<compile_context>
chip_gen: v6e
topology: v6e:2x2x1
jax: 0.10.0
libtpu: 0.0.40
codegen_flags: <defaults>
</compile_context>

<pallas_src>
import math

import jax
import jax.numpy as jnp
from jax.experimental import pallas as pl
from jax.experimental.pallas import tpu as pltpu

# ----------------------------- model dims -----------------------------------
B, S, H = 2, 8, 32          # batch, seq, hidden
NUM_HEADS = 4
HEAD_DIM = H // NUM_HEADS
INTER = 4 * H               # intermediate (FFN) size
NUM_LAYERS = 6
VOCAB = 50
VOCAB_PAD = 64              # word-emb table zero-padded to an aligned vocab
MAX_POS = 16
TYPE_VOCAB = 2
LN_EPS = 1e-12
BS = B * S
BH = NUM_HEADS * B                       # head-major batch for attention
QKV_PER_HEAD = 2 * HEAD_DIM + H          # [q(8) | k(8) | v@Wo(32)] = 48
QKV_W = NUM_HEADS * QKV_PER_HEAD         # 192
NVEC_BASE = 2                            # rows 0/1 of nvec = embedding LN g/b
NVEC_PER_LAYER = 5                       # ln1_g, ln1_b, b2, ln2_g, ln2_b


# ----------------------------- kernel helpers --------------------------------
def _layernorm(x, gamma, beta):
    # x: [BS, H], gamma/beta: [1, H]  (all f32)
    mean = jnp.mean(x, axis=-1, keepdims=True)
    var = jnp.mean(jnp.square(x - mean), axis=-1, keepdims=True)
    inv = jax.lax.rsqrt(var + LN_EPS)
    return (x - mean) * inv * gamma + beta


def _gelu(x):
    # TODO(synk): tanh-approx GELU; HF BERT's exact erf-based GELU differs by <1e-3.
    c = math.sqrt(2.0 / math.pi)
    return 0.5 * x * (1.0 + jnp.tanh(c * (x + 0.044715 * x * x * x)))


# ----------------------------- fused Pallas kernel ---------------------------
def front_bert_kernel(ids_ref, mask_ref, wemb_ref, ptemb_ref,
                      wqkv_ref, w1_ref, w2_ref,
                      bqkv_ref, b1_ref, nvec_ref, o_ref):
    f32 = jnp.float32
    bf16 = jnp.bfloat16

    # ---- embeddings: one-hot gather on the MXU (bf16) + pos/type add + LN ----
    ids = ids_ref[...]                                               # [BS, 1] int32
    iota = jax.lax.broadcasted_iota(jnp.int32, (BS, VOCAB_PAD), 1)
    onehot = (iota == ids).astype(bf16)                              # [BS, VOCAB_PAD]
    x = jnp.dot(onehot, wemb_ref[...], preferred_element_type=f32)   # [BS, H] f32
    x = x + ptemb_ref[...]                                           # + position + type-0
    x = _layernorm(x, nvec_ref[0:1, :], nvec_ref[1:2, :])

    # ---- additive attention mask: broadcast ONCE (hoisted out of the loop) ---
    mask3 = jax.lax.broadcast_in_dim(mask_ref[...], (BH, S, S), (0, 2))

    # ---- 6 encoder layers, stacked weights VMEM-resident, statically unrolled
    for li in range(NUM_LAYERS):
        base = NVEC_BASE + NVEC_PER_LAYER * li

        # --- fused Q / K / (V @ Wo) projection, head-major columns ------------
        qkv = jnp.dot(x.astype(bf16), wqkv_ref[li], preferred_element_type=f32)
        qkv = qkv + bqkv_ref[li:li + 1, :]                           # [BS, 192]
        qkv3 = qkv.reshape(B, S, QKV_W)
        # 4 lane slices + one outermost-axis stack -> head-major batch [BH,S,48]
        qkvh = jnp.stack(
            [qkv3[:, :, h * QKV_PER_HEAD:(h + 1) * QKV_PER_HEAD]
             for h in range(NUM_HEADS)],
            axis=0).reshape(BH, S, QKV_PER_HEAD)
        q = qkvh[:, :, 0:HEAD_DIM]                                   # [BH, S, 8]
        k = qkvh[:, :, HEAD_DIM:2 * HEAD_DIM]                        # [BH, S, 8]
        vt = qkvh[:, :, 2 * HEAD_DIM:]                               # [BH, S, 32] (already @ Wo)

        # --- one batched score einsum + one softmax + one context einsum ------
        s = jnp.einsum("bqd,bkd->bqk", q, k,
                       preferred_element_type=f32) + mask3           # [BH, S, S]
        m = jnp.max(s, axis=-1, keepdims=True)
        p = jnp.exp(s - m)
        p = p * pl.reciprocal(jnp.sum(p, axis=-1, keepdims=True), approx=True)
        ctx = jnp.einsum("bqk,bkd->bqd", p, vt,
                         preferred_element_type=f32)                 # [BH, S, H]
        # output projection is pre-folded into vt -> just sum over heads
        attn = jnp.sum(ctx.reshape(NUM_HEADS, B, S, H), axis=0).reshape(BS, H)
        x = _layernorm(attn + x,
                       nvec_ref[base + 0:base + 1, :], nvec_ref[base + 1:base + 2, :])

        # --- feed-forward ------------------------------------------------------
        h1 = jnp.dot(x.astype(bf16), w1_ref[li], preferred_element_type=f32)
        h1 = _gelu(h1 + b1_ref[li:li + 1, :])                        # [BS, INTER] f32
        y = jnp.dot(h1.astype(bf16), w2_ref[li], preferred_element_type=f32)
        y = y + nvec_ref[base + 2:base + 3, :]
        x = _layernorm(y + x,
                       nvec_ref[base + 3:base + 4, :], nvec_ref[base + 4:base + 5, :])

    o_ref[...] = x                                                   # [BS, H] f32


# ----------------------------- parameters ------------------------------------
def init_params(key):
    def nrm(k, shape):
        return 0.02 * jax.random.normal(k, shape, jnp.float32)

    keys = jax.random.split(key, 3 + NUM_LAYERS)
    params = {
        "word_emb": nrm(keys[0], (VOCAB, H)),
        "pos_emb": nrm(keys[1], (MAX_POS, H)),
        "type_emb": nrm(keys[2], (TYPE_VOCAB, H)),
        "emb_ln_g": jnp.ones((1, H), jnp.float32),
        "emb_ln_b": jnp.zeros((1, H), jnp.float32),
        "layers": [],
    }
    for li in range(NUM_LAYERS):
        lk = jax.random.split(keys[3 + li], 6)
        layer = {
            "wq": nrm(lk[0], (H, H)), "bq": jnp.zeros((1, H), jnp.float32),
            "wk": nrm(lk[1], (H, H)), "bk": jnp.zeros((1, H), jnp.float32),
            "wv": nrm(lk[2], (H, H)), "bv": jnp.zeros((1, H), jnp.float32),
            "wo": nrm(lk[3], (H, H)), "bo": jnp.zeros((1, H), jnp.float32),
            "attn_ln_g": jnp.ones((1, H), jnp.float32),
            "attn_ln_b": jnp.zeros((1, H), jnp.float32),
            "w1": nrm(lk[4], (H, INTER)), "b1": jnp.zeros((1, INTER), jnp.float32),
            "w2": nrm(lk[5], (INTER, H)), "b2": jnp.zeros((1, H), jnp.float32),
            "out_ln_g": jnp.ones((1, H), jnp.float32),
            "out_ln_b": jnp.zeros((1, H), jnp.float32),
        }
        params["layers"].append(layer)
    return params


def pack_params(params):
    """One-time layout transform for the fused kernel:
       * stack per-layer weights into [L, ...] arrays (bf16 for matmul operands),
       * fold 1/sqrt(head_dim) into Q, fold Wo/bo into the value projection,
       * pack the QKV~ projection head-major: per head [q(8) | k(8) | v@Wo(32)],
       * consolidate all narrow vectors into one [32, 32] array,
       * zero-pad the word-embedding table and pre-tile position + type-0 rows."""
    scale = 1.0 / math.sqrt(HEAD_DIM)
    layers = params["layers"]

    pos_type = params["pos_emb"][jnp.arange(S)] + params["type_emb"][0][None, :]  # [S, H]

    wqkv_l, bqkv_l, w1_l, b1_l = [], [], [], []
    narrow = [params["emb_ln_g"][0], params["emb_ln_b"][0]]                       # [H] rows
    for l in layers:
        wq = (l["wq"] * scale).reshape(H, NUM_HEADS, HEAD_DIM)
        wk = l["wk"].reshape(H, NUM_HEADS, HEAD_DIM)
        wv = l["wv"].reshape(H, NUM_HEADS, HEAD_DIM)
        wo = l["wo"].reshape(NUM_HEADS, HEAD_DIM, H)
        wvo = jnp.einsum("xnd,nde->nxe", wv, wo)                                  # [NH, H, H]
        bq = (l["bq"][0] * scale).reshape(NUM_HEADS, HEAD_DIM)
        bk = l["bk"][0].reshape(NUM_HEADS, HEAD_DIM)
        bvo = jnp.einsum("nd,nde->ne", l["bv"][0].reshape(NUM_HEADS, HEAD_DIM), wo)
        bvo = bvo + l["bo"][0][None, :] / NUM_HEADS     # fold output bias (softmax rows sum to 1)

        w_blocks = [jnp.concatenate([wq[:, n], wk[:, n], wvo[n]], axis=1)         # [H, 48]
                    for n in range(NUM_HEADS)]
        b_blocks = [jnp.concatenate([bq[n], bk[n], bvo[n]], axis=0)               # [48]
                    for n in range(NUM_HEADS)]
        wqkv_l.append(jnp.concatenate(w_blocks, axis=1))                          # [H, 192]
        bqkv_l.append(jnp.concatenate(b_blocks, axis=0))                          # [192]
        w1_l.append(l["w1"])
        b1_l.append(l["b1"][0])
        narrow += [l["attn_ln_g"][0], l["attn_ln_b"][0],
                   l["b2"][0], l["out_ln_g"][0], l["out_ln_b"][0]]

    return {
        "word_emb": jnp.pad(params["word_emb"],
                            ((0, VOCAB_PAD - VOCAB), (0, 0))).astype(jnp.bfloat16),
        "pos_type": jnp.tile(pos_type, (B, 1)).astype(jnp.float32),               # [BS, H]
        "wqkv": jnp.stack(wqkv_l).astype(jnp.bfloat16),                           # [L, H, 192]
        "bqkv": jnp.stack(bqkv_l).astype(jnp.float32),                            # [L, 192]
        "w1": jnp.stack(w1_l).astype(jnp.bfloat16),                               # [L, H, 128]
        "b1": jnp.stack(b1_l).astype(jnp.float32),                                # [L, 128]
        "w2": jnp.stack([l["w2"] for l in layers]).astype(jnp.bfloat16),          # [L, 128, H]
        "nvec": jnp.stack(narrow).astype(jnp.float32),                            # [32, 32]
    }


# ----------------------------- forward ----------------------------------------
@jax.jit
def front_bert_forward(packed, input_ids, attention_mask):
    ids2 = input_ids.reshape(BS, 1).astype(jnp.int32)
    add_mask = (1.0 - attention_mask.astype(jnp.float32)) * -10000.0      # [B, S]
    mask_hb = jnp.tile(add_mask, (NUM_HEADS, 1))                          # [NH*B, S] head-major

    vmem = pltpu.MemorySpace.VMEM
    out = pl.pallas_call(
        front_bert_kernel,
        out_shape=jax.ShapeDtypeStruct((BS, H), jnp.float32),
        in_specs=[pl.BlockSpec(memory_space=vmem)] * 10,
        out_specs=pl.BlockSpec(memory_space=vmem),
    )(ids2, mask_hb, packed["word_emb"], packed["pos_type"],
      packed["wqkv"], packed["w1"], packed["w2"],
      packed["bqkv"], packed["b1"], packed["nvec"])
    return out.reshape(B, S, H)


# ----------------------------- plain-JAX reference -----------------------------
def front_bert_reference(params, input_ids, attention_mask):
    def ln(x, g, b):
        mu = jnp.mean(x, -1, keepdims=True)
        var = jnp.mean(jnp.square(x - mu), -1, keepdims=True)
        return (x - mu) * jax.lax.rsqrt(var + LN_EPS) * g + b

    emb = (params["word_emb"][input_ids]
           + params["pos_emb"][jnp.arange(S)][None, :, :]
           + params["type_emb"][0][None, None, :])
    x = ln(emb, params["emb_ln_g"], params["emb_ln_b"])
    add_mask = (1.0 - attention_mask) * -10000.0

    def heads(t):
        return t.reshape(B, S, NUM_HEADS, HEAD_DIM).transpose(0, 2, 1, 3)

    for l in params["layers"]:
        q = heads(x @ l["wq"] + l["bq"])
        k = heads(x @ l["wk"] + l["bk"])
        v = heads(x @ l["wv"] + l["bv"])
        s = jnp.einsum("bhqd,bhkd->bhqk", q, k) / math.sqrt(HEAD_DIM)
        s = s + add_mask[:, None, None, :]
        p = jax.nn.softmax(s, axis=-1)
        ctx = jnp.einsum("bhqk,bhkd->bhqd", p, v).transpose(0, 2, 1, 3).reshape(B, S, H)
        x = ln(ctx @ l["wo"] + l["bo"] + x, l["attn_ln_g"], l["attn_ln_b"])
        hmid = _gelu(x @ l["w1"] + l["b1"])
        x = ln(hmid @ l["w2"] + l["b2"] + x, l["out_ln_g"], l["out_ln_b"])
    return x


# ----------------------------- main -------------------------------------------
if __name__ == "__main__":
    key = jax.random.PRNGKey(0)
    kp, kid = jax.random.split(key)
    params = init_params(kp)
    packed = pack_params(params)

    input_ids = jax.random.randint(kid, (B, S), 0, VOCAB, dtype=jnp.int32)
    attention_mask = jnp.ones((B, S), jnp.float32)
    attention_mask = attention_mask.at[1, S - 2:].set(0.0)   # pad tail of 2nd seq

    out = front_bert_forward(packed, input_ids, attention_mask)
    out = jax.block_until_ready(out)
    assert out.shape == (B, S, H) and out.dtype == jnp.float32

    with jax.default_matmul_precision("highest"):
        ref = front_bert_reference(params, input_ids, attention_mask)
    err = float(jnp.max(jnp.abs(out - ref)))
    assert err < 5e-2, f"mismatch vs reference: max abs err {err}"

    print("KERNEL_OK")
</pallas_src>

<mosaic_0001>
module attributes {stable_mosaic.version = 11 : i64} {
  func.func @front_bert_kernel(%arg0: memref<16x1xi32, #tpu.memory_space<vmem>>, %arg1: memref<8x8xf32, #tpu.memory_space<vmem>>, %arg2: memref<64x32xbf16, #tpu.memory_space<vmem>>, %arg3: memref<16x32xf32, #tpu.memory_space<vmem>>, %arg4: memref<6x32x192xbf16, #tpu.memory_space<vmem>>, %arg5: memref<6x32x128xbf16, #tpu.memory_space<vmem>>, %arg6: memref<6x128x32xbf16, #tpu.memory_space<vmem>>, %arg7: memref<6x192xf32, #tpu.memory_space<vmem>>, %arg8: memref<6x128xf32, #tpu.memory_space<vmem>>, %arg9: memref<32x32xf32, #tpu.memory_space<vmem>>, %arg10: memref<16x32xf32, #tpu.memory_space<vmem>>) attributes {dimension_semantics = [], scalar_prefetch = 0 : i64, scratch_operands = 0 : i64, tpu.core_type = #tpu.core_type<tc>} {
    %c0 = arith.constant 0 : index
    %c0_0 = arith.constant 0 : index
    %0 = vector.load %arg0[%c0, %c0_0] : memref<16x1xi32, #tpu.memory_space<vmem>>, vector<16x1xi32>
    %1 = tpu.iota {dimensions = array<i32: 1>} : vector<16x64xi32>
    %2 = vector.broadcast %0 : vector<16x1xi32> to vector<16x64xi32>
    %3 = arith.cmpi eq, %1, %2 : vector<16x64xi32>
    %4 = arith.extui %3 : vector<16x64xi1> to vector<16x64xi32>
    %5 = arith.sitofp %4 : vector<16x64xi32> to vector<16x64xf32>
    %6 = arith.truncf %5 : vector<16x64xf32> to vector<16x64xbf16>
    %c0_1 = arith.constant 0 : index
    %c0_2 = arith.constant 0 : index
    %7 = vector.load %arg2[%c0_1, %c0_2] : memref<64x32xbf16, #tpu.memory_space<vmem>>, vector<64x32xbf16>
    %cst = arith.constant dense<0.000000e+00> : vector<16x32xf32>
    %8 = tpu.matmul %6, %7, %cst {dimension_numbers = #tpu.dot_dimension_numbers<[1], [0], [0], [1], [0, 0, 1, 1], [], []>} : vector<16x64xbf16>, vector<64x32xbf16>, vector<16x32xf32> -> vector<16x32xf32>
    %c0_3 = arith.constant 0 : index
    %c0_4 = arith.constant 0 : index
    %9 = vector.load %arg3[%c0_3, %c0_4] : memref<16x32xf32, #tpu.memory_space<vmem>>, vector<16x32xf32>
    %10 = arith.addf %8, %9 : vector<16x32xf32>
    %c0_5 = arith.constant 0 : index
    %c0_6 = arith.constant 0 : index
    %11 = vector.load %arg9[%c0_5, %c0_6] : memref<32x32xf32, #tpu.memory_space<vmem>>, vector<1x32xf32>
    %c1 = arith.constant 1 : index
    %c0_7 = arith.constant 0 : index
    %12 = vector.load %arg9[%c1, %c0_7] : memref<32x32xf32, #tpu.memory_space<vmem>>, vector<1x32xf32>
    %cst_8 = arith.constant dense<0.000000e+00> : vector<16xf32>
    %13 = vector.multi_reduction <add>, %10, %cst_8 [1] : vector<16x32xf32> to vector<16xf32>
    %14 = vector.shape_cast %13 : vector<16xf32> to vector<16x1xf32>
    %cst_9 = arith.constant 3.200000e+01 : f32
    %15 = vector.broadcast %cst_9 : f32 to vector<16x1xf32>
    %16 = arith.divf %14, %15 : vector<16x1xf32>
    %17 = vector.broadcast %16 : vector<16x1xf32> to vector<16x32xf32>
    %18 = arith.subf %10, %17 : vector<16x32xf32>
    %19 = arith.mulf %18, %18 : vector<16x32xf32>
    %cst_10 = arith.constant dense<0.000000e+00> : vector<16xf32>
    %20 = vector.multi_reduction <add>, %19, %cst_10 [1] : vector<16x32xf32> to vector<16xf32>
    %21 = vector.shape_cast %20 : vector<16xf32> to vector<16x1xf32>
    %cst_11 = arith.constant 3.200000e+01 : f32
    %22 = vector.broadcast %cst_11 : f32 to vector<16x1xf32>
    %23 = arith.divf %21, %22 : vector<16x1xf32>
    %cst_12 = arith.constant 9.99999996E-13 : f32
    %24 = vector.broadcast %cst_12 : f32 to vector<16x1xf32>
    %25 = arith.addf %23, %24 : vector<16x1xf32>
    %26 = math.rsqrt %25 : vector<16x1xf32>
    %27 = vector.broadcast %16 : vector<16x1xf32> to vector<16x32xf32>
    %28 = arith.subf %10, %27 : vector<16x32xf32>
    %29 = vector.broadcast %26 : vector<16x1xf32> to vector<16x32xf32>
    %30 = arith.mulf %28, %29 : vector<16x32xf32>
    %31 = vector.broadcast %11 : vector<1x32xf32> to vector<16x32xf32>
    %32 = arith.mulf %30, %31 : vector<16x32xf32>
    %33 = vector.broadcast %12 : vector<1x32xf32> to vector<16x32xf32>
    %34 = arith.addf %32, %33 : vector<16x32xf32>
    %c0_13 = arith.constant 0 : index
    %c0_14 = arith.constant 0 : index
    %35 = vector.load %arg1[%c0_13, %c0_14] : memref<8x8xf32, #tpu.memory_space<vmem>>, vector<8x8xf32>
    %36 = vector.shape_cast %35 : vector<8x8xf32> to vector<8x1x8xf32>
    %37 = vector.broadcast %36 : vector<8x1x8xf32> to vector<8x8x8xf32>
    %38 = arith.truncf %34 : vector<16x32xf32> to vector<16x32xbf16>
    %c0_15 = arith.constant 0 : index
    %c0_16 = arith.constant 0 : index
    %c0_17 = arith.constant 0 : index
    %39 = vector.load %arg4[%c0_15, %c0_16, %c0_17] : memref<6x32x192xbf16, #tpu.memory_space<vmem>>, vector<1x32x192xbf16>
    %40 = vector.shape_cast %39 : vector<1x32x192xbf16> to vector<32x192xbf16>
    %cst_18 = arith.constant dense<0.000000e+00> : vector<16x192xf32>
    %41 = tpu.matmul %38, %40, %cst_18 {dimension_numbers = #tpu.dot_dimension_numbers<[1], [0], [0], [1], [0, 0, 1, 1], [], []>} : vector<16x32xbf16>, vector<32x192xbf16>, vector<16x192xf32> -> vector<16x192xf32>
    %c0_19 = arith.constant 0 : index
    %c0_20 = arith.constant 0 : index
    %42 = vector.load %arg7[%c0_19, %c0_20] : memref<6x192xf32, #tpu.memory_space<vmem>>, vector<1x192xf32>
    %43 = vector.broadcast %42 : vector<1x192xf32> to vector<16x192xf32>
    %44 = arith.addf %41, %43 : vector<16x192xf32>
    %45 = vector.shape_cast %44 : vector<16x192xf32> to vector<2x8x192xf32>
    %46 = vector.extract_strided_slice %45 {offsets = [0, 0, 0], sizes = [2, 8, 48], strides = [1, 1, 1]} : vector<2x8x192xf32> to vector<2x8x48xf32>
    %47 = vector.extract_strided_slice %45 {offsets = [0, 0, 48], sizes = [2, 8, 48], strides = [1, 1, 1]} : vector<2x8x192xf32> to vector<2x8x48xf32>
    %48 = vector.extract_strided_slice %45 {offsets = [0, 0, 96], sizes = [2, 8, 48], strides = [1, 1, 1]} : vector<2x8x192xf32> to vector<2x8x48xf32>
    %49 = vector.extract_strided_slice %45 {offsets = [0, 0, 144], sizes = [2, 8, 48], strides = [1, 1, 1]} : vector<2x8x192xf32> to vector<2x8x48xf32>
    %50 = vector.shape_cast %46 : vector<2x8x48xf32> to vector<1x2x8x48xf32>
    %51 = vector.shape_cast %47 : vector<2x8x48xf32> to vector<1x2x8x48xf32>
    %52 = vector.shape_cast %48 : vector<2x8x48xf32> to vector<1x2x8x48xf32>
    %53 = vector.shape_cast %49 : vector<2x8x48xf32> to vector<1x2x8x48xf32>
    %54 = tpu.concatenate %50, %51, %52, %53 in 0 : vector<1x2x8x48xf32>, vector<1x2x8x48xf32>, vector<1x2x8x48xf32>, vector<1x2x8x48xf32> -> vector<4x2x8x48xf32>
    %55 = vector.shape_cast %54 : vector<4x2x8x48xf32> to vector<8x8x48xf32>
    %56 = vector.extract_strided_slice %55 {offsets = [0, 0, 0], sizes = [8, 8, 8], strides = [1, 1, 1]} : vector<8x8x48xf32> to vector<8x8x8xf32>
    %57 = vector.extract_strided_slice %55 {offsets = [0, 0, 8], sizes = [8, 8, 8], strides = [1, 1, 1]} : vector<8x8x48xf32> to vector<8x8x8xf32>
    %58 = vector.extract_strided_slice %55 {offsets = [0, 0, 16], sizes = [8, 8, 32], strides = [1, 1, 1]} : vector<8x8x48xf32> to vector<8x8x32xf32>
    "tpu.trace_start"() <{level = 10 : i32, message = "bqd,bkd->bqk"}> : () -> ()
    %cst_21 = arith.constant dense<0.000000e+00> : vector<8x8x8xf32>
    %59 = tpu.matmul %56, %57, %cst_21 {dimension_numbers = #tpu.dot_dimension_numbers<[2], [2], [1], [1], [0, 0, 0, 1, 1, 1], [0], [0]>} : vector<8x8x8xf32>, vector<8x8x8xf32>, vector<8x8x8xf32> -> vector<8x8x8xf32>
    "tpu.trace_stop"() : () -> ()
    %60 = arith.addf %59, %37 : vector<8x8x8xf32>
    %cst_22 = arith.constant dense<0xFF800000> : vector<8x8xf32>
    %61 = vector.multi_reduction <maximumf>, %60, %cst_22 [2] : vector<8x8x8xf32> to vector<8x8xf32>
    %62 = vector.shape_cast %61 : vector<8x8xf32> to vector<8x8x1xf32>
    %63 = vector.broadcast %62 : vector<8x8x1xf32> to vector<8x8x8xf32>
    %64 = arith.subf %60, %63 : vector<8x8x8xf32>
    %65 = math.exp %64 : vector<8x8x8xf32>
    %cst_23 = arith.constant dense<0.000000e+00> : vector<8x8xf32>
    %66 = vector.multi_reduction <add>, %65, %cst_23 [2] : vector<8x8x8xf32> to vector<8x8xf32>
    %67 = vector.shape_cast %66 : vector<8x8xf32> to vector<8x8x1xf32>
    %68 = tpu.reciprocal %67 {approx = true} : vector<8x8x1xf32> -> vector<8x8x1xf32>
    %69 = vector.broadcast %68 : vector<8x8x1xf32> to vector<8x8x8xf32>
    %70 = arith.mulf %65, %69 : vector<8x8x8xf32>
    "tpu.trace_start"() <{level = 10 : i32, message = "bqk,bkd->bqd"}> : () -> ()
    %cst_24 = arith.constant dense<0.000000e+00> : vector<8x8x32xf32>
    %71 = tpu.matmul %70, %58, %cst_24 {dimension_numbers = #tpu.dot_dimension_numbers<[2], [1], [1], [2], [0, 0, 0, 1, 1, 2], [0], [0]>} : vector<8x8x8xf32>, vector<8x8x32xf32>, vector<8x8x32xf32> -> vector<8x8x32xf32>
    "tpu.trace_stop"() : () -> ()
    %72 = vector.shape_cast %71 : vector<8x8x32xf32> to vector<4x2x8x32xf32>
    %cst_25 = arith.constant dense<0.000000e+00> : vector<2x8x32xf32>
    %73 = vector.multi_reduction <add>, %72, %cst_25 [0] : vector<4x2x8x32xf32> to vector<2x8x32xf32>
    %74 = vector.shape_cast %73 : vector<2x8x32xf32> to vector<16x32xf32>
    %75 = arith.addf %74, %34 : vector<16x32xf32>
    %c2 = arith.constant 2 : index
    %c0_26 = arith.constant 0 : index
    %76 = vector.load %arg9[%c2, %c0_26] : memref<32x32xf32, #tpu.memory_space<vmem>>, vector<1x32xf32>
    %c3 = arith.constant 3 : index
    %c0_27 = arith.constant 0 : index
    %77 = vector.load %arg9[%c3, %c0_27] : memref<32x32xf32, #tpu.memory_space<vmem>>, vector<1x32xf32>
    %cst_28 = arith.constant dense<0.000000e+00> : vector<16xf32>
    %78 = vector.multi_reduction <add>, %75, %cst_28 [1] : vector<16x32xf32> to vector<16xf32>
    %79 = vector.shape_cast %78 : vector<16xf32> to vector<16x1xf32>
    %cst_29 = arith.constant 3.200000e+01 : f32
    %80 = vector.broadcast %cst_29 : f32 to vector<16x1xf32>
    %81 = arith.divf %79, %80 : vector<16x1xf32>
    %82 = vector.broadcast %81 : vector<16x1xf32> to vector<16x32xf32>
    %83 = arith.subf %75, %82 : vector<16x32xf32>
    %84 = arith.mulf %83, %83 : vector<16x32xf32>
    %cst_30 = arith.constant dense<0.000000e+00> : vector<16xf32>
    %85 = vector.multi_reduction <add>, %84, %cst_30 [1] : vector<16x32xf32> to vector<16xf32>
    %86 = vector.shape_cast %85 : vector<16xf32> to vector<16x1xf32>
    %cst_31 = arith.constant 3.200000e+01 : f32
    %87 = vector.broadcast %cst_31 : f32 to vector<16x1xf32>
    %88 = arith.divf %86, %87 : vector<16x1xf32>
    %cst_32 = arith.constant 9.99999996E-13 : f32
    %89 = vector.broadcast %cst_32 : f32 to vector<16x1xf32>
    %90 = arith.addf %88, %89 : vector<16x1xf32>
    %91 = math.rsqrt %90 : vector<16x1xf32>
    %92 = vector.broadcast %81 : vector<16x1xf32> to vector<16x32xf32>
    %93 = arith.subf %75, %92 : vector<16x32xf32>
    %94 = vector.broadcast %91 : vector<16x1xf32> to vector<16x32xf32>
    %95 = arith.mulf %93, %94 : vector<16x32xf32>
    %96 = vector.broadcast %76 : vector<1x32xf32> to vector<16x32xf32>
    %97 = arith.mulf %95, %96 : vector<16x32xf32>
    %98 = vector.broadcast %77 : vector<1x32xf32> to vector<16x32xf32>
    %99 = arith.addf %97, %98 : vector<16x32xf32>
    %100 = arith.truncf %99 : vector<16x32xf32> to vector<16x32xbf16>
    %c0_33 = arith.constant 0 : index
    %c0_34 = arith.constant 0 : index
    %c0_35 = arith.constant 0 : index
    %101 = vector.load %arg5[%c0_33, %c0_34, %c0_35] : memref<6x32x128xbf16, #tpu.memory_space<vmem>>, vector<1x32x128xbf16>
    %102 = vector.shape_cast %101 : vector<1x32x128xbf16> to vector<32x128xbf16>
    %cst_36 = arith.constant dense<0.000000e+00> : vector<16x128xf32>
    %103 = tpu.matmul %100, %102, %cst_36 {dimension_numbers = #tpu.dot_dimension_numbers<[1], [0], [0], [1], [0, 0, 1, 1], [], []>} : vector<16x32xbf16>, vector<32x128xbf16>, vector<16x128xf32> -> vector<16x128xf32>
    %c0_37 = arith.constant 0 : index
    %c0_38 = arith.constant 0 : index
    %104 = vector.load %arg8[%c0_37, %c0_38] : memref<6x128xf32, #tpu.memory_space<vmem>>, vector<1x128xf32>
    %105 = vector.broadcast %104 : vector<1x128xf32> to vector<16x128xf32>
    %106 = arith.addf %103, %105 : vector<16x128xf32>
    %cst_39 = arith.constant 5.000000e-01 : f32
    %107 = vector.broadcast %cst_39 : f32 to vector<16x128xf32>
    %108 = arith.mulf %107, %106 : vector<16x128xf32>
    %cst_40 = arith.constant 4.471500e-02 : f32
    %109 = vector.broadcast %cst_40 : f32 to vector<16x128xf32>
    %110 = arith.mulf %109, %106 : vector<16x128xf32>
    %111 = arith.mulf %110, %106 : vector<16x128xf32>
    %112 = arith.mulf %111, %106 : vector<16x128xf32>
    %113 = arith.addf %106, %112 : vector<16x128xf32>
    %cst_41 = arith.constant 0.797884583 : f32
    %114 = vector.broadcast %cst_41 : f32 to vector<16x128xf32>
    %115 = arith.mulf %114, %113 : vector<16x128xf32>
    %116 = math.tanh %115 : vector<16x128xf32>
    %cst_42 = arith.constant 1.000000e+00 : f32
    %117 = vector.broadcast %cst_42 : f32 to vector<16x128xf32>
    %118 = arith.addf %117, %116 : vector<16x128xf32>
    %119 = arith.mulf %108, %118 : vector<16x128xf32>
    %120 = arith.truncf %119 : vector<16x128xf32> to vector<16x128xbf16>
    %c0_43 = arith.constant 0 : index
    %c0_44 = arith.constant 0 : index
    %c0_45 = arith.constant 0 : index
    %121 = vector.load %arg6[%c0_43, %c0_44, %c0_45] : memref<6x128x32xbf16, #tpu.memory_space<vmem>>, vector<1x128x32xbf16>
    %122 = vector.shape_cast %121 : vector<1x128x32xbf16> to vector<128x32xbf16>
    %cst_46 = arith.constant dense<0.000000e+00> : vector<16x32xf32>
    %123 = tpu.matmul %120, %122, %cst_46 {dimension_numbers = #tpu.dot_dimension_numbers<[1], [0], [0], [1], [0, 0, 1, 1], [], []>} : vector<16x128xbf16>, vector<128x32xbf16>, vector<16x32xf32> -> vector<16x32xf32>
    %c4 = arith.constant 4 : index
    %c0_47 = arith.constant 0 : index
    %124 = vector.load %arg9[%c4, %c0_47] : memref<32x32xf32, #tpu.memory_space<vmem>>, vector<1x32xf32>
    %125 = vector.broadcast %124 : vector<1x32xf32> to vector<16x32xf32>
    %126 = arith.addf %123, %125 : vector<16x32xf32>
    %127 = arith.addf %126, %99 : vector<16x32xf32>
    %c5 = arith.constant 5 : index
    %c0_48 = arith.constant 0 : index
    %128 = vector.load %arg9[%c5, %c0_48] : memref<32x32xf32, #tpu.memory_space<vmem>>, vector<1x32xf32>
    %c6 = arith.constant 6 : index
    %c0_49 = arith.constant 0 : index
    %129 = vector.load %arg9[%c6, %c0_49] : memref<32x32xf32, #tpu.memory_space<vmem>>, vector<1x32xf32>
    %cst_50 = arith.constant dense<0.000000e+00> : vector<16xf32>
    %130 = vector.multi_reduction <add>, %127, %cst_50 [1] : vector<16x32xf32> to vector<16xf32>
    %131 = vector.shape_cast %130 : vector<16xf32> to vector<16x1xf32>
    %cst_51 = arith.constant 3.200000e+01 : f32
    %132 = vector.broadcast %cst_51 : f32 to vector<16x1xf32>
    %133 = arith.divf %131, %132 : vector<16x1xf32>
    %134 = vector.broadcast %133 : vector<16x1xf32> to vector<16x32xf32>
    %135 = arith.subf %127, %134 : vector<16x32xf32>
    %136 = arith.mulf %135, %135 : vector<16x32xf32>
    %cst_52 = arith.constant dense<0.000000e+00> : vector<16xf32>
    %137 = vector.multi_reduction <add>, %136, %cst_52 [1] : vector<16x32xf32> to vector<16xf32>
    %138 = vector.shape_cast %137 : vector<16xf32> to vector<16x1xf32>
    %cst_53 = arith.constant 3.200000e+01 : f32
    %139 = vector.broadcast %cst_53 : f32 to vector<16x1xf32>
    %140 = arith.divf %138, %139 : vector<16x1xf32>
    %cst_54 = arith.constant 9.99999996E-13 : f32
    %141 = vector.broadcast %cst_54 : f32 to vector<16x1xf32>
    %142 = arith.addf %140, %141 : vector<16x1xf32>
    %143 = math.rsqrt %142 : vector<16x1xf32>
    %144 = vector.broadcast %133 : vector<16x1xf32> to vector<16x32xf32>
    %145 = arith.subf %127, %144 : vector<16x32xf32>
    %146 = vector.broadcast %143 : vector<16x1xf32> to vector<16x32xf32>
    %147 = arith.mulf %145, %146 : vector<16x32xf32>
    %148 = vector.broadcast %128 : vector<1x32xf32> to vector<16x32xf32>
    %149 = arith.mulf %147, %148 : vector<16x32xf32>
    %150 = vector.broadcast %129 : vector<1x32xf32> to vector<16x32xf32>
    %151 = arith.addf %149, %150 : vector<16x32xf32>
    %152 = arith.truncf %151 : vector<16x32xf32> to vector<16x32xbf16>
    %c1_55 = arith.constant 1 : index
    %c0_56 = arith.constant 0 : index
    %c0_57 = arith.constant 0 : index
    %153 = vector.load %arg4[%c1_55, %c0_56, %c0_57] : memref<6x32x192xbf16, #tpu.memory_space<vmem>>, vector<1x32x192xbf16>
    %154 = vector.shape_cast %153 : vector<1x32x192xbf16> to vector<32x192xbf16>
    %cst_58 = arith.constant dense<0.000000e+00> : vector<16x192xf32>
    %155 = tpu.matmul %152, %154, %cst_58 {dimension_numbers = #tpu.dot_dimension_numbers<[1], [0], [0], [1], [0, 0, 1, 1], [], []>} : vector<16x32xbf16>, vector<32x192xbf16>, vector<16x192xf32> -> vector<16x192xf32>
    %c1_59 = arith.constant 1 : index
    %c0_60 = arith.constant 0 : index
    %156 = vector.load %arg7[%c1_59, %c0_60] : memref<6x192xf32, #tpu.memory_space<vmem>>, vector<1x192xf32>
    %157 = vector.broadcast %156 : vector<1x192xf32> to vector<16x192xf32>
    %158 = arith.addf %155, %157 : vector<16x192xf32>
    %159 = vector.shape_cast %158 : vector<16x192xf32> to vector<2x8x192xf32>
    %160 = vector.extract_strided_slice %159 {offsets = [0, 0, 0], sizes = [2, 8, 48], strides = [1, 1, 1]} : vector<2x8x192xf32> to vector<2x8x48xf32>
    %161 = vector.extract_strided_slice %159 {offsets = [0, 0, 48], sizes = [2, 8, 48], strides = [1, 1, 1]} : vector<2x8x192xf32> to vector<2x8x48xf32>
    %162 = vector.extract_strided_slice %159 {offsets = [0, 0, 96], sizes = [2, 8, 48], strides = [1, 1, 1]} : vector<2x8x192xf32> to vector<2x8x48xf32>
    %163 = vector.extract_strided_slice %159 {offsets = [0, 0, 144], sizes = [2, 8, 48], strides = [1, 1, 1]} : vector<2x8x192xf32> to vector<2x8x48xf32>
    %164 = vector.shape_cast %160 : vector<2x8x48xf32> to vector<1x2x8x48xf32>
    %165 = vector.shape_cast %161 : vector<2x8x48xf32> to vector<1x2x8x48xf32>
    %166 = vector.shape_cast %162 : vector<2x8x48xf32> to vector<1x2x8x48xf32>
    %167 = vector.shape_cast %163 : vector<2x8x48xf32> to vector<1x2x8x48xf32>
    %168 = tpu.concatenate %164, %165, %166, %167 in 0 : vector<1x2x8x48xf32>, vector<1x2x8x48xf32>, vector<1x2x8x48xf32>, vector<1x2x8x48xf32> -> vector<4x2x8x48xf32>
    %169 = vector.shape_cast %168 : vector<4x2x8x48xf32> to vector<8x8x48xf32>
    %170 = vector.extract_strided_slice %169 {offsets = [0, 0, 0], sizes = [8, 8, 8], strides = [1, 1, 1]} : vector<8x8x48xf32> to vector<8x8x8xf32>
    %171 = vector.extract_strided_slice %169 {offsets = [0, 0, 8], sizes = [8, 8, 8], strides = [1, 1, 1]} : vector<8x8x48xf32> to vector<8x8x8xf32>
    %172 = vector.extract_strided_slice %169 {offsets = [0, 0, 16], sizes = [8, 8, 32], strides = [1, 1, 1]} : vector<8x8x48xf32> to vector<8x8x32xf32>
    "tpu.trace_start"() <{level = 10 : i32, message = "bqd,bkd->bqk"}> : () -> ()
    %cst_61 = arith.constant dense<0.000000e+00> : vector<8x8x8xf32>
    %173 = tpu.matmul %170, %171, %cst_61 {dimension_numbers = #tpu.dot_dimension_numbers<[2], [2], [1], [1], [0, 0, 0, 1, 1, 1], [0], [0]>} : vector<8x8x8xf32>, vector<8x8x8xf32>, vector<8x8x8xf32> -> vector<8x8x8xf32>
    "tpu.trace_stop"() : () -> ()
    %174 = arith.addf %173, %37 : vector<8x8x8xf32>
    %cst_62 = arith.constant dense<0xFF800000> : vector<8x8xf32>
    %175 = vector.multi_reduction <maximumf>, %174, %cst_62 [2] : vector<8x8x8xf32> to vector<8x8xf32>
    %176 = vector.shape_cast %175 : vector<8x8xf32> to vector<8x8x1xf32>
    %177 = vector.broadcast %176 : vector<8x8x1xf32> to vector<8x8x8xf32>
    %178 = arith.subf %174, %177 : vector<8x8x8xf32>
    %179 = math.exp %178 : vector<8x8x8xf32>
    %cst_63 = arith.constant dense<0.000000e+00> : vector<8x8xf32>
    %180 = vector.multi_reduction <add>, %179, %cst_63 [2] : vector<8x8x8xf32> to vector<8x8xf32>
    %181 = vector.shape_cast %180 : vector<8x8xf32> to vector<8x8x1xf32>
    %182 = tpu.reciprocal %181 {approx = true} : vector<8x8x1xf32> -> vector<8x8x1xf32>
    %183 = vector.broadcast %182 : vector<8x8x1xf32> to vector<8x8x8xf32>
    %184 = arith.mulf %179, %183 : vector<8x8x8xf32>
    "tpu.trace_start"() <{level = 10 : i32, message = "bqk,bkd->bqd"}> : () -> ()
    %cst_64 = arith.constant dense<0.000000e+00> : vector<8x8x32xf32>
    %185 = tpu.matmul %184, %172, %cst_64 {dimension_numbers = #tpu.dot_dimension_numbers<[2], [1], [1], [2], [0, 0, 0, 1, 1, 2], [0], [0]>} : vector<8x8x8xf32>, vector<8x8x32xf32>, vector<8x8x32xf32> -> vector<8x8x32xf32>
    "tpu.trace_stop"() : () -> ()
    %186 = vector.shape_cast %185 : vector<8x8x32xf32> to vector<4x2x8x32xf32>
    %cst_65 = arith.constant dense<0.000000e+00> : vector<2x8x32xf32>
    %187 = vector.multi_reduction <add>, %186, %cst_65 [0] : vector<4x2x8x32xf32> to vector<2x8x32xf32>
    %188 = vector.shape_cast %187 : vector<2x8x32xf32> to vector<16x32xf32>
    %189 = arith.addf %188, %151 : vector<16x32xf32>
    %c7 = arith.constant 7 : index
    %c0_66 = arith.constant 0 : index
    %190 = vector.load %arg9[%c7, %c0_66] : memref<32x32xf32, #tpu.memory_space<vmem>>, vector<1x32xf32>
    %c8 = arith.constant 8 : index
    %c0_67 = arith.constant 0 : index
    %191 = vector.load %arg9[%c8, %c0_67] : memref<32x32xf32, #tpu.memory_space<vmem>>, vector<1x32xf32>
    %cst_68 = arith.constant dense<0.000000e+00> : vector<16xf32>
    %192 = vector.multi_reduction <add>, %189, %cst_68 [1] : vector<16x32xf32> to vector<16xf32>
    %193 = vector.shape_cast %192 : vector<16xf32> to vector<16x1xf32>
    %cst_69 = arith.constant 3.200000e+01 : f32
    %194 = vector.broadcast %cst_69 : f32 to vector<16x1xf32>
    %195 = arith.divf %193, %194 : vector<16x1xf32>
    %196 = vector.broadcast %195 : vector<16x1xf32> to vector<16x32xf32>
    %197 = arith.subf %189, %196 : vector<16x32xf32>
    %198 = arith.mulf %197, %197 : vector<16x32xf32>
    %cst_70 = arith.constant dense<0.000000e+00> : vector<16xf32>
    %199 = vector.multi_reduction <add>, %198, %cst_70 [1] : vector<16x32xf32> to vector<16xf32>
    %200 = vector.shape_cast %199 : vector<16xf32> to vector<16x1xf32>
    %cst_71 = arith.constant 3.200000e+01 : f32
    %201 = vector.broadcast %cst_71 : f32 to vector<16x1xf32>
    %202 = arith.divf %200, %201 : vector<16x1xf32>
    %cst_72 = arith.constant 9.99999996E-13 : f32
    %203 = vector.broadcast %cst_72 : f32 to vector<16x1xf32>
    %204 = arith.addf %202, %203 : vector<16x1xf32>
    %205 = math.rsqrt %204 : vector<16x1xf32>
    %206 = vector.broadcast %195 : vector<16x1xf32> to vector<16x32xf32>
    %207 = arith.subf %189, %206 : vector<16x32xf32>
    %208 = vector.broadcast %205 : vector<16x1xf32> to vector<16x32xf32>
    %209 = arith.mulf %207, %208 : vector<16x32xf32>
    %210 = vector.broadcast %190 : vector<1x32xf32> to vector<16x32xf32>
    %211 = arith.mulf %209, %210 : vector<16x32xf32>
    %212 = vector.broadcast %191 : vector<1x32xf32> to vector<16x32xf32>
    %213 = arith.addf %211, %212 : vector<16x32xf32>
    %214 = arith.truncf %213 : vector<16x32xf32> to vector<16x32xbf16>
    %c1_73 = arith.constant 1 : index
    %c0_74 = arith.constant 0 : index
    %c0_75 = arith.constant 0 : index
    %215 = vector.load %arg5[%c1_73, %c0_74, %c0_75] : memref<6x32x128xbf16, #tpu.memory_space<vmem>>, vector<1x32x128xbf16>
    %216 = vector.shape_cast %215 : vector<1x32x128xbf16> to vector<32x128xbf16>
    %cst_76 = arith.constant dense<0.000000e+00> : vector<16x128xf32>
    %217 = tpu.matmul %214, %216, %cst_76 {dimension_numbers = #tpu.dot_dimension_numbers<[1], [0], [0], [1], [0, 0, 1, 1], [], []>} : vector<16x32xbf16>, vector<32x128xbf16>, vector<16x128xf32> -> vector<16x128xf32>
    %c1_77 = arith.constant 1 : index
    %c0_78 = arith.constant 0 : index
    %218 = vector.load %arg8[%c1_77, %c0_78] : memref<6x128xf32, #tpu.memory_space<vmem>>, vector<1x128xf32>
    %219 = vector.broadcast %218 : vector<1x128xf32> to vector<16x128xf32>
    %220 = arith.addf %217, %219 : vector<16x128xf32>
    %cst_79 = arith.constant 5.000000e-01 : f32
    %221 = vector.broadcast %cst_79 : f32 to vector<16x128xf32>
    %222 = arith.mulf %221, %220 : vector<16x128xf32>
    %cst_80 = arith.constant 4.471500e-02 : f32
    %223 = vector.broadcast %cst_80 : f32 to vector<16x128xf32>
    %224 = arith.mulf %223, %220 : vector<16x128xf32>
    %225 = arith.mulf %224, %220 : vector<16x128xf32>
    %226 = arith.mulf %225, %220 : vector<16x128xf32>
    %227 = arith.addf %220, %226 : vector<16x128xf32>
    %cst_81 = arith.constant 0.797884583 : f32
    %228 = vector.broadcast %cst_81 : f32 to vector<16x128xf32>
    %229 = arith.mulf %228, %227 : vector<16x128xf32>
    %230 = math.tanh %229 : vector<16x128xf32>
    %cst_82 = arith.constant 1.000000e+00 : f32
    %231 = vector.broadcast %cst_82 : f32 to vector<16x128xf32>
    %232 = arith.addf %231, %230 : vector<16x128xf32>
    %233 = arith.mulf %222, %232 : vector<16x128xf32>
    %234 = arith.truncf %233 : vector<16x128xf32> to vector<16x128xbf16>
    %c1_83 = arith.constant 1 : index
    %c0_84 = arith.constant 0 : index
    %c0_85 = arith.constant 0 : index
    %235 = vector.load %arg6[%c1_83, %c0_84, %c0_85] : memref<6x128x32xbf16, #tpu.memory_space<vmem>>, vector<1x128x32xbf16>
    %236 = vector.shape_cast %235 : vector<1x128x32xbf16> to vector<128x32xbf16>
    %cst_86 = arith.constant dense<0.000000e+00> : vector<16x32xf32>
    %237 = tpu.matmul %234, %236, %cst_86 {dimension_numbers = #tpu.dot_dimension_numbers<[1], [0], [0], [1], [0, 0, 1, 1], [], []>} : vector<16x128xbf16>, vector<128x32xbf16>, vector<16x32xf32> -> vector<16x32xf32>
    %c9 = arith.constant 9 : index
    %c0_87 = arith.constant 0 : index
    %238 = vector.load %arg9[%c9, %c0_87] : memref<32x32xf32, #tpu.memory_space<vmem>>, vector<1x32xf32>
    %239 = vector.broadcast %238 : vector<1x32xf32> to vector<16x32xf32>
    %240 = arith.addf %237, %239 : vector<16x32xf32>
    %241 = arith.addf %240, %213 : vector<16x32xf32>
    %c10 = arith.constant 10 : index
    %c0_88 = arith.constant 0 : index
    %242 = vector.load %arg9[%c10, %c0_88] : memref<32x32xf32, #tpu.memory_space<vmem>>, vector<1x32xf32>
    %c11 = arith.constant 11 : index
    %c0_89 = arith.constant 0 : index
    %243 = vector.load %arg9[%c11, %c0_89] : memref<32x32xf32, #tpu.memory_space<vmem>>, vector<1x32xf32>
    %cst_90 = arith.constant dense<0.000000e+00> : vector<16xf32>
    %244 = vector.multi_reduction <add>, %241, %cst_90 [1] : vector<16x32xf32> to vector<16xf32>
    %245 = vector.shape_cast %244 : vector<16xf32> to vector<16x1xf32>
    %cst_91 = arith.constant 3.200000e+01 : f32
    %246 = vector.broadcast %cst_91 : f32 to vector<16x1xf32>
    %247 = arith.divf %245, %246 : vector<16x1xf32>
    %248 = vector.broadcast %247 : vector<16x1xf32> to vector<16x32xf32>
    %249 = arith.subf %241, %248 : vector<16x32xf32>
    %250 = arith.mulf %249, %249 : vector<16x32xf32>
    %cst_92 = arith.constant dense<0.000000e+00> : vector<16xf32>
    %251 = vector.multi_reduction <add>, %250, %cst_92 [1] : vector<16x32xf32> to vector<16xf32>
    %252 = vector.shape_cast %251 : vector<16xf32> to vector<16x1xf32>
    %cst_93 = arith.constant 3.200000e+01 : f32
    %253 = vector.broadcast %cst_93 : f32 to vector<16x1xf32>
    %254 = arith.divf %252, %253 : vector<16x1xf32>
    %cst_94 = arith.constant 9.99999996E-13 : f32
    %255 = vector.broadcast %cst_94 : f32 to vector<16x1xf32>
    %256 = arith.addf %254, %255 : vector<16x1xf32>
    %257 = math.rsqrt %256 : vector<16x1xf32>
    %258 = vector.broadcast %247 : vector<16x1xf32> to vector<16x32xf32>
    %259 = arith.subf %241, %258 : vector<16x32xf32>
    %260 = vector.broadcast %257 : vector<16x1xf32> to vector<16x32xf32>
    %261 = arith.mulf %259, %260 : vector<16x32xf32>
    %262 = vector.broadcast %242 : vector<1x32xf32> to vector<16x32xf32>
    %263 = arith.mulf %261, %262 : vector<16x32xf32>
    %264 = vector.broadcast %243 : vector<1x32xf32> to vector<16x32xf32>
    %265 = arith.addf %263, %264 : vector<16x32xf32>
    %266 = arith.truncf %265 : vector<16x32xf32> to vector<16x32xbf16>
    %c2_95 = arith.constant 2 : index
    %c0_96 = arith.constant 0 : index
    %c0_97 = arith.constant 0 : index
    %267 = vector.load %arg4[%c2_95, %c0_96, %c0_97] : memref<6x32x192xbf16, #tpu.memory_space<vmem>>, vector<1x32x192xbf16>
    %268 = vector.shape_cast %267 : vector<1x32x192xbf16> to vector<32x192xbf16>
    %cst_98 = arith.constant dense<0.000000e+00> : vector<16x192xf32>
    %269 = tpu.matmul %266, %268, %cst_98 {dimension_numbers = #tpu.dot_dimension_numbers<[1], [0], [0], [1], [0, 0, 1, 1], [], []>} : vector<16x32xbf16>, vector<32x192xbf16>, vector<16x192xf32> -> vector<16x192xf32>
    %c2_99 = arith.constant 2 : index
    %c0_100 = arith.constant 0 : index
    %270 = vector.load %arg7[%c2_99, %c0_100] : memref<6x192xf32, #tpu.memory_space<vmem>>, vector<1x192xf32>
    %271 = vector.broadcast %270 : vector<1x192xf32> to vector<16x192xf32>
    %272 = arith.addf %269, %271 : vector<16x192xf32>
    %273 = vector.shape_cast %272 : vector<16x192xf32> to vector<2x8x192xf32>
    %274 = vector.extract_strided_slice %273 {offsets = [0, 0, 0], sizes = [2, 8, 48], strides = [1, 1, 1]} : vector<2x8x192xf32> to vector<2x8x48xf32>
    %275 = vector.extract_strided_slice %273 {offsets = [0, 0, 48], sizes = [2, 8, 48], strides = [1, 1, 1]} : vector<2x8x192xf32> to vector<2x8x48xf32>
    %276 = vector.extract_strided_slice %273 {offsets = [0, 0, 96], sizes = [2, 8, 48], strides = [1, 1, 1]} : vector<2x8x192xf32> to vector<2x8x48xf32>
    %277 = vector.extract_strided_slice %273 {offsets = [0, 0, 144], sizes = [2, 8, 48], strides = [1, 1, 1]} : vector<2x8x192xf32> to vector<2x8x48xf32>
    %278 = vector.shape_cast %274 : vector<2x8x48xf32> to vector<1x2x8x48xf32>
    %279 = vector.shape_cast %275 : vector<2x8x48xf32> to vector<1x2x8x48xf32>
    %280 = vector.shape_cast %276 : vector<2x8x48xf32> to vector<1x2x8x48xf32>
    %281 = vector.shape_cast %277 : vector<2x8x48xf32> to vector<1x2x8x48xf32>
    %282 = tpu.concatenate %278, %279, %280, %281 in 0 : vector<1x2x8x48xf32>, vector<1x2x8x48xf32>, vector<1x2x8x48xf32>, vector<1x2x8x48xf32> -> vector<4x2x8x48xf32>
    %283 = vector.shape_cast %282 : vector<4x2x8x48xf32> to vector<8x8x48xf32>
    %284 = vector.extract_strided_slice %283 {offsets = [0, 0, 0], sizes = [8, 8, 8], strides = [1, 1, 1]} : vector<8x8x48xf32> to vector<8x8x8xf32>
    %285 = vector.extract_strided_slice %283 {offsets = [0, 0, 8], sizes = [8, 8, 8], strides = [1, 1, 1]} : vector<8x8x48xf32> to vector<8x8x8xf32>
    %286 = vector.extract_strided_slice %283 {offsets = [0, 0, 16], sizes = [8, 8, 32], strides = [1, 1, 1]} : vector<8x8x48xf32> to vector<8x8x32xf32>
    "tpu.trace_start"() <{level = 10 : i32, message = "bqd,bkd->bqk"}> : () -> ()
    %cst_101 = arith.constant dense<0.000000e+00> : vector<8x8x8xf32>
    %287 = tpu.matmul %284, %285, %cst_101 {dimension_numbers = #tpu.dot_dimension_numbers<[2], [2], [1], [1], [0, 0, 0, 1, 1, 1], [0], [0]>} : vector<8x8x8xf32>, vector<8x8x8xf32>, vector<8x8x8xf32> -> vector<8x8x8xf32>
    "tpu.trace_stop"() : () -> ()
    %288 = arith.addf %287, %37 : vector<8x8x8xf32>
    %cst_102 = arith.constant dense<0xFF800000> : vector<8x8xf32>
    %289 = vector.multi_reduction <maximumf>, %288, %cst_102 [2] : vector<8x8x8xf32> to vector<8x8xf32>
    %290 = vector.shape_cast %289 : vector<8x8xf32> to vector<8x8x1xf32>
    %291 = vector.broadcast %290 : vector<8x8x1xf32> to vector<8x8x8xf32>
    %292 = arith.subf %288, %291 : vector<8x8x8xf32>
    %293 = math.exp %292 : vector<8x8x8xf32>
    %cst_103 = arith.constant dense<0.000000e+00> : vector<8x8xf32>
    %294 = vector.multi_reduction <add>, %293, %cst_103 [2] : vector<8x8x8xf32> to vector<8x8xf32>
    %295 = vector.shape_cast %294 : vector<8x8xf32> to vector<8x8x1xf32>
    %296 = tpu.reciprocal %295 {approx = true} : vector<8x8x1xf32> -> vector<8x8x1xf32>
    %297 = vector.broadcast %296 : vector<8x8x1xf32> to vector<8x8x8xf32>
    %298 = arith.mulf %293, %297 : vector<8x8x8xf32>
    "tpu.trace_start"() <{level = 10 : i32, message = "bqk,bkd->bqd"}> : () -> ()
    %cst_104 = arith.constant dense<0.000000e+00> : vector<8x8x32xf32>
    %299 = tpu.matmul %298, %286, %cst_104 {dimension_numbers = #tpu.dot_dimension_numbers<[2], [1], [1], [2], [0, 0, 0, 1, 1, 2], [0], [0]>} : vector<8x8x8xf32>, vector<8x8x32xf32>, vector<8x8x32xf32> -> vector<8x8x32xf32>
    "tpu.trace_stop"() : () -> ()
    %300 = vector.shape_cast %299 : vector<8x8x32xf32> to vector<4x2x8x32xf32>
    %cst_105 = arith.constant dense<0.000000e+00> : vector<2x8x32xf32>
    %301 = vector.multi_reduction <add>, %300, %cst_105 [0] : vector<4x2x8x32xf32> to vector<2x8x32xf32>
    %302 = vector.shape_cast %301 : vector<2x8x32xf32> to vector<16x32xf32>
    %303 = arith.addf %302, %265 : vector<16x32xf32>
    %c12 = arith.constant 12 : index
    %c0_106 = arith.constant 0 : index
    %304 = vector.load %arg9[%c12, %c0_106] : memref<32x32xf32, #tpu.memory_space<vmem>>, vector<1x32xf32>
    %c13 = arith.constant 13 : index
    %c0_107 = arith.constant 0 : index
    %305 = vector.load %arg9[%c13, %c0_107] : memref<32x32xf32, #tpu.memory_space<vmem>>, vector<1x32xf32>
    %cst_108 = arith.constant dense<0.000000e+00> : vector<16xf32>
    %306 = vector.multi_reduction <add>, %303, %cst_108 [1] : vector<16x32xf32> to vector<16xf32>
    %307 = vector.shape_cast %306 : vector<16xf32> to vector<16x1xf32>
    %cst_109 = arith.constant 3.200000e+01 : f32
    %308 = vector.broadcast %cst_109 : f32 to vector<16x1xf32>
    %309 = arith.divf %307, %308 : vector<16x1xf32>
    %310 = vector.broadcast %309 : vector<16x1xf32> to vector<16x32xf32>
    %311 = arith.subf %303, %310 : vector<16x32xf32>
    %312 = arith.mulf %311, %311 : vector<16x32xf32>
    %cst_110 = arith.constant dense<0.000000e+00> : vector<16xf32>
    %313 = vector.multi_reduction <add>, %312, %cst_110 [1] : vector<16x32xf32> to vector<16xf32>
    %314 = vector.shape_cast %313 : vector<16xf32> to vector<16x1xf32>
    %cst_111 = arith.constant 3.200000e+01 : f32
    %315 = vector.broadcast %cst_111 : f32 to vector<16x1xf32>
    %316 = arith.divf %314, %315 : vector<16x1xf32>
    %cst_112 = arith.constant 9.99999996E-13 : f32
    %317 = vector.broadcast %cst_112 : f32 to vector<16x1xf32>
    %318 = arith.addf %316, %317 : vector<16x1xf32>
    %319 = math.rsqrt %318 : vector<16x1xf32>
    %320 = vector.broadcast %309 : vector<16x1xf32> to vector<16x32xf32>
    %321 = arith.subf %303, %320 : vector<16x32xf32>
    %322 = vector.broadcast %319 : vector<16x1xf32> to vector<16x32xf32>
    %323 = arith.mulf %321, %322 : vector<16x32xf32>
    %324 = vector.broadcast %304 : vector<1x32xf32> to vector<16x32xf32>
    %325 = arith.mulf %323, %324 : vector<16x32xf32>
    %326 = vector.broadcast %305 : vector<1x32xf32> to vector<16x32xf32>
    %327 = arith.addf %325, %326 : vector<16x32xf32>
    %328 = arith.truncf %327 : vector<16x32xf32> to vector<16x32xbf16>
    %c2_113 = arith.constant 2 : index
    %c0_114 = arith.constant 0 : index
    %c0_115 = arith.constant 0 : index
    %329 = vector.load %arg5[%c2_113, %c0_114, %c0_115] : memref<6x32x128xbf16, #tpu.memory_space<vmem>>, vector<1x32x128xbf16>
    %330 = vector.shape_cast %329 : vector<1x32x128xbf16> to vector<32x128xbf16>
    %cst_116 = arith.constant dense<0.000000e+00> : vector<16x128xf32>
    %331 = tpu.matmul %328, %330, %cst_116 {dimension_numbers = #tpu.dot_dimension_numbers<[1], [0], [0], [1], [0, 0, 1, 1], [], []>} : vector<16x32xbf16>, vector<32x128xbf16>, vector<16x128xf32> -> vector<16x128xf32>
    %c2_117 = arith.constant 2 : index
    %c0_118 = arith.constant 0 : index
    %332 = vector.load %arg8[%c2_117, %c0_118] : memref<6x128xf32, #tpu.memory_space<vmem>>, vector<1x128xf32>
    %333 = vector.broadcast %332 : vector<1x128xf32> to vector<16x128xf32>
    %334 = arith.addf %331, %333 : vector<16x128xf32>
    %cst_119 = arith.constant 5.000000e-01 : f32
    %335 = vector.broadcast %cst_119 : f32 to vector<16x128xf32>
    %336 = arith.mulf %335, %334 : vector<16x128xf32>
    %cst_120 = arith.constant 4.471500e-02 : f32
    %337 = vector.broadcast %cst_120 : f32 to vector<16x128xf32>
    %338 = arith.mulf %337, %334 : vector<16x128xf32>
    %339 = arith.mulf %338, %334 : vector<16x128xf32>
    %340 = arith.mulf %339, %334 : vector<16x128xf32>
    %341 = arith.addf %334, %340 : vector<16x128xf32>
    %cst_121 = arith.constant 0.797884583 : f32
    %342 = vector.broadcast %cst_121 : f32 to vector<16x128xf32>
    %343 = arith.mulf %342, %341 : vector<16x128xf32>
    %344 = math.tanh %343 : vector<16x128xf32>
    %cst_122 = arith.constant 1.000000e+00 : f32
    %345 = vector.broadcast %cst_122 : f32 to vector<16x128xf32>
    %346 = arith.addf %345, %344 : vector<16x128xf32>
    %347 = arith.mulf %336, %346 : vector<16x128xf32>
    %348 = arith.truncf %347 : vector<16x128xf32> to vector<16x128xbf16>
    %c2_123 = arith.constant 2 : index
    %c0_124 = arith.constant 0 : index
    %c0_125 = arith.constant 0 : index
    %349 = vector.load %arg6[%c2_123, %c0_124, %c0_125] : memref<6x128x32xbf16, #tpu.memory_space<vmem>>, vector<1x128x32xbf16>
    %350 = vector.shape_cast %349 : vector<1x128x32xbf16> to vector<128x32xbf16>
    %cst_126 = arith.constant dense<0.000000e+00> : vector<16x32xf32>
    %351 = tpu.matmul %348, %350, %cst_126 {dimension_numbers = #tpu.dot_dimension_numbers<[1], [0], [0], [1], [0, 0, 1, 1], [], []>} : vector<16x128xbf16>, vector<128x32xbf16>, vector<16x32xf32> -> vector<16x32xf32>
    %c14 = arith.constant 14 : index
    %c0_127 = arith.constant 0 : index
    %352 = vector.load %arg9[%c14, %c0_127] : memref<32x32xf32, #tpu.memory_space<vmem>>, vector<1x32xf32>
    %353 = vector.broadcast %352 : vector<1x32xf32> to vector<16x32xf32>
    %354 = arith.addf %351, %353 : vector<16x32xf32>
    %355 = arith.addf %354, %327 : vector<16x32xf32>
    %c15 = arith.constant 15 : index
    %c0_128 = arith.constant 0 : index
    %356 = vector.load %arg9[%c15, %c0_128] : memref<32x32xf32, #tpu.memory_space<vmem>>, vector<1x32xf32>
    %c16 = arith.constant 16 : index
    %c0_129 = arith.constant 0 : index
    %357 = vector.load %arg9[%c16, %c0_129] : memref<32x32xf32, #tpu.memory_space<vmem>>, vector<1x32xf32>
    %cst_130 = arith.constant dense<0.000000e+00> : vector<16xf32>
    %358 = vector.multi_reduction <add>, %355, %cst_130 [1] : vector<16x32xf32> to vector<16xf32>
    %359 = vector.shape_cast %358 : vector<16xf32> to vector<16x1xf32>
    %cst_131 = arith.constant 3.200000e+01 : f32
    %360 = vector.broadcast %cst_131 : f32 to vector<16x1xf32>
    %361 = arith.divf %359, %360 : vector<16x1xf32>
    %362 = vector.broadcast %361 : vector<16x1xf32> to vector<16x32xf32>
    %363 = arith.subf %355, %362 : vector<16x32xf32>
    %364 = arith.mulf %363, %363 : vector<16x32xf32>
    %cst_132 = arith.constant dense<0.000000e+00> : vector<16xf32>
    %365 = vector.multi_reduction <add>, %364, %cst_132 [1] : vector<16x32xf32> to vector<16xf32>
    %366 = vector.shape_cast %365 : vector<16xf32> to vector<16x1xf32>
    %cst_133 = arith.constant 3.200000e+01 : f32
    %367 = vector.broadcast %cst_133 : f32 to vector<16x1xf32>
    %368 = arith.divf %366, %367 : vector<16x1xf32>
    %cst_134 = arith.constant 9.99999996E-13 : f32
    %369 = vector.broadcast %cst_134 : f32 to vector<16x1xf32>
    %370 = arith.addf %368, %369 : vector<16x1xf32>
    %371 = math.rsqrt %370 : vector<16x1xf32>
    %372 = vector.broadcast %361 : vector<16x1xf32> to vector<16x32xf32>
    %373 = arith.subf %355, %372 : vector<16x32xf32>
    %374 = vector.broadcast %371 : vector<16x1xf32> to vector<16x32xf32>
    %375 = arith.mulf %373, %374 : vector<16x32xf32>
    %376 = vector.broadcast %356 : vector<1x32xf32> to vector<16x32xf32>
    %377 = arith.mulf %375, %376 : vector<16x32xf32>
    %378 = vector.broadcast %357 : vector<1x32xf32> to vector<16x32xf32>
    %379 = arith.addf %377, %378 : vector<16x32xf32>
    %380 = arith.truncf %379 : vector<16x32xf32> to vector<16x32xbf16>
    %c3_135 = arith.constant 3 : index
    %c0_136 = arith.constant 0 : index
    %c0_137 = arith.constant 0 : index
    %381 = vector.load %arg4[%c3_135, %c0_136, %c0_137] : memref<6x32x192xbf16, #tpu.memory_space<vmem>>, vector<1x32x192xbf16>
    %382 = vector.shape_cast %381 : vector<1x32x192xbf16> to vector<32x192xbf16>
    %cst_138 = arith.constant dense<0.000000e+00> : vector<16x192xf32>
    %383 = tpu.matmul %380, %382, %cst_138 {dimension_numbers = #tpu.dot_dimension_numbers<[1], [0], [0], [1], [0, 0, 1, 1], [], []>} : vector<16x32xbf16>, vector<32x192xbf16>, vector<16x192xf32> -> vector<16x192xf32>
    %c3_139 = arith.constant 3 : index
    %c0_140 = arith.constant 0 : index
    %384 = vector.load %arg7[%c3_139, %c0_140] : memref<6x192xf32, #tpu.memory_space<vmem>>, vector<1x192xf32>
    %385 = vector.broadcast %384 : vector<1x192xf32> to vector<16x192xf32>
    %386 = arith.addf %383, %385 : vector<16x192xf32>
    %387 = vector.shape_cast %386 : vector<16x192xf32> to vector<2x8x192xf32>
    %388 = vector.extract_strided_slice %387 {offsets = [0, 0, 0], sizes = [2, 8, 48], strides = [1, 1, 1]} : vector<2x8x192xf32> to vector<2x8x48xf32>
    %389 = vector.extract_strided_slice %387 {offsets = [0, 0, 48], sizes = [2, 8, 48], strides = [1, 1, 1]} : vector<2x8x192xf32> to vector<2x8x48xf32>
    %390 = vector.extract_strided_slice %387 {offsets = [0, 0, 96], sizes = [2, 8, 48], strides = [1, 1, 1]} : vector<2x8x192xf32> to vector<2x8x48xf32>
    %391 = vector.extract_strided_slice %387 {offsets = [0, 0, 144], sizes = [2, 8, 48], strides = [1, 1, 1]} : vector<2x8x192xf32> to vector<2x8x48xf32>
    %392 = vector.shape_cast %388 : vector<2x8x48xf32> to vector<1x2x8x48xf32>
    %393 = vector.shape_cast %389 : vector<2x8x48xf32> to vector<1x2x8x48xf32>
    %394 = vector.shape_cast %390 : vector<2x8x48xf32> to vector<1x2x8x48xf32>
    %395 = vector.shape_cast %391 : vector<2x8x48xf32> to vector<1x2x8x48xf32>
    %396 = tpu.concatenate %392, %393, %394, %395 in 0 : vector<1x2x8x48xf32>, vector<1x2x8x48xf32>, vector<1x2x8x48xf32>, vector<1x2x8x48xf32> -> vector<4x2x8x48xf32>
    %397 = vector.shape_cast %396 : vector<4x2x8x48xf32> to vector<8x8x48xf32>
    %398 = vector.extract_strided_slice %397 {offsets = [0, 0, 0], sizes = [8, 8, 8], strides = [1, 1, 1]} : vector<8x8x48xf32> to vector<8x8x8xf32>
    %399 = vector.extract_strided_slice %397 {offsets = [0, 0, 8], sizes = [8, 8, 8], strides = [1, 1, 1]} : vector<8x8x48xf32> to vector<8x8x8xf32>
    %400 = vector.extract_strided_slice %397 {offsets = [0, 0, 16], sizes = [8, 8, 32], strides = [1, 1, 1]} : vector<8x8x48xf32> to vector<8x8x32xf32>
    "tpu.trace_start"() <{level = 10 : i32, message = "bqd,bkd->bqk"}> : () -> ()
    %cst_141 = arith.constant dense<0.000000e+00> : vector<8x8x8xf32>
    %401 = tpu.matmul %398, %399, %cst_141 {dimension_numbers = #tpu.dot_dimension_numbers<[2], [2], [1], [1], [0, 0, 0, 1, 1, 1], [0], [0]>} : vector<8x8x8xf32>, vector<8x8x8xf32>, vector<8x8x8xf32> -> vector<8x8x8xf32>
    "tpu.trace_stop"() : () -> ()
    %402 = arith.addf %401, %37 : vector<8x8x8xf32>
    %cst_142 = arith.constant dense<0xFF800000> : vector<8x8xf32>
    %403 = vector.multi_reduction <maximumf>, %402, %cst_142 [2] : vector<8x8x8xf32> to vector<8x8xf32>
    %404 = vector.shape_cast %403 : vector<8x8xf32> to vector<8x8x1xf32>
    %405 = vector.broadcast %404 : vector<8x8x1xf32> to vector<8x8x8xf32>
    %406 = arith.subf %402, %405 : vector<8x8x8xf32>
    %407 = math.exp %406 : vector<8x8x8xf32>
    %cst_143 = arith.constant dense<0.000000e+00> : vector<8x8xf32>
    %408 = vector.multi_reduction <add>, %407, %cst_143 [2] : vector<8x8x8xf32> to vector<8x8xf32>
    %409 = vector.shape_cast %408 : vector<8x8xf32> to vector<8x8x1xf32>
    %410 = tpu.reciprocal %409 {approx = true} : vector<8x8x1xf32> -> vector<8x8x1xf32>
    %411 = vector.broadcast %410 : vector<8x8x1xf32> to vector<8x8x8xf32>
    %412 = arith.mulf %407, %411 : vector<8x8x8xf32>
    "tpu.trace_start"() <{level = 10 : i32, message = "bqk,bkd->bqd"}> : () -> ()
    %cst_144 = arith.constant dense<0.000000e+00> : vector<8x8x32xf32>
    %413 = tpu.matmul %412, %400, %cst_144 {dimension_numbers = #tpu.dot_dimension_numbers<[2], [1], [1], [2], [0, 0, 0, 1, 1, 2], [0], [0]>} : vector<8x8x8xf32>, vector<8x8x32xf32>, vector<8x8x32xf32> -> vector<8x8x32xf32>
    "tpu.trace_stop"() : () -> ()
    %414 = vector.shape_cast %413 : vector<8x8x32xf32> to vector<4x2x8x32xf32>
    %cst_145 = arith.constant dense<0.000000e+00> : vector<2x8x32xf32>
    %415 = vector.multi_reduction <add>, %414, %cst_145 [0] : vector<4x2x8x32xf32> to vector<2x8x32xf32>
    %416 = vector.shape_cast %415 : vector<2x8x32xf32> to vector<16x32xf32>
    %417 = arith.addf %416, %379 : vector<16x32xf32>
    %c17 = arith.constant 17 : index
    %c0_146 = arith.constant 0 : index
    %418 = vector.load %arg9[%c17, %c0_146] : memref<32x32xf32, #tpu.memory_space<vmem>>, vector<1x32xf32>
    %c18 = arith.constant 18 : index
    %c0_147 = arith.constant 0 : index
    %419 = vector.load %arg9[%c18, %c0_147] : memref<32x32xf32, #tpu.memory_space<vmem>>, vector<1x32xf32>
    %cst_148 = arith.constant dense<0.000000e+00> : vector<16xf32>
    %420 = vector.multi_reduction <add>, %417, %cst_148 [1] : vector<16x32xf32> to vector<16xf32>
    %421 = vector.shape_cast %420 : vector<16xf32> to vector<16x1xf32>
    %cst_149 = arith.constant 3.200000e+01 : f32
    %422 = vector.broadcast %cst_149 : f32 to vector<16x1xf32>
    %423 = arith.divf %421, %422 : vector<16x1xf32>
    %424 = vector.broadcast %423 : vector<16x1xf32> to vector<16x32xf32>
    %425 = arith.subf %417, %424 : vector<16x32xf32>
    %426 = arith.mulf %425, %425 : vector<16x32xf32>
    %cst_150 = arith.constant dense<0.000000e+00> : vector<16xf32>
    %427 = vector.multi_reduction <add>, %426, %cst_150 [1] : vector<16x32xf32> to vector<16xf32>
    %428 = vector.shape_cast %427 : vector<16xf32> to vector<16x1xf32>
    %cst_151 = arith.constant 3.200000e+01 : f32
    %429 = vector.broadcast %cst_151 : f32 to vector<16x1xf32>
    %430 = arith.divf %428, %429 : vector<16x1xf32>
    %cst_152 = arith.constant 9.99999996E-13 : f32
    %431 = vector.broadcast %cst_152 : f32 to vector<16x1xf32>
    %432 = arith.addf %430, %431 : vector<16x1xf32>
    %433 = math.rsqrt %432 : vector<16x1xf32>
    %434 = vector.broadcast %423 : vector<16x1xf32> to vector<16x32xf32>
    %435 = arith.subf %417, %434 : vector<16x32xf32>
    %436 = vector.broadcast %433 : vector<16x1xf32> to vector<16x32xf32>
    %437 = arith.mulf %435, %436 : vector<16x32xf32>
    %438 = vector.broadcast %418 : vector<1x32xf32> to vector<16x32xf32>
    %439 = arith.mulf %437, %438 : vector<16x32xf32>
    %440 = vector.broadcast %419 : vector<1x32xf32> to vector<16x32xf32>
    %441 = arith.addf %439, %440 : vector<16x32xf32>
    %442 = arith.truncf %441 : vector<16x32xf32> to vector<16x32xbf16>
    %c3_153 = arith.constant 3 : index
    %c0_154 = arith.constant 0 : index
    %c0_155 = arith.constant 0 : index
    %443 = vector.load %arg5[%c3_153, %c0_154, %c0_155] : memref<6x32x128xbf16, #tpu.memory_space<vmem>>, vector<1x32x128xbf16>
    %444 = vector.shape_cast %443 : vector<1x32x128xbf16> to vector<32x128xbf16>
    %cst_156 = arith.constant dense<0.000000e+00> : vector<16x128xf32>
    %445 = tpu.matmul %442, %444, %cst_156 {dimension_numbers = #tpu.dot_dimension_numbers<[1], [0], [0], [1], [0, 0, 1, 1], [], []>} : vector<16x32xbf16>, vector<32x128xbf16>, vector<16x128xf32> -> vector<16x128xf32>
    %c3_157 = arith.constant 3 : index
    %c0_158 = arith.constant 0 : index
    %446 = vector.load %arg8[%c3_157, %c0_158] : memref<6x128xf32, #tpu.memory_space<vmem>>, vector<1x128xf32>
    %447 = vector.broadcast %446 : vector<1x128xf32> to vector<16x128xf32>
    %448 = arith.addf %445, %447 : vector<16x128xf32>
    %cst_159 = arith.constant 5.000000e-01 : f32
    %449 = vector.broadcast %cst_159 : f32 to vector<16x128xf32>
    %450 = arith.mulf %449, %448 : vector<16x128xf32>
    %cst_160 = arith.constant 4.471500e-02 : f32
    %451 = vector.broadcast %cst_160 : f32 to vector<16x128xf32>
    %452 = arith.mulf %451, %448 : vector<16x128xf32>
    %453 = arith.mulf %452, %448 : vector<16x128xf32>
    %454 = arith.mulf %453, %448 : vector<16x128xf32>
    %455 = arith.addf %448, %454 : vector<16x128xf32>
    %cst_161 = arith.constant 0.797884583 : f32
    %456 = vector.broadcast %cst_161 : f32 to vector<16x128xf32>
    %457 = arith.mulf %456, %455 : vector<16x128xf32>
    %458 = math.tanh %457 : vector<16x128xf32>
    %cst_162 = arith.constant 1.000000e+00 : f32
    %459 = vector.broadcast %cst_162 : f32 to vector<16x128xf32>
    %460 = arith.addf %459, %458 : vector<16x128xf32>
    %461 = arith.mulf %450, %460 : vector<16x128xf32>
    %462 = arith.truncf %461 : vector<16x128xf32> to vector<16x128xbf16>
    %c3_163 = arith.constant 3 : index
    %c0_164 = arith.constant 0 : index
    %c0_165 = arith.constant 0 : index
    %463 = vector.load %arg6[%c3_163, %c0_164, %c0_165] : memref<6x128x32xbf16, #tpu.memory_space<vmem>>, vector<1x128x32xbf16>
    %464 = vector.shape_cast %463 : vector<1x128x32xbf16> to vector<128x32xbf16>
    %cst_166 = arith.constant dense<0.000000e+00> : vector<16x32xf32>
    %465 = tpu.matmul %462, %464, %cst_166 {dimension_numbers = #tpu.dot_dimension_numbers<[1], [0], [0], [1], [0, 0, 1, 1], [], []>} : vector<16x128xbf16>, vector<128x32xbf16>, vector<16x32xf32> -> vector<16x32xf32>
    %c19 = arith.constant 19 : index
    %c0_167 = arith.constant 0 : index
    %466 = vector.load %arg9[%c19, %c0_167] : memref<32x32xf32, #tpu.memory_space<vmem>>, vector<1x32xf32>
    %467 = vector.broadcast %466 : vector<1x32xf32> to vector<16x32xf32>
    %468 = arith.addf %465, %467 : vector<16x32xf32>
    %469 = arith.addf %468, %441 : vector<16x32xf32>
    %c20 = arith.constant 20 : index
    %c0_168 = arith.constant 0 : index
    %470 = vector.load %arg9[%c20, %c0_168] : memref<32x32xf32, #tpu.memory_space<vmem>>, vector<1x32xf32>
    %c21 = arith.constant 21 : index
    %c0_169 = arith.constant 0 : index
    %471 = vector.load %arg9[%c21, %c0_169] : memref<32x32xf32, #tpu.memory_space<vmem>>, vector<1x32xf32>
    %cst_170 = arith.constant dense<0.000000e+00> : vector<16xf32>
    %472 = vector.multi_reduction <add>, %469, %cst_170 [1] : vector<16x32xf32> to vector<16xf32>
    %473 = vector.shape_cast %472 : vector<16xf32> to vector<16x1xf32>
    %cst_171 = arith.constant 3.200000e+01 : f32
    %474 = vector.broadcast %cst_171 : f32 to vector<16x1xf32>
    %475 = arith.divf %473, %474 : vector<16x1xf32>
    %476 = vector.broadcast %475 : vector<16x1xf32> to vector<16x32xf32>
    %477 = arith.subf %469, %476 : vector<16x32xf32>
    %478 = arith.mulf %477, %477 : vector<16x32xf32>
    %cst_172 = arith.constant dense<0.000000e+00> : vector<16xf32>
    %479 = vector.multi_reduction <add>, %478, %cst_172 [1] : vector<16x32xf32> to vector<16xf32>
    %480 = vector.shape_cast %479 : vector<16xf32> to vector<16x1xf32>
    %cst_173 = arith.constant 3.200000e+01 : f32
    %481 = vector.broadcast %cst_173 : f32 to vector<16x1xf32>
    %482 = arith.divf %480, %481 : vector<16x1xf32>
    %cst_174 = arith.constant 9.99999996E-13 : f32
    %483 = vector.broadcast %cst_174 : f32 to vector<16x1xf32>
    %484 = arith.addf %482, %483 : vector<16x1xf32>
    %485 = math.rsqrt %484 : vector<16x1xf32>
    %486 = vector.broadcast %475 : vector<16x1xf32> to vector<16x32xf32>
    %487 = arith.subf %469, %486 : vector<16x32xf32>
    %488 = vector.broadcast %485 : vector<16x1xf32> to vector<16x32xf32>
    %489 = arith.mulf %487, %488 : vector<16x32xf32>
    %490 = vector.broadcast %470 : vector<1x32xf32> to vector<16x32xf32>
    %491 = arith.mulf %489, %490 : vector<16x32xf32>
    %492 = vector.broadcast %471 : vector<1x32xf32> to vector<16x32xf32>
    %493 = arith.addf %491, %492 : vector<16x32xf32>
    %494 = arith.truncf %493 : vector<16x32xf32> to vector<16x32xbf16>
    %c4_175 = arith.constant 4 : index
    %c0_176 = arith.constant 0 : index
    %c0_177 = arith.constant 0 : index
    %495 = vector.load %arg4[%c4_175, %c0_176, %c0_177] : memref<6x32x192xbf16, #tpu.memory_space<vmem>>, vector<1x32x192xbf16>
    %496 = vector.shape_cast %495 : vector<1x32x192xbf16> to vector<32x192xbf16>
    %cst_178 = arith.constant dense<0.000000e+00> : vector<16x192xf32>
    %497 = tpu.matmul %494, %496, %cst_178 {dimension_numbers = #tpu.dot_dimension_numbers<[1], [0], [0], [1], [0, 0, 1, 1], [], []>} : vector<16x32xbf16>, vector<32x192xbf16>, vector<16x192xf32> -> vector<16x192xf32>
    %c4_179 = arith.constant 4 : index
    %c0_180 = arith.constant 0 : index
    %498 = vector.load %arg7[%c4_179, %c0_180] : memref<6x192xf32, #tpu.memory_space<vmem>>, vector<1x192xf32>
    %499 = vector.broadcast %498 : vector<1x192xf32> to vector<16x192xf32>
    %500 = arith.addf %497, %499 : vector<16x192xf32>
    %501 = vector.shape_cast %500 : vector<16x192xf32> to vector<2x8x192xf32>
    %502 = vector.extract_strided_slice %501 {offsets = [0, 0, 0], sizes = [2, 8, 48], strides = [1, 1, 1]} : vector<2x8x192xf32> to vector<2x8x48xf32>
    %503 = vector.extract_strided_slice %501 {offsets = [0, 0, 48], sizes = [2, 8, 48], strides = [1, 1, 1]} : vector<2x8x192xf32> to vector<2x8x48xf32>
    %504 = vector.extract_strided_slice %501 {offsets = [0, 0, 96], sizes = [2, 8, 48], strides = [1, 1, 1]} : vector<2x8x192xf32> to vector<2x8x48xf32>
    %505 = vector.extract_strided_slice %501 {offsets = [0, 0, 144], sizes = [2, 8, 48], strides = [1, 1, 1]} : vector<2x8x192xf32> to vector<2x8x48xf32>
    %506 = vector.shape_cast %502 : vector<2x8x48xf32> to vector<1x2x8x48xf32>
    %507 = vector.shape_cast %503 : vector<2x8x48xf32> to vector<1x2x8x48xf32>
    %508 = vector.shape_cast %504 : vector<2x8x48xf32> to vector<1x2x8x48xf32>
    %509 = vector.shape_cast %505 : vector<2x8x48xf32> to vector<1x2x8x48xf32>
    %510 = tpu.concatenate %506, %507, %508, %509 in 0 : vector<1x2x8x48xf32>, vector<1x2x8x48xf32>, vector<1x2x8x48xf32>, vector<1x2x8x48xf32> -> vector<4x2x8x48xf32>
    %511 = vector.shape_cast %510 : vector<4x2x8x48xf32> to vector<8x8x48xf32>
    %512 = vector.extract_strided_slice %511 {offsets = [0, 0, 0], sizes = [8, 8, 8], strides = [1, 1, 1]} : vector<8x8x48xf32> to vector<8x8x8xf32>
    %513 = vector.extract_strided_slice %511 {offsets = [0, 0, 8], sizes = [8, 8, 8], strides = [1, 1, 1]} : vector<8x8x48xf32> to vector<8x8x8xf32>
    %514 = vector.extract_strided_slice %511 {offsets = [0, 0, 16], sizes = [8, 8, 32], strides = [1, 1, 1]} : vector<8x8x48xf32> to vector<8x8x32xf32>
    "tpu.trace_start"() <{level = 10 : i32, message = "bqd,bkd->bqk"}> : () -> ()
    %cst_181 = arith.constant dense<0.000000e+00> : vector<8x8x8xf32>
    %515 = tpu.matmul %512, %513, %cst_181 {dimension_numbers = #tpu.dot_dimension_numbers<[2], [2], [1], [1], [0, 0, 0, 1, 1, 1], [0], [0]>} : vector<8x8x8xf32>, vector<8x8x8xf32>, vector<8x8x8xf32> -> vector<8x8x8xf32>
    "tpu.trace_stop"() : () -> ()
    %516 = arith.addf %515, %37 : vector<8x8x8xf32>
    %cst_182 = arith.constant dense<0xFF800000> : vector<8x8xf32>
    %517 = vector.multi_reduction <maximumf>, %516, %cst_182 [2] : vector<8x8x8xf32> to vector<8x8xf32>
    %518 = vector.shape_cast %517 : vector<8x8xf32> to vector<8x8x1xf32>
    %519 = vector.broadcast %518 : vector<8x8x1xf32> to vector<8x8x8xf32>
    %520 = arith.subf %516, %519 : vector<8x8x8xf32>
    %521 = math.exp %520 : vector<8x8x8xf32>
    %cst_183 = arith.constant dense<0.000000e+00> : vector<8x8xf32>
    %522 = vector.multi_reduction <add>, %521, %cst_183 [2] : vector<8x8x8xf32> to vector<8x8xf32>
    %523 = vector.shape_cast %522 : vector<8x8xf32> to vector<8x8x1xf32>
    %524 = tpu.reciprocal %523 {approx = true} : vector<8x8x1xf32> -> vector<8x8x1xf32>
    %525 = vector.broadcast %524 : vector<8x8x1xf32> to vector<8x8x8xf32>
    %526 = arith.mulf %521, %525 : vector<8x8x8xf32>
    "tpu.trace_start"() <{level = 10 : i32, message = "bqk,bkd->bqd"}> : () -> ()
    %cst_184 = arith.constant dense<0.000000e+00> : vector<8x8x32xf32>
    %527 = tpu.matmul %526, %514, %cst_184 {dimension_numbers = #tpu.dot_dimension_numbers<[2], [1], [1], [2], [0, 0, 0, 1, 1, 2], [0], [0]>} : vector<8x8x8xf32>, vector<8x8x32xf32>, vector<8x8x32xf32> -> vector<8x8x32xf32>
    "tpu.trace_stop"() : () -> ()
    %528 = vector.shape_cast %527 : vector<8x8x32xf32> to vector<4x2x8x32xf32>
    %cst_185 = arith.constant dense<0.000000e+00> : vector<2x8x32xf32>
    %529 = vector.multi_reduction <add>, %528, %cst_185 [0] : vector<4x2x8x32xf32> to vector<2x8x32xf32>
    %530 = vector.shape_cast %529 : vector<2x8x32xf32> to vector<16x32xf32>
    %531 = arith.addf %530, %493 : vector<16x32xf32>
    %c22 = arith.constant 22 : index
    %c0_186 = arith.constant 0 : index
    %532 = vector.load %arg9[%c22, %c0_186] : memref<32x32xf32, #tpu.memory_space<vmem>>, vector<1x32xf32>
    %c23 = arith.constant 23 : index
    %c0_187 = arith.constant 0 : index
    %533 = vector.load %arg9[%c23, %c0_187] : memref<32x32xf32, #tpu.memory_space<vmem>>, vector<1x32xf32>
    %cst_188 = arith.constant dense<0.000000e+00> : vector<16xf32>
    %534 = vector.multi_reduction <add>, %531, %cst_188 [1] : vector<16x32xf32> to vector<16xf32>
    %535 = vector.shape_cast %534 : vector<16xf32> to vector<16x1xf32>
    %cst_189 = arith.constant 3.200000e+01 : f32
    %536 = vector.broadcast %cst_189 : f32 to vector<16x1xf32>
    %537 = arith.divf %535, %536 : vector<16x1xf32>
    %538 = vector.broadcast %537 : vector<16x1xf32> to vector<16x32xf32>
    %539 = arith.subf %531, %538 : vector<16x32xf32>
    %540 = arith.mulf %539, %539 : vector<16x32xf32>
    %cst_190 = arith.constant dense<0.000000e+00> : vector<16xf32>
    %541 = vector.multi_reduction <add>, %540, %cst_190 [1] : vector<16x32xf32> to vector<16xf32>
    %542 = vector.shape_cast %541 : vector<16xf32> to vector<16x1xf32>
    %cst_191 = arith.constant 3.200000e+01 : f32
    %543 = vector.broadcast %cst_191 : f32 to vector<16x1xf32>
    %544 = arith.divf %542, %543 : vector<16x1xf32>
    %cst_192 = arith.constant 9.99999996E-13 : f32
    %545 = vector.broadcast %cst_192 : f32 to vector<16x1xf32>
    %546 = arith.addf %544, %545 : vector<16x1xf32>
    %547 = math.rsqrt %546 : vector<16x1xf32>
    %548 = vector.broadcast %537 : vector<16x1xf32> to vector<16x32xf32>
    %549 = arith.subf %531, %548 : vector<16x32xf32>
    %550 = vector.broadcast %547 : vector<16x1xf32> to vector<16x32xf32>
    %551 = arith.mulf %549, %550 : vector<16x32xf32>
    %552 = vector.broadcast %532 : vector<1x32xf32> to vector<16x32xf32>
    %553 = arith.mulf %551, %552 : vector<16x32xf32>
    %554 = vector.broadcast %533 : vector<1x32xf32> to vector<16x32xf32>
    %555 = arith.addf %553, %554 : vector<16x32xf32>
    %556 = arith.truncf %555 : vector<16x32xf32> to vector<16x32xbf16>
    %c4_193 = arith.constant 4 : index
    %c0_194 = arith.constant 0 : index
    %c0_195 = arith.constant 0 : index
    %557 = vector.load %arg5[%c4_193, %c0_194, %c0_195] : memref<6x32x128xbf16, #tpu.memory_space<vmem>>, vector<1x32x128xbf16>
    %558 = vector.shape_cast %557 : vector<1x32x128xbf16> to vector<32x128xbf16>
    %cst_196 = arith.constant dense<0.000000e+00> : vector<16x128xf32>
    %559 = tpu.matmul %556, %558, %cst_196 {dimension_numbers = #tpu.dot_dimension_numbers<[1], [0], [0], [1], [0, 0, 1, 1], [], []>} : vector<16x32xbf16>, vector<32x128xbf16>, vector<16x128xf32> -> vector<16x128xf32>
    %c4_197 = arith.constant 4 : index
    %c0_198 = arith.constant 0 : index
    %560 = vector.load %arg8[%c4_197, %c0_198] : memref<6x128xf32, #tpu.memory_space<vmem>>, vector<1x128xf32>
    %561 = vector.broadcast %560 : vector<1x128xf32> to vector<16x128xf32>
    %562 = arith.addf %559, %561 : vector<16x128xf32>
    %cst_199 = arith.constant 5.000000e-01 : f32
    %563 = vector.broadcast %cst_199 : f32 to vector<16x128xf32>
    %564 = arith.mulf %563, %562 : vector<16x128xf32>
    %cst_200 = arith.constant 4.471500e-02 : f32
    %565 = vector.broadcast %cst_200 : f32 to vector<16x128xf32>
    %566 = arith.mulf %565, %562 : vector<16x128xf32>
    %567 = arith.mulf %566, %562 : vector<16x128xf32>
    %568 = arith.mulf %567, %562 : vector<16x128xf32>
    %569 = arith.addf %562, %568 : vector<16x128xf32>
    %cst_201 = arith.constant 0.797884583 : f32
    %570 = vector.broadcast %cst_201 : f32 to vector<16x128xf32>
    %571 = arith.mulf %570, %569 : vector<16x128xf32>
    %572 = math.tanh %571 : vector<16x128xf32>
    %cst_202 = arith.constant 1.000000e+00 : f32
    %573 = vector.broadcast %cst_202 : f32 to vector<16x128xf32>
    %574 = arith.addf %573, %572 : vector<16x128xf32>
    %575 = arith.mulf %564, %574 : vector<16x128xf32>
    %576 = arith.truncf %575 : vector<16x128xf32> to vector<16x128xbf16>
    %c4_203 = arith.constant 4 : index
    %c0_204 = arith.constant 0 : index
    %c0_205 = arith.constant 0 : index
    %577 = vector.load %arg6[%c4_203, %c0_204, %c0_205] : memref<6x128x32xbf16, #tpu.memory_space<vmem>>, vector<1x128x32xbf16>
    %578 = vector.shape_cast %577 : vector<1x128x32xbf16> to vector<128x32xbf16>
    %cst_206 = arith.constant dense<0.000000e+00> : vector<16x32xf32>
    %579 = tpu.matmul %576, %578, %cst_206 {dimension_numbers = #tpu.dot_dimension_numbers<[1], [0], [0], [1], [0, 0, 1, 1], [], []>} : vector<16x128xbf16>, vector<128x32xbf16>, vector<16x32xf32> -> vector<16x32xf32>
    %c24 = arith.constant 24 : index
    %c0_207 = arith.constant 0 : index
    %580 = vector.load %arg9[%c24, %c0_207] : memref<32x32xf32, #tpu.memory_space<vmem>>, vector<1x32xf32>
    %581 = vector.broadcast %580 : vector<1x32xf32> to vector<16x32xf32>
    %582 = arith.addf %579, %581 : vector<16x32xf32>
    %583 = arith.addf %582, %555 : vector<16x32xf32>
    %c25 = arith.constant 25 : index
    %c0_208 = arith.constant 0 : index
    %584 = vector.load %arg9[%c25, %c0_208] : memref<32x32xf32, #tpu.memory_space<vmem>>, vector<1x32xf32>
    %c26 = arith.constant 26 : index
    %c0_209 = arith.constant 0 : index
    %585 = vector.load %arg9[%c26, %c0_209] : memref<32x32xf32, #tpu.memory_space<vmem>>, vector<1x32xf32>
    %cst_210 = arith.constant dense<0.000000e+00> : vector<16xf32>
    %586 = vector.multi_reduction <add>, %583, %cst_210 [1] : vector<16x32xf32> to vector<16xf32>
    %587 = vector.shape_cast %586 : vector<16xf32> to vector<16x1xf32>
    %cst_211 = arith.constant 3.200000e+01 : f32
    %588 = vector.broadcast %cst_211 : f32 to vector<16x1xf32>
    %589 = arith.divf %587, %588 : vector<16x1xf32>
    %590 = vector.broadcast %589 : vector<16x1xf32> to vector<16x32xf32>
    %591 = arith.subf %583, %590 : vector<16x32xf32>
    %592 = arith.mulf %591, %591 : vector<16x32xf32>
    %cst_212 = arith.constant dense<0.000000e+00> : vector<16xf32>
    %593 = vector.multi_reduction <add>, %592, %cst_212 [1] : vector<16x32xf32> to vector<16xf32>
    %594 = vector.shape_cast %593 : vector<16xf32> to vector<16x1xf32>
    %cst_213 = arith.constant 3.200000e+01 : f32
    %595 = vector.broadcast %cst_213 : f32 to vector<16x1xf32>
    %596 = arith.divf %594, %595 : vector<16x1xf32>
    %cst_214 = arith.constant 9.99999996E-13 : f32
    %597 = vector.broadcast %cst_214 : f32 to vector<16x1xf32>
    %598 = arith.addf %596, %597 : vector<16x1xf32>
    %599 = math.rsqrt %598 : vector<16x1xf32>
    %600 = vector.broadcast %589 : vector<16x1xf32> to vector<16x32xf32>
    %601 = arith.subf %583, %600 : vector<16x32xf32>
    %602 = vector.broadcast %599 : vector<16x1xf32> to vector<16x32xf32>
    %603 = arith.mulf %601, %602 : vector<16x32xf32>
    %604 = vector.broadcast %584 : vector<1x32xf32> to vector<16x32xf32>
    %605 = arith.mulf %603, %604 : vector<16x32xf32>
    %606 = vector.broadcast %585 : vector<1x32xf32> to vector<16x32xf32>
    %607 = arith.addf %605, %606 : vector<16x32xf32>
    %608 = arith.truncf %607 : vector<16x32xf32> to vector<16x32xbf16>
    %c5_215 = arith.constant 5 : index
    %c0_216 = arith.constant 0 : index
    %c0_217 = arith.constant 0 : index
    %609 = vector.load %arg4[%c5_215, %c0_216, %c0_217] : memref<6x32x192xbf16, #tpu.memory_space<vmem>>, vector<1x32x192xbf16>
    %610 = vector.shape_cast %609 : vector<1x32x192xbf16> to vector<32x192xbf16>
    %cst_218 = arith.constant dense<0.000000e+00> : vector<16x192xf32>
    %611 = tpu.matmul %608, %610, %cst_218 {dimension_numbers = #tpu.dot_dimension_numbers<[1], [0], [0], [1], [0, 0, 1, 1], [], []>} : vector<16x32xbf16>, vector<32x192xbf16>, vector<16x192xf32> -> vector<16x192xf32>
    %c5_219 = arith.constant 5 : index
    %c0_220 = arith.constant 0 : index
    %612 = vector.load %arg7[%c5_219, %c0_220] : memref<6x192xf32, #tpu.memory_space<vmem>>, vector<1x192xf32>
    %613 = vector.broadcast %612 : vector<1x192xf32> to vector<16x192xf32>
    %614 = arith.addf %611, %613 : vector<16x192xf32>
    %615 = vector.shape_cast %614 : vector<16x192xf32> to vector<2x8x192xf32>
    %616 = vector.extract_strided_slice %615 {offsets = [0, 0, 0], sizes = [2, 8, 48], strides = [1, 1, 1]} : vector<2x8x192xf32> to vector<2x8x48xf32>
    %617 = vector.extract_strided_slice %615 {offsets = [0, 0, 48], sizes = [2, 8, 48], strides = [1, 1, 1]} : vector<2x8x192xf32> to vector<2x8x48xf32>
    %618 = vector.extract_strided_slice %615 {offsets = [0, 0, 96], sizes = [2, 8, 48], strides = [1, 1, 1]} : vector<2x8x192xf32> to vector<2x8x48xf32>
    %619 = vector.extract_strided_slice %615 {offsets = [0, 0, 144], sizes = [2, 8, 48], strides = [1, 1, 1]} : vector<2x8x192xf32> to vector<2x8x48xf32>
    %620 = vector.shape_cast %616 : vector<2x8x48xf32> to vector<1x2x8x48xf32>
    %621 = vector.shape_cast %617 : vector<2x8x48xf32> to vector<1x2x8x48xf32>
    %622 = vector.shape_cast %618 : vector<2x8x48xf32> to vector<1x2x8x48xf32>
    %623 = vector.shape_cast %619 : vector<2x8x48xf32> to vector<1x2x8x48xf32>
    %624 = tpu.concatenate %620, %621, %622, %623 in 0 : vector<1x2x8x48xf32>, vector<1x2x8x48xf32>, vector<1x2x8x48xf32>, vector<1x2x8x48xf32> -> vector<4x2x8x48xf32>
    %625 = vector.shape_cast %624 : vector<4x2x8x48xf32> to vector<8x8x48xf32>
    %626 = vector.extract_strided_slice %625 {offsets = [0, 0, 0], sizes = [8, 8, 8], strides = [1, 1, 1]} : vector<8x8x48xf32> to vector<8x8x8xf32>
    %627 = vector.extract_strided_slice %625 {offsets = [0, 0, 8], sizes = [8, 8, 8], strides = [1, 1, 1]} : vector<8x8x48xf32> to vector<8x8x8xf32>
    %628 = vector.extract_strided_slice %625 {offsets = [0, 0, 16], sizes = [8, 8, 32], strides = [1, 1, 1]} : vector<8x8x48xf32> to vector<8x8x32xf32>
    "tpu.trace_start"() <{level = 10 : i32, message = "bqd,bkd->bqk"}> : () -> ()
    %cst_221 = arith.constant dense<0.000000e+00> : vector<8x8x8xf32>
    %629 = tpu.matmul %626, %627, %cst_221 {dimension_numbers = #tpu.dot_dimension_numbers<[2], [2], [1], [1], [0, 0, 0, 1, 1, 1], [0], [0]>} : vector<8x8x8xf32>, vector<8x8x8xf32>, vector<8x8x8xf32> -> vector<8x8x8xf32>
    "tpu.trace_stop"() : () -> ()
    %630 = arith.addf %629, %37 : vector<8x8x8xf32>
    %cst_222 = arith.constant dense<0xFF800000> : vector<8x8xf32>
    %631 = vector.multi_reduction <maximumf>, %630, %cst_222 [2] : vector<8x8x8xf32> to vector<8x8xf32>
    %632 = vector.shape_cast %631 : vector<8x8xf32> to vector<8x8x1xf32>
    %633 = vector.broadcast %632 : vector<8x8x1xf32> to vector<8x8x8xf32>
    %634 = arith.subf %630, %633 : vector<8x8x8xf32>
    %635 = math.exp %634 : vector<8x8x8xf32>
    %cst_223 = arith.constant dense<0.000000e+00> : vector<8x8xf32>
    %636 = vector.multi_reduction <add>, %635, %cst_223 [2] : vector<8x8x8xf32> to vector<8x8xf32>
    %637 = vector.shape_cast %636 : vector<8x8xf32> to vector<8x8x1xf32>
    %638 = tpu.reciprocal %637 {approx = true} : vector<8x8x1xf32> -> vector<8x8x1xf32>
    %639 = vector.broadcast %638 : vector<8x8x1xf32> to vector<8x8x8xf32>
    %640 = arith.mulf %635, %639 : vector<8x8x8xf32>
    "tpu.trace_start"() <{level = 10 : i32, message = "bqk,bkd->bqd"}> : () -> ()
    %cst_224 = arith.constant dense<0.000000e+00> : vector<8x8x32xf32>
    %641 = tpu.matmul %640, %628, %cst_224 {dimension_numbers = #tpu.dot_dimension_numbers<[2], [1], [1], [2], [0, 0, 0, 1, 1, 2], [0], [0]>} : vector<8x8x8xf32>, vector<8x8x32xf32>, vector<8x8x32xf32> -> vector<8x8x32xf32>
    "tpu.trace_stop"() : () -> ()
    %642 = vector.shape_cast %641 : vector<8x8x32xf32> to vector<4x2x8x32xf32>
    %cst_225 = arith.constant dense<0.000000e+00> : vector<2x8x32xf32>
    %643 = vector.multi_reduction <add>, %642, %cst_225 [0] : vector<4x2x8x32xf32> to vector<2x8x32xf32>
    %644 = vector.shape_cast %643 : vector<2x8x32xf32> to vector<16x32xf32>
    %645 = arith.addf %644, %607 : vector<16x32xf32>
    %c27 = arith.constant 27 : index
    %c0_226 = arith.constant 0 : index
    %646 = vector.load %arg9[%c27, %c0_226] : memref<32x32xf32, #tpu.memory_space<vmem>>, vector<1x32xf32>
    %c28 = arith.constant 28 : index
    %c0_227 = arith.constant 0 : index
    %647 = vector.load %arg9[%c28, %c0_227] : memref<32x32xf32, #tpu.memory_space<vmem>>, vector<1x32xf32>
    %cst_228 = arith.constant dense<0.000000e+00> : vector<16xf32>
    %648 = vector.multi_reduction <add>, %645, %cst_228 [1] : vector<16x32xf32> to vector<16xf32>
    %649 = vector.shape_cast %648 : vector<16xf32> to vector<16x1xf32>
    %cst_229 = arith.constant 3.200000e+01 : f32
    %650 = vector.broadcast %cst_229 : f32 to vector<16x1xf32>
    %651 = arith.divf %649, %650 : vector<16x1xf32>
    %652 = vector.broadcast %651 : vector<16x1xf32> to vector<16x32xf32>
    %653 = arith.subf %645, %652 : vector<16x32xf32>
    %654 = arith.mulf %653, %653 : vector<16x32xf32>
    %cst_230 = arith.constant dense<0.000000e+00> : vector<16xf32>
    %655 = vector.multi_reduction <add>, %654, %cst_230 [1] : vector<16x32xf32> to vector<16xf32>
    %656 = vector.shape_cast %655 : vector<16xf32> to vector<16x1xf32>
    %cst_231 = arith.constant 3.200000e+01 : f32
    %657 = vector.broadcast %cst_231 : f32 to vector<16x1xf32>
    %658 = arith.divf %656, %657 : vector<16x1xf32>
    %cst_232 = arith.constant 9.99999996E-13 : f32
    %659 = vector.broadcast %cst_232 : f32 to vector<16x1xf32>
    %660 = arith.addf %658, %659 : vector<16x1xf32>
    %661 = math.rsqrt %660 : vector<16x1xf32>
    %662 = vector.broadcast %651 : vector<16x1xf32> to vector<16x32xf32>
    %663 = arith.subf %645, %662 : vector<16x32xf32>
    %664 = vector.broadcast %661 : vector<16x1xf32> to vector<16x32xf32>
    %665 = arith.mulf %663, %664 : vector<16x32xf32>
    %666 = vector.broadcast %646 : vector<1x32xf32> to vector<16x32xf32>
    %667 = arith.mulf %665, %666 : vector<16x32xf32>
    %668 = vector.broadcast %647 : vector<1x32xf32> to vector<16x32xf32>
    %669 = arith.addf %667, %668 : vector<16x32xf32>
    %670 = arith.truncf %669 : vector<16x32xf32> to vector<16x32xbf16>
    %c5_233 = arith.constant 5 : index
    %c0_234 = arith.constant 0 : index
    %c0_235 = arith.constant 0 : index
    %671 = vector.load %arg5[%c5_233, %c0_234, %c0_235] : memref<6x32x128xbf16, #tpu.memory_space<vmem>>, vector<1x32x128xbf16>
    %672 = vector.shape_cast %671 : vector<1x32x128xbf16> to vector<32x128xbf16>
    %cst_236 = arith.constant dense<0.000000e+00> : vector<16x128xf32>
    %673 = tpu.matmul %670, %672, %cst_236 {dimension_numbers = #tpu.dot_dimension_numbers<[1], [0], [0], [1], [0, 0, 1, 1], [], []>} : vector<16x32xbf16>, vector<32x128xbf16>, vector<16x128xf32> -> vector<16x128xf32>
    %c5_237 = arith.constant 5 : index
    %c0_238 = arith.constant 0 : index
    %674 = vector.load %arg8[%c5_237, %c0_238] : memref<6x128xf32, #tpu.memory_space<vmem>>, vector<1x128xf32>
    %675 = vector.broadcast %674 : vector<1x128xf32> to vector<16x128xf32>
    %676 = arith.addf %673, %675 : vector<16x128xf32>
    %cst_239 = arith.constant 5.000000e-01 : f32
    %677 = vector.broadcast %cst_239 : f32 to vector<16x128xf32>
    %678 = arith.mulf %677, %676 : vector<16x128xf32>
    %cst_240 = arith.constant 4.471500e-02 : f32
    %679 = vector.broadcast %cst_240 : f32 to vector<16x128xf32>
    %680 = arith.mulf %679, %676 : vector<16x128xf32>
    %681 = arith.mulf %680, %676 : vector<16x128xf32>
    %682 = arith.mulf %681, %676 : vector<16x128xf32>
    %683 = arith.addf %676, %682 : vector<16x128xf32>
    %cst_241 = arith.constant 0.797884583 : f32
    %684 = vector.broadcast %cst_241 : f32 to vector<16x128xf32>
    %685 = arith.mulf %684, %683 : vector<16x128xf32>
    %686 = math.tanh %685 : vector<16x128xf32>
    %cst_242 = arith.constant 1.000000e+00 : f32
    %687 = vector.broadcast %cst_242 : f32 to vector<16x128xf32>
    %688 = arith.addf %687, %686 : vector<16x128xf32>
    %689 = arith.mulf %678, %688 : vector<16x128xf32>
    %690 = arith.truncf %689 : vector<16x128xf32> to vector<16x128xbf16>
    %c5_243 = arith.constant 5 : index
    %c0_244 = arith.constant 0 : index
    %c0_245 = arith.constant 0 : index
    %691 = vector.load %arg6[%c5_243, %c0_244, %c0_245] : memref<6x128x32xbf16, #tpu.memory_space<vmem>>, vector<1x128x32xbf16>
    %692 = vector.shape_cast %691 : vector<1x128x32xbf16> to vector<128x32xbf16>
    %cst_246 = arith.constant dense<0.000000e+00> : vector<16x32xf32>
    %693 = tpu.matmul %690, %692, %cst_246 {dimension_numbers = #tpu.dot_dimension_numbers<[1], [0], [0], [1], [0, 0, 1, 1], [], []>} : vector<16x128xbf16>, vector<128x32xbf16>, vector<16x32xf32> -> vector<16x32xf32>
    %c29 = arith.constant 29 : index
    %c0_247 = arith.constant 0 : index
    %694 = vector.load %arg9[%c29, %c0_247] : memref<32x32xf32, #tpu.memory_space<vmem>>, vector<1x32xf32>
    %695 = vector.broadcast %694 : vector<1x32xf32> to vector<16x32xf32>
    %696 = arith.addf %693, %695 : vector<16x32xf32>
    %697 = arith.addf %696, %669 : vector<16x32xf32>
    %c30 = arith.constant 30 : index
    %c0_248 = arith.constant 0 : index
    %698 = vector.load %arg9[%c30, %c0_248] : memref<32x32xf32, #tpu.memory_space<vmem>>, vector<1x32xf32>
    %c31 = arith.constant 31 : index
    %c0_249 = arith.constant 0 : index
    %699 = vector.load %arg9[%c31, %c0_249] : memref<32x32xf32, #tpu.memory_space<vmem>>, vector<1x32xf32>
    %cst_250 = arith.constant dense<0.000000e+00> : vector<16xf32>
    %700 = vector.multi_reduction <add>, %697, %cst_250 [1] : vector<16x32xf32> to vector<16xf32>
    %701 = vector.shape_cast %700 : vector<16xf32> to vector<16x1xf32>
    %cst_251 = arith.constant 3.200000e+01 : f32
    %702 = vector.broadcast %cst_251 : f32 to vector<16x1xf32>
    %703 = arith.divf %701, %702 : vector<16x1xf32>
    %704 = vector.broadcast %703 : vector<16x1xf32> to vector<16x32xf32>
    %705 = arith.subf %697, %704 : vector<16x32xf32>
    %706 = arith.mulf %705, %705 : vector<16x32xf32>
    %cst_252 = arith.constant dense<0.000000e+00> : vector<16xf32>
    %707 = vector.multi_reduction <add>, %706, %cst_252 [1] : vector<16x32xf32> to vector<16xf32>
    %708 = vector.shape_cast %707 : vector<16xf32> to vector<16x1xf32>
    %cst_253 = arith.constant 3.200000e+01 : f32
    %709 = vector.broadcast %cst_253 : f32 to vector<16x1xf32>
    %710 = arith.divf %708, %709 : vector<16x1xf32>
    %cst_254 = arith.constant 9.99999996E-13 : f32
    %711 = vector.broadcast %cst_254 : f32 to vector<16x1xf32>
    %712 = arith.addf %710, %711 : vector<16x1xf32>
    %713 = math.rsqrt %712 : vector<16x1xf32>
    %714 = vector.broadcast %703 : vector<16x1xf32> to vector<16x32xf32>
    %715 = arith.subf %697, %714 : vector<16x32xf32>
    %716 = vector.broadcast %713 : vector<16x1xf32> to vector<16x32xf32>
    %717 = arith.mulf %715, %716 : vector<16x32xf32>
    %718 = vector.broadcast %698 : vector<1x32xf32> to vector<16x32xf32>
    %719 = arith.mulf %717, %718 : vector<16x32xf32>
    %720 = vector.broadcast %699 : vector<1x32xf32> to vector<16x32xf32>
    %721 = arith.addf %719, %720 : vector<16x32xf32>
    %c0_255 = arith.constant 0 : index
    %c0_256 = arith.constant 0 : index
    %722 = vector.load %arg10[%c0_255, %c0_256] : memref<16x32xf32, #tpu.memory_space<vmem>>, vector<16x32xf32>
    tpu.vector_store %arg10[%c0_255, %c0_256], %721 {strides = array<i32>} : memref<16x32xf32, #tpu.memory_space<vmem>>, vector<16x32xf32>,
    return
  }
}

</mosaic_0001>

<llo_original>
// kernel: front_bert_forward.1
$region0: #{front_bert_forward.1}
  #allocation0 [shape = 'u32[]', space=smem, size = 0x4, offset = 0x4, fixed_abs, tag = 'smem constant byte address 0x4 - core index']
  #allocation1 [shape = 'u32[144,128]{1,0:T(1,128)}', space=vmem, size = 0x12000, scoped, tag = 'internal scratch']
  %s0 = inlined_call_operand.vmem [shape: s32[16,1], index: 0, kind: input, shape index: {}]
  %s1 = inlined_call_operand.vmem [shape: f32[8,8], index: 1, kind: input, shape index: {}]
  %s2 = inlined_call_operand.vmem [shape: bf16[64,32], index: 2, kind: input, shape index: {}]
  %s3 = inlined_call_operand.vmem [shape: f32[16,32], index: 3, kind: input, shape index: {}]
  %s4 = inlined_call_operand.vmem [shape: bf16[6,32,192], index: 4, kind: input, shape index: {}]
  %s5 = inlined_call_operand.vmem [shape: bf16[6,32,128], index: 5, kind: input, shape index: {}]
  %s6 = inlined_call_operand.vmem [shape: bf16[6,128,32], index: 6, kind: input, shape index: {}]
  %s7 = inlined_call_operand.vmem [shape: f32[6,192], index: 7, kind: input, shape index: {}]
  %s8 = inlined_call_operand.vmem [shape: f32[6,128], index: 8, kind: input, shape index: {}]
  %s9 = inlined_call_operand.vmem [shape: f32[32,32], index: 9, kind: input, shape index: {}]
  %s10 = inlined_call_operand.hbm [shape: f32[16,32], index: 10, kind: output, shape index: {}]
  %s11 = sld [smem:[#allocation0]]
  $region50: #{front_bert_forward.1} parent=0
    _
  %s13 = ssub.s32 1, %s11
  %s14 = scalar_select 0, %s13, %s11
  $region1: #{front_bert_forward.1} parent=0
    #allocation2 [shape = 'u8[8192]{0}', space=vmem, size = 0x2000, scoped, tag = 'output window, operand 0, single buffered']
    #allocation3 [shape = 's32[1]{0}', space=sflag, size = 0x4, scoped, tag = 'scoped memory for front_bert_forward.1']
    %15 = vsyncpa [#allocation3], 0
    // Predicated region
    $region2: #{front_bert_forward.1} parent=1 // pred_check
      _
    $region3: #{front_bert_forward.1} parent=1 // pred_check_branch
      %17 = sbr.rel (0) target = $region5
    $region4: #{front_bert_forward.1} parent=1 // pred_region
      _
    $region5: #{front_bert_forward.1} parent=1 // pred_fallthru
      _
    // Predicated region
    $region6: #{front_bert_forward.1} parent=1 // pred_check
      _
    $region7: #{front_bert_forward.1} parent=1 // pred_check_branch
      %19 = sbr.rel (0) target = $region9
    $region8: #{front_bert_forward.1} parent=1 // pred_region
      _
    $region9: #{front_bert_forward.1} parent=1 // pred_fallthru
      _
    // Predicated region
    $region10: #{front_bert_forward.1} parent=1 // pred_check
      _
    $region11: #{front_bert_forward.1} parent=1 // pred_check_branch
      %21 = sbr.rel (0) target = $region13
    $region12: #{front_bert_forward.1} parent=1 // pred_region
      _
    $region13: #{front_bert_forward.1} parent=1 // pred_fallthru
      _
    // Predicated region
    $region14: #{front_bert_forward.1} parent=1 // pred_check
      _
    $region15: #{front_bert_forward.1} parent=1 // pred_check_branch
      %23 = sbr.rel (0) target = $region17
    $region16: #{front_bert_forward.1} parent=1 // pred_region
      _
    $region17: #{front_bert_forward.1} parent=1 // pred_fallthru
      _
    // Predicated region
    $region18: #{front_bert_forward.1} parent=1 // pred_check
      _
    $region19: #{front_bert_forward.1} parent=1 // pred_check_branch
      %25 = sbr.rel (0) target = $region21
    $region20: #{front_bert_forward.1} parent=1 // pred_region
      _
    $region21: #{front_bert_forward.1} parent=1 // pred_fallthru
      _
    // Predicated region
    $region22: #{front_bert_forward.1} parent=1 // pred_check
      _
    $region23: #{front_bert_forward.1} parent=1 // pred_check_branch
      %27 = sbr.rel (0) target = $region25
    $region24: #{front_bert_forward.1} parent=1 // pred_region
      _
    $region25: #{front_bert_forward.1} parent=1 // pred_fallthru
      _
    // Predicated region
    $region26: #{front_bert_forward.1} parent=1 // pred_check
      _
    $region27: #{front_bert_forward.1} parent=1 // pred_check_branch
      %29 = sbr.rel (0) target = $region29
    $region28: #{front_bert_forward.1} parent=1 // pred_region
      _
    $region29: #{front_bert_forward.1} parent=1 // pred_fallthru
      _
    // Predicated region
    $region30: #{front_bert_forward.1} parent=1 // pred_check
      _
    $region31: #{front_bert_forward.1} parent=1 // pred_check_branch
      %31 = sbr.rel (0) target = $region33
    $region32: #{front_bert_forward.1} parent=1 // pred_region
      _
    $region33: #{front_bert_forward.1} parent=1 // pred_fallthru
      _
    // Predicated region
    $region34: #{front_bert_forward.1} parent=1 // pred_check
      _
    $region35: #{front_bert_forward.1} parent=1 // pred_check_branch
      %33 = sbr.rel (0) target = $region37
    $region36: #{front_bert_forward.1} parent=1 // pred_region
      _
    $region37: #{front_bert_forward.1} parent=1 // pred_fallthru
      _
    // Predicated region
    $region38: #{front_bert_forward.1} parent=1 // pred_check
      _
    $region39: #{front_bert_forward.1} parent=1 // pred_check_branch
      %35 = sbr.rel (0) target = $region41
    $region40: #{front_bert_forward.1} parent=1 // pred_region
      _
    $region41: #{front_bert_forward.1} parent=1 // pred_fallthru
      _
    %v37 = vld [vmem:[%s0] sm:$0xff]
    %v38 = vld [vmem:[%s0 + $0x8] sm:$0xff]
    %v39 = vlaneseq
    %v40 = vand.u32 %v39, 127
    %41 = vset.pattern.permute.xlu0 0
    %42 = vperm.xlu0 %41, %v37
    %v43 = vpop.permute.xlu0 %42
    %44 = vset.pattern.permute.xlu0 0
    %45 = vperm.xlu0 %44, %v38
    %v46 = vpop.permute.xlu0 %45
    %vm47 = vcmp.eq.s32.totalorder %v40, %v43
    %vm48 = vcmp.eq.s32.totalorder %v40, %v46
    %v49 = vsel %vm47, 1, 0
    %v50 = vsel %vm48, 1, 0
    %v51 = vcvt.s32.f32 %v49
    %v52 = vcvt.s32.f32 %v50
    %v53 = vpack.c.bf16 %v52, %v51
    %v54 = vld [vmem:[%s2] sm:$0xf]
    %v55 = vld [vmem:[%s2 + $0x4] sm:$0xf]
    %v56 = vld [vmem:[%s2 + $0x8] sm:$0xf]
    %v57 = vld [vmem:[%s2 + $0xc] sm:$0xf]
    %v58 = vld [vmem:[%s2 + $0x10] sm:$0xf]
    %v59 = vld [vmem:[%s2 + $0x14] sm:$0xf]
    %v60 = vld [vmem:[%s2 + $0x18] sm:$0xf]
    %v61 = vld [vmem:[%s2 + $0x1c] sm:$0xf]
    %v62 = vld [vmem:[%s3] sm:$0xff]
    %v63 = vld [vmem:[%s3 + $0x8] sm:$0xff]
    %v72 = vunpack.c.l.b16 %v54
    %v73 = vunpack.c.l.b16 %v55
    %v74 = vunpack.c.l.b16 %v56
    %v75 = vunpack.c.l.b16 %v57
    %v76 = vunpack.c.l.b16 %v58
    %v77 = vunpack.c.l.b16 %v59
    %v78 = vunpack.c.l.b16 %v60
    %v79 = vunpack.c.l.b16 %v61
    %v80 = vpack.c.b16 %v73, %v72
    %v81 = vpack.c.b16 %v75, %v74
    %v82 = vpack.c.b16 %v77, %v76
    %v83 = vpack.c.b16 %v79, %v78
    %vm88 = vcmask 523264
    %v90 = vsel %vm88, %v53, 0
    %92 = vmatprep.subr.bf16.mxu0 0
    %93 = vmatpush1.bf16.msra.mxu0 0
    %94 = vmatprep.subr.bf16.mxu0 0
    %95 = vmatpush1.bf16.msra.mxu0 0
    %96 = vmatprep.subr.bf16.mxu0 0
    %97 = vmatpush1.bf16.msra.mxu0 0
    %98 = vmatprep.subr.bf16.mxu0 0
    %99 = vmatpush1.bf16.msra.mxu0 0
    %100 = vmatprep.subr.bf16.mxu0 0
    %101 = vmatpush1.bf16.msra.mxu0 %v83
    %102 = vmatprep.subr.bf16.mxu0 0
    %103 = vmatpush1.bf16.msra.mxu0 %v82
    %104 = vmatprep.subr.bf16.mxu0 0
    %105 = vmatpush1.bf16.msra.mxu0 %v81
    %106 = vmatprep.subr.bf16.mxu0 0
    %107 = vmatpush1.bf16.msra.mxu0 %v80
    %108 = vmatprep.subr.bf16.mxu0 0
    %109 = vmatpush2.bf16.msra.mxu0 0
    %110 = vmatprep.subr.bf16.mxu0 0
    %111 = vmatpush2.bf16.msra.mxu0 0
    %112 = vmatprep.subr.bf16.mxu0 0
    %113 = vmatpush2.bf16.msra.mxu0 0
    %114 = vmatprep.subr.bf16.mxu0 0
    %115 = vmatpush2.bf16.msra.mxu0 0
    %116 = vmatprep.subr.bf16.mxu0 0
    %117 = vmatpush2.bf16.msra.mxu0 0
    %118 = vmatprep.subr.bf16.mxu0 0
    %119 = vmatpush2.bf16.msra.mxu0 0
    %120 = vmatprep.subr.bf16.mxu0 0
    %121 = vmatpush2.bf16.msra.mxu0 0
    %122 = vmatprep.subr.bf16.mxu0 0
    %123 = vmatpush2.bf16.msra.mxu0 0
    %124 = vmatprep.mubr.bf16.mxu0 0
    %125 = vmatmul.mubr.bf16.gmra.mxu0 %v90
    %v126 = vpop.f32.mrf.mxu0
    %v127 = vadd.f32 %v62, %v126
    %v128 = vpop.f32.mrf.mxu0
    %v129 = vpop.f32.mrf.mxu0
    %v130 = vadd.f32 %v63, %v129
    %v131 = vpop.f32.mrf.mxu0
    %132 = vdwg.mxu0
    %v133 = vld [vmem:[%s9] sm:$0x1]
    %v134 = vld [vmem:[%s9 + $0x1] sm:$0x1]
    %vm135 = vcmask 261120
    %v136 = vsel %vm135, %v127, 0.0
    %137 = vadd.xlane.f32.xlu0 %v136
    %v138 = vpop.xlane.xlu0 %137
    %v139 = vsel %vm135, %v130, 0.0
    %140 = vadd.xlane.f32.xlu0 %v139
    %v141 = vpop.xlane.xlu0 %140
    %v142 = vrcp.pop 32.0
    %v143 = vmul.f32 %v138, %v142
    %v144 = vmul.f32 %v141, %v142
    %v145 = vsub.f32 %v127, %v143
    %v146 = vsub.f32 %v130, %v144
    %v147 = vmul.f32 %v145, %v145
    %v148 = vmul.f32 %v146, %v146
    %v149 = vsel %vm135, %v147, 0.0
    %150 = vadd.xlane.f32.xlu0 %v149
    %v151 = vpop.xlane.xlu0 %150
    %v152 = vsel %vm135, %v148, 0.0
    %153 = vadd.xlane.f32.xlu0 %v152
    %v154 = vpop.xlane.xlu0 %153
    %v155 = vmul.f32 %v151, %v142
    %v156 = vmul.f32 %v154, %v142
    %v157 = vadd.f32 %v155, 1e-12
    %v158 = vadd.f32 %v156, 1e-12
    %v159 = vrsqrt.pop %v157
    %v160 = vrsqrt.pop %v158
    %v161 = vmul.f32 %v145, %v159
    %v162 = vmul.f32 %v146, %v160
    %v163 = vlaneseq
    %v164 = vshrl.u32 %v163, 7
    %v165 = vsub.s32 0, %v164
    %v166 = vrot.slane %v133, %v165
    %v167 = vmul.f32 %v161, %v166
    %v168 = vmul.f32 %v162, %v166
    %v169 = vlaneseq
    %v170 = vshrl.u32 %v169, 7
    %v171 = vsub.s32 0, %v170
    %v172 = vrot.slane %v134, %v171
    %v173 = vadd.f32 %v167, %v172
    %v174 = vadd.f32 %v168, %v172
    %v175 = vld [vmem:[%s1] sm:$0xff]
    %v177 = vcombine.high %v175, %v175
    %v179 = vunpack.c.l.s4 1966171168
    %v180 = vunpack.c.0.s8 %v179
    %v181 = vlaneseq
    %v182 = vshrl.u32 %v181, 7
    %v183 = vsub.s32 %v180, %v182
    %v184 = vrot.slane %v175, %v183
    %v186 = vunpack.c.l.s4 1966171168
    %v187 = vunpack.c.0.s8 %v186
    %v188 = vlaneseq
    %v189 = vshrl.u32 %v188, 7
    %v190 = vsub.s32 %v187, %v189
    %v191 = vrot.slane %v177, %v190
    %v192 = vcombine.high %v184, %v184
    %v193 = vcombine.high %v191, %v191
    %v195 = vunpack.c.l.s4 1966171168
    %v196 = vunpack.c.0.s8 %v195
    %v197 = vlaneseq
    %v198 = vshrl.u32 %v197, 7
    %v199 = vsub.s32 %v196, %v198
    %v200 = vrot.slane %v184, %v199
    %v202 = vunpack.c.l.s4 1966171168
    %v203 = vunpack.c.0.s8 %v202
    %v204 = vlaneseq
    %v205 = vshrl.u32 %v204, 7
    %v206 = vsub.s32 %v203, %v205
    %v207 = vrot.slane %v191, %v206
    %v209 = vunpack.c.l.s4 1966171168
    %v210 = vunpack.c.0.s8 %v209
    %v211 = vlaneseq
    %v212 = vshrl.u32 %v211, 7
    %v213 = vsub.s32 %v210, %v212
    %v214 = vrot.slane %v192, %v213
    %v216 = vunpack.c.l.s4 1966171168
    %v217 = vunpack.c.0.s8 %v216
    %v218 = vlaneseq
    %v219 = vshrl.u32 %v218, 7
    %v220 = vsub.s32 %v217, %v219
    %v221 = vrot.slane %v193, %v220
    %v222 = vcombine.high %v200, %v200
    %v223 = vcombine.high %v207, %v207
    %v224 = vcombine.high %v214, %v214
    %v225 = vcombine.high %v221, %v221
    %v226 = vlaneseq
    %v227 = vshrl.u32 %v226, 7
    %v228 = vsub.s32 0, %v227
    %v229 = vrot.slane %v200, %v228
    %v230 = vlaneseq
    %v231 = vshrl.u32 %v230, 7
    %v232 = vsub.s32 0, %v231
    %v233 = vrot.slane %v214, %v232
    %v234 = vlaneseq
    %v235 = vshrl.u32 %v234, 7
    %v236 = vsub.s32 0, %v235
    %v237 = vrot.slane %v222, %v236
    %v238 = vlaneseq
    %v239 = vshrl.u32 %v238, 7
    %v240 = vsub.s32 0, %v239
    %v241 = vrot.slane %v224, %v240
    %v242 = vlaneseq
    %v243 = vshrl.u32 %v242, 7
    %v244 = vsub.s32 0, %v243
    %v245 = vrot.slane %v207, %v244
    %v246 = vlaneseq
    %v247 = vshrl.u32 %v246, 7
    %v248 = vsub.s32 0, %v247
    %v249 = vrot.slane %v221, %v248
    %v250 = vlaneseq
    %v251 = vshrl.u32 %v250, 7
    %v252 = vsub.s32 0, %v251
    %v253 = vrot.slane %v223, %v252
    %v254 = vlaneseq
    %v255 = vshrl.u32 %v254, 7
    %v256 = vsub.s32 0, %v255
    %v257 = vrot.slane %v225, %v256
    %v266 = vpack.c.bf16 %v174, %v173
    %v267 = vld [vmem:[%s4] sm:$0xff]
    %v268 = vld [vmem:[%s4 + $0x8] sm:$0xff]
    %v269 = vld [vmem:[%s4 + $0x10] sm:$0xff]
    %v270 = vld [vmem:[%s4 + $0x18] sm:$0xff]
    %v271 = vld [vmem:[%s7] ss:$8 sm:$0x3]
    %v273 = vlaneseq
    %v274 = vshrl.u32 %v273, 7
    %v275 = vsub.s32 0, %v274
    %v276 = vrot.slane %v271, %v275
    %v277 = vlaneseq
    %v278 = vshrl.u32 %v277, 7
    %v279 = vsub.s32 1, %v278
    %v280 = vrot.slane %v271, %v279
    %v287 = vunpack.c.l.b16 %v267
    %v288 = vunpack.c.h.b16 %v267
    %v289 = vunpack.c.l.b16 %v268
    %v290 = vunpack.c.h.b16 %v268
    %v291 = vunpack.c.l.b16 %v269
    %v292 = vunpack.c.h.b16 %v269
    %v293 = vunpack.c.l.b16 %v270
    %v294 = vunpack.c.h.b16 %v270
    %v295 = vpack.c.b16 %v289, %v287
    %v296 = vpack.c.b16 %v290, %v288
    %v297 = vpack.c.b16 %v293, %v291
    %v298 = vpack.c.b16 %v294, %v292
    %v304 = vsel %vm135, %v266, 0
    %306 = vmatprep.subr.bf16.mxu0 0
    %307 = vmatpush1.bf16.msra.mxu0 0
    %308 = vmatprep.subr.bf16.mxu0 0
    %309 = vmatpush1.bf16.msra.mxu0 0
    %310 = vmatprep.subr.bf16.mxu0 0
    %311 = vmatpush1.bf16.msra.mxu0 0
    %312 = vmatprep.subr.bf16.mxu0 0
    %313 = vmatpush1.bf16.msra.mxu0 0
    %314 = vmatprep.subr.bf16.mxu0 0
    %315 = vmatpush1.bf16.msra.mxu0 0
    %316 = vmatprep.subr.bf16.mxu0 0
    %317 = vmatpush1.bf16.msra.mxu0 0
    %318 = vmatprep.subr.bf16.mxu0 %v298
    %319 = vmatpush1.bf16.msra.mxu0 %v297
    %320 = vmatprep.subr.bf16.mxu0 %v296
    %321 = vmatpush1.bf16.msra.mxu0 %v295
    %322 = vmatprep.subr.bf16.mxu0 0
    %323 = vmatpush2.bf16.msra.mxu0 0
    %324 = vmatprep.subr.bf16.mxu0 0
    %325 = vmatpush2.bf16.msra.mxu0 0
    %326 = vmatprep.subr.bf16.mxu0 0
    %327 = vmatpush2.bf16.msra.mxu0 0
    %328 = vmatprep.subr.bf16.mxu0 0
    %329 = vmatpush2.bf16.msra.mxu0 0
    %330 = vmatprep.subr.bf16.mxu0 0
    %331 = vmatpush2.bf16.msra.mxu0 0
    %332 = vmatprep.subr.bf16.mxu0 0
    %333 = vmatpush2.bf16.msra.mxu0 0
    %334 = vmatprep.subr.bf16.mxu0 0
    %335 = vmatpush2.bf16.msra.mxu0 0
    %336 = vmatprep.subr.bf16.mxu0 0
    %337 = vmatpush2.bf16.msra.mxu0 0
    %338 = vmatprep.mubr.bf16.mxu0 0
    %339 = vmatmul.mubr.bf16.gmra.mxu0 %v304
    %v340 = vpop.f32.mrf.mxu0
    %v341 = vadd.f32 %v276, %v340
    %v342 = vpop.f32.mrf.mxu0
    %v343 = vadd.f32 %v280, %v342
    %v344 = vpop.f32.mrf.mxu0
    %v345 = vadd.f32 %v276, %v344
    %v346 = vpop.f32.mrf.mxu0
    %v347 = vadd.f32 %v280, %v346
    %348 = vdwg.mxu0
    %351 = vrot.lane.b32.xlu0 %v341, 80
    %v352 = vpop.permute.xlu0 %351
    %353 = vrot.lane.b32.xlu0 %v345, 80
    %v354 = vpop.permute.xlu0 %353
    %357 = vrot.lane.b32.xlu0 %v341, 32
    %v358 = vpop.permute.xlu0 %357
    %359 = vrot.lane.b32.xlu0 %v343, 32
    %v360 = vpop.permute.xlu0 %359
    %361 = vrot.lane.b32.xlu0 %v345, 32
    %v362 = vpop.permute.xlu0 %361
    %363 = vrot.lane.b32.xlu0 %v347, 32
    %v364 = vpop.permute.xlu0 %363
    %v365 = vsel %vm135, %v358, %v360
    %v366 = vsel %vm135, %v362, %v364
    %367 = vrot.lane.b32.xlu0 %v343, 112
    %v368 = vpop.permute.xlu0 %367
    %369 = vrot.lane.b32.xlu0 %v347, 112
    %v370 = vpop.permute.xlu0 %369
    %371 = vrot.lane.b32.xlu0 %v341, 120
    %v372 = vpop.permute.xlu0 %371
    %vm373 = vcmask 64512
    %v374 = vsel %vm373, %v341, 0
    %v376 = vsel %vm373, %v372, 0
    %378 = vmatprep.subr.mxu0 0.0
    %379 = vmatpush1.xpose.msra.mxu0 0.0
    %380 = vmatprep.subr.mxu0 0.0
    %381 = vmatpush1.xpose.msra.mxu0 0.0
    %382 = vmatprep.subr.mxu0 0.0
    %383 = vmatpush1.xpose.msra.mxu0 0.0
    %384 = vmatprep.subr.mxu0 0.0
    %385 = vmatpush1.xpose.msra.mxu0 0.0
    %386 = vmatprep.subr.mxu0 0.0
    %387 = vmatpush1.xpose.msra.mxu0 0.0
    %388 = vmatprep.subr.mxu0 0.0
    %389 = vmatpush1.xpose.msra.mxu0 0.0
    %390 = vmatprep.subr.mxu0 0.0
    %391 = vmatpush1.xpose.msra.mxu0 0.0
    %392 = vmatprep.subr.mxu0 0.0
    %393 = vmatpush1.xpose.msra.mxu0 0.0
    %394 = vmatprep.subr.mxu0 0.0
    %395 = vmatpush1.xpose.msra.mxu0 0.0
    %396 = vmatprep.subr.mxu0 0.0
    %397 = vmatpush1.xpose.msra.mxu0 0.0
    %398 = vmatprep.subr.mxu0 0.0
    %399 = vmatpush1.xpose.msra.mxu0 0.0
    %400 = vmatprep.subr.mxu0 0.0
    %401 = vmatpush1.xpose.msra.mxu0 0.0
    %402 = vmatprep.subr.mxu0 0.0
    %403 = vmatpush1.xpose.msra.mxu0 0.0
    %404 = vmatprep.subr.mxu0 0.0
    %405 = vmatpush1.xpose.msra.mxu0 0.0
    %406 = vmatprep.subr.mxu0 0.0
    %407 = vmatpush1.xpose.msra.mxu0 0.0
    %408 = vmatprep.subr.mxu0 0.0
    %409 = vmatpush1.xpose.msra.mxu0 %v376
    %410 = vmatprep.subr.mxu0 0.0
    %411 = vmatpush2.xpose.msra.mxu0 0.0
    %412 = vmatprep.subr.mxu0 0.0
    %413 = vmatpush2.xpose.msra.mxu0 0.0
    %414 = vmatprep.subr.mxu0 0.0
    %415 = vmatpush2.xpose.msra.mxu0 0.0
    %416 = vmatprep.subr.mxu0 0.0
    %417 = vmatpush2.xpose.msra.mxu0 0.0
    %418 = vmatprep.subr.mxu0 0.0
    %419 = vmatpush2.xpose.msra.mxu0 0.0
    %420 = vmatprep.subr.mxu0 0.0
    %421 = vmatpush2.xpose.msra.mxu0 0.0
    %422 = vmatprep.subr.mxu0 0.0
    %423 = vmatpush2.xpose.msra.mxu0 0.0
    %424 = vmatprep.subr.mxu0 0.0
    %425 = vmatpush2.xpose.msra.mxu0 0.0
    %426 = vmatprep.subr.mxu0 0.0
    %427 = vmatpush2.xpose.msra.mxu0 0.0
    %428 = vmatprep.subr.mxu0 0.0
    %429 = vmatpush2.xpose.msra.mxu0 0.0
    %430 = vmatprep.subr.mxu0 0.0
    %431 = vmatpush2.xpose.msra.mxu0 0.0
    %432 = vmatprep.subr.mxu0 0.0
    %433 = vmatpush2.xpose.msra.mxu0 0.0
    %434 = vmatprep.subr.mxu0 0.0
    %435 = vmatpush2.xpose.msra.mxu0 0.0
    %436 = vmatprep.subr.mxu0 0.0
    %437 = vmatpush2.xpose.msra.mxu0 0.0
    %438 = vmatprep.subr.mxu0 0.0
    %439 = vmatpush2.xpose.msra.mxu0 0.0
    %440 = vmatprep.subr.mxu0 0.0
    %441 = vmatpush2.xpose.msra.mxu0 0.0
    %442 = vmatprep.mubr.f32.mxu0 0.0
    %443 = vmatmul.mubr.f32.gmra.mxu0 %v374
    %v444 = vpop.f32.mrf.mxu0
    %v445 = vadd.f32 %v229, %v444
    %v446 = vpop.f32.mrf.mxu0
    %447 = vdwg.mxu0
    %448 = vrot.lane.b32.xlu0 %v345, 120
    %v449 = vpop.permute.xlu0 %448
    %v450 = vsel %vm373, %v345, 0
    %v452 = vsel %vm373, %v449, 0
    %454 = vmatprep.subr.mxu0 0.0
    %455 = vmatpush1.xpose.msra.mxu0 0.0
    %456 = vmatprep.subr.mxu0 0.0
    %457 = vmatpush1.xpose.msra.mxu0 0.0
    %458 = vmatprep.subr.mxu0 0.0
    %459 = vmatpush1.xpose.msra.mxu0 0.0
    %460 = vmatprep.subr.mxu0 0.0
    %461 = vmatpush1.xpose.msra.mxu0 0.0
    %462 = vmatprep.subr.mxu0 0.0
    %463 = vmatpush1.xpose.msra.mxu0 0.0
    %464 = vmatprep.subr.mxu0 0.0
    %465 = vmatpush1.xpose.msra.mxu0 0.0
    %466 = vmatprep.subr.mxu0 0.0
    %467 = vmatpush1.xpose.msra.mxu0 0.0
    %468 = vmatprep.subr.mxu0 0.0
    %469 = vmatpush1.xpose.msra.mxu0 0.0
    %470 = vmatprep.subr.mxu0 0.0
    %471 = vmatpush1.xpose.msra.mxu0 0.0
    %472 = vmatprep.subr.mxu0 0.0
    %473 = vmatpush1.xpose.msra.mxu0 0.0
    %474 = vmatprep.subr.mxu0 0.0
    %475 = vmatpush1.xpose.msra.mxu0 0.0
    %476 = vmatprep.subr.mxu0 0.0
    %477 = vmatpush1.xpose.msra.mxu0 0.0
    %478 = vmatprep.subr.mxu0 0.0
    %479 = vmatpush1.xpose.msra.mxu0 0.0
    %480 = vmatprep.subr.mxu0 0.0
    %481 = vmatpush1.xpose.msra.mxu0 0.0
    %482 = vmatprep.subr.mxu0 0.0
    %483 = vmatpush1.xpose.msra.mxu0 0.0
    %484 = vmatprep.subr.mxu0 0.0
    %485 = vmatpush1.xpose.msra.mxu0 %v452
    %486 = vmatprep.subr.mxu0 0.0
    %487 = vmatpush2.xpose.msra.mxu0 0.0
    %488 = vmatprep.subr.mxu0 0.0
    %489 = vmatpush2.xpose.msra.mxu0 0.0
    %490 = vmatprep.subr.mxu0 0.0
    %491 = vmatpush2.xpose.msra.mxu0 0.0
    %492 = vmatprep.subr.mxu0 0.0
    %493 = vmatpush2.xpose.msra.mxu0 0.0
    %494 = vmatprep.subr.mxu0 0.0
    %495 = vmatpush2.xpose.msra.mxu0 0.0
    %496 = vmatprep.subr.mxu0 0.0
    %497 = vmatpush2.xpose.msra.mxu0 0.0
    %498 = vmatprep.subr.mxu0 0.0
    %499 = vmatpush2.xpose.msra.mxu0 0.0
    %500 = vmatprep.subr.mxu0 0.0
    %501 = vmatpush2.xpose.msra.mxu0 0.0
    %502 = vmatprep.subr.mxu0 0.0
    %503 = vmatpush2.xpose.msra.mxu0 0.0
    %504 = vmatprep.subr.mxu0 0.0
    %505 = vmatpush2.xpose.msra.mxu0 0.0
    %506 = vmatprep.subr.mxu0 0.0
    %507 = vmatpush2.xpose.msra.mxu0 0.0
    %508 = vmatprep.subr.mxu0 0.0
    %509 = vmatpush2.xpose.msra.mxu0 0.0
    %510 = vmatprep.subr.mxu0 0.0
    %511 = vmatpush2.xpose.msra.mxu0 0.0
    %512 = vmatprep.subr.mxu0 0.0
    %513 = vmatpush2.xpose.msra.mxu0 0.0
    %514 = vmatprep.subr.mxu0 0.0
    %515 = vmatpush2.xpose.msra.mxu0 0.0
    %516 = vmatprep.subr.mxu0 0.0
    %517 = vmatpush2.xpose.msra.mxu0 0.0
    %518 = vmatprep.mubr.f32.mxu0 0.0
    %519 = vmatmul.mubr.f32.gmra.mxu0 %v450
    %v520 = vpop.f32.mrf.mxu0
    %v521 = vadd.f32 %v233, %v520
    %v522 = vpop.f32.mrf.mxu0
    %523 = vdwg.mxu0
    %524 = vrot.lane.b32.xlu0 %v352, 120
    %v525 = vpop.permute.xlu0 %524
    %v526 = vsel %vm373, %v352, 0
    %v528 = vsel %vm373, %v525, 0
    %530 = vmatprep.subr.mxu0 0.0
    %531 = vmatpush1.xpose.msra.mxu0 0.0
    %532 = vmatprep.subr.mxu0 0.0
    %533 = vmatpush1.xpose.msra.mxu0 0.0
    %534 = vmatprep.subr.mxu0 0.0
    %535 = vmatpush1.xpose.msra.mxu0 0.0
    %536 = vmatprep.subr.mxu0 0.0
    %537 = vmatpush1.xpose.msra.mxu0 0.0
    %538 = vmatprep.subr.mxu0 0.0
    %539 = vmatpush1.xpose.msra.mxu0 0.0
    %540 = vmatprep.subr.mxu0 0.0
    %541 = vmatpush1.xpose.msra.mxu0 0.0
    %542 = vmatprep.subr.mxu0 0.0
    %543 = vmatpush1.xpose.msra.mxu0 0.0
    %544 = vmatprep.subr.mxu0 0.0
    %545 = vmatpush1.xpose.msra.mxu0 0.0
    %546 = vmatprep.subr.mxu0 0.0
    %547 = vmatpush1.xpose.msra.mxu0 0.0
    %548 = vmatprep.subr.mxu0 0.0
    %549 = vmatpush1.xpose.msra.mxu0 0.0
    %550 = vmatprep.subr.mxu0 0.0
    %551 = vmatpush1.xpose.msra.mxu0 0.0
    %552 = vmatprep.subr.mxu0 0.0
    %553 = vmatpush1.xpose.msra.mxu0 0.0
    %554 = vmatprep.subr.mxu0 0.0
    %555 = vmatpush1.xpose.msra.mxu0 0.0
    %556 = vmatprep.subr.mxu0 0.0
    %557 = vmatpush1.xpose.msra.mxu0 0.0
    %558 = vmatprep.subr.mxu0 0.0
    %559 = vmatpush1.xpose.msra.mxu0 0.0
    %560 = vmatprep.subr.mxu0 0.0
    %561 = vmatpush1.xpose.msra.mxu0 %v528
    %562 = vmatprep.subr.mxu0 0.0
    %563 = vmatpush2.xpose.msra.mxu0 0.0
    %564 = vmatprep.subr.mxu0 0.0
    %565 = vmatpush2.xpose.msra.mxu0 0.0
    %566 = vmatprep.subr.mxu0 0.0
    %567 = vmatpush2.xpose.msra.mxu0 0.0
    %568 = vmatprep.subr.mxu0 0.0
    %569 = vmatpush2.xpose.msra.mxu0 0.0
    %570 = vmatprep.subr.mxu0 0.0
    %571 = vmatpush2.xpose.msra.mxu0 0.0
    %572 = vmatprep.subr.mxu0 0.0
    %573 = vmatpush2.xpose.msra.mxu0 0.0
    %574 = vmatprep.subr.mxu0 0.0
    %575 = vmatpush2.xpose.msra.mxu0 0.0
    %576 = vmatprep.subr.mxu0 0.0
    %577 = vmatpush2.xpose.msra.mxu0 0.0
    %578 = vmatprep.subr.mxu0 0.0
    %579 = vmatpush2.xpose.msra.mxu0 0.0
    %580 = vmatprep.subr.mxu0 0.0
    %581 = vmatpush2.xpose.msra.mxu0 0.0
    %582 = vmatprep.subr.mxu0 0.0
    %583 = vmatpush2.xpose.msra.mxu0 0.0
    %584 = vmatprep.subr.mxu0 0.0
    %585 = vmatpush2.xpose.msra.mxu0 0.0
    %586 = vmatprep.subr.mxu0 0.0
    %587 = vmatpush2.xpose.msra.mxu0 0.0
    %588 = vmatprep.subr.mxu0 0.0
    %589 = vmatpush2.xpose.msra.mxu0 0.0
    %590 = vmatprep.subr.mxu0 0.0
    %591 = vmatpush2.xpose.msra.mxu0 0.0
    %592 = vmatprep.subr.mxu0 0.0
    %593 = vmatpush2.xpose.msra.mxu0 0.0
    %594 = vmatprep.mubr.f32.mxu0 0.0
    %595 = vmatmul.mubr.f32.gmra.mxu0 %v526
    %v596 = vpop.f32.mrf.mxu0
    %v597 = vadd.f32 %v237, %v596
    %v598 = vpop.f32.mrf.mxu0
    %599 = vdwg.mxu0
    %600 = vrot.lane.b32.xlu0 %v354, 120
    %v601 = vpop.permute.xlu0 %600
    %v602 = vsel %vm373, %v354, 0
    %v604 = vsel %vm373, %v601, 0
    %606 = vmatprep.subr.mxu0 0.0
    %607 = vmatpush1.xpose.msra.mxu0 0.0
    %608 = vmatprep.subr.mxu0 0.0
    %609 = vmatpush1.xpose.msra.mxu0 0.0
    %610 = vmatprep.subr.mxu0 0.0
    %611 = vmatpush1.xpose.msra.mxu0 0.0
    %612 = vmatprep.subr.mxu0 0.0
    %613 = vmatpush1.xpose.msra.mxu0 0.0
    %614 = vmatprep.subr.mxu0 0.0
    %615 = vmatpush1.xpose.msra.mxu0 0.0
    %616 = vmatprep.subr.mxu0 0.0
    %617 = vmatpush1.xpose.msra.mxu0 0.0
    %618 = vmatprep.subr.mxu0 0.0
    %619 = vmatpush1.xpose.msra.mxu0 0.0
    %620 = vmatprep.subr.mxu0 0.0
    %621 = vmatpush1.xpose.msra.mxu0 0.0
    %622 = vmatprep.subr.mxu0 0.0
    %623 = vmatpush1.xpose.msra.mxu0 0.0
    %624 = vmatprep.subr.mxu0 0.0
    %625 = vmatpush1.xpose.msra.mxu0 0.0
    %626 = vmatprep.subr.mxu0 0.0
    %627 = vmatpush1.xpose.msra.mxu0 0.0
    %628 = vmatprep.subr.mxu0 0.0
    %629 = vmatpush1.xpose.msra.mxu0 0.0
    %630 = vmatprep.subr.mxu0 0.0
    %631 = vmatpush1.xpose.msra.mxu0 0.0
    %632 = vmatprep.subr.mxu0 0.0
    %633 = vmatpush1.xpose.msra.mxu0 0.0
    %634 = vmatprep.subr.mxu0 0.0
    %635 = vmatpush1.xpose.msra.mxu0 0.0
    %636 = vmatprep.subr.mxu0 0.0
    %637 = vmatpush1.xpose.msra.mxu0 %v604
    %638 = vmatprep.subr.mxu0 0.0
    %639 = vmatpush2.xpose.msra.mxu0 0.0
    %640 = vmatprep.subr.mxu0 0.0
    %641 = vmatpush2.xpose.msra.mxu0 0.0
    %642 = vmatprep.subr.mxu0 0.0
    %643 = vmatpush2.xpose.msra.mxu0 0.0
    %644 = vmatprep.subr.mxu0 0.0
    %645 = vmatpush2.xpose.msra.mxu0 0.0
    %646 = vmatprep.subr.mxu0 0.0
    %647 = vmatpush2.xpose.msra.mxu0 0.0
    %648 = vmatprep.subr.mxu0 0.0
    %649 = vmatpush2.xpose.msra.mxu0 0.0
    %650 = vmatprep.subr.mxu0 0.0
    %651 = vmatpush2.xpose.msra.mxu0 0.0
    %652 = vmatprep.subr.mxu0 0.0
    %653 = vmatpush2.xpose.msra.mxu0 0.0
    %654 = vmatprep.subr.mxu0 0.0
    %655 = vmatpush2.xpose.msra.mxu0 0.0
    %656 = vmatprep.subr.mxu0 0.0
    %657 = vmatpush2.xpose.msra.mxu0 0.0
    %658 = vmatprep.subr.mxu0 0.0
    %659 = vmatpush2.xpose.msra.mxu0 0.0
    %660 = vmatprep.subr.mxu0 0.0
    %661 = vmatpush2.xpose.msra.mxu0 0.0
    %662 = vmatprep.subr.mxu0 0.0
    %663 = vmatpush2.xpose.msra.mxu0 0.0
    %664 = vmatprep.subr.mxu0 0.0
    %665 = vmatpush2.xpose.msra.mxu0 0.0
    %666 = vmatprep.subr.mxu0 0.0
    %667 = vmatpush2.xpose.msra.mxu0 0.0
    %668 = vmatprep.subr.mxu0 0.0
    %669 = vmatpush2.xpose.msra.mxu0 0.0
    %670 = vmatprep.mubr.f32.mxu0 0.0
    %671 = vmatmul.mubr.f32.gmra.mxu0 %v602
    %v672 = vpop.f32.mrf.mxu0
    %v673 = vadd.f32 %v241, %v672
    %v674 = vpop.f32.mrf.mxu0
    %675 = vdwg.mxu0
    %676 = vrot.lane.b32.xlu0 %v365, 120
    %v677 = vpop.permute.xlu0 %676
    %v678 = vsel %vm373, %v365, 0
    %v680 = vsel %vm373, %v677, 0
    %682 = vmatprep.subr.mxu0 0.0
    %683 = vmatpush1.xpose.msra.mxu0 0.0
    %684 = vmatprep.subr.mxu0 0.0
    %685 = vmatpush1.xpose.msra.mxu0 0.0
    %686 = vmatprep.subr.mxu0 0.0
    %687 = vmatpush1.xpose.msra.mxu0 0.0
    %688 = vmatprep.subr.mxu0 0.0
    %689 = vmatpush1.xpose.msra.mxu0 0.0
    %690 = vmatprep.subr.mxu0 0.0
    %691 = vmatpush1.xpose.msra.mxu0 0.0
    %692 = vmatprep.subr.mxu0 0.0
    %693 = vmatpush1.xpose.msra.mxu0 0.0
    %694 = vmatprep.subr.mxu0 0.0
    %695 = vmatpush1.xpose.msra.mxu0 0.0
    %696 = vmatprep.subr.mxu0 0.0
    %697 = vmatpush1.xpose.msra.mxu0 0.0
    %698 = vmatprep.subr.mxu0 0.0
    %699 = vmatpush1.xpose.msra.mxu0 0.0
    %700 = vmatprep.subr.mxu0 0.0
    %701 = vmatpush1.xpose.msra.mxu0 0.0
    %702 = vmatprep.subr.mxu0 0.0
    %703 = vmatpush1.xpose.msra.mxu0 0.0
    %704 = vmatprep.subr.mxu0 0.0
    %705 = vmatpush1.xpose.msra.mxu0 0.0
    %706 = vmatprep.subr.mxu0 0.0
    %707 = vmatpush1.xpose.msra.mxu0 0.0
    %708 = vmatprep.subr.mxu0 0.0
    %709 = vmatpush1.xpose.msra.mxu0 0.0
    %710 = vmatprep.subr.mxu0 0.0
    %711 = vmatpush1.xpose.msra.mxu0 0.0
    %712 = vmatprep.subr.mxu0 0.0
    %713 = vmatpush1.xpose.msra.mxu0 %v680
    %714 = vmatprep.subr.mxu0 0.0
    %715 = vmatpush2.xpose.msra.mxu0 0.0
    %716 = vmatprep.subr.mxu0 0.0
    %717 = vmatpush2.xpose.msra.mxu0 0.0
    %718 = vmatprep.subr.mxu0 0.0
    %719 = vmatpush2.xpose.msra.mxu0 0.0
    %720 = vmatprep.subr.mxu0 0.0
    %721 = vmatpush2.xpose.msra.mxu0 0.0
    %722 = vmatprep.subr.mxu0 0.0
    %723 = vmatpush2.xpose.msra.mxu0 0.0
    %724 = vmatprep.subr.mxu0 0.0
    %725 = vmatpush2.xpose.msra.mxu0 0.0
    %726 = vmatprep.subr.mxu0 0.0
    %727 = vmatpush2.xpose.msra.mxu0 0.0
    %728 = vmatprep.subr.mxu0 0.0
    %729 = vmatpush2.xpose.msra.mxu0 0.0
    %730 = vmatprep.subr.mxu0 0.0
    %731 = vmatpush2.xpose.msra.mxu0 0.0
    %732 = vmatprep.subr.mxu0 0.0
    %733 = vmatpush2.xpose.msra.mxu0 0.0
    %734 = vmatprep.subr.mxu0 0.0
    %735 = vmatpush2.xpose.msra.mxu0 0.0
    %736 = vmatprep.subr.mxu0 0.0
    %737 = vmatpush2.xpose.msra.mxu0 0.0
    %738 = vmatprep.subr.mxu0 0.0
    %739 = vmatpush2.xpose.msra.mxu0 0.0
    %740 = vmatprep.subr.mxu0 0.0
    %741 = vmatpush2.xpose.msra.mxu0 0.0
    %742 = vmatprep.subr.mxu0 0.0
    %743 = vmatpush2.xpose.msra.mxu0 0.0
    %744 = vmatprep.subr.mxu0 0.0
    %745 = vmatpush2.xpose.msra.mxu0 0.0
    %746 = vmatprep.mubr.f32.mxu0 0.0
    %747 = vmatmul.mubr.f32.gmra.mxu0 %v678
    %v748 = vpop.f32.mrf.mxu0
    %v749 = vadd.f32 %v245, %v748
    %v750 = vpop.f32.mrf.mxu0
    %751 = vdwg.mxu0
    %752 = vrot.lane.b32.xlu0 %v366, 120
    %v753 = vpop.permute.xlu0 %752
    %v754 = vsel %vm373, %v366, 0
    %v756 = vsel %vm373, %v753, 0
    %758 = vmatprep.subr.mxu0 0.0
    %759 = vmatpush1.xpose.msra.mxu0 0.0
    %760 = vmatprep.subr.mxu0 0.0
    %761 = vmatpush1.xpose.msra.mxu0 0.0
    %762 = vmatprep.subr.mxu0 0.0
    %763 = vmatpush1.xpose.msra.mxu0 0.0
    %764 = vmatprep.subr.mxu0 0.0
    %765 = vmatpush1.xpose.msra.mxu0 0.0
    %766 = vmatprep.subr.mxu0 0.0
    %767 = vmatpush1.xpose.msra.mxu0 0.0
    %768 = vmatprep.subr.mxu0 0.0
    %769 = vmatpush1.xpose.msra.mxu0 0.0
    %770 = vmatprep.subr.mxu0 0.0
    %771 = vmatpush1.xpose.msra.mxu0 0.0
    %772 = vmatprep.subr.mxu0 0.0
    %773 = vmatpush1.xpose.msra.mxu0 0.0
    %774 = vmatprep.subr.mxu0 0.0
    %775 = vmatpush1.xpose.msra.mxu0 0.0
    %776 = vmatprep.subr.mxu0 0.0
    %777 = vmatpush1.xpose.msra.mxu0 0.0
    %778 = vmatprep.subr.mxu0 0.0
    %779 = vmatpush1.xpose.msra.mxu0 0.0
    %780 = vmatprep.subr.mxu0 0.0
    %781 = vmatpush1.xpose.msra.mxu0 0.0
    %782 = vmatprep.subr.mxu0 0.0
    %783 = vmatpush1.xpose.msra.mxu0 0.0
    %784 = vmatprep.subr.mxu0 0.0
    %785 = vmatpush1.xpose.msra.mxu0 0.0
    %786 = vmatprep.subr.mxu0 0.0
    %787 = vmatpush1.xpose.msra.mxu0 0.0
    %788 = vmatprep.subr.mxu0 0.0
    %789 = vmatpush1.xpose.msra.mxu0 %v756
    %790 = vmatprep.subr.mxu0 0.0
    %791 = vmatpush2.xpose.msra.mxu0 0.0
    %792 = vmatprep.subr.mxu0 0.0
    %793 = vmatpush2.xpose.msra.mxu0 0.0
    %794 = vmatprep.subr.mxu0 0.0
    %795 = vmatpush2.xpose.msra.mxu0 0.0
    %796 = vmatprep.subr.mxu0 0.0
    %797 = vmatpush2.xpose.msra.mxu0 0.0
    %798 = vmatprep.subr.mxu0 0.0
    %799 = vmatpush2.xpose.msra.mxu0 0.0
    %800 = vmatprep.subr.mxu0 0.0
    %801 = vmatpush2.xpose.msra.mxu0 0.0
    %802 = vmatprep.subr.mxu0 0.0
    %803 = vmatpush2.xpose.msra.mxu0 0.0
    %804 = vmatprep.subr.mxu0 0.0
    %805 = vmatpush2.xpose.msra.mxu0 0.0
    %806 = vmatprep.subr.mxu0 0.0
    %807 = vmatpush2.xpose.msra.mxu0 0.0
    %808 = vmatprep.subr.mxu0 0.0
    %809 = vmatpush2.xpose.msra.mxu0 0.0
    %810 = vmatprep.subr.mxu0 0.0
    %811 = vmatpush2.xpose.msra.mxu0 0.0
    %812 = vmatprep.subr.mxu0 0.0
    %813 = vmatpush2.xpose.msra.mxu0 0.0
    %814 = vmatprep.subr.mxu0 0.0
    %815 = vmatpush2.xpose.msra.mxu0 0.0
    %816 = vmatprep.subr.mxu0 0.0
    %817 = vmatpush2.xpose.msra.mxu0 0.0
    %818 = vmatprep.subr.mxu0 0.0
    %819 = vmatpush2.xpose.msra.mxu0 0.0
    %820 = vmatprep.subr.mxu0 0.0
    %821 = vmatpush2.xpose.msra.mxu0 0.0
    %822 = vmatprep.mubr.f32.mxu0 0.0
    %823 = vmatmul.mubr.f32.gmra.mxu0 %v754
    %v824 = vpop.f32.mrf.mxu0
    %v825 = vadd.f32 %v249, %v824
    %v826 = vpop.f32.mrf.mxu0
    %827 = vdwg.mxu0
    %828 = vrot.lane.b32.xlu0 %v368, 120
    %v829 = vpop.permute.xlu0 %828
    %v830 = vsel %vm373, %v368, 0
    %v832 = vsel %vm373, %v829, 0
    %834 = vmatprep.subr.mxu0 0.0
    %835 = vmatpush1.xpose.msra.mxu0 0.0
    %836 = vmatprep.subr.mxu0 0.0
    %837 = vmatpush1.xpose.msra.mxu0 0.0
    %838 = vmatprep.subr.mxu0 0.0
    %839 = vmatpush1.xpose.msra.mxu0 0.0
    %840 = vmatprep.subr.mxu0 0.0
    %841 = vmatpush1.xpose.msra.mxu0 0.0
    %842 = vmatprep.subr.mxu0 0.0
    %843 = vmatpush1.xpose.msra.mxu0 0.0
    %844 = vmatprep.subr.mxu0 0.0
    %845 = vmatpush1.xpose.msra.mxu0 0.0
    %846 = vmatprep.subr.mxu0 0.0
    %847 = vmatpush1.xpose.msra.mxu0 0.0
    %848 = vmatprep.subr.mxu0 0.0
    %849 = vmatpush1.xpose.msra.mxu0 0.0
    %850 = vmatprep.subr.mxu0 0.0
    %851 = vmatpush1.xpose.msra.mxu0 0.0
    %852 = vmatprep.subr.mxu0 0.0
    %853 = vmatpush1.xpose.msra.mxu0 0.0
    %854 = vmatprep.subr.mxu0 0.0
    %855 = vmatpush1.xpose.msra.mxu0 0.0
    %856 = vmatprep.subr.mxu0 0.0
    %857 = vmatpush1.xpose.msra.mxu0 0.0
    %858 = vmatprep.subr.mxu0 0.0
    %859 = vmatpush1.xpose.msra.mxu0 0.0
    %860 = vmatprep.subr.mxu0 0.0
    %861 = vmatpush1.xpose.msra.mxu0 0.0
    %862 = vmatprep.subr.mxu0 0.0
    %863 = vmatpush1.xpose.msra.mxu0 0.0
    %864 = vmatprep.subr.mxu0 0.0
    %865 = vmatpush1.xpose.msra.mxu0 %v832
    %866 = vmatprep.subr.mxu0 0.0
    %867 = vmatpush2.xpose.msra.mxu0 0.0
    %868 = vmatprep.subr.mxu0 0.0
    %869 = vmatpush2.xpose.msra.mxu0 0.0
    %870 = vmatprep.subr.mxu0 0.0
    %871 = vmatpush2.xpose.msra.mxu0 0.0
    %872 = vmatprep.subr.mxu0 0.0
    %873 = vmatpush2.xpose.msra.mxu0 0.0
    %874 = vmatprep.subr.mxu0 0.0
    %875 = vmatpush2.xpose.msra.mxu0 0.0
    %876 = vmatprep.subr.mxu0 0.0
    %877 = vmatpush2.xpose.msra.mxu0 0.0
    %878 = vmatprep.subr.mxu0 0.0
    %879 = vmatpush2.xpose.msra.mxu0 0.0
    %880 = vmatprep.subr.mxu0 0.0
    %881 = vmatpush2.xpose.msra.mxu0 0.0
    %882 = vmatprep.subr.mxu0 0.0
    %883 = vmatpush2.xpose.msra.mxu0 0.0
    %884 = vmatprep.subr.mxu0 0.0
    %885 = vmatpush2.xpose.msra.mxu0 0.0
    %886 = vmatprep.subr.mxu0 0.0
    %887 = vmatpush2.xpose.msra.mxu0 0.0
    %888 = vmatprep.subr.mxu0 0.0
    %889 = vmatpush2.xpose.msra.mxu0 0.0
    %890 = vmatprep.subr.mxu0 0.0
    %891 = vmatpush2.xpose.msra.mxu0 0.0
    %892 = vmatprep.subr.mxu0 0.0
    %893 = vmatpush2.xpose.msra.mxu0 0.0
    %894 = vmatprep.subr.mxu0 0.0
    %895 = vmatpush2.xpose.msra.mxu0 0.0
    %896 = vmatprep.subr.mxu0 0.0
    %897 = vmatpush2.xpose.msra.mxu0 0.0
    %898 = vmatprep.mubr.f32.mxu0 0.0
    %899 = vmatmul.mubr.f32.gmra.mxu0 %v830
    %v900 = vpop.f32.mrf.mxu0
    %v901 = vadd.f32 %v253, %v900
    %v902 = vpop.f32.mrf.mxu0
    %903 = vdwg.mxu0
    %904 = vrot.lane.b32.xlu0 %v370, 120
    %v905 = vpop.permute.xlu0 %904
    %v906 = vsel %vm373, %v370, 0
    %v908 = vsel %vm373, %v905, 0
    %910 = vmatprep.subr.mxu0 0.0
    %911 = vmatpush1.xpose.msra.mxu0 0.0
    %912 = vmatprep.subr.mxu0 0.0
    %913 = vmatpush1.xpose.msra.mxu0 0.0
    %914 = vmatprep.subr.mxu0 0.0
    %915 = vmatpush1.xpose.msra.mxu0 0.0
    %916 = vmatprep.subr.mxu0 0.0
    %917 = vmatpush1.xpose.msra.mxu0 0.0
    %918 = vmatprep.subr.mxu0 0.0
    %919 = vmatpush1.xpose.msra.mxu0 0.0
    %920 = vmatprep.subr.mxu0 0.0
    %921 = vmatpush1.xpose.msra.mxu0 0.0
    %922 = vmatprep.subr.mxu0 0.0
    %923 = vmatpush1.xpose.msra.mxu0 0.0
    %924 = vmatprep.subr.mxu0 0.0
    %925 = vmatpush1.xpose.msra.mxu0 0.0
    %926 = vmatprep.subr.mxu0 0.0
    %927 = vmatpush1.xpose.msra.mxu0 0.0
    %928 = vmatprep.subr.mxu0 0.0
    %929 = vmatpush1.xpose.msra.mxu0 0.0
    %930 = vmatprep.subr.mxu0 0.0
    %931 = vmatpush1.xpose.msra.mxu0 0.0
    %932 = vmatprep.subr.mxu0 0.0
    %933 = vmatpush1.xpose.msra.mxu0 0.0
    %934 = vmatprep.subr.mxu0 0.0
    %935 = vmatpush1.xpose.msra.mxu0 0.0
    %936 = vmatprep.subr.mxu0 0.0
    %937 = vmatpush1.xpose.msra.mxu0 0.0
    %938 = vmatprep.subr.mxu0 0.0
    %939 = vmatpush1.xpose.msra.mxu0 0.0
    %940 = vmatprep.subr.mxu0 0.0
    %941 = vmatpush1.xpose.msra.mxu0 %v908
    %942 = vmatprep.subr.mxu0 0.0
    %943 = vmatpush2.xpose.msra.mxu0 0.0
    %944 = vmatprep.subr.mxu0 0.0
    %945 = vmatpush2.xpose.msra.mxu0 0.0
    %946 = vmatprep.subr.mxu0 0.0
    %947 = vmatpush2.xpose.msra.mxu0 0.0
    %948 = vmatprep.subr.mxu0 0.0
    %949 = vmatpush2.xpose.msra.mxu0 0.0
    %950 = vmatprep.subr.mxu0 0.0
    %951 = vmatpush2.xpose.msra.mxu0 0.0
    %952 = vmatprep.subr.mxu0 0.0
    %953 = vmatpush2.xpose.msra.mxu0 0.0
    %954 = vmatprep.subr.mxu0 0.0
    %955 = vmatpush2.xpose.msra.mxu0 0.0
    %956 = vmatprep.subr.mxu0 0.0
    %957 = vmatpush2.xpose.msra.mxu0 0.0
    %958 = vmatprep.subr.mxu0 0.0
    %959 = vmatpush2.xpose.msra.mxu0 0.0
    %960 = vmatprep.subr.mxu0 0.0
    %961 = vmatpush2.xpose.msra.mxu0 0.0
    %962 = vmatprep.subr.mxu0 0.0
    %963 = vmatpush2.xpose.msra.mxu0 0.0
    %964 = vmatprep.subr.mxu0 0.0
    %965 = vmatpush2.xpose.msra.mxu0 0.0
    %966 = vmatprep.subr.mxu0 0.0
    %967 = vmatpush2.xpose.msra.mxu0 0.0
    %968 = vmatprep.subr.mxu0 0.0
    %969 = vmatpush2.xpose.msra.mxu0 0.0
    %970 = vmatprep.subr.mxu0 0.0
    %971 = vmatpush2.xpose.msra.mxu0 0.0
    %972 = vmatprep.subr.mxu0 0.0
    %973 = vmatpush2.xpose.msra.mxu0 0.0
    %974 = vmatprep.mubr.f32.mxu0 0.0
    %975 = vmatmul.mubr.f32.gmra.mxu0 %v906
    %v976 = vpop.f32.mrf.mxu0
    %v977 = vadd.f32 %v257, %v976
    %v978 = vpop.f32.mrf.mxu0
    %979 = vdwg.mxu0
    %v980 = vsel %vm373, %v445, -inf
    %981 = vmax.xlane.f32.xlu0 %v980
    %v982 = vpop.xlane.xlu0 %981
    %v983 = vsel %vm373, %v521, -inf
    %984 = vmax.xlane.f32.xlu0 %v983
    %v985 = vpop.xlane.xlu0 %984
    %v986 = vsel %vm373, %v597, -inf
    %987 = vmax.xlane.f32.xlu0 %v986
    %v988 = vpop.xlane.xlu0 %987
    %v989 = vsel %vm373, %v673, -inf
    %990 = vmax.xlane.f32.xlu0 %v989
    %v991 = vpop.xlane.xlu0 %990
    %v992 = vsel %vm373, %v749, -inf
    %993 = vmax.xlane.f32.xlu0 %v992
    %v994 = vpop.xlane.xlu0 %993
    %v995 = vsel %vm373, %v825, -inf
    %996 = vmax.xlane.f32.xlu0 %v995
    %v997 = vpop.xlane.xlu0 %996
    %v998 = vsel %vm373, %v901, -inf
    %999 = vmax.xlane.f32.xlu0 %v998
    %v1000 = vpop.xlane.xlu0 %999
    %v1001 = vsel %vm373, %v977, -inf
    %1002 = vmax.xlane.f32.xlu0 %v1001
    %v1003 = vpop.xlane.xlu0 %1002
    %v1004 = vsub.f32 %v445, %v982
    %v1005 = vsub.f32 %v521, %v985
    %v1006 = vsub.f32 %v597, %v988
    %v1007 = vsub.f32 %v673, %v991
    %v1008 = vsub.f32 %v749, %v994
    %v1009 = vsub.f32 %v825, %v997
    %v1010 = vsub.f32 %v901, %v1000
    %v1011 = vsub.f32 %v977, %v1003
    %v1012 = vmul.f32 %v1004, 1.442695
    %v1013 = vpow.pop %v1012
    %v1014 = vmul.f32 %v1005, 1.442695
    %v1015 = vpow.pop %v1014
    %v1016 = vmul.f32 %v1006, 1.442695
    %v1017 = vpow.pop %v1016
    %v1018 = vmul.f32 %v1007, 1.442695
    %v1019 = vpow.pop %v1018
    %v1020 = vmul.f32 %v1008, 1.442695
    %v1021 = vpow.pop %v1020
    %v1022 = vmul.f32 %v1009, 1.442695
    %v1023 = vpow.pop %v1022
    %v1024 = vmul.f32 %v1010, 1.442695
    %v1025 = vpow.pop %v1024
    %v1026 = vmul.f32 %v1011, 1.442695
    %v1027 = vpow.pop %v1026
    %v1028 = vsel %vm373, %v1013, 0.0
    %1029 = vadd.xlane.f32.xlu0 %v1028
    %v1030 = vpop.xlane.xlu0 %1029
    %v1031 = vsel %vm373, %v1015, 0.0
    %1032 = vadd.xlane.f32.xlu0 %v1031
    %v1033 = vpop.xlane.xlu0 %1032
    %v1034 = vsel %vm373, %v1017, 0.0
    %1035 = vadd.xlane.f32.xlu0 %v1034
    %v1036 = vpop.xlane.xlu0 %1035
    %v1037 = vsel %vm373, %v1019, 0.0
    %1038 = vadd.xlane.f32.xlu0 %v1037
    %v1039 = vpop.xlane.xlu0 %1038
    %v1040 = vsel %vm373, %v1021, 0.0
    %1041 = vadd.xlane.f32.xlu0 %v1040
    %v1042 = vpop.xlane.xlu0 %1041
    %v1043 = vsel %vm373, %v1023, 0.0
    %1044 = vadd.xlane.f32.xlu0 %v1043
    %v1045 = vpop.xlane.xlu0 %1044
    %v1046 = vsel %vm373, %v1025, 0.0
    %1047 = vadd.xlane.f32.xlu0 %v1046
    %v1048 = vpop.xlane.xlu0 %1047
    %v1049 = vsel %vm373, %v1027, 0.0
    %1050 = vadd.xlane.f32.xlu0 %v1049
    %v1051 = vpop.xlane.xlu0 %1050
    %v1052 = vrcp.pop %v1030
    %v1053 = vrcp.pop %v1033
    %v1054 = vrcp.pop %v1036
    %v1055 = vrcp.pop %v1039
    %v1056 = vrcp.pop %v1042
    %v1057 = vrcp.pop %v1045
    %v1058 = vrcp.pop %v1048
    %v1059 = vrcp.pop %v1051
    %v1060 = vmul.f32 %v1013, %v1052
    %v1061 = vmul.f32 %v1015, %v1053
    %v1062 = vmul.f32 %v1017, %v1054
    %v1063 = vmul.f32 %v1019, %v1055
    %v1064 = vmul.f32 %v1021, %v1056
    %v1065 = vmul.f32 %v1023, %v1057
    %v1066 = vmul.f32 %v1025, %v1058
    %v1067 = vmul.f32 %v1027, %v1059
    %1068 = vrot.lane.b32.xlu0 %v341, 112
    %v1069 = vpop.permute.xlu0 %1068
    %v1072 = vsel %vm373, %v1060, 0
    %1074 = vmatprep.subr.mxu0 0.0
    %1075 = vmatpush1.msra.mxu0 0.0
    %1076 = vmatprep.subr.mxu0 0.0
    %1077 = vmatpush1.msra.mxu0 0.0
    %1078 = vmatprep.subr.mxu0 0.0
    %1079 = vmatpush1.msra.mxu0 0.0
    %1080 = vmatprep.subr.mxu0 0.0
    %1081 = vmatpush1.msra.mxu0 0.0
    %1082 = vmatprep.subr.mxu0 0.0
    %1083 = vmatpush1.msra.mxu0 0.0
    %1084 = vmatprep.subr.mxu0 0.0
    %1085 = vmatpush1.msra.mxu0 0.0
    %1086 = vmatprep.subr.mxu0 0.0
    %1087 = vmatpush1.msra.mxu0 0.0
    %1088 = vmatprep.subr.mxu0 0.0
    %1089 = vmatpush1.msra.mxu0 0.0
    %1090 = vmatprep.subr.mxu0 0.0
    %1091 = vmatpush1.msra.mxu0 0.0
    %1092 = vmatprep.subr.mxu0 0.0
    %1093 = vmatpush1.msra.mxu0 0.0
    %1094 = vmatprep.subr.mxu0 0.0
    %1095 = vmatpush1.msra.mxu0 0.0
    %1096 = vmatprep.subr.mxu0 0.0
    %1097 = vmatpush1.msra.mxu0 0.0
    %1098 = vmatprep.subr.mxu0 0.0
    %1099 = vmatpush1.msra.mxu0 0.0
    %1100 = vmatprep.subr.mxu0 0.0
    %1101 = vmatpush1.msra.mxu0 0.0
    %1102 = vmatprep.subr.mxu0 0.0
    %1103 = vmatpush1.msra.mxu0 0.0
    %1104 = vmatprep.subr.mxu0 0.0
    %1105 = vmatpush1.msra.mxu0 %v1069
    %1106 = vmatprep.subr.mxu0 0.0
    %1107 = vmatpush2.msra.mxu0 0.0
    %1108 = vmatprep.subr.mxu0 0.0
    %1109 = vmatpush2.msra.mxu0 0.0
    %1110 = vmatprep.subr.mxu0 0.0
    %1111 = vmatpush2.msra.mxu0 0.0
    %1112 = vmatprep.subr.mxu0 0.0
    %1113 = vmatpush2.msra.mxu0 0.0
    %1114 = vmatprep.subr.mxu0 0.0
    %1115 = vmatpush2.msra.mxu0 0.0
    %1116 = vmatprep.subr.mxu0 0.0
    %1117 = vmatpush2.msra.mxu0 0.0
    %1118 = vmatprep.subr.mxu0 0.0
    %1119 = vmatpush2.msra.mxu0 0.0
    %1120 = vmatprep.subr.mxu0 0.0
    %1121 = vmatpush2.msra.mxu0 0.0
    %1122 = vmatprep.subr.mxu0 0.0
    %1123 = vmatpush2.msra.mxu0 0.0
    %1124 = vmatprep.subr.mxu0 0.0
    %1125 = vmatpush2.msra.mxu0 0.0
    %1126 = vmatprep.subr.mxu0 0.0
    %1127 = vmatpush2.msra.mxu0 0.0
    %1128 = vmatprep.subr.mxu0 0.0
    %1129 = vmatpush2.msra.mxu0 0.0
    %1130 = vmatprep.subr.mxu0 0.0
    %1131 = vmatpush2.msra.mxu0 0.0
    %1132 = vmatprep.subr.mxu0 0.0
    %1133 = vmatpush2.msra.mxu0 0.0
    %1134 = vmatprep.subr.mxu0 0.0
    %1135 = vmatpush2.msra.mxu0 0.0
    %1136 = vmatprep.subr.mxu0 0.0
    %1137 = vmatpush2.msra.mxu0 0.0
    %1138 = vmatprep.mubr.f32.mxu0 0.0
    %1139 = vmatmul.mubr.f32.gmra.mxu0 %v1072
    %v1140 = vpop.f32.mrf.mxu0
    %v1141 = vadd.f32 0.0, %v1140
    %v1142 = vpop.f32.mrf.mxu0
    %1143 = vdwg.mxu0
    %1144 = vrot.lane.b32.xlu0 %v345, 112
    %v1145 = vpop.permute.xlu0 %1144
    %v1148 = vsel %vm373, %v1061, 0
    %1150 = vmatprep.subr.mxu0 0.0
    %1151 = vmatpush1.msra.mxu0 0.0
    %1152 = vmatprep.subr.mxu0 0.0
    %1153 = vmatpush1.msra.mxu0 0.0
    %1154 = vmatprep.subr.mxu0 0.0
    %1155 = vmatpush1.msra.mxu0 0.0
    %1156 = vmatprep.subr.mxu0 0.0
    %1157 = vmatpush1.msra.mxu0 0.0
    %1158 = vmatprep.subr.mxu0 0.0
    %1159 = vmatpush1.msra.mxu0 0.0
    %1160 = vmatprep.subr.mxu0 0.0
    %1161 = vmatpush1.msra.mxu0 0.0
    %1162 = vmatprep.subr.mxu0 0.0
    %1163 = vmatpush1.msra.mxu0 0.0
    %1164 = vmatprep.subr.mxu0 0.0
    %1165 = vmatpush1.msra.mxu0 0.0
    %1166 = vmatprep.subr.mxu0 0.0
    %1167 = vmatpush1.msra.mxu0 0.0
    %1168 = vmatprep.subr.mxu0 0.0
    %1169 = vmatpush1.msra.mxu0 0.0
    %1170 = vmatprep.subr.mxu0 0.0
    %1171 = vmatpush1.msra.mxu0 0.0
    %1172 = vmatprep.subr.mxu0 0.0
    %1173 = vmatpush1.msra.mxu0 0.0
    %1174 = vmatprep.subr.mxu0 0.0
    %1175 = vmatpush1.msra.mxu0 0.0
    %1176 = vmatprep.subr.mxu0 0.0
    %1177 = vmatpush1.msra.mxu0 0.0
    %1178 = vmatprep.subr.mxu0 0.0
    %1179 = vmatpush1.msra.mxu0 0.0
    %1180 = vmatprep.subr.mxu0 0.0
    %1181 = vmatpush1.msra.mxu0 %v1145
    %1182 = vmatprep.subr.mxu0 0.0
    %1183 = vmatpush2.msra.mxu0 0.0
    %1184 = vmatprep.subr.mxu0 0.0
    %1185 = vmatpush2.msra.mxu0 0.0
    %1186 = vmatprep.subr.mxu0 0.0
    %1187 = vmatpush2.msra.mxu0 0.0
    %1188 = vmatprep.subr.mxu0 0.0
    %1189 = vmatpush2.msra.mxu0 0.0
    %1190 = vmatprep.subr.mxu0 0.0
    %1191 = vmatpush2.msra.mxu0 0.0
    %1192 = vmatprep.subr.mxu0 0.0
    %1193 = vmatpush2.msra.mxu0 0.0
    %1194 = vmatprep.subr.mxu0 0.0
    %1195 = vmatpush2.msra.mxu0 0.0
    %1196 = vmatprep.subr.mxu0 0.0
    %1197 = vmatpush2.msra.mxu0 0.0
    %1198 = vmatprep.subr.mxu0 0.0
    %1199 = vmatpush2.msra.mxu0 0.0
    %1200 = vmatprep.subr.mxu0 0.0
    %1201 = vmatpush2.msra.mxu0 0.0
    %1202 = vmatprep.subr.mxu0 0.0
    %1203 = vmatpush2.msra.mxu0 0.0
    %1204 = vmatprep.subr.mxu0 0.0
    %1205 = vmatpush2.msra.mxu0 0.0
    %1206 = vmatprep.subr.mxu0 0.0
    %1207 = vmatpush2.msra.mxu0 0.0
    %1208 = vmatprep.subr.mxu0 0.0
    %1209 = vmatpush2.msra.mxu0 0.0
    %1210 = vmatprep.subr.mxu0 0.0
    %1211 = vmatpush2.msra.mxu0 0.0
    %1212 = vmatprep.subr.mxu0 0.0
    %1213 = vmatpush2.msra.mxu0 0.0
    %1214 = vmatprep.mubr.f32.mxu0 0.0
    %1215 = vmatmul.mubr.f32.gmra.mxu0 %v1148
    %v1216 = vpop.f32.mrf.mxu0
    %v1217 = vadd.f32 0.0, %v1216
    %v1218 = vpop.f32.mrf.mxu0
    %1219 = vdwg.mxu0
    %1220 = vrot.lane.b32.xlu0 %v352, 112
    %v1221 = vpop.permute.xlu0 %1220
    %v1224 = vsel %vm373, %v1062, 0
    %1226 = vmatprep.subr.mxu0 0.0
    %1227 = vmatpush1.msra.mxu0 0.0
    %1228 = vmatprep.subr.mxu0 0.0
    %1229 = vmatpush1.msra.mxu0 0.0
    %1230 = vmatprep.subr.mxu0 0.0
    %1231 = vmatpush1.msra.mxu0 0.0
    %1232 = vmatprep.subr.mxu0 0.0
    %1233 = vmatpush1.msra.mxu0 0.0
    %1234 = vmatprep.subr.mxu0 0.0
    %1235 = vmatpush1.msra.mxu0 0.0
    %1236 = vmatprep.subr.mxu0 0.0
    %1237 = vmatpush1.msra.mxu0 0.0
    %1238 = vmatprep.subr.mxu0 0.0
    %1239 = vmatpush1.msra.mxu0 0.0
    %1240 = vmatprep.subr.mxu0 0.0
    %1241 = vmatpush1.msra.mxu0 0.0
    %1242 = vmatprep.subr.mxu0 0.0
    %1243 = vmatpush1.msra.mxu0 0.0
    %1244 = vmatprep.subr.mxu0 0.0
    %1245 = vmatpush1.msra.mxu0 0.0
    %1246 = vmatprep.subr.mxu0 0.0
    %1247 = vmatpush1.msra.mxu0 0.0
    %1248 = vmatprep.subr.mxu0 0.0
    %1249 = vmatpush1.msra.mxu0 0.0
    %1250 = vmatprep.subr.mxu0 0.0
    %1251 = vmatpush1.msra.mxu0 0.0
    %1252 = vmatprep.subr.mxu0 0.0
    %1253 = vmatpush1.msra.mxu0 0.0
    %1254 = vmatprep.subr.mxu0 0.0
    %1255 = vmatpush1.msra.mxu0 0.0
    %1256 = vmatprep.subr.mxu0 0.0
    %1257 = vmatpush1.msra.mxu0 %v1221
    %1258 = vmatprep.subr.mxu0 0.0
    %1259 = vmatpush2.msra.mxu0 0.0
    %1260 = vmatprep.subr.mxu0 0.0
    %1261 = vmatpush2.msra.mxu0 0.0
    %1262 = vmatprep.subr.mxu0 0.0
    %1263 = vmatpush2.msra.mxu0 0.0
    %1264 = vmatprep.subr.mxu0 0.0
    %1265 = vmatpush2.msra.mxu0 0.0
    %1266 = vmatprep.subr.mxu0 0.0
    %1267 = vmatpush2.msra.mxu0 0.0
    %1268 = vmatprep.subr.mxu0 0.0
    %1269 = vmatpush2.msra.mxu0 0.0
    %1270 = vmatprep.subr.mxu0 0.0
    %1271 = vmatpush2.msra.mxu0 0.0
    %1272 = vmatprep.subr.mxu0 0.0
    %1273 = vmatpush2.msra.mxu0 0.0
    %1274 = vmatprep.subr.mxu0 0.0
    %1275 = vmatpush2.msra.mxu0 0.0
    %1276 = vmatprep.subr.mxu0 0.0
    %1277 = vmatpush2.msra.mxu0 0.0
    %1278 = vmatprep.subr.mxu0 0.0
    %1279 = vmatpush2.msra.mxu0 0.0
    %1280 = vmatprep.subr.mxu0 0.0
    %1281 = vmatpush2.msra.mxu0 0.0
    %1282 = vmatprep.subr.mxu0 0.0
    %1283 = vmatpush2.msra.mxu0 0.0
    %1284 = vmatprep.subr.mxu0 0.0
    %1285 = vmatpush2.msra.mxu0 0.0
    %1286 = vmatprep.subr.mxu0 0.0
    %1287 = vmatpush2.msra.mxu0 0.0
    %1288 = vmatprep.subr.mxu0 0.0
    %1289 = vmatpush2.msra.mxu0 0.0
    %1290 = vmatprep.mubr.f32.mxu0 0.0
    %1291 = vmatmul.mubr.f32.gmra.mxu0 %v1224
    %v1292 = vpop.f32.mrf.mxu0
    %v1293 = vadd.f32 0.0, %v1292
    %v1294 = vpop.f32.mrf.mxu0
    %1295 = vdwg.mxu0
    %1296 = vrot.lane.b32.xlu0 %v354, 112
    %v1297 = vpop.permute.xlu0 %1296
    %v1300 = vsel %vm373, %v1063, 0
    %1302 = vmatprep.subr.mxu0 0.0
    %1303 = vmatpush1.msra.mxu0 0.0
    %1304 = vmatprep.subr.mxu0 0.0
    %1305 = vmatpush1.msra.mxu0 0.0
    %1306 = vmatprep.subr.mxu0 0.0
    %1307 = vmatpush1.msra.mxu0 0.0
    %1308 = vmatprep.subr.mxu0 0.0
    %1309 = vmatpush1.msra.mxu0 0.0
    %1310 = vmatprep.subr.mxu0 0.0
    %1311 = vmatpush1.msra.mxu0 0.0
    %1312 = vmatprep.subr.mxu0 0.0
    %1313 = vmatpush1.msra.mxu0 0.0
    %1314 = vmatprep.subr.mxu0 0.0
    %1315 = vmatpush1.msra.mxu0 0.0
    %1316 = vmatprep.subr.mxu0 0.0
    %1317 = vmatpush1.msra.mxu0 0.0
    %1318 = vmatprep.subr.mxu0 0.0
    %1319 = vmatpush1.msra.mxu0 0.0
    %1320 = vmatprep.subr.mxu0 0.0
    %1321 = vmatpush1.msra.mxu0 0.0
    %1322 = vmatprep.subr.mxu0 0.0
    %1323 = vmatpush1.msra.mxu0 0.0
    %1324 = vmatprep.subr.mxu0 0.0
    %1325 = vmatpush1.msra.mxu0 0.0
    %1326 = vmatprep.subr.mxu0 0.0
    %1327 = vmatpush1.msra.mxu0 0.0
    %1328 = vmatprep.subr.mxu0 0.0
    %1329 = vmatpush1.msra.mxu0 0.0
    %1330 = vmatprep.subr.mxu0 0.0
    %1331 = vmatpush1.msra.mxu0 0.0
    %1332 = vmatprep.subr.mxu0 0.0
    %1333 = vmatpush1.msra.mxu0 %v1297
    %1334 = vmatprep.subr.mxu0 0.0
    %1335 = vmatpush2.msra.mxu0 0.0
    %1336 = vmatprep.subr.mxu0 0.0
    %1337 = vmatpush2.msra.mxu0 0.0
    %1338 = vmatprep.subr.mxu0 0.0
    %1339 = vmatpush2.msra.mxu0 0.0
    %1340 = vmatprep.subr.mxu0 0.0
    %1341 = vmatpush2.msra.mxu0 0.0
    %1342 = vmatprep.subr.mxu0 0.0
    %1343 = vmatpush2.msra.mxu0 0.0
    %1344 = vmatprep.subr.mxu0 0.0
    %1345 = vmatpush2.msra.mxu0 0.0
    %1346 = vmatprep.subr.mxu0 0.0
    %1347 = vmatpush2.msra.mxu0 0.0
    %1348 = vmatprep.subr.mxu0 0.0
    %1349 = vmatpush2.msra.mxu0 0.0
    %1350 = vmatprep.subr.mxu0 0.0
    %1351 = vmatpush2.msra.mxu0 0.0
    %1352 = vmatprep.subr.mxu0 0.0
    %1353 = vmatpush2.msra.mxu0 0.0
    %1354 = vmatprep.subr.mxu0 0.0
    %1355 = vmatpush2.msra.mxu0 0.0
    %1356 = vmatprep.subr.mxu0 0.0
    %1357 = vmatpush2.msra.mxu0 0.0
    %1358 = vmatprep.subr.mxu0 0.0
    %1359 = vmatpush2.msra.mxu0 0.0
    %1360 = vmatprep.subr.mxu0 0.0
    %1361 = vmatpush2.msra.mxu0 0.0
    %1362 = vmatprep.subr.mxu0 0.0
    %1363 = vmatpush2.msra.mxu0 0.0
    %1364 = vmatprep.subr.mxu0 0.0
    %1365 = vmatpush2.msra.mxu0 0.0
    %1366 = vmatprep.mubr.f32.mxu0 0.0
    %1367 = vmatmul.mubr.f32.gmra.mxu0 %v1300
    %v1368 = vpop.f32.mrf.mxu0
    %v1369 = vadd.f32 0.0, %v1368
    %v1370 = vpop.f32.mrf.mxu0
    %1371 = vdwg.mxu0
    %1372 = vrot.lane.b32.xlu0 %v365, 112
    %v1373 = vpop.permute.xlu0 %1372
    %v1376 = vsel %vm373, %v1064, 0
    %1378 = vmatprep.subr.mxu0 0.0
    %1379 = vmatpush1.msra.mxu0 0.0
    %1380 = vmatprep.subr.mxu0 0.0
    %1381 = vmatpush1.msra.mxu0 0.0
    %1382 = vmatprep.subr.mxu0 0.0
    %1383 = vmatpush1.msra.mxu0 0.0
    %1384 = vmatprep.subr.mxu0 0.0
    %1385 = vmatpush1.msra.mxu0 0.0
    %1386 = vmatprep.subr.mxu0 0.0
    %1387 = vmatpush1.msra.mxu0 0.0
    %1388 = vmatprep.subr.mxu0 0.0
    %1389 = vmatpush1.msra.mxu0 0.0
    %1390 = vmatprep.subr.mxu0 0.0
    %1391 = vmatpush1.msra.mxu0 0.0
    %1392 = vmatprep.subr.mxu0 0.0
    %1393 = vmatpush1.msra.mxu0 0.0
    %1394 = vmatprep.subr.mxu0 0.0
    %1395 = vmatpush1.msra.mxu0 0.0
    %1396 = vmatprep.subr.mxu0 0.0
    %1397 = vmatpush1.msra.mxu0 0.0
    %1398 = vmatprep.subr.mxu0 0.0
    %1399 = vmatpush1.msra.mxu0 0.0
    %1400 = vmatprep.subr.mxu0 0.0
    %1401 = vmatpush1.msra.mxu0 0.0
    %1402 = vmatprep.subr.mxu0 0.0
    %1403 = vmatpush1.msra.mxu0 0.0
    %1404 = vmatprep.subr.mxu0 0.0
    %1405 = vmatpush1.msra.mxu0 0.0
    %1406 = vmatprep.subr.mxu0 0.0
    %1407 = vmatpush1.msra.mxu0 0.0
    %1408 = vmatprep.subr.mxu0 0.0
    %1409 = vmatpush1.msra.mxu0 %v1373
    %1410 = vmatprep.subr.mxu0 0.0
    %1411 = vmatpush2.msra.mxu0 0.0
    %1412 = vmatprep.subr.mxu0 0.0
    %1413 = vmatpush2.msra.mxu0 0.0
    %1414 = vmatprep.subr.mxu0 0.0
    %1415 = vmatpush2.msra.mxu0 0.0
    %1416 = vmatprep.subr.mxu0 0.0
    %1417 = vmatpush2.msra.mxu0 0.0
    %1418 = vmatprep.subr.mxu0 0.0
    %1419 = vmatpush2.msra.mxu0 0.0
    %1420 = vmatprep.subr.mxu0 0.0
    %1421 = vmatpush2.msra.mxu0 0.0
    %1422 = vmatprep.subr.mxu0 0.0
    %1423 = vmatpush2.msra.mxu0 0.0
    %1424 = vmatprep.subr.mxu0 0.0
    %1425 = vmatpush2.msra.mxu0 0.0
    %1426 = vmatprep.subr.mxu0 0.0
    %1427 = vmatpush2.msra.mxu0 0.0
    %1428 = vmatprep.subr.mxu0 0.0
    %1429 = vmatpush2.msra.mxu0 0.0
    %1430 = vmatprep.subr.mxu0 0.0
    %1431 = vmatpush2.msra.mxu0 0.0
    %1432 = vmatprep.subr.mxu0 0.0
    %1433 = vmatpush2.msra.mxu0 0.0
    %1434 = vmatprep.subr.mxu0 0.0
    %1435 = vmatpush2.msra.mxu0 0.0
    %1436 = vmatprep.subr.mxu0 0.0
    %1437 = vmatpush2.msra.mxu0 0.0
    %1438 = vmatprep.subr.mxu0 0.0
    %1439 = vmatpush2.msra.mxu0 0.0
    %1440 = vmatprep.subr.mxu0 0.0
    %1441 = vmatpush2.msra.mxu0 0.0
    %1442 = vmatprep.mubr.f32.mxu0 0.0
    %1443 = vmatmul.mubr.f32.gmra.mxu0 %v1376
    %v1444 = vpop.f32.mrf.mxu0
    %v1445 = vadd.f32 0.0, %v1444
    %v1446 = vpop.f32.mrf.mxu0
    %1447 = vdwg.mxu0
    %1448 = vrot.lane.b32.xlu0 %v366, 112
    %v1449 = vpop.permute.xlu0 %1448
    %v1452 = vsel %vm373, %v1065, 0
    %1454 = vmatprep.subr.mxu0 0.0
    %1455 = vmatpush1.msra.mxu0 0.0
    %1456 = vmatprep.subr.mxu0 0.0
    %1457 = vmatpush1.msra.mxu0 0.0
    %1458 = vmatprep.subr.mxu0 0.0
    %1459 = vmatpush1.msra.mxu0 0.0
    %1460 = vmatprep.subr.mxu0 0.0
    %1461 = vmatpush1.msra.mxu0 0.0
    %1462 = vmatprep.subr.mxu0 0.0
    %1463 = vmatpush1.msra.mxu0 0.0
    %1464 = vmatprep.subr.mxu0 0.0
    %1465 = vmatpush1.msra.mxu0 0.0
    %1466 = vmatprep.subr.mxu0 0.0
    %1467 = vmatpush1.msra.mxu0 0.0
    %1468 = vmatprep.subr.mxu0 0.0
    %1469 = vmatpush1.msra.mxu0 0.0
    %1470 = vmatprep.subr.mxu0 0.0
    %1471 = vmatpush1.msra.mxu0 0.0
    %1472 = vmatprep.subr.mxu0 0.0
    %1473 = vmatpush1.msra.mxu0 0.0
    %1474 = vmatprep.subr.mxu0 0.0
    %1475 = vmatpush1.msra.mxu0 0.0
    %1476 = vmatprep.subr.mxu0 0.0
    %1477 = vmatpush1.msra.mxu0 0.0
    %1478 = vmatprep.subr.mxu0 0.0
    %1479 = vmatpush1.msra.mxu0 0.0
    %1480 = vmatprep.subr.mxu0 0.0
    %1481 = vmatpush1.msra.mxu0 0.0
    %1482 = vmatprep.subr.mxu0 0.0
    %1483 = vmatpush1.msra.mxu0 0.0
    %1484 = vmatprep.subr.mxu0 0.0
    %1485 = vmatpush1.msra.mxu0 %v1449
    %1486 = vmatprep.subr.mxu0 0.0
    %1487 = vmatpush2.msra.mxu0 0.0
    %1488 = vmatprep.subr.mxu0 0.0
    %1489 = vmatpush2.msra.mxu0 0.0
    %1490 = vmatprep.subr.mxu0 0.0
    %1491 = vmatpush2.msra.mxu0 0.0
    %1492 = vmatprep.subr.mxu0 0.0
    %1493 = vmatpush2.msra.mxu0 0.0
    %1494 = vmatprep.subr.mxu0 0.0
    %1495 = vmatpush2.msra.mxu0 0.0
    %1496 = vmatprep.subr.mxu0 0.0
    %1497 = vmatpush2.msra.mxu0 0.0
    %1498 = vmatprep.subr.mxu0 0.0
    %1499 = vmatpush2.msra.mxu0 0.0
    %1500 = vmatprep.subr.mxu0 0.0
    %1501 = vmatpush2.msra.mxu0 0.0
    %1502 = vmatprep.subr.mxu0 0.0
    %1503 = vmatpush2.msra.mxu0 0.0
    %1504 = vmatprep.subr.mxu0 0.0
    %1505 = vmatpush2.msra.mxu0 0.0
    %1506 = vmatprep.subr.mxu0 0.0
    %1507 = vmatpush2.msra.mxu0 0.0
    %1508 = vmatprep.subr.mxu0 0.0
    %1509 = vmatpush2.msra.mxu0 0.0
    %1510 = vmatprep.subr.mxu0 0.0
    %1511 = vmatpush2.msra.mxu0 0.0
    %1512 = vmatprep.subr.mxu0 0.0
    %1513 = vmatpush2.msra.mxu0 0.0
    %1514 = vmatprep.subr.mxu0 0.0
    %1515 = vmatpush2.msra.mxu0 0.0
    %1516 = vmatprep.subr.mxu0 0.0
    %1517 = vmatpush2.msra.mxu0 0.0
    %1518 = vmatprep.mubr.f32.mxu0 0.0
    %1519 = vmatmul.mubr.f32.gmra.mxu0 %v1452
    %v1520 = vpop.f32.mrf.mxu0
    %v1521 = vadd.f32 0.0, %v1520
    %v1522 = vpop.f32.mrf.mxu0
    %1523 = vdwg.mxu0
    %1524 = vrot.lane.b32.xlu0 %v368, 112
    %v1525 = vpop.permute.xlu0 %1524
    %v1528 = vsel %vm373, %v1066, 0
    %1530 = vmatprep.subr.mxu0 0.0
    %1531 = vmatpush1.msra.mxu0 0.0
    %1532 = vmatprep.subr.mxu0 0.0
    %1533 = vmatpush1.msra.mxu0 0.0
    %1534 = vmatprep.subr.mxu0 0.0
    %1535 = vmatpush1.msra.mxu0 0.0
    %1536 = vmatprep.subr.mxu0 0.0
    %1537 = vmatpush1.msra.mxu0 0.0
    %1538 = vmatprep.subr.mxu0 0.0
    %1539 = vmatpush1.msra.mxu0 0.0
    %1540 = vmatprep.subr.mxu0 0.0
    %1541 = vmatpush1.msra.mxu0 0.0
    %1542 = vmatprep.subr.mxu0 0.0
    %1543 = vmatpush1.msra.mxu0 0.0
    %1544 = vmatprep.subr.mxu0 0.0
    %1545 = vmatpush1.msra.mxu0 0.0
    %1546 = vmatprep.subr.mxu0 0.0
    %1547 = vmatpush1.msra.mxu0 0.0
    %1548 = vmatprep.subr.mxu0 0.0
    %1549 = vmatpush1.msra.mxu0 0.0
    %1550 = vmatprep.subr.mxu0 0.0
    %1551 = vmatpush1.msra.mxu0 0.0
    %1552 = vmatprep.subr.mxu0 0.0
    %1553 = vmatpush1.msra.mxu0 0.0
    %1554 = vmatprep.subr.mxu0 0.0
    %1555 = vmatpush1.msra.mxu0 0.0
    %1556 = vmatprep.subr.mxu0 0.0
    %1557 = vmatpush1.msra.mxu0 0.0
    %1558 = vmatprep.subr.mxu0 0.0
    %1559 = vmatpush1.msra.mxu0 0.0
    %1560 = vmatprep.subr.mxu0 0.0
    %1561 = vmatpush1.msra.mxu0 %v1525
    %1562 = vmatprep.subr.mxu0 0.0
    %1563 = vmatpush2.msra.mxu0 0.0
    %1564 = vmatprep.subr.mxu0 0.0
    %1565 = vmatpush2.msra.mxu0 0.0
    %1566 = vmatprep.subr.mxu0 0.0
    %1567 = vmatpush2.msra.mxu0 0.0
    %1568 = vmatprep.subr.mxu0 0.0
    %1569 = vmatpush2.msra.mxu0 0.0
    %1570 = vmatprep.subr.mxu0 0.0
    %1571 = vmatpush2.msra.mxu0 0.0
    %1572 = vmatprep.subr.mxu0 0.0
    %1573 = vmatpush2.msra.mxu0 0.0
    %1574 = vmatprep.subr.mxu0 0.0
    %1575 = vmatpush2.msra.mxu0 0.0
    %1576 = vmatprep.subr.mxu0 0.0
    %1577 = vmatpush2.msra.mxu0 0.0
    %1578 = vmatprep.subr.mxu0 0.0
    %1579 = vmatpush2.msra.mxu0 0.0
    %1580 = vmatprep.subr.mxu0 0.0
    %1581 = vmatpush2.msra.mxu0 0.0
    %1582 = vmatprep.subr.mxu0 0.0
    %1583 = vmatpush2.msra.mxu0 0.0
    %1584 = vmatprep.subr.mxu0 0.0
    %1585 = vmatpush2.msra.mxu0 0.0
    %1586 = vmatprep.subr.mxu0 0.0
    %1587 = vmatpush2.msra.mxu0 0.0
    %1588 = vmatprep.subr.mxu0 0.0
    %1589 = vmatpush2.msra.mxu0 0.0
    %1590 = vmatprep.subr.mxu0 0.0
    %1591 = vmatpush2.msra.mxu0 0.0
    %1592 = vmatprep.subr.mxu0 0.0
    %1593 = vmatpush2.msra.mxu0 0.0
    %1594 = vmatprep.mubr.f32.mxu0 0.0
    %1595 = vmatmul.mubr.f32.gmra.mxu0 %v1528
    %v1596 = vpop.f32.mrf.mxu0
    %v1597 = vadd.f32 0.0, %v1596
    %v1598 = vpop.f32.mrf.mxu0
    %1599 = vdwg.mxu0
    %1600 = vrot.lane.b32.xlu0 %v370, 112
    %v1601 = vpop.permute.xlu0 %1600
    %v1604 = vsel %vm373, %v1067, 0
    %1606 = vmatprep.subr.mxu0 0.0
    %1607 = vmatpush1.msra.mxu0 0.0
    %1608 = vmatprep.subr.mxu0 0.0
    %1609 = vmatpush1.msra.mxu0 0.0
    %1610 = vmatprep.subr.mxu0 0.0
    %1611 = vmatpush1.msra.mxu0 0.0
    %1612 = vmatprep.subr.mxu0 0.0
    %1613 = vmatpush1.msra.mxu0 0.0
    %1614 = vmatprep.subr.mxu0 0.0
    %1615 = vmatpush1.msra.mxu0 0.0
    %1616 = vmatprep.subr.mxu0 0.0
    %1617 = vmatpush1.msra.mxu0 0.0
    %1618 = vmatprep.subr.mxu0 0.0
    %1619 = vmatpush1.msra.mxu0 0.0
    %1620 = vmatprep.subr.mxu0 0.0
    %1621 = vmatpush1.msra.mxu0 0.0
    %1622 = vmatprep.subr.mxu0 0.0
    %1623 = vmatpush1.msra.mxu0 0.0
    %1624 = vmatprep.subr.mxu0 0.0
    %1625 = vmatpush1.msra.mxu0 0.0
    %1626 = vmatprep.subr.mxu0 0.0
    %1627 = vmatpush1.msra.mxu0 0.0
    %1628 = vmatprep.subr.mxu0 0.0
    %1629 = vmatpush1.msra.mxu0 0.0
    %1630 = vmatprep.subr.mxu0 0.0
    %1631 = vmatpush1.msra.mxu0 0.0
    %1632 = vmatprep.subr.mxu0 0.0
    %1633 = vmatpush1.msra.mxu0 0.0
    %1634 = vmatprep.subr.mxu0 0.0
    %1635 = vmatpush1.msra.mxu0 0.0
    %1636 = vmatprep.subr.mxu0 0.0
    %1637 = vmatpush1.msra.mxu0 %v1601
    %1638 = vmatprep.subr.mxu0 0.0
    %1639 = vmatpush2.msra.mxu0 0.0
    %1640 = vmatprep.subr.mxu0 0.0
    %1641 = vmatpush2.msra.mxu0 0.0
    %1642 = vmatprep.subr.mxu0 0.0
    %1643 = vmatpush2.msra.mxu0 0.0
    %1644 = vmatprep.subr.mxu0 0.0
    %1645 = vmatpush2.msra.mxu0 0.0
    %1646 = vmatprep.subr.mxu0 0.0
    %1647 = vmatpush2.msra.mxu0 0.0
    %1648 = vmatprep.subr.mxu0 0.0
    %1649 = vmatpush2.msra.mxu0 0.0
    %1650 = vmatprep.subr.mxu0 0.0
    %1651 = vmatpush2.msra.mxu0 0.0
    %1652 = vmatprep.subr.mxu0 0.0
    %1653 = vmatpush2.msra.mxu0 0.0
    %1654 = vmatprep.subr.mxu0 0.0
    %1655 = vmatpush2.msra.mxu0 0.0
    %1656 = vmatprep.subr.mxu0 0.0
    %1657 = vmatpush2.msra.mxu0 0.0
    %1658 = vmatprep.subr.mxu0 0.0
    %1659 = vmatpush2.msra.mxu0 0.0
    %1660 = vmatprep.subr.mxu0 0.0
    %1661 = vmatpush2.msra.mxu0 0.0
    %1662 = vmatprep.subr.mxu0 0.0
    %1663 = vmatpush2.msra.mxu0 0.0
    %1664 = vmatprep.subr.mxu0 0.0
    %1665 = vmatpush2.msra.mxu0 0.0
    %1666 = vmatprep.subr.mxu0 0.0
    %1667 = vmatpush2.msra.mxu0 0.0
    %1668 = vmatprep.subr.mxu0 0.0
    %1669 = vmatpush2.msra.mxu0 0.0
    %1670 = vmatprep.mubr.f32.mxu0 0.0
    %1671 = vmatmul.mubr.f32.gmra.mxu0 %v1604
    %v1672 = vpop.f32.mrf.mxu0
    %v1673 = vadd.f32 0.0, %v1672
    %v1674 = vpop.f32.mrf.mxu0
    %1675 = vdwg.mxu0
    %v1676 = vsel %vm135, %v1141, 0.0
    %v1677 = vsel %vm135, %v1293, 0.0
    %v1678 = vadd.f32 %v1676, %v1677
    %v1679 = vsel %vm135, %v1445, 0.0
    %v1680 = vadd.f32 %v1678, %v1679
    %v1681 = vsel %vm135, %v1597, 0.0
    %v1682 = vadd.f32 %v1680, %v1681
    %v1683 = vsel %vm135, %v1217, 0.0
    %v1684 = vsel %vm135, %v1369, 0.0
    %v1685 = vadd.f32 %v1683, %v1684
    %v1686 = vsel %vm135, %v1521, 0.0
    %v1687 = vadd.f32 %v1685, %v1686
    %v1688 = vsel %vm135, %v1673, 0.0
    %v1689 = vadd.f32 %v1687, %v1688
    %v1690 = vadd.f32 %v1682, %v173
    %v1691 = vadd.f32 %v1689, %v174
    %v1692 = vld [vmem:[%s9 + $0x2] sm:$0x1]
    %v1693 = vld [vmem:[%s9 + $0x3] sm:$0x1]
    %v1694 = vsel %vm135, %v1690, 0.0
    %1695 = vadd.xlane.f32.xlu0 %v1694
    %v1696 = vpop.xlane.xlu0 %1695
    %v1697 = vsel %vm135, %v1691, 0.0
    %1698 = vadd.xlane.f32.xlu0 %v1697
    %v1699 = vpop.xlane.xlu0 %1698
    %v1700 = vmul.f32 %v1696, %v142
    %v1701 = vmul.f32 %v1699, %v142
    %v1702 = vsub.f32 %v1690, %v1700
    %v1703 = vsub.f32 %v1691, %v1701
    %v1704 = vmul.f32 %v1702, %v1702
    %v1705 = vmul.f32 %v1703, %v1703
    %v1706 = vsel %vm135, %v1704, 0.0
    %1707 = vadd.xlane.f32.xlu0 %v1706
    %v1708 = vpop.xlane.xlu0 %1707
    %v1709 = vsel %vm135, %v1705, 0.0
    %1710 = vadd.xlane.f32.xlu0 %v1709
    %v1711 = vpop.xlane.xlu0 %1710
    %v1712 = vmul.f32 %v1708, %v142
    %v1713 = vmul.f32 %v1711, %v142
    %v1714 = vadd.f32 %v1712, 1e-12
    %v1715 = vadd.f32 %v1713, 1e-12
    %v1716 = vrsqrt.pop %v1714
    %v1717 = vrsqrt.pop %v1715
    %v1718 = vmul.f32 %v1702, %v1716
    %v1719 = vmul.f32 %v1703, %v1717
    %v1720 = vlaneseq
    %v1721 = vshrl.u32 %v1720, 7
    %v1722 = vsub.s32 0, %v1721
    %v1723 = vrot.slane %v1692, %v1722
    %v1724 = vmul.f32 %v1718, %v1723
    %v1725 = vmul.f32 %v1719, %v1723
    %v1726 = vlaneseq
    %v1727 = vshrl.u32 %v1726, 7
    %v1728 = vsub.s32 0, %v1727
    %v1729 = vrot.slane %v1693, %v1728
    %v1730 = vadd.f32 %v1724, %v1729
    %v1731 = vadd.f32 %v1725, %v1729
    %v1732 = vpack.c.bf16 %v1731, %v1730
    %v1733 = vld [vmem:[%s5] sm:$0xf]
    %v1734 = vld [vmem:[%s5 + $0x4] sm:$0xf]
    %v1735 = vld [vmem:[%s5 + $0x8] sm:$0xf]
    %v1736 = vld [vmem:[%s5 + $0xc] sm:$0xf]
    %v1737 = vld [vmem:[%s8] sm:$0x1]
    %v1738 = vlaneseq
    %v1739 = vshrl.u32 %v1738, 7
    %v1740 = vsub.s32 0, %v1739
    %v1741 = vrot.slane %v1737, %v1740
    %v1746 = vunpack.c.l.b16 %v1733
    %v1747 = vunpack.c.l.b16 %v1734
    %v1748 = vunpack.c.l.b16 %v1735
    %v1749 = vunpack.c.l.b16 %v1736
    %v1750 = vpack.c.b16 %v1747, %v1746
    %v1751 = vpack.c.b16 %v1749, %v1748
    %v1755 = vsel %vm135, %v1732, 0
    %1757 = vmatprep.subr.bf16.mxu0 0
    %1758 = vmatpush1.bf16.msra.mxu0 0
    %1759 = vmatprep.subr.bf16.mxu0 0
    %1760 = vmatpush1.bf16.msra.mxu0 0
    %1761 = vmatprep.subr.bf16.mxu0 0
    %1762 = vmatpush1.bf16.msra.mxu0 0
    %1763 = vmatprep.subr.bf16.mxu0 0
    %1764 = vmatpush1.bf16.msra.mxu0 0
    %1765 = vmatprep.subr.bf16.mxu0 0
    %1766 = vmatpush1.bf16.msra.mxu0 0
    %1767 = vmatprep.subr.bf16.mxu0 0
    %1768 = vmatpush1.bf16.msra.mxu0 0
    %1769 = vmatprep.subr.bf16.mxu0 0
    %1770 = vmatpush1.bf16.msra.mxu0 %v1751
    %1771 = vmatprep.subr.bf16.mxu0 0
    %1772 = vmatpush1.bf16.msra.mxu0 %v1750
    %1773 = vmatprep.subr.bf16.mxu0 0
    %1774 = vmatpush2.bf16.msra.mxu0 0
    %1775 = vmatprep.subr.bf16.mxu0 0
    %1776 = vmatpush2.bf16.msra.mxu0 0
    %1777 = vmatprep.subr.bf16.mxu0 0
    %1778 = vmatpush2.bf16.msra.mxu0 0
    %1779 = vmatprep.subr.bf16.mxu0 0
    %1780 = vmatpush2.bf16.msra.mxu0 0
    %1781 = vmatprep.subr.bf16.mxu0 0
    %1782 = vmatpush2.bf16.msra.mxu0 0
    %1783 = vmatprep.subr.bf16.mxu0 0
    %1784 = vmatpush2.bf16.msra.mxu0 0
    %1785 = vmatprep.subr.bf16.mxu0 0
    %1786 = vmatpush2.bf16.msra.mxu0 0
    %1787 = vmatprep.subr.bf16.mxu0 0
    %1788 = vmatpush2.bf16.msra.mxu0 0
    %1789 = vmatprep.mubr.bf16.mxu0 0
    %1790 = vmatmul.mubr.bf16.gmra.mxu0 %v1755
    %v1791 = vpop.f32.mrf.mxu0
    %v1792 = vadd.f32 %v1741, %v1791
    %v1793 = vpop.f32.mrf.mxu0
    %v1794 = vpop.f32.mrf.mxu0
    %v1795 = vadd.f32 %v1741, %v1794
    %v1796 = vpop.f32.mrf.mxu0
    %1797 = vdwg.mxu0
    %v1798 = vmul.f32 %v1792, 0.5
    %v1799 = vmul.f32 %v1795, 0.5
    %v1800 = vmul.f32 %v1792, 0.044715
    %v1801 = vmul.f32 %v1795, 0.044715
    %v1802 = vmul.f32 %v1800, %v1792
    %v1803 = vmul.f32 %v1801, %v1795
    %v1804 = vmul.f32 %v1802, %v1792
    %v1805 = vmul.f32 %v1803, %v1795
    %v1806 = vadd.f32 %v1792, %v1804
    %v1807 = vadd.f32 %v1795, %v1805
    %v1808 = vmul.f32 %v1806, 0.7978846
    %v1809 = vmul.f32 %v1807, 0.7978846
    %v1810 = vtanh.pop %v1808
    %v1811 = vtanh.pop %v1809
    %v1812 = vadd.f32 %v1810, 1.0
    %v1813 = vadd.f32 %v1811, 1.0
    %v1814 = vmul.f32 %v1798, %v1812
    %v1815 = vmul.f32 %v1799, %v1813
    %v1816 = vpack.c.bf16 %v1815, %v1814
    %v1817 = vld [vmem:[%s6] sm:$0xf]
    %v1818 = vld [vmem:[%s6 + $0x4] sm:$0xf]
    %v1819 = vld [vmem:[%s6 + $0x8] sm:$0xf]
    %v1820 = vld [vmem:[%s6 + $0xc] sm:$0xf]
    %v1821 = vld [vmem:[%s6 + $0x10] sm:$0xf]
    %v1822 = vld [vmem:[%s6 + $0x14] sm:$0xf]
    %v1823 = vld [vmem:[%s6 + $0x18] sm:$0xf]
    %v1824 = vld [vmem:[%s6 + $0x1c] sm:$0xf]
    %v1825 = vld [vmem:[%s6 + $0x20] sm:$0xf]
    %v1826 = vld [vmem:[%s6 + $0x24] sm:$0xf]
    %v1827 = vld [vmem:[%s6 + $0x28] sm:$0xf]
    %v1828 = vld [vmem:[%s6 + $0x2c] sm:$0xf]
    %v1829 = vld [vmem:[%s6 + $0x30] sm:$0xf]
    %v1830 = vld [vmem:[%s6 + $0x34] sm:$0xf]
    %v1831 = vld [vmem:[%s6 + $0x38] sm:$0xf]
    %v1832 = vld [vmem:[%s6 + $0x3c] sm:$0xf]
    %v1833 = vld [vmem:[%s9 + $0x4] sm:$0x1]
    %v1834 = vlaneseq
    %v1835 = vshrl.u32 %v1834, 7
    %v1836 = vsub.s32 0, %v1835
    %v1837 = vrot.slane %v1833, %v1836
    %v1854 = vunpack.c.l.b16 %v1817
    %v1855 = vunpack.c.l.b16 %v1818
    %v1856 = vunpack.c.l.b16 %v1819
    %v1857 = vunpack.c.l.b16 %v1820
    %v1858 = vunpack.c.l.b16 %v1821
    %v1859 = vunpack.c.l.b16 %v1822
    %v1860 = vunpack.c.l.b16 %v1823
    %v1861 = vunpack.c.l.b16 %v1824
    %v1862 = vunpack.c.l.b16 %v1825
    %v1863 = vunpack.c.l.b16 %v1826
    %v1864 = vunpack.c.l.b16 %v1827
    %v1865 = vunpack.c.l.b16 %v1828
    %v1866 = vunpack.c.l.b16 %v1829
    %v1867 = vunpack.c.l.b16 %v1830
    %v1868 = vunpack.c.l.b16 %v1831
    %v1869 = vunpack.c.l.b16 %v1832
    %v1870 = vpack.c.b16 %v1855, %v1854
    %v1871 = vpack.c.b16 %v1857, %v1856
    %v1872 = vpack.c.b16 %v1859, %v1858
    %v1873 = vpack.c.b16 %v1861, %v1860
    %v1874 = vpack.c.b16 %v1863, %v1862
    %v1875 = vpack.c.b16 %v1865, %v1864
    %v1876 = vpack.c.b16 %v1867, %v1866
    %v1877 = vpack.c.b16 %v1869, %v1868
    %1886 = vmatprep.subr.bf16.mxu0 0
    %1887 = vmatpush1.bf16.msra.mxu0 %v1877
    %1888 = vmatprep.subr.bf16.mxu0 0
    %1889 = vmatpush1.bf16.msra.mxu0 %v1876
    %1890 = vmatprep.subr.bf16.mxu0 0
    %1891 = vmatpush1.bf16.msra.mxu0 %v1875
    %1892 = vmatprep.subr.bf16.mxu0 0
    %1893 = vmatpush1.bf16.msra.mxu0 %v1874
    %1894 = vmatprep.subr.bf16.mxu0 0
    %1895 = vmatpush1.bf16.msra.mxu0 %v1873
    %1896 = vmatprep.subr.bf16.mxu0 0
    %1897 = vmatpush1.bf16.msra.mxu0 %v1872
    %1898 = vmatprep.subr.bf16.mxu0 0
    %1899 = vmatpush1.bf16.msra.mxu0 %v1871
    %1900 = vmatprep.subr.bf16.mxu0 0
    %1901 = vmatpush1.bf16.msra.mxu0 %v1870
    %1902 = vmatprep.subr.bf16.mxu0 0
    %1903 = vmatpush2.bf16.msra.mxu0 0
    %1904 = vmatprep.subr.bf16.mxu0 0
    %1905 = vmatpush2.bf16.msra.mxu0 0
    %1906 = vmatprep.subr.bf16.mxu0 0
    %1907 = vmatpush2.bf16.msra.mxu0 0
    %1908 = vmatprep.subr.bf16.mxu0 0
    %1909 = vmatpush2.bf16.msra.mxu0 0
    %1910 = vmatprep.subr.bf16.mxu0 0
    %1911 = vmatpush2.bf16.msra.mxu0 0
    %1912 = vmatprep.subr.bf16.mxu0 0
    %1913 = vmatpush2.bf16.msra.mxu0 0
    %1914 = vmatprep.subr.bf16.mxu0 0
    %1915 = vmatpush2.bf16.msra.mxu0 0
    %1916 = vmatprep.subr.bf16.mxu0 0
    %1917 = vmatpush2.bf16.msra.mxu0 0
    %1918 = vmatprep.mubr.bf16.mxu0 0
    %1919 = vmatmul.mubr.bf16.gmra.mxu0 %v1816
    %v1920 = vpop.f32.mrf.mxu0
    %v1921 = vadd.f32 %v1837, %v1920
    %v1922 = vpop.f32.mrf.mxu0
    %v1923 = vpop.f32.mrf.mxu0
    %v1924 = vadd.f32 %v1837, %v1923
    %v1925 = vpop.f32.mrf.mxu0
    %1926 = vdwg.mxu0
    %v1927 = vadd.f32 %v1921, %v1730
    %v1928 = vadd.f32 %v1924, %v1731
    %v1929 = vld [vmem:[%s9 + $0x5] sm:$0x1]
    %v1930 = vld [vmem:[%s9 + $0x6] sm:$0x1]
    %v1931 = vsel %vm135, %v1927, 0.0
    %1932 = vadd.xlane.f32.xlu0 %v1931
    %v1933 = vpop.xlane.xlu0 %1932
    %v1934 = vsel %vm135, %v1928, 0.0
    %1935 = vadd.xlane.f32.xlu0 %v1934
    %v1936 = vpop.xlane.xlu0 %1935
    %v1937 = vmul.f32 %v1933, %v142
    %v1938 = vmul.f32 %v1936, %v142
    %v1939 = vsub.f32 %v1927, %v1937
    %v1940 = vsub.f32 %v1928, %v1938
    %v1941 = vmul.f32 %v1939, %v1939
    %v1942 = vmul.f32 %v1940, %v1940
    %v1943 = vsel %vm135, %v1941, 0.0
    %1944 = vadd.xlane.f32.xlu0 %v1943
    %v1945 = vpop.xlane.xlu0 %1944
    %v1946 = vsel %vm135, %v1942, 0.0
    %1947 = vadd.xlane.f32.xlu0 %v1946
    %v1948 = vpop.xlane.xlu0 %1947
    %v1949 = vmul.f32 %v1945, %v142
    %v1950 = vmul.f32 %v1948, %v142
    %v1951 = vadd.f32 %v1949, 1e-12
    %v1952 = vadd.f32 %v1950, 1e-12
    %v1953 = vrsqrt.pop %v1951
    %v1954 = vrsqrt.pop %v1952
    %v1955 = vmul.f32 %v1939, %v1953
    %v1956 = vmul.f32 %v1940, %v1954
    %v1957 = vlaneseq
    %v1958 = vshrl.u32 %v1957, 7
    %v1959 = vsub.s32 0, %v1958
    %v1960 = vrot.slane %v1929, %v1959
    %v1961 = vmul.f32 %v1955, %v1960
    %v1962 = vmul.f32 %v1956, %v1960
    %v1963 = vlaneseq
    %v1964 = vshrl.u32 %v1963, 7
    %v1965 = vsub.s32 0, %v1964
    %v1966 = vrot.slane %v1930, %v1965
    %v1967 = vadd.f32 %v1961, %v1966
    %v1968 = vadd.f32 %v1962, %v1966
    %v1969 = vpack.c.bf16 %v1968, %v1967
    %s1970 = scalar_lea.vmem %s4, 32
    %v1971 = vld [vmem:[%s1970] sm:$0xff]
    %v1972 = vld [vmem:[%s1970 + $0x8] sm:$0xff]
    %v1973 = vld [vmem:[%s1970 + $0x10] sm:$0xff]
    %v1974 = vld [vmem:[%s1970 + $0x18] sm:$0xff]
    %s1975 = scalar_lea.vmem %s7, 1
    %v1976 = vld [vmem:[%s1975] ss:$8 sm:$0x3]
    %v1978 = vlaneseq
    %v1979 = vshrl.u32 %v1978, 7
    %v1980 = vsub.s32 0, %v1979
    %v1981 = vrot.slane %v1976, %v1980
    %v1982 = vlaneseq
    %v1983 = vshrl.u32 %v1982, 7
    %v1984 = vsub.s32 1, %v1983
    %v1985 = vrot.slane %v1976, %v1984
    %v1992 = vunpack.c.l.b16 %v1971
    %v1993 = vunpack.c.h.b16 %v1971
    %v1994 = vunpack.c.l.b16 %v1972
    %v1995 = vunpack.c.h.b16 %v1972
    %v1996 = vunpack.c.l.b16 %v1973
    %v1997 = vunpack.c.h.b16 %v1973
    %v1998 = vunpack.c.l.b16 %v1974
    %v1999 = vunpack.c.h.b16 %v1974
    %v2000 = vpack.c.b16 %v1994, %v1992
    %v2001 = vpack.c.b16 %v1995, %v1993
    %v2002 = vpack.c.b16 %v1998, %v1996
    %v2003 = vpack.c.b16 %v1999, %v1997
    %v2009 = vsel %vm135, %v1969, 0
    %2011 = vmatprep.subr.bf16.mxu0 0
    %2012 = vmatpush1.bf16.msra.mxu0 0
    %2013 = vmatprep.subr.bf16.mxu0 0
    %2014 = vmatpush1.bf16.msra.mxu0 0
    %2015 = vmatprep.subr.bf16.mxu0 0
    %2016 = vmatpush1.bf16.msra.mxu0 0
    %2017 = vmatprep.subr.bf16.mxu0 0
    %2018 = vmatpush1.bf16.msra.mxu0 0
    %2019 = vmatprep.subr.bf16.mxu0 0
    %2020 = vmatpush1.bf16.msra.mxu0 0
    %2021 = vmatprep.subr.bf16.mxu0 0
    %2022 = vmatpush1.bf16.msra.mxu0 0
    %2023 = vmatprep.subr.bf16.mxu0 %v2003
    %2024 = vmatpush1.bf16.msra.mxu0 %v2002
    %2025 = vmatprep.subr.bf16.mxu0 %v2001
    %2026 = vmatpush1.bf16.msra.mxu0 %v2000
    %2027 = vmatprep.subr.bf16.mxu0 0
    %2028 = vmatpush2.bf16.msra.mxu0 0
    %2029 = vmatprep.subr.bf16.mxu0 0
    %2030 = vmatpush2.bf16.msra.mxu0 0
    %2031 = vmatprep.subr.bf16.mxu0 0
    %2032 = vmatpush2.bf16.msra.mxu0 0
    %2033 = vmatprep.subr.bf16.mxu0 0
    %2034 = vmatpush2.bf16.msra.mxu0 0
    %2035 = vmatprep.subr.bf16.mxu0 0
    %2036 = vmatpush2.bf16.msra.mxu0 0
    %2037 = vmatprep.subr.bf16.mxu0 0
    %2038 = vmatpush2.bf16.msra.mxu0 0
    %2039 = vmatprep.subr.bf16.mxu0 0
    %2040 = vmatpush2.bf16.msra.mxu0 0
    %2041 = vmatprep.subr.bf16.mxu0 0
    %2042 = vmatpush2.bf16.msra.mxu0 0
    %2043 = vmatprep.mubr.bf16.mxu0 0
    %2044 = vmatmul.mubr.bf16.gmra.mxu0 %v2009
    %v2045 = vpop.f32.mrf.mxu0
    %v2046 = vadd.f32 %v1981, %v2045
    %v2047 = vpop.f32.mrf.mxu0
    %v2048 = vadd.f32 %v1985, %v2047
    %v2049 = vpop.f32.mrf.mxu0
    %v2050 = vadd.f32 %v1981, %v2049
    %v2051 = vpop.f32.mrf.mxu0
    %v2052 = vadd.f32 %v1985, %v2051
    %2053 = vdwg.mxu0
    %2056 = vrot.lane.b32.xlu0 %v2046, 80
    %v2057 = vpop.permute.xlu0 %2056
    %2058 = vrot.lane.b32.xlu0 %v2050, 80
    %v2059 = vpop.permute.xlu0 %2058
    %2062 = vrot.lane.b32.xlu0 %v2046, 32
    %v2063 = vpop.permute.xlu0 %2062
    %2064 = vrot.lane.b32.xlu0 %v2048, 32
    %v2065 = vpop.permute.xlu0 %2064
    %2066 = vrot.lane.b32.xlu0 %v2050, 32
    %v2067 = vpop.permute.xlu0 %2066
    %2068 = vrot.lane.b32.xlu0 %v2052, 32
    %v2069 = vpop.permute.xlu0 %2068
    %v2070 = vsel %vm135, %v2063, %v2065
    %v2071 = vsel %vm135, %v2067, %v2069
    %2072 = vrot.lane.b32.xlu0 %v2048, 112
    %v2073 = vpop.permute.xlu0 %2072
    %2074 = vrot.lane.b32.xlu0 %v2052, 112
    %v2075 = vpop.permute.xlu0 %2074
    %2076 = vrot.lane.b32.xlu0 %v2046, 120
    %v2077 = vpop.permute.xlu0 %2076
    %v2078 = vsel %vm373, %v2046, 0
    %v2080 = vsel %vm373, %v2077, 0
    %2082 = vmatprep.subr.mxu0 0.0
    %2083 = vmatpush1.xpose.msra.mxu0 0.0
    %2084 = vmatprep.subr.mxu0 0.0
    %2085 = vmatpush1.xpose.msra.mxu0 0.0
    %2086 = vmatprep.subr.mxu0 0.0
    %2087 = vmatpush1.xpose.msra.mxu0 0.0
    %2088 = vmatprep.subr.mxu0 0.0
    %2089 = vmatpush1.xpose.msra.mxu0 0.0
    %2090 = vmatprep.subr.mxu0 0.0
    %2091 = vmatpush1.xpose.msra.mxu0 0.0
    %2092 = vmatprep.subr.mxu0 0.0
    %2093 = vmatpush1.xpose.msra.mxu0 0.0
    %2094 = vmatprep.subr.mxu0 0.0
    %2095 = vmatpush1.xpose.msra.mxu0 0.0
    %2096 = vmatprep.subr.mxu0 0.0
    %2097 = vmatpush1.xpose.msra.mxu0 0.0
    %2098 = vmatprep.subr.mxu0 0.0
    %2099 = vmatpush1.xpose.msra.mxu0 0.0
    %2100 = vmatprep.subr.mxu0 0.0
    %2101 = vmatpush1.xpose.msra.mxu0 0.0
    %2102 = vmatprep.subr.mxu0 0.0
    %2103 = vmatpush1.xpose.msra.mxu0 0.0
    %2104 = vmatprep.subr.mxu0 0.0
    %2105 = vmatpush1.xpose.msra.mxu0 0.0
    %2106 = vmatprep.subr.mxu0 0.0
    %2107 = vmatpush1.xpose.msra.mxu0 0.0
    %2108 = vmatprep.subr.mxu0 0.0
    %2109 = vmatpush1.xpose.msra.mxu0 0.0
    %2110 = vmatprep.subr.mxu0 0.0
    %2111 = vmatpush1.xpose.msra.mxu0 0.0
    %2112 = vmatprep.subr.mxu0 0.0
    %2113 = vmatpush1.xpose.msra.mxu0 %v2080
    %2114 = vmatprep.subr.mxu0 0.0
    %2115 = vmatpush2.xpose.msra.mxu0 0.0
    %2116 = vmatprep.subr.mxu0 0.0
    %2117 = vmatpush2.xpose.msra.mxu0 0.0
    %2118 = vmatprep.subr.mxu0 0.0
    %2119 = vmatpush2.xpose.msra.mxu0 0.0
    %2120 = vmatprep.subr.mxu0 0.0
    %2121 = vmatpush2.xpose.msra.mxu0 0.0
    %2122 = vmatprep.subr.mxu0 0.0
    %2123 = vmatpush2.xpose.msra.mxu0 0.0
    %2124 = vmatprep.subr.mxu0 0.0
    %2125 = vmatpush2.xpose.msra.mxu0 0.0
    %2126 = vmatprep.subr.mxu0 0.0
    %2127 = vmatpush2.xpose.msra.mxu0 0.0
    %2128 = vmatprep.subr.mxu0 0.0
    %2129 = vmatpush2.xpose.msra.mxu0 0.0
    %2130 = vmatprep.subr.mxu0 0.0
    %2131 = vmatpush2.xpose.msra.mxu0 0.0
    %2132 = vmatprep.subr.mxu0 0.0
    %2133 = vmatpush2.xpose.msra.mxu0 0.0
    %2134 = vmatprep.subr.mxu0 0.0
    %2135 = vmatpush2.xpose.msra.mxu0 0.0
    %2136 = vmatprep.subr.mxu0 0.0
    %2137 = vmatpush2.xpose.msra.mxu0 0.0
    %2138 = vmatprep.subr.mxu0 0.0
    %2139 = vmatpush2.xpose.msra.mxu0 0.0
    %2140 = vmatprep.subr.mxu0 0.0
    %2141 = vmatpush2.xpose.msra.mxu0 0.0
    %2142 = vmatprep.subr.mxu0 0.0
    %2143 = vmatpush2.xpose.msra.mxu0 0.0
    %2144 = vmatprep.subr.mxu0 0.0
    %2145 = vmatpush2.xpose.msra.mxu0 0.0
    %2146 = vmatprep.mubr.f32.mxu0 0.0
    %2147 = vmatmul.mubr.f32.gmra.mxu0 %v2078
    %v2148 = vpop.f32.mrf.mxu0
    %v2149 = vadd.f32 %v229, %v2148
    %v2150 = vpop.f32.mrf.mxu0
    %2151 = vdwg.mxu0
    %2152 = vrot.lane.b32.xlu0 %v2050, 120
    %v2153 = vpop.permute.xlu0 %2152
    %v2154 = vsel %vm373, %v2050, 0
    %v2156 = vsel %vm373, %v2153, 0
    %2158 = vmatprep.subr.mxu0 0.0
    %2159 = vmatpush1.xpose.msra.mxu0 0.0
    %2160 = vmatprep.subr.mxu0 0.0
    %2161 = vmatpush1.xpose.msra.mxu0 0.0
    %2162 = vmatprep.subr.mxu0 0.0
    %2163 = vmatpush1.xpose.msra.mxu0 0.0
    %2164 = vmatprep.subr.mxu0 0.0
    %2165 = vmatpush1.xpose.msra.mxu0 0.0
    %2166 = vmatprep.subr.mxu0 0.0
    %2167 = vmatpush1.xpose.msra.mxu0 0.0
    %2168 = vmatprep.subr.mxu0 0.0
    %2169 = vmatpush1.xpose.msra.mxu0 0.0
    %2170 = vmatprep.subr.mxu0 0.0
    %2171 = vmatpush1.xpose.msra.mxu0 0.0
    %2172 = vmatprep.subr.mxu0 0.0
    %2173 = vmatpush1.xpose.msra.mxu0 0.0
    %2174 = vmatprep.subr.mxu0 0.0
    %2175 = vmatpush1.xpose.msra.mxu0 0.0
    %2176 = vmatprep.subr.mxu0 0.0
    %2177 = vmatpush1.xpose.msra.mxu0 0.0
    %2178 = vmatprep.subr.mxu0 0.0
    %2179 = vmatpush1.xpose.msra.mxu0 0.0
    %2180 = vmatprep.subr.mxu0 0.0
    %2181 = vmatpush1.xpose.msra.mxu0 0.0
    %2182 = vmatprep.subr.mxu0 0.0
    %2183 = vmatpush1.xpose.msra.mxu0 0.0
    %2184 = vmatprep.subr.mxu0 0.0
    %2185 = vmatpush1.xpose.msra.mxu0 0.0
    %2186 = vmatprep.subr.mxu0 0.0
    %2187 = vmatpush1.xpose.msra.mxu0 0.0
    %2188 = vmatprep.subr.mxu0 0.0
    %2189 = vmatpush1.xpose.msra.mxu0 %v2156
    %2190 = vmatprep.subr.mxu0 0.0
    %2191 = vmatpush2.xpose.msra.mxu0 0.0
    %2192 = vmatprep.subr.mxu0 0.0
    %2193 = vmatpush2.xpose.msra.mxu0 0.0
    %2194 = vmatprep.subr.mxu0 0.0
    %2195 = vmatpush2.xpose.msra.mxu0 0.0
    %2196 = vmatprep.subr.mxu0 0.0
    %2197 = vmatpush2.xpose.msra.mxu0 0.0
    %2198 = vmatprep.subr.mxu0 0.0
    %2199 = vmatpush2.xpose.msra.mxu0 0.0
    %2200 = vmatprep.subr.mxu0 0.0
    %2201 = vmatpush2.xpose.msra.mxu0 0.0
    %2202 = vmatprep.subr.mxu0 0.0
    %2203 = vmatpush2.xpose.msra.mxu0 0.0
    %2204 = vmatprep.subr.mxu0 0.0
    %2205 = vmatpush2.xpose.msra.mxu0 0.0
    %2206 = vmatprep.subr.mxu0 0.0
    %2207 = vmatpush2.xpose.msra.mxu0 0.0
    %2208 = vmatprep.subr.mxu0 0.0
    %2209 = vmatpush2.xpose.msra.mxu0 0.0
    %2210 = vmatprep.subr.mxu0 0.0
    %2211 = vmatpush2.xpose.msra.mxu0 0.0
    %2212 = vmatprep.subr.mxu0 0.0
    %2213 = vmatpush2.xpose.msra.mxu0 0.0
    %2214 = vmatprep.subr.mxu0 0.0
    %2215 = vmatpush2.xpose.msra.mxu0 0.0
    %2216 = vmatprep.subr.mxu0 0.0
    %2217 = vmatpush2.xpose.msra.mxu0 0.0
    %2218 = vmatprep.subr.mxu0 0.0
    %2219 = vmatpush2.xpose.msra.mxu0 0.0
    %2220 = vmatprep.subr.mxu0 0.0
    %2221 = vmatpush2.xpose.msra.mxu0 0.0
    %2222 = vmatprep.mubr.f32.mxu0 0.0
    %2223 = vmatmul.mubr.f32.gmra.mxu0 %v2154
    %v2224 = vpop.f32.mrf.mxu0
    %v2225 = vadd.f32 %v233, %v2224
    %v2226 = vpop.f32.mrf.mxu0
    %2227 = vdwg.mxu0
    %2228 = vrot.lane.b32.xlu0 %v2057, 120
    %v2229 = vpop.permute.xlu0 %2228
    %v2230 = vsel %vm373, %v2057, 0
    %v2232 = vsel %vm373, %v2229, 0
    %2234 = vmatprep.subr.mxu0 0.0
    %2235 = vmatpush1.xpose.msra.mxu0 0.0
    %2236 = vmatprep.subr.mxu0 0.0
    %2237 = vmatpush1.xpose.msra.mxu0 0.0
    %2238 = vmatprep.subr.mxu0 0.0
    %2239 = vmatpush1.xpose.msra.mxu0 0.0
    %2240 = vmatprep.subr.mxu0 0.0
    %2241 = vmatpush1.xpose.msra.mxu0 0.0
    %2242 = vmatprep.subr.mxu0 0.0
    %2243 = vmatpush1.xpose.msra.mxu0 0.0
    %2244 = vmatprep.subr.mxu0 0.0
    %2245 = vmatpush1.xpose.msra.mxu0 0.0
    %2246 = vmatprep.subr.mxu0 0.0
    %2247 = vmatpush1.xpose.msra.mxu0 0.0
    %2248 = vmatprep.subr.mxu0 0.0
    %2249 = vmatpush1.xpose.msra.mxu0 0.0
    %2250 = vmatprep.subr.mxu0 0.0
    %2251 = vmatpush1.xpose.msra.mxu0 0.0
    %2252 = vmatprep.subr.mxu0 0.0
    %2253 = vmatpush1.xpose.msra.mxu0 0.0
    %2254 = vmatprep.subr.mxu0 0.0
    %2255 = vmatpush1.xpose.msra.mxu0 0.0
    %2256 = vmatprep.subr.mxu0 0.0
    %2257 = vmatpush1.xpose.msra.mxu0 0.0
    %2258 = vmatprep.subr.mxu0 0.0
    %2259 = vmatpush1.xpose.msra.mxu0 0.0
    %2260 = vmatprep.subr.mxu0 0.0
    %2261 = vmatpush1.xpose.msra.mxu0 0.0
    %2262 = vmatprep.subr.mxu0 0.0
    %2263 = vmatpush1.xpose.msra.mxu0 0.0
    %2264 = vmatprep.subr.mxu0 0.0
    %2265 = vmatpush1.xpose.msra.mxu0 %v2232
    %2266 = vmatprep.subr.mxu0 0.0
    %2267 = vmatpush2.xpose.msra.mxu0 0.0
    %2268 = vmatprep.subr.mxu0 0.0
    %2269 = vmatpush2.xpose.msra.mxu0 0.0
    %2270 = vmatprep.subr.mxu0 0.0
    %2271 = vmatpush2.xpose.msra.mxu0 0.0
    %2272 = vmatprep.subr.mxu0 0.0
    %2273 = vmatpush2.xpose.msra.mxu0 0.0
    %2274 = vmatprep.subr.mxu0 0.0
    %2275 = vmatpush2.xpose.msra.mxu0 0.0
    %2276 = vmatprep.subr.mxu0 0.0
    %2277 = vmatpush2.xpose.msra.mxu0 0.0
    %2278 = vmatprep.subr.mxu0 0.0
    %2279 = vmatpush2.xpose.msra.mxu0 0.0
    %2280 = vmatprep.subr.mxu0 0.0
    %2281 = vmatpush2.xpose.msra.mxu0 0.0
    %2282 = vmatprep.subr.mxu0 0.0
    %2283 = vmatpush2.xpose.msra.mxu0 0.0
    %2284 = vmatprep.subr.mxu0 0.0
    %2285 = vmatpush2.xpose.msra.mxu0 0.0
    %2286 = vmatprep.subr.mxu0 0.0
    %2287 = vmatpush2.xpose.msra.mxu0 0.0
    %2288 = vmatprep.subr.mxu0 0.0
    %2289 = vmatpush2.xpose.msra.mxu0 0.0
    %2290 = vmatprep.subr.mxu0 0.0
    %2291 = vmatpush2.xpose.msra.mxu0 0.0
    %2292 = vmatprep.subr.mxu0 0.0
    %2293 = vmatpush2.xpose.msra.mxu0 0.0
    %2294 = vmatprep.subr.mxu0 0.0
    %2295 = vmatpush2.xpose.msra.mxu0 0.0
    %2296 = vmatprep.subr.mxu0 0.0
    %2297 = vmatpush2.xpose.msra.mxu0 0.0
    %2298 = vmatprep.mubr.f32.mxu0 0.0
    %2299 = vmatmul.mubr.f32.gmra.mxu0 %v2230
    %v2300 = vpop.f32.mrf.mxu0
    %v2301 = vadd.f32 %v237, %v2300
    %v2302 = vpop.f32.mrf.mxu0
    %2303 = vdwg.mxu0
    %2304 = vrot.lane.b32.xlu0 %v2059, 120
    %v2305 = vpop.permute.xlu0 %2304
    %v2306 = vsel %vm373, %v2059, 0
    %v2308 = vsel %vm373, %v2305, 0
    %2310 = vmatprep.subr.mxu0 0.0
    %2311 = vmatpush1.xpose.msra.mxu0 0.0
    %2312 = vmatprep.subr.mxu0 0.0
    %2313 = vmatpush1.xpose.msra.mxu0 0.0
    %2314 = vmatprep.subr.mxu0 0.0
    %2315 = vmatpush1.xpose.msra.mxu0 0.0
    %2316 = vmatprep.subr.mxu0 0.0
    %2317 = vmatpush1.xpose.msra.mxu0 0.0
    %2318 = vmatprep.subr.mxu0 0.0
    %2319 = vmatpush1.xpose.msra.mxu0 0.0
    %2320 = vmatprep.subr.mxu0 0.0
    %2321 = vmatpush1.xpose.msra.mxu0 0.0
    %2322 = vmatprep.subr.mxu0 0.0
    %2323 = vmatpush1.xpose.msra.mxu0 0.0
    %2324 = vmatprep.subr.mxu0 0.0
    %2325 = vmatpush1.xpose.msra.mxu0 0.0
    %2326 = vmatprep.subr.mxu0 0.0
    %2327 = vmatpush1.xpose.msra.mxu0 0.0
    %2328 = vmatprep.subr.mxu0 0.0
    %2329 = vmatpush1.xpose.msra.mxu0 0.0
    %2330 = vmatprep.subr.mxu0 0.0
    %2331 = vmatpush1.xpose.msra.mxu0 0.0
    %2332 = vmatprep.subr.mxu0 0.0
    %2333 = vmatpush1.xpose.msra.mxu0 0.0
    %2334 = vmatprep.subr.mxu0 0.0
    %2335 = vmatpush1.xpose.msra.mxu0 0.0
    %2336 = vmatprep.subr.mxu0 0.0
    %2337 = vmatpush1.xpose.msra.mxu0 0.0
    %2338 = vmatprep.subr.mxu0 0.0
    %2339 = vmatpush1.xpose.msra.mxu0 0.0
    %2340 = vmatprep.subr.mxu0 0.0
    %2341 = vmatpush1.xpose.msra.mxu0 %v2308
    %2342 = vmatprep.subr.mxu0 0.0
    %2343 = vmatpush2.xpose.msra.mxu0 0.0
    %2344 = vmatprep.subr.mxu0 0.0
    %2345 = vmatpush2.xpose.msra.mxu0 0.0
    %2346 = vmatprep.subr.mxu0 0.0
    %2347 = vmatpush2.xpose.msra.mxu0 0.0
    %2348 = vmatprep.subr.mxu0 0.0
    %2349 = vmatpush2.xpose.msra.mxu0 0.0
    %2350 = vmatprep.subr.mxu0 0.0
    %2351 = vmatpush2.xpose.msra.mxu0 0.0
    %2352 = vmatprep.subr.mxu0 0.0
    %2353 = vmatpush2.xpose.msra.mxu0 0.0
    %2354 = vmatprep.subr.mxu0 0.0
    %2355 = vmatpush2.xpose.msra.mxu0 0.0
    %2356 = vmatprep.subr.mxu0 0.0
    %2357 = vmatpush2.xpose.msra.mxu0 0.0
    %2358 = vmatprep.subr.mxu0 0.0
    %2359 = vmatpush2.xpose.msra.mxu0 0.0
    %2360 = vmatprep.subr.mxu0 0.0
    %2361 = vmatpush2.xpose.msra.mxu0 0.0
    %2362 = vmatprep.subr.mxu0 0.0
    %2363 = vmatpush2.xpose.msra.mxu0 0.0
    %2364 = vmatprep.subr.mxu0 0.0
    %2365 = vmatpush2.xpose.msra.mxu0 0.0
    %2366 = vmatprep.subr.mxu0 0.0
    %2367 = vmatpush2.xpose.msra.mxu0 0.0
    %2368 = vmatprep.subr.mxu0 0.0
    %2369 = vmatpush2.xpose.msra.mxu0 0.0
    %2370 = vmatprep.subr.mxu0 0.0
    %2371 = vmatpush2.xpose.msra.mxu0 0.0
    %2372 = vmatprep.subr.mxu0 0.0
    %2373 = vmatpush2.xpose.msra.mxu0 0.0
    %2374 = vmatprep.mubr.f32.mxu0 0.0
    %2375 = vmatmul.mubr.f32.gmra.mxu0 %v2306
    %v2376 = vpop.f32.mrf.mxu0
    %v2377 = vadd.f32 %v241, %v2376
    %v2378 = vpop.f32.mrf.mxu0
    %2379 = vdwg.mxu0
    %2380 = vrot.lane.b32.xlu0 %v2070, 120
    %v2381 = vpop.permute.xlu0 %2380
    %v2382 = vsel %vm373, %v2070, 0
    %v2384 = vsel %vm373, %v2381, 0
    %2386 = vmatprep.subr.mxu0 0.0
    %2387 = vmatpush1.xpose.msra.mxu0 0.0
    %2388 = vmatprep.subr.mxu0 0.0
    %2389 = vmatpush1.xpose.msra.mxu0 0.0
    %2390 = vmatprep.subr.mxu0 0.0
    %2391 = vmatpush1.xpose.msra.mxu0 0.0
    %2392 = vmatprep.subr.mxu0 0.0
    %2393 = vmatpush1.xpose.msra.mxu0 0.0
    %2394 = vmatprep.subr.mxu0 0.0
    %2395 = vmatpush1.xpose.msra.mxu0 0.0
    %2396 = vmatprep.subr.mxu0 0.0
    %2397 = vmatpush1.xpose.msra.mxu0 0.0
    %2398 = vmatprep.subr.mxu0 0.0
    %2399 = vmatpush1.xpose.msra.mxu0 0.0
    %2400 = vmatprep.subr.mxu0 0.0
    %2401 = vmatpush1.xpose.msra.mxu0 0.0
    %2402 = vmatprep.subr.mxu0 0.0
    %2403 = vmatpush1.xpose.msra.mxu0 0.0
    %2404 = vmatprep.subr.mxu0 0.0
    %2405 = vmatpush1.xpose.msra.mxu0 0.0
    %2406 = vmatprep.subr.mxu0 0.0
    %2407 = vmatpush1.xpose.msra.mxu0 0.0
    %2408 = vmatprep.subr.mxu0 0.0
    %2409 = vmatpush1.xpose.msra.mxu0 0.0
    %2410 = vmatprep.subr.mxu0 0.0
    %2411 = vmatpush1.xpose.msra.mxu0 0.0
    %2412 = vmatprep.subr.mxu0 0.0
    %2413 = vmatpush1.xpose.msra.mxu0 0.0
    %2414 = vmatprep.subr.mxu0 0.0
    %2415 = vmatpush1.xpose.msra.mxu0 0.0
    %2416 = vmatprep.subr.mxu0 0.0
    %2417 = vmatpush1.xpose.msra.mxu0 %v2384
    %2418 = vmatprep.subr.mxu0 0.0
    %2419 = vmatpush2.xpose.msra.mxu0 0.0
    %2420 = vmatprep.subr.mxu0 0.0
    %2421 = vmatpush2.xpose.msra.mxu0 0.0
    %2422 = vmatprep.subr.mxu0 0.0
    %2423 = vmatpush2.xpose.msra.mxu0 0.0
    %2424 = vmatprep.subr.mxu0 0.0
    %2425 = vmatpush2.xpose.msra.mxu0 0.0
    %2426 = vmatprep.subr.mxu0 0.0
    %2427 = vmatpush2.xpose.msra.mxu0 0.0
    %2428 = vmatprep.subr.mxu0 0.0
    %2429 = vmatpush2.xpose.msra.mxu0 0.0
    %2430 = vmatprep.subr.mxu0 0.0
    %2431 = vmatpush2.xpose.msra.mxu0 0.0
    %2432 = vmatprep.subr.mxu0 0.0
    %2433 = vmatpush2.xpose.msra.mxu0 0.0
    %2434 = vmatprep.subr.mxu0 0.0
    %2435 = vmatpush2.xpose.msra.mxu0 0.0
    %2436 = vmatprep.subr.mxu0 0.0
    %2437 = vmatpush2.xpose.msra.mxu0 0.0
    %2438 = vmatprep.subr.mxu0 0.0
    %2439 = vmatpush2.xpose.msra.mxu0 0.0
    %2440 = vmatprep.subr.mxu0 0.0
    %2441 = vmatpush2.xpose.msra.mxu0 0.0
    %2442 = vmatprep.subr.mxu0 0.0
    %2443 = vmatpush2.xpose.msra.mxu0 0.0
    %2444 = vmatprep.subr.mxu0 0.0
    %2445 = vmatpush2.xpose.msra.mxu0 0.0
    %2446 = vmatprep.subr.mxu0 0.0
    %2447 = vmatpush2.xpose.msra.mxu0 0.0
    %2448 = vmatprep.subr.mxu0 0.0
    %2449 = vmatpush2.xpose.msra.mxu0 0.0
    %2450 = vmatprep.mubr.f32.mxu0 0.0
    %2451 = vmatmul.mubr.f32.gmra.mxu0 %v2382
    %v2452 = vpop.f32.mrf.mxu0
    %v2453 = vadd.f32 %v245, %v2452
    %v2454 = vpop.f32.mrf.mxu0
    %2455 = vdwg.mxu0
    %2456 = vrot.lane.b32.xlu0 %v2071, 120
    %v2457 = vpop.permute.xlu0 %2456
    %v2458 = vsel %vm373, %v2071, 0
    %v2460 = vsel %vm373, %v2457, 0
    %2462 = vmatprep.subr.mxu0 0.0
    %2463 = vmatpush1.xpose.msra.mxu0 0.0
    %2464 = vmatprep.subr.mxu0 0.0
    %2465 = vmatpush1.xpose.msra.mxu0 0.0
    %2466 = vmatprep.subr.mxu0 0.0
    %2467 = vmatpush1.xpose.msra.mxu0 0.0
    %2468 = vmatprep.subr.mxu0 0.0
    %2469 = vmatpush1.xpose.msra.mxu0 0.0
    %2470 = vmatprep.subr.mxu0 0.0
    %2471 = vmatpush1.xpose.msra.mxu0 0.0
    %2472 = vmatprep.subr.mxu0 0.0
    %2473 = vmatpush1.xpose.msra.mxu0 0.0
    %2474 = vmatprep.subr.mxu0 0.0
    %2475 = vmatpush1.xpose.msra.mxu0 0.0
    %2476 = vmatprep.subr.mxu0 0.0
    %2477 = vmatpush1.xpose.msra.mxu0 0.0
    %2478 = vmatprep.subr.mxu0 0.0
    %2479 = vmatpush1.xpose.msra.mxu0 0.0
    %2480 = vmatprep.subr.mxu0 0.0
    %2481 = vmatpush1.xpose.msra.mxu0 0.0
    %2482 = vmatprep.subr.mxu0 0.0
    %2483 = vmatpush1.xpose.msra.mxu0 0.0
    %2484 = vmatprep.subr.mxu0 0.0
    %2485 = vmatpush1.xpose.msra.mxu0 0.0
    %2486 = vmatprep.subr.mxu0 0.0
    %2487 = vmatpush1.xpose.msra.mxu0 0.0
    %2488 = vmatprep.subr.mxu0 0.0
    %2489 = vmatpush1.xpose.msra.mxu0 0.0
    %2490 = vmatprep.subr.mxu0 0.0
    %2491 = vmatpush1.xpose.msra.mxu0 0.0
    %2492 = vmatprep.subr.mxu0 0.0
    %2493 = vmatpush1.xpose.msra.mxu0 %v2460
    %2494 = vmatprep.subr.mxu0 0.0
    %2495 = vmatpush2.xpose.msra.mxu0 0.0
    %2496 = vmatprep.subr.mxu0 0.0
    %2497 = vmatpush2.xpose.msra.mxu0 0.0
    %2498 = vmatprep.subr.mxu0 0.0
    %2499 = vmatpush2.xpose.msra.mxu0 0.0
    %2500 = vmatprep.subr.mxu0 0.0
    %2501 = vmatpush2.xpose.msra.mxu0 0.0
    %2502 = vmatprep.subr.mxu0 0.0
    %2503 = vmatpush2.xpose.msra.mxu0 0.0
    %2504 = vmatprep.subr.mxu0 0.0
    %2505 = vmatpush2.xpose.msra.mxu0 0.0
    %2506 = vmatprep.subr.mxu0 0.0
    %2507 = vmatpush2.xpose.msra.mxu0 0.0
    %2508 = vmatprep.subr.mxu0 0.0
    %2509 = vmatpush2.xpose.msra.mxu0 0.0
    %2510 = vmatprep.subr.mxu0 0.0
    %2511 = vmatpush2.xpose.msra.mxu0 0.0
    %2512 = vmatprep.subr.mxu0 0.0
    %2513 = vmatpush2.xpose.msra.mxu0 0.0
    %2514 = vmatprep.subr.mxu0 0.0
    %2515 = vmatpush2.xpose.msra.mxu0 0.0
    %2516 = vmatprep.subr.mxu0 0.0
    %2517 = vmatpush2.xpose.msra.mxu0 0.0
    %2518 = vmatprep.subr.mxu0 0.0
    %2519 = vmatpush2.xpose.msra.mxu0 0.0
    %2520 = vmatprep.subr.mxu0 0.0
    %2521 = vmatpush2.xpose.msra.mxu0 0.0
    %2522 = vmatprep.subr.mxu0 0.0
    %2523 = vmatpush2.xpose.msra.mxu0 0.0
    %2524 = vmatprep.subr.mxu0 0.0
    %2525 = vmatpush2.xpose.msra.mxu0 0.0
    %2526 = vmatprep.mubr.f32.mxu0 0.0
    %2527 = vmatmul.mubr.f32.gmra.mxu0 %v2458
    %v2528 = vpop.f32.mrf.mxu0
    %v2529 = vadd.f32 %v249, %v2528
    %v2530 = vpop.f32.mrf.mxu0
    %2531 = vdwg.mxu0
    %2532 = vrot.lane.b32.xlu0 %v2073, 120
    %v2533 = vpop.permute.xlu0 %2532
    %v2534 = vsel %vm373, %v2073, 0
    %v2536 = vsel %vm373, %v2533, 0
    %2538 = vmatprep.subr.mxu0 0.0
    %2539 = vmatpush1.xpose.msra.mxu0 0.0
    %2540 = vmatprep.subr.mxu0 0.0
    %2541 = vmatpush1.xpose.msra.mxu0 0.0
    %2542 = vmatprep.subr.mxu0 0.0
    %2543 = vmatpush1.xpose.msra.mxu0 0.0
    %2544 = vmatprep.subr.mxu0 0.0
    %2545 = vmatpush1.xpose.msra.mxu0 0.0
    %2546 = vmatprep.subr.mxu0 0.0
    %2547 = vmatpush1.xpose.msra.mxu0 0.0
    %2548 = vmatprep.subr.mxu0 0.0
    %2549 = vmatpush1.xpose.msra.mxu0 0.0
    %2550 = vmatprep.subr.mxu0 0.0
    %2551 = vmatpush1.xpose.msra.mxu0 0.0
    %2552 = vmatprep.subr.mxu0 0.0
    %2553 = vmatpush1.xpose.msra.mxu0 0.0
    %2554 = vmatprep.subr.mxu0 0.0
    %2555 = vmatpush1.xpose.msra.mxu0 0.0
    %2556 = vmatprep.subr.mxu0 0.0
    %2557 = vmatpush1.xpose.msra.mxu0 0.0
    %2558 = vmatprep.subr.mxu0 0.0
    %2559 = vmatpush1.xpose.msra.mxu0 0.0
    %2560 = vmatprep.subr.mxu0 0.0
    %2561 = vmatpush1.xpose.msra.mxu0 0.0
    %2562 = vmatprep.subr.mxu0 0.0
    %2563 = vmatpush1.xpose.msra.mxu0 0.0
    %2564 = vmatprep.subr.mxu0 0.0
    %2565 = vmatpush1.xpose.msra.mxu0 0.0
    %2566 = vmatprep.subr.mxu0 0.0
    %2567 = vmatpush1.xpose.msra.mxu0 0.0
    %2568 = vmatprep.subr.mxu0 0.0
    %2569 = vmatpush1.xpose.msra.mxu0 %v2536
    %2570 = vmatprep.subr.mxu0 0.0
    %2571 = vmatpush2.xpose.msra.mxu0 0.0
    %2572 = vmatprep.subr.mxu0 0.0
    %2573 = vmatpush2.xpose.msra.mxu0 0.0
    %2574 = vmatprep.subr.mxu0 0.0
    %2575 = vmatpush2.xpose.msra.mxu0 0.0
    %2576 = vmatprep.subr.mxu0 0.0
    %2577 = vmatpush2.xpose.msra.mxu0 0.0
    %2578 = vmatprep.subr.mxu0 0.0
    %2579 = vmatpush2.xpose.msra.mxu0 0.0
    %2580 = vmatprep.subr.mxu0 0.0
    %2581 = vmatpush2.xpose.msra.mxu0 0.0
    %2582 = vmatprep.subr.mxu0 0.0
    %2583 = vmatpush2.xpose.msra.mxu0 0.0
    %2584 = vmatprep.subr.mxu0 0.0
    %2585 = vmatpush2.xpose.msra.mxu0 0.0
    %2586 = vmatprep.subr.mxu0 0.0
    %2587 = vmatpush2.xpose.msra.mxu0 0.0
    %2588 = vmatprep.subr.mxu0 0.0
    %2589 = vmatpush2.xpose.msra.mxu0 0.0
    %2590 = vmatprep.subr.mxu0 0.0
    %2591 = vmatpush2.xpose.msra.mxu0 0.0
    %2592 = vmatprep.subr.mxu0 0.0
    %2593 = vmatpush2.xpose.msra.mxu0 0.0
    %2594 = vmatprep.subr.mxu0 0.0
    %2595 = vmatpush2.xpose.msra.mxu0 0.0
    %2596 = vmatprep.subr.mxu0 0.0
    %2597 = vmatpush2.xpose.msra.mxu0 0.0
    %2598 = vmatprep.subr.mxu0 0.0
    %2599 = vmatpush2.xpose.msra.mxu0 0.0
    %2600 = vmatprep.subr.mxu0 0.0
    %2601 = vmatpush2.xpose.msra.mxu0 0.0
    %2602 = vmatprep.mubr.f32.mxu0 0.0
    %2603 = vmatmul.mubr.f32.gmra.mxu0 %v2534
    %v2604 = vpop.f32.mrf.mxu0
    %v2605 = vadd.f32 %v253, %v2604
    %v2606 = vpop.f32.mrf.mxu0
    %2607 = vdwg.mxu0
    %2608 = vrot.lane.b32.xlu0 %v2075, 120
    %v2609 = vpop.permute.xlu0 %2608
    %v2610 = vsel %vm373, %v2075, 0
    %v2612 = vsel %vm373, %v2609, 0
    %2614 = vmatprep.subr.mxu0 0.0
    %2615 = vmatpush1.xpose.msra.mxu0 0.0
    %2616 = vmatprep.subr.mxu0 0.0
    %2617 = vmatpush1.xpose.msra.mxu0 0.0
    %2618 = vmatprep.subr.mxu0 0.0
    %2619 = vmatpush1.xpose.msra.mxu0 0.0
    %2620 = vmatprep.subr.mxu0 0.0
    %2621 = vmatpush1.xpose.msra.mxu0 0.0
    %2622 = vmatprep.subr.mxu0 0.0
    %2623 = vmatpush1.xpose.msra.mxu0 0.0
    %2624 = vmatprep.subr.mxu0 0.0
    %2625 = vmatpush1.xpose.msra.mxu0 0.0
    %2626 = vmatprep.subr.mxu0 0.0
    %2627 = vmatpush1.xpose.msra.mxu0 0.0
    %2628 = vmatprep.subr.mxu0 0.0
    %2629 = vmatpush1.xpose.msra.mxu0 0.0
    %2630 = vmatprep.subr.mxu0 0.0
    %2631 = vmatpush1.xpose.msra.mxu0 0.0
    %2632 = vmatprep.subr.mxu0 0.0
    %2633 = vmatpush1.xpose.msra.mxu0 0.0
    %2634 = vmatprep.subr.mxu0 0.0
    %2635 = vmatpush1.xpose.msra.mxu0 0.0
    %2636 = vmatprep.subr.mxu0 0.0
    %2637 = vmatpush1.xpose.msra.mxu0 0.0
    %2638 = vmatprep.subr.mxu0 0.0
    %2639 = vmatpush1.xpose.msra.mxu0 0.0
    %2640 = vmatprep.subr.mxu0 0.0
    %2641 = vmatpush1.xpose.msra.mxu0 0.0
    %2642 = vmatprep.subr.mxu0 0.0
    %2643 = vmatpush1.xpose.msra.mxu0 0.0
    %2644 = vmatprep.subr.mxu0 0.0
    %2645 = vmatpush1.xpose.msra.mxu0 %v2612
    %2646 = vmatprep.subr.mxu0 0.0
    %2647 = vmatpush2.xpose.msra.mxu0 0.0
    %2648 = vmatprep.subr.mxu0 0.0
    %2649 = vmatpush2.xpose.msra.mxu0 0.0
    %2650 = vmatprep.subr.mxu0 0.0
    %2651 = vmatpush2.xpose.msra.mxu0 0.0
    %2652 = vmatprep.subr.mxu0 0.0
    %2653 = vmatpush2.xpose.msra.mxu0 0.0
    %2654 = vmatprep.subr.mxu0 0.0
    %2655 = vmatpush2.xpose.msra.mxu0 0.0
    %2656 = vmatprep.subr.mxu0 0.0
    %2657 = vmatpush2.xpose.msra.mxu0 0.0
    %2658 = vmatprep.subr.mxu0 0.0
    %2659 = vmatpush2.xpose.msra.mxu0 0.0
    %2660 = vmatprep.subr.mxu0 0.0
    %2661 = vmatpush2.xpose.msra.mxu0 0.0
    %2662 = vmatprep.subr.mxu0 0.0
    %2663 = vmatpush2.xpose.msra.mxu0 0.0
    %2664 = vmatprep.subr.mxu0 0.0
    %2665 = vmatpush2.xpose.msra.mxu0 0.0
    %2666 = vmatprep.subr.mxu0 0.0
    %2667 = vmatpush2.xpose.msra.mxu0 0.0
    %2668 = vmatprep.subr.mxu0 0.0
    %2669 = vmatpush2.xpose.msra.mxu0 0.0
    %2670 = vmatprep.subr.mxu0 0.0
    %2671 = vmatpush2.xpose.msra.mxu0 0.0
    %2672 = vmatprep.subr.mxu0 0.0
    %2673 = vmatpush2.xpose.msra.mxu0 0.0
    %2674 = vmatprep.subr.mxu0 0.0
    %2675 = vmatpush2.xpose.msra.mxu0 0.0
    %2676 = vmatprep.subr.mxu0 0.0
    %2677 = vmatpush2.xpose.msra.mxu0 0.0
    %2678 = vmatprep.mubr.f32.mxu0 0.0
    %2679 = vmatmul.mubr.f32.gmra.mxu0 %v2610
    %v2680 = vpop.f32.mrf.mxu0
    %v2681 = vadd.f32 %v257, %v2680
    %v2682 = vpop.f32.mrf.mxu0
    %2683 = vdwg.mxu0
    %v2684 = vsel %vm373, %v2149, -inf
    %2685 = vmax.xlane.f32.xlu0 %v2684
    %v2686 = vpop.xlane.xlu0 %2685
    %v2687 = vsel %vm373, %v2225, -inf
    %2688 = vmax.xlane.f32.xlu0 %v2687
    %v2689 = vpop.xlane.xlu0 %2688
    %v2690 = vsel %vm373, %v2301, -inf
    %2691 = vmax.xlane.f32.xlu0 %v2690
    %v2692 = vpop.xlane.xlu0 %2691
    %v2693 = vsel %vm373, %v2377, -inf
    %2694 = vmax.xlane.f32.xlu0 %v2693
    %v2695 = vpop.xlane.xlu0 %2694
    %v2696 = vsel %vm373, %v2453, -inf
    %2697 = vmax.xlane.f32.xlu0 %v2696
    %v2698 = vpop.xlane.xlu0 %2697
    %v2699 = vsel %vm373, %v2529, -inf
    %2700 = vmax.xlane.f32.xlu0 %v2699
    %v2701 = vpop.xlane.xlu0 %2700
    %v2702 = vsel %vm373, %v2605, -inf
    %2703 = vmax.xlane.f32.xlu0 %v2702
    %v2704 = vpop.xlane.xlu0 %2703
    %v2705 = vsel %vm373, %v2681, -inf
    %2706 = vmax.xlane.f32.xlu0 %v2705
    %v2707 = vpop.xlane.xlu0 %2706
    %v2708 = vsub.f32 %v2149, %v2686
    %v2709 = vsub.f32 %v2225, %v2689
    %v2710 = vsub.f32 %v2301, %v2692
    %v2711 = vsub.f32 %v2377, %v2695
    %v2712 = vsub.f32 %v2453, %v2698
    %v2713 = vsub.f32 %v2529, %v2701
    %v2714 = vsub.f32 %v2605, %v2704
    %v2715 = vsub.f32 %v2681, %v2707
    %v2716 = vmul.f32 %v2708, 1.442695
    %v2717 = vpow.pop %v2716
    %v2718 = vmul.f32 %v2709, 1.442695
    %v2719 = vpow.pop %v2718
    %v2720 = vmul.f32 %v2710, 1.442695
    %v2721 = vpow.pop %v2720
    %v2722 = vmul.f32 %v2711, 1.442695
    %v2723 = vpow.pop %v2722
    %v2724 = vmul.f32 %v2712, 1.442695
    %v2725 = vpow.pop %v2724
    %v2726 = vmul.f32 %v2713, 1.442695
    %v2727 = vpow.pop %v2726
    %v2728 = vmul.f32 %v2714, 1.442695
    %v2729 = vpow.pop %v2728
    %v2730 = vmul.f32 %v2715, 1.442695
    %v2731 = vpow.pop %v2730
    %v2732 = vsel %vm373, %v2717, 0.0
    %2733 = vadd.xlane.f32.xlu0 %v2732
    %v2734 = vpop.xlane.xlu0 %2733
    %v2735 = vsel %vm373, %v2719, 0.0
    %2736 = vadd.xlane.f32.xlu0 %v2735
    %v2737 = vpop.xlane.xlu0 %2736
    %v2738 = vsel %vm373, %v2721, 0.0
    %2739 = vadd.xlane.f32.xlu0 %v2738
    %v2740 = vpop.xlane.xlu0 %2739
    %v2741 = vsel %vm373, %v2723, 0.0
    %2742 = vadd.xlane.f32.xlu0 %v2741
    %v2743 = vpop.xlane.xlu0 %2742
    %v2744 = vsel %vm373, %v2725, 0.0
    %2745 = vadd.xlane.f32.xlu0 %v2744
    %v2746 = vpop.xlane.xlu0 %2745
    %v2747 = vsel %vm373, %v2727, 0.0
    %2748 = vadd.xlane.f32.xlu0 %v2747
    %v2749 = vpop.xlane.xlu0 %2748
    %v2750 = vsel %vm373, %v2729, 0.0
    %2751 = vadd.xlane.f32.xlu0 %v2750
    %v2752 = vpop.xlane.xlu0 %2751
    %v2753 = vsel %vm373, %v2731, 0.0
    %2754 = vadd.xlane.f32.xlu0 %v2753
    %v2755 = vpop.xlane.xlu0 %2754
    %v2756 = vrcp.pop %v2734
    %v2757 = vrcp.pop %v2737
    %v2758 = vrcp.pop %v2740
    %v2759 = vrcp.pop %v2743
    %v2760 = vrcp.pop %v2746
    %v2761 = vrcp.pop %v2749
    %v2762 = vrcp.pop %v2752
    %v2763 = vrcp.pop %v2755
    %v2764 = vmul.f32 %v2717, %v2756
    %v2765 = vmul.f32 %v2719, %v2757
    %v2766 = vmul.f32 %v2721, %v2758
    %v2767 = vmul.f32 %v2723, %v2759
    %v2768 = vmul.f32 %v2725, %v2760
    %v2769 = vmul.f32 %v2727, %v2761
    %v2770 = vmul.f32 %v2729, %v2762
    %v2771 = vmul.f32 %v2731, %v2763
    %2772 = vrot.lane.b32.xlu0 %v2046, 112
    %v2773 = vpop.permute.xlu0 %2772
    %v2776 = vsel %vm373, %v2764, 0
    %2778 = vmatprep.subr.mxu0 0.0
    %2779 = vmatpush1.msra.mxu0 0.0
    %2780 = vmatprep.subr.mxu0 0.0
    %2781 = vmatpush1.msra.mxu0 0.0
    %2782 = vmatprep.subr.mxu0 0.0
    %2783 = vmatpush1.msra.mxu0 0.0
    %2784 = vmatprep.subr.mxu0 0.0
    %2785 = vmatpush1.msra.mxu0 0.0
    %2786 = vmatprep.subr.mxu0 0.0
    %2787 = vmatpush1.msra.mxu0 0.0
    %2788 = vmatprep.subr.mxu0 0.0
    %2789 = vmatpush1.msra.mxu0 0.0
    %2790 = vmatprep.subr.mxu0 0.0
    %2791 = vmatpush1.msra.mxu0 0.0
    %2792 = vmatprep.subr.mxu0 0.0
    %2793 = vmatpush1.msra.mxu0 0.0
    %2794 = vmatprep.subr.mxu0 0.0
    %2795 = vmatpush1.msra.mxu0 0.0
    %2796 = vmatprep.subr.mxu0 0.0
    %2797 = vmatpush1.msra.mxu0 0.0
    %2798 = vmatprep.subr.mxu0 0.0
    %2799 = vmatpush1.msra.mxu0 0.0
    %2800 = vmatprep.subr.mxu0 0.0
    %2801 = vmatpush1.msra.mxu0 0.0
    %2802 = vmatprep.subr.mxu0 0.0
    %2803 = vmatpush1.msra.mxu0 0.0
    %2804 = vmatprep.subr.mxu0 0.0
    %2805 = vmatpush1.msra.mxu0 0.0
    %2806 = vmatprep.subr.mxu0 0.0
    %2807 = vmatpush1.msra.mxu0 0.0
    %2808 = vmatprep.subr.mxu0 0.0
    %2809 = vmatpush1.msra.mxu0 %v2773
    %2810 = vmatprep.subr.mxu0 0.0
    %2811 = vmatpush2.msra.mxu0 0.0
    %2812 = vmatprep.subr.mxu0 0.0
    %2813 = vmatpush2.msra.mxu0 0.0
    %2814 = vmatprep.subr.mxu0 0.0
    %2815 = vmatpush2.msra.mxu0 0.0
    %2816 = vmatprep.subr.mxu0 0.0
    %2817 = vmatpush2.msra.mxu0 0.0
    %2818 = vmatprep.subr.mxu0 0.0
    %2819 = vmatpush2.msra.mxu0 0.0
    %2820 = vmatprep.subr.mxu0 0.0
    %2821 = vmatpush2.msra.mxu0 0.0
    %2822 = vmatprep.subr.mxu0 0.0
    %2823 = vmatpush2.msra.mxu0 0.0
    %2824 = vmatprep.subr.mxu0 0.0
    %2825 = vmatpush2.msra.mxu0 0.0
    %2826 = vmatprep.subr.mxu0 0.0
    %2827 = vmatpush2.msra.mxu0 0.0
    %2828 = vmatprep.subr.mxu0 0.0
    %2829 = vmatpush2.msra.mxu0 0.0
    %2830 = vmatprep.subr.mxu0 0.0
    %2831 = vmatpush2.msra.mxu0 0.0
    %2832 = vmatprep.subr.mxu0 0.0
    %2833 = vmatpush2.msra.mxu0 0.0
    %2834 = vmatprep.subr.mxu0 0.0
    %2835 = vmatpush2.msra.mxu0 0.0
    %2836 = vmatprep.subr.mxu0 0.0
    %2837 = vmatpush2.msra.mxu0 0.0
    %2838 = vmatprep.subr.mxu0 0.0
    %2839 = vmatpush2.msra.mxu0 0.0
    %2840 = vmatprep.subr.mxu0 0.0
    %2841 = vmatpush2.msra.mxu0 0.0
    %2842 = vmatprep.mubr.f32.mxu0 0.0
    %2843 = vmatmul.mubr.f32.gmra.mxu0 %v2776
    %v2844 = vpop.f32.mrf.mxu0
    %v2845 = vadd.f32 0.0, %v2844
    %v2846 = vpop.f32.mrf.mxu0
    %2847 = vdwg.mxu0
    %2848 = vrot.lane.b32.xlu0 %v2050, 112
    %v2849 = vpop.permute.xlu0 %2848
    %v2852 = vsel %vm373, %v2765, 0
    %2854 = vmatprep.subr.mxu0 0.0
    %2855 = vmatpush1.msra.mxu0 0.0
    %2856 = vmatprep.subr.mxu0 0.0
    %2857 = vmatpush1.msra.mxu0 0.0
    %2858 = vmatprep.subr.mxu0 0.0
    %2859 = vmatpush1.msra.mxu0 0.0
    %2860 = vmatprep.subr.mxu0 0.0
    %2861 = vmatpush1.msra.mxu0 0.0
    %2862 = vmatprep.subr.mxu0 0.0
    %2863 = vmatpush1.msra.mxu0 0.0
    %2864 = vmatprep.subr.mxu0 0.0
    %2865 = vmatpush1.msra.mxu0 0.0
    %2866 = vmatprep.subr.mxu0 0.0
    %2867 = vmatpush1.msra.mxu0 0.0
    %2868 = vmatprep.subr.mxu0 0.0
    %2869 = vmatpush1.msra.mxu0 0.0
    %2870 = vmatprep.subr.mxu0 0.0
    %2871 = vmatpush1.msra.mxu0 0.0
    %2872 = vmatprep.subr.mxu0 0.0
    %2873 = vmatpush1.msra.mxu0 0.0
    %2874 = vmatprep.subr.mxu0 0.0
    %2875 = vmatpush1.msra.mxu0 0.0
    %2876 = vmatprep.subr.mxu0 0.0
    %2877 = vmatpush1.msra.mxu0 0.0
    %2878 = vmatprep.subr.mxu0 0.0
    %2879 = vmatpush1.msra.mxu0 0.0
    %2880 = vmatprep.subr.mxu0 0.0
    %2881 = vmatpush1.msra.mxu0 0.0
    %2882 = vmatprep.subr.mxu0 0.0
    %2883 = vmatpush1.msra.mxu0 0.0
    %2884 = vmatprep.subr.mxu0 0.0
    %2885 = vmatpush1.msra.mxu0 %v2849
    %2886 = vmatprep.subr.mxu0 0.0
    %2887 = vmatpush2.msra.mxu0 0.0
    %2888 = vmatprep.subr.mxu0 0.0
    %2889 = vmatpush2.msra.mxu0 0.0
    %2890 = vmatprep.subr.mxu0 0.0
    %2891 = vmatpush2.msra.mxu0 0.0
    %2892 = vmatprep.subr.mxu0 0.0
    %2893 = vmatpush2.msra.mxu0 0.0
    %2894 = vmatprep.subr.mxu0 0.0
    %2895 = vmatpush2.msra.mxu0 0.0
    %2896 = vmatprep.subr.mxu0 0.0
    %2897 = vmatpush2.msra.mxu0 0.0
    %2898 = vmatprep.subr.mxu0 0.0
    %2899 = vmatpush2.msra.mxu0 0.0
    %2900 = vmatprep.subr.mxu0 0.0
    %2901 = vmatpush2.msra.mxu0 0.0
    %2902 = vmatprep.subr.mxu0 0.0
    %2903 = vmatpush2.msra.mxu0 0.0
    %2904 = vmatprep.subr.mxu0 0.0
    %2905 = vmatpush2.msra.mxu0 0.0
    %2906 = vmatprep.subr.mxu0 0.0
    %2907 = vmatpush2.msra.mxu0 0.0
    %2908 = vmatprep.subr.mxu0 0.0
    %2909 = vmatpush2.msra.mxu0 0.0
    %2910 = vmatprep.subr.mxu0 0.0
    %2911 = vmatpush2.msra.mxu0 0.0
    %2912 = vmatprep.subr.mxu0 0.0
    %2913 = vmatpush2.msra.mxu0 0.0
    %2914 = vmatprep.subr.mxu0 0.0
    %2915 = vmatpush2.msra.mxu0 0.0
    %2916 = vmatprep.subr.mxu0 0.0
    %2917 = vmatpush2.msra.mxu0 0.0
    %2918 = vmatprep.mubr.f32.mxu0 0.0
    %2919 = vmatmul.mubr.f32.gmra.mxu0 %v2852
    %v2920 = vpop.f32.mrf.mxu0
    %v2921 = vadd.f32 0.0, %v2920
    %v2922 = vpop.f32.mrf.mxu0
    %2923 = vdwg.mxu0
    %2924 = vrot.lane.b32.xlu0 %v2057, 112
    %v2925 = vpop.permute.xlu0 %2924
    %v2928 = vsel %vm373, %v2766, 0
    %2930 = vmatprep.subr.mxu0 0.0
    %2931 = vmatpush1.msra.mxu0 0.0
    %2932 = vmatprep.subr.mxu0 0.0
    %2933 = vmatpush1.msra.mxu0 0.0
    %2934 = vmatprep.subr.mxu0 0.0
    %2935 = vmatpush1.msra.mxu0 0.0
    %2936 = vmatprep.subr.mxu0 0.0
    %2937 = vmatpush1.msra.mxu0 0.0
    %2938 = vmatprep.subr.mxu0 0.0
    %2939 = vmatpush1.msra.mxu0 0.0
    %2940 = vmatprep.subr.mxu0 0.0
    %2941 = vmatpush1.msra.mxu0 0.0
    %2942 = vmatprep.subr.mxu0 0.0
    %2943 = vmatpush1.msra.mxu0 0.0
    %2944 = vmatprep.subr.mxu0 0.0
    %2945 = vmatpush1.msra.mxu0 0.0
    %2946 = vmatprep.subr.mxu0 0.0
    %2947 = vmatpush1.msra.mxu0 0.0
    %2948 = vmatprep.subr.mxu0 0.0
    %2949 = vmatpush1.msra.mxu0 0.0
    %2950 = vmatprep.subr.mxu0 0.0
    %2951 = vmatpush1.msra.mxu0 0.0
    %2952 = vmatprep.subr.mxu0 0.0
    %2953 = vmatpush1.msra.mxu0 0.0
    %2954 = vmatprep.subr.mxu0 0.0
    %2955 = vmatpush1.msra.mxu0 0.0
    %2956 = vmatprep.subr.mxu0 0.0
    %2957 = vmatpush1.msra.mxu0 0.0
    %2958 = vmatprep.subr.mxu0 0.0
    %2959 = vmatpush1.msra.mxu0 0.0
    %2960 = vmatprep.subr.mxu0 0.0
    %2961 = vmatpush1.msra.mxu0 %v2925
    %2962 = vmatprep.subr.mxu0 0.0
    %2963 = vmatpush2.msra.mxu0 0.0
    %2964 = vmatprep.subr.mxu0 0.0
    %2965 = vmatpush2.msra.mxu0 0.0
    %2966 = vmatprep.subr.mxu0 0.0
    %2967 = vmatpush2.msra.mxu0 0.0
    %2968 = vmatprep.subr.mxu0 0.0
    %2969 = vmatpush2.msra.mxu0 0.0
    %2970 = vmatprep.subr.mxu0 0.0
    %2971 = vmatpush2.msra.mxu0 0.0
    %2972 = vmatprep.subr.mxu0 0.0
    %2973 = vmatpush2.msra.mxu0 0.0
    %2974 = vmatprep.subr.mxu0 0.0
    %2975 = vmatpush2.msra.mxu0 0.0
    %2976 = vmatprep.subr.mxu0 0.0
    %2977 = vmatpush2.msra.mxu0 0.0
    %2978 = vmatprep.subr.mxu0 0.0
    %2979 = vmatpush2.msra.mxu0 0.0
    %2980 = vmatprep.subr.mxu0 0.0
    %2981 = vmatpush2.msra.mxu0 0.0
    %2982 = vmatprep.subr.mxu0 0.0
    %2983 = vmatpush2.msra.mxu0 0.0
    %2984 = vmatprep.subr.mxu0 0.0
    %2985 = vmatpush2.msra.mxu0 0.0
    %2986 = vmatprep.subr.mxu0 0.0
    %2987 = vmatpush2.msra.mxu0 0.0
    %2988 = vmatprep.subr.mxu0 0.0
    %2989 = vmatpush2.msra.mxu0 0.0
    %2990 = vmatprep.subr.mxu0 0.0
    %2991 = vmatpush2.msra.mxu0 0.0
    %2992 = vmatprep.subr.mxu0 0.0
    %2993 = vmatpush2.msra.mxu0 0.0
    %2994 = vmatprep.mubr.f32.mxu0 0.0
    %2995 = vmatmul.mubr.f32.gmra.mxu0 %v2928
    %v2996 = vpop.f32.mrf.mxu0
    %v2997 = vadd.f32 0.0, %v2996
    %v2998 = vpop.f32.mrf.mxu0
    %2999 = vdwg.mxu0
    %3000 = vrot.lane.b32.xlu0 %v2059, 112
    %v3001 = vpop.permute.xlu0 %3000
    %v3004 = vsel %vm373, %v2767, 0
    %3006 = vmatprep.subr.mxu0 0.0
    %3007 = vmatpush1.msra.mxu0 0.0
    %3008 = vmatprep.subr.mxu0 0.0
    %3009 = vmatpush1.msra.mxu0 0.0
    %3010 = vmatprep.subr.mxu0 0.0
    %3011 = vmatpush1.msra.mxu0 0.0
    %3012 = vmatprep.subr.mxu0 0.0
    %3013 = vmatpush1.msra.mxu0 0.0
    %3014 = vmatprep.subr.mxu0 0.0
    %3015 = vmatpush1.msra.mxu0 0.0
    %3016 = vmatprep.subr.mxu0 0.0
    %3017 = vmatpush1.msra.mxu0 0.0
    %3018 = vmatprep.subr.mxu0 0.0
    %3019 = vmatpush1.msra.mxu0 0.0
    %3020 = vmatprep.subr.mxu0 0.0
    %3021 = vmatpush1.msra.mxu0 0.0
    %3022 = vmatprep.subr.mxu0 0.0
    %3023 = vmatpush1.msra.mxu0 0.0
    %3024 = vmatprep.subr.mxu0 0.0
    %3025 = vmatpush1.msra.mxu0 0.0
    %3026 = vmatprep.subr.mxu0 0.0
    %3027 = vmatpush1.msra.mxu0 0.0
    %3028 = vmatprep.subr.mxu0 0.0
    %3029 = vmatpush1.msra.mxu0 0.0
    %3030 = vmatprep.subr.mxu0 0.0
    %3031 = vmatpush1.msra.mxu0 0.0
    %3032 = vmatprep.subr.mxu0 0.0
    %3033 = vmatpush1.msra.mxu0 0.0
    %3034 = vmatprep.subr.mxu0 0.0
    %3035 = vmatpush1.msra.mxu0 0.0
    %3036 = vmatprep.subr.mxu0 0.0
    %3037 = vmatpush1.msra.mxu0 %v3001
    %3038 = vmatprep.subr.mxu0 0.0
    %3039 = vmatpush2.msra.mxu0 0.0
    %3040 = vmatprep.subr.mxu0 0.0
    %3041 = vmatpush2.msra.mxu0 0.0
    %3042 = vmatprep.subr.mxu0 0.0
    %3043 = vmatpush2.msra.mxu0 0.0
    %3044 = vmatprep.subr.mxu0 0.0
    %3045 = vmatpush2.msra.mxu0 0.0
    %3046 = vmatprep.subr.mxu0 0.0
    %3047 = vmatpush2.msra.mxu0 0.0
    %3048 = vmatprep.subr.mxu0 0.0
    %3049 = vmatpush2.msra.mxu0 0.0
    %3050 = vmatprep.subr.mxu0 0.0
    %3051 = vmatpush2.msra.mxu0 0.0
    %3052 = vmatprep.subr.mxu0 0.0
    %3053 = vmatpush2.msra.mxu0 0.0
    %3054 = vmatprep.subr.mxu0 0.0
    %3055 = vmatpush2.msra.mxu0 0.0
    %3056 = vmatprep.subr.mxu0 0.0
    %3057 = vmatpush2.msra.mxu0 0.0
    %3058 = vmatprep.subr.mxu0 0.0
    %3059 = vmatpush2.msra.mxu0 0.0
    %3060 = vmatprep.subr.mxu0 0.0
    %3061 = vmatpush2.msra.mxu0 0.0
    %3062 = vmatprep.subr.mxu0 0.0
    %3063 = vmatpush2.msra.mxu0 0.0
    %3064 = vmatprep.subr.mxu0 0.0
    %3065 = vmatpush2.msra.mxu0 0.0
    %3066 = vmatprep.subr.mxu0 0.0
    %3067 = vmatpush2.msra.mxu0 0.0
    %3068 = vmatprep.subr.mxu0 0.0
    %3069 = vmatpush2.msra.mxu0 0.0
    %3070 = vmatprep.mubr.f32.mxu0 0.0
    %3071 = vmatmul.mubr.f32.gmra.mxu0 %v3004
    %v3072 = vpop.f32.mrf.mxu0
    %v3073 = vadd.f32 0.0, %v3072
    %v3074 = vpop.f32.mrf.mxu0
    %3075 = vdwg.mxu0
    %3076 = vrot.lane.b32.xlu0 %v2070, 112
    %v3077 = vpop.permute.xlu0 %3076
    %v3080 = vsel %vm373, %v2768, 0
    %3082 = vmatprep.subr.mxu0 0.0
    %3083 = vmatpush1.msra.mxu0 0.0
    %3084 = vmatprep.subr.mxu0 0.0
    %3085 = vmatpush1.msra.mxu0 0.0
    %3086 = vmatprep.subr.mxu0 0.0
    %3087 = vmatpush1.msra.mxu0 0.0
    %3088 = vmatprep.subr.mxu0 0.0
    %3089 = vmatpush1.msra.mxu0 0.0
    %3090 = vmatprep.subr.mxu0 0.0
    %3091 = vmatpush1.msra.mxu0 0.0
    %3092 = vmatprep.subr.mxu0 0.0
    %3093 = vmatpush1.msra.mxu0 0.0
    %3094 = vmatprep.subr.mxu0 0.0
    %3095 = vmatpush1.msra.mxu0 0.0
    %3096 = vmatprep.subr.mxu0 0.0
    %3097 = vmatpush1.msra.mxu0 0.0
    %3098 = vmatprep.subr.mxu0 0.0
    %3099 = vmatpush1.msra.mxu0 0.0
    %3100 = vmatprep.subr.mxu0 0.0
    %3101 = vmatpush1.msra.mxu0 0.0
    %3102 = vmatprep.subr.mxu0 0.0
    %3103 = vmatpush1.msra.mxu0 0.0
    %3104 = vmatprep.subr.mxu0 0.0
    %3105 = vmatpush1.msra.mxu0 0.0
    %3106 = vmatprep.subr.mxu0 0.0
    %3107 = vmatpush1.msra.mxu0 0.0
    %3108 = vmatprep.subr.mxu0 0.0
    %3109 = vmatpush1.msra.mxu0 0.0
    %3110 = vmatprep.subr.mxu0 0.0
    %3111 = vmatpush1.msra.mxu0 0.0
    %3112 = vmatprep.subr.mxu0 0.0
    %3113 = vmatpush1.msra.mxu0 %v3077
    %3114 = vmatprep.subr.mxu0 0.0
    %3115 = vmatpush2.msra.mxu0 0.0
    %3116 = vmatprep.subr.mxu0 0.0
    %3117 = vmatpush2.msra.mxu0 0.0
    %3118 = vmatprep.subr.mxu0 0.0
    %3119 = vmatpush2.msra.mxu0 0.0
    %3120 = vmatprep.subr.mxu0 0.0
    %3121 = vmatpush2.msra.mxu0 0.0
    %3122 = vmatprep.subr.mxu0 0.0
    %3123 = vmatpush2.msra.mxu0 0.0
    %3124 = vmatprep.subr.mxu0 0.0
    %3125 = vmatpush2.msra.mxu0 0.0
    %3126 = vmatprep.subr.mxu0 0.0
    %3127 = vmatpush2.msra.mxu0 0.0
    %3128 = vmatprep.subr.mxu0 0.0
    %3129 = vmatpush2.msra.mxu0 0.0
    %3130 = vmatprep.subr.mxu0 0.0
    %3131 = vmatpush2.msra.mxu0 0.0
    %3132 = vmatprep.subr.mxu0 0.0
    %3133 = vmatpush2.msra.mxu0 0.0
    %3134 = vmatprep.subr.mxu0 0.0
    %3135 = vmatpush2.msra.mxu0 0.0
    %3136 = vmatprep.subr.mxu0 0.0
    %3137 = vmatpush2.msra.mxu0 0.0
    %3138 = vmatprep.subr.mxu0 0.0
    %3139 = vmatpush2.msra.mxu0 0.0
    %3140 = vmatprep.subr.mxu0 0.0
    %3141 = vmatpush2.msra.mxu0 0.0
    %3142 = vmatprep.subr.mxu0 0.0
    %3143 = vmatpush2.msra.mxu0 0.0
    %3144 = vmatprep.subr.mxu0 0.0
    %3145 = vmatpush2.msra.mxu0 0.0
    %3146 = vmatprep.mubr.f32.mxu0 0.0
    %3147 = vmatmul.mubr.f32.gmra.mxu0 %v3080
    %v3148 = vpop.f32.mrf.mxu0
    %v3149 = vadd.f32 0.0, %v3148
    %v3150 = vpop.f32.mrf.mxu0
    %3151 = vdwg.mxu0
    %3152 = vrot.lane.b32.xlu0 %v2071, 112
    %v3153 = vpop.permute.xlu0 %3152
    %v3156 = vsel %vm373, %v2769, 0
    %3158 = vmatprep.subr.mxu0 0.0
    %3159 = vmatpush1.msra.mxu0 0.0
    %3160 = vmatprep.subr.mxu0 0.0
    %3161 = vmatpush1.msra.mxu0 0.0
    %3162 = vmatprep.subr.mxu0 0.0
    %3163 = vmatpush1.msra.mxu0 0.0
    %3164 = vmatprep.subr.mxu0 0.0
    %3165 = vmatpush1.msra.mxu0 0.0
    %3166 = vmatprep.subr.mxu0 0.0
    %3167 = vmatpush1.msra.mxu0 0.0
    %3168 = vmatprep.subr.mxu0 0.0
    %3169 = vmatpush1.msra.mxu0 0.0
    %3170 = vmatprep.subr.mxu0 0.0
    %3171 = vmatpush1.msra.mxu0 0.0
    %3172 = vmatprep.subr.mxu0 0.0
    %3173 = vmatpush1.msra.mxu0 0.0
    %3174 = vmatprep.subr.mxu0 0.0
    %3175 = vmatpush1.msra.mxu0 0.0
    %3176 = vmatprep.subr.mxu0 0.0
    %3177 = vmatpush1.msra.mxu0 0.0
    %3178 = vmatprep.subr.mxu0 0.0
    %3179 = vmatpush1.msra.mxu0 0.0
    %3180 = vmatprep.subr.mxu0 0.0
    %3181 = vmatpush1.msra.mxu0 0.0
    %3182 = vmatprep.subr.mxu0 0.0
    %3183 = vmatpush1.msra.mxu0 0.0
    %3184 = vmatprep.subr.mxu0 0.0
    %3185 = vmatpush1.msra.mxu0 0.0
    %3186 = vmatprep.subr.mxu0 0.0
    %3187 = vmatpush1.msra.mxu0 0.0
    %3188 = vmatprep.subr.mxu0 0.0
    %3189 = vmatpush1.msra.mxu0 %v3153
    %3190 = vmatprep.subr.mxu0 0.0
    %3191 = vmatpush2.msra.mxu0 0.0
    %3192 = vmatprep.subr.mxu0 0.0
    %3193 = vmatpush2.msra.mxu0 0.0
    %3194 = vmatprep.subr.mxu0 0.0
    %3195 = vmatpush2.msra.mxu0 0.0
    %3196 = vmatprep.subr.mxu0 0.0
    %3197 = vmatpush2.msra.mxu0 0.0
    %3198 = vmatprep.subr.mxu0 0.0
    %3199 = vmatpush2.msra.mxu0 0.0
    %3200 = vmatprep.subr.mxu0 0.0
    %3201 = vmatpush2.msra.mxu0 0.0
    %3202 = vmatprep.subr.mxu0 0.0
    %3203 = vmatpush2.msra.mxu0 0.0
    %3204 = vmatprep.subr.mxu0 0.0
    %3205 = vmatpush2.msra.mxu0 0.0
    %3206 = vmatprep.subr.mxu0 0.0
    %3207 = vmatpush2.msra.mxu0 0.0
    %3208 = vmatprep.subr.mxu0 0.0
    %3209 = vmatpush2.msra.mxu0 0.0
    %3210 = vmatprep.subr.mxu0 0.0
    %3211 = vmatpush2.msra.mxu0 0.0
    %3212 = vmatprep.subr.mxu0 0.0
    %3213 = vmatpush2.msra.mxu0 0.0
    %3214 = vmatprep.subr.mxu0 0.0
    %3215 = vmatpush2.msra.mxu0 0.0
    %3216 = vmatprep.subr.mxu0 0.0
    %3217 = vmatpush2.msra.mxu0 0.0
    %3218 = vmatprep.subr.mxu0 0.0
    %3219 = vmatpush2.msra.mxu0 0.0
    %3220 = vmatprep.subr.mxu0 0.0
    %3221 = vmatpush2.msra.mxu0 0.0
    %3222 = vmatprep.mubr.f32.mxu0 0.0
    %3223 = vmatmul.mubr.f32.gmra.mxu0 %v3156
    %v3224 = vpop.f32.mrf.mxu0
    %v3225 = vadd.f32 0.0, %v3224
    %v3226 = vpop.f32.mrf.mxu0
    %3227 = vdwg.mxu0
    %3228 = vrot.lane.b32.xlu0 %v2073, 112
    %v3229 = vpop.permute.xlu0 %3228
    %v3232 = vsel %vm373, %v2770, 0
    %3234 = vmatprep.subr.mxu0 0.0
    %3235 = vmatpush1.msra.mxu0 0.0
    %3236 = vmatprep.subr.mxu0 0.0
    %3237 = vmatpush1.msra.mxu0 0.0
    %3238 = vmatprep.subr.mxu0 0.0
    %3239 = vmatpush1.msra.mxu0 0.0
    %3240 = vmatprep.subr.mxu0 0.0
    %3241 = vmatpush1.msra.mxu0 0.0
    %3242 = vmatprep.subr.mxu0 0.0
    %3243 = vmatpush1.msra.mxu0 0.0
    %3244 = vmatprep.subr.mxu0 0.0
    %3245 = vmatpush1.msra.mxu0 0.0
    %3246 = vmatprep.subr.mxu0 0.0
    %3247 = vmatpush1.msra.mxu0 0.0
    %3248 = vmatprep.subr.mxu0 0.0
    %3249 = vmatpush1.msra.mxu0 0.0
    %3250 = vmatprep.subr.mxu0 0.0
    %3251 = vmatpush1.msra.mxu0 0.0
    %3252 = vmatprep.subr.mxu0 0.0
    %3253 = vmatpush1.msra.mxu0 0.0
    %3254 = vmatprep.subr.mxu0 0.0
    %3255 = vmatpush1.msra.mxu0 0.0
    %3256 = vmatprep.subr.mxu0 0.0
    %3257 = vmatpush1.msra.mxu0 0.0
    %3258 = vmatprep.subr.mxu0 0.0
    %3259 = vmatpush1.msra.mxu0 0.0
    %3260 = vmatprep.subr.mxu0 0.0
    %3261 = vmatpush1.msra.mxu0 0.0
    %3262 = vmatprep.subr.mxu0 0.0
    %3263 = vmatpush1.msra.mxu0 0.0
    %3264 = vmatprep.subr.mxu0 0.0
    %3265 = vmatpush1.msra.mxu0 %v3229
    %3266 = vmatprep.subr.mxu0 0.0
    %3267 = vmatpush2.msra.mxu0 0.0
    %3268 = vmatprep.subr.mxu0 0.0
    %3269 = vmatpush2.msra.mxu0 0.0
    %3270 = vmatprep.subr.mxu0 0.0
    %3271 = vmatpush2.msra.mxu0 0.0
    %3272 = vmatprep.subr.mxu0 0.0
    %3273 = vmatpush2.msra.mxu0 0.0
    %3274 = vmatprep.subr.mxu0 0.0
    %3275 = vmatpush2.msra.mxu0 0.0
    %3276 = vmatprep.subr.mxu0 0.0
    %3277 = vmatpush2.msra.mxu0 0.0
    %3278 = vmatprep.subr.mxu0 0.0
    %3279 = vmatpush2.msra.mxu0 0.0
    %3280 = vmatprep.subr.mxu0 0.0
    %3281 = vmatpush2.msra.mxu0 0.0
    %3282 = vmatprep.subr.mxu0 0.0
    %3283 = vmatpush2.msra.mxu0 0.0
    %3284 = vmatprep.subr.mxu0 0.0
    %3285 = vmatpush2.msra.mxu0 0.0
    %3286 = vmatprep.subr.mxu0 0.0
    %3287 = vmatpush2.msra.mxu0 0.0
    %3288 = vmatprep.subr.mxu0 0.0
    %3289 = vmatpush2.msra.mxu0 0.0
    %3290 = vmatprep.subr.mxu0 0.0
    %3291 = vmatpush2.msra.mxu0 0.0
    %3292 = vmatprep.subr.mxu0 0.0
    %3293 = vmatpush2.msra.mxu0 0.0
    %3294 = vmatprep.subr.mxu0 0.0
    %3295 = vmatpush2.msra.mxu0 0.0
    %3296 = vmatprep.subr.mxu0 0.0
    %3297 = vmatpush2.msra.mxu0 0.0
    %3298 = vmatprep.mubr.f32.mxu0 0.0
    %3299 = vmatmul.mubr.f32.gmra.mxu0 %v3232
    %v3300 = vpop.f32.mrf.mxu0
    %v3301 = vadd.f32 0.0, %v3300
    %v3302 = vpop.f32.mrf.mxu0
    %3303 = vdwg.mxu0
    %3304 = vrot.lane.b32.xlu0 %v2075, 112
    %v3305 = vpop.permute.xlu0 %3304
    %v3308 = vsel %vm373, %v2771, 0
    %3310 = vmatprep.subr.mxu0 0.0
    %3311 = vmatpush1.msra.mxu0 0.0
    %3312 = vmatprep.subr.mxu0 0.0
    %3313 = vmatpush1.msra.mxu0 0.0
    %3314 = vmatprep.subr.mxu0 0.0
    %3315 = vmatpush1.msra.mxu0 0.0
    %3316 = vmatprep.subr.mxu0 0.0
    %3317 = vmatpush1.msra.mxu0 0.0
    %3318 = vmatprep.subr.mxu0 0.0
    %3319 = vmatpush1.msra.mxu0 0.0
    %3320 = vmatprep.subr.mxu0 0.0
    %3321 = vmatpush1.msra.mxu0 0.0
    %3322 = vmatprep.subr.mxu0 0.0
    %3323 = vmatpush1.msra.mxu0 0.0
    %3324 = vmatprep.subr.mxu0 0.0
    %3325 = vmatpush1.msra.mxu0 0.0
    %3326 = vmatprep.subr.mxu0 0.0
    %3327 = vmatpush1.msra.mxu0 0.0
    %3328 = vmatprep.subr.mxu0 0.0
    %3329 = vmatpush1.msra.mxu0 0.0
    %3330 = vmatprep.subr.mxu0 0.0
    %3331 = vmatpush1.msra.mxu0 0.0
    %3332 = vmatprep.subr.mxu0 0.0
    %3333 = vmatpush1.msra.mxu0 0.0
    %3334 = vmatprep.subr.mxu0 0.0
    %3335 = vmatpush1.msra.mxu0 0.0
    %3336 = vmatprep.subr.mxu0 0.0
    %3337 = vmatpush1.msra.mxu0 0.0
    %3338 = vmatprep.subr.mxu0 0.0
    %3339 = vmatpush1.msra.mxu0 0.0
    %3340 = vmatprep.subr.mxu0 0.0
    %3341 = vmatpush1.msra.mxu0 %v3305
    %3342 = vmatprep.subr.mxu0 0.0
    %3343 = vmatpush2.msra.mxu0 0.0
    %3344 = vmatprep.subr.mxu0 0.0
    %3345 = vmatpush2.msra.mxu0 0.0
    %3346 = vmatprep.subr.mxu0 0.0
    %3347 = vmatpush2.msra.mxu0 0.0
    %3348 = vmatprep.subr.mxu0 0.0
    %3349 = vmatpush2.msra.mxu0 0.0
    %3350 = vmatprep.subr.mxu0 0.0
    %3351 = vmatpush2.msra.mxu0 0.0
    %3352 = vmatprep.subr.mxu0 0.0
    %3353 = vmatpush2.msra.mxu0 0.0
    %3354 = vmatprep.subr.mxu0 0.0
    %3355 = vmatpush2.msra.mxu0 0.0
    %3356 = vmatprep.subr.mxu0 0.0
    %3357 = vmatpush2.msra.mxu0 0.0
    %3358 = vmatprep.subr.mxu0 0.0
    %3359 = vmatpush2.msra.mxu0 0.0
    %3360 = vmatprep.subr.mxu0 0.0
    %3361 = vmatpush2.msra.mxu0 0.0
    %3362 = vmatprep.subr.mxu0 0.0
    %3363 = vmatpush2.msra.mxu0 0.0
    %3364 = vmatprep.subr.mxu0 0.0
    %3365 = vmatpush2.msra.mxu0 0.0
    %3366 = vmatprep.subr.mxu0 0.0
    %3367 = vmatpush2.msra.mxu0 0.0
    %3368 = vmatprep.subr.mxu0 0.0
    %3369 = vmatpush2.msra.mxu0 0.0
    %3370 = vmatprep.subr.mxu0 0.0
    %3371 = vmatpush2.msra.mxu0 0.0
    %3372 = vmatprep.subr.mxu0 0.0
    %3373 = vmatpush2.msra.mxu0 0.0
    %3374 = vmatprep.mubr.f32.mxu0 0.0
    %3375 = vmatmul.mubr.f32.gmra.mxu0 %v3308
    %v3376 = vpop.f32.mrf.mxu0
    %v3377 = vadd.f32 0.0, %v3376
    %v3378 = vpop.f32.mrf.mxu0
    %3379 = vdwg.mxu0
    %v3380 = vsel %vm135, %v2845, 0.0
    %v3381 = vsel %vm135, %v2997, 0.0
    %v3382 = vadd.f32 %v3380, %v3381
    %v3383 = vsel %vm135, %v3149, 0.0
    %v3384 = vadd.f32 %v3382, %v3383
    %v3385 = vsel %vm135, %v3301, 0.0
    %v3386 = vadd.f32 %v3384, %v3385
    %v3387 = vsel %vm135, %v2921, 0.0
    %v3388 = vsel %vm135, %v3073, 0.0
    %v3389 = vadd.f32 %v3387, %v3388
    %v3390 = vsel %vm135, %v3225, 0.0
    %v3391 = vadd.f32 %v3389, %v3390
    %v3392 = vsel %vm135, %v3377, 0.0
    %v3393 = vadd.f32 %v3391, %v3392
    %v3394 = vadd.f32 %v3386, %v1967
    %v3395 = vadd.f32 %v3393, %v1968
    %v3396 = vld [vmem:[%s9 + $0x7] sm:$0x1]
    %v3397 = vld [vmem:[%s9 + $0x8] sm:$0x1]
    %v3398 = vsel %vm135, %v3394, 0.0
    %3399 = vadd.xlane.f32.xlu0 %v3398
    %v3400 = vpop.xlane.xlu0 %3399
    %v3401 = vsel %vm135, %v3395, 0.0
    %3402 = vadd.xlane.f32.xlu0 %v3401
    %v3403 = vpop.xlane.xlu0 %3402
    %v3404 = vmul.f32 %v3400, %v142
    %v3405 = vmul.f32 %v3403, %v142
    %v3406 = vsub.f32 %v3394, %v3404
    %v3407 = vsub.f32 %v3395, %v3405
    %v3408 = vmul.f32 %v3406, %v3406
    %v3409 = vmul.f32 %v3407, %v3407
    %v3410 = vsel %vm135, %v3408, 0.0
    %3411 = vadd.xlane.f32.xlu0 %v3410
    %v3412 = vpop.xlane.xlu0 %3411
    %v3413 = vsel %vm135, %v3409, 0.0
    %3414 = vadd.xlane.f32.xlu0 %v3413
    %v3415 = vpop.xlane.xlu0 %3414
    %v3416 = vmul.f32 %v3412, %v142
    %v3417 = vmul.f32 %v3415, %v142
    %v3418 = vadd.f32 %v3416, 1e-12
    %v3419 = vadd.f32 %v3417, 1e-12
    %v3420 = vrsqrt.pop %v3418
    %v3421 = vrsqrt.pop %v3419
    %v3422 = vmul.f32 %v3406, %v3420
    %v3423 = vmul.f32 %v3407, %v3421
    %v3424 = vlaneseq
    %v3425 = vshrl.u32 %v3424, 7
    %v3426 = vsub.s32 0, %v3425
    %v3427 = vrot.slane %v3396, %v3426
    %v3428 = vmul.f32 %v3422, %v3427
    %v3429 = vmul.f32 %v3423, %v3427
    %v3430 = vlaneseq
    %v3431 = vshrl.u32 %v3430, 7
    %v3432 = vsub.s32 0, %v3431
    %v3433 = vrot.slane %v3397, %v3432
    %v3434 = vadd.f32 %v3428, %v3433
    %v3435 = vadd.f32 %v3429, %v3433
    %v3436 = vpack.c.bf16 %v3435, %v3434
    %s3437 = scalar_lea.vmem %s5, 16
    %v3438 = vld [vmem:[%s3437] sm:$0xf]
    %v3439 = vld [vmem:[%s3437 + $0x4] sm:$0xf]
    %v3440 = vld [vmem:[%s3437 + $0x8] sm:$0xf]
    %v3441 = vld [vmem:[%s3437 + $0xc] sm:$0xf]
    %v3442 = vld [vmem:[%s8 + $0x1] sm:$0x1]
    %v3443 = vlaneseq
    %v3444 = vshrl.u32 %v3443, 7
    %v3445 = vsub.s32 0, %v3444
    %v3446 = vrot.slane %v3442, %v3445
    %v3451 = vunpack.c.l.b16 %v3438
    %v3452 = vunpack.c.l.b16 %v3439
    %v3453 = vunpack.c.l.b16 %v3440
    %v3454 = vunpack.c.l.b16 %v3441
    %v3455 = vpack.c.b16 %v3452, %v3451
    %v3456 = vpack.c.b16 %v3454, %v3453
    %v3460 = vsel %vm135, %v3436, 0
    %3462 = vmatprep.subr.bf16.mxu0 0
    %3463 = vmatpush1.bf16.msra.mxu0 0
    %3464 = vmatprep.subr.bf16.mxu0 0
    %3465 = vmatpush1.bf16.msra.mxu0 0
    %3466 = vmatprep.subr.bf16.mxu0 0
    %3467 = vmatpush1.bf16.msra.mxu0 0
    %3468 = vmatprep.subr.bf16.mxu0 0
    %3469 = vmatpush1.bf16.msra.mxu0 0
    %3470 = vmatprep.subr.bf16.mxu0 0
    %3471 = vmatpush1.bf16.msra.mxu0 0
    %3472 = vmatprep.subr.bf16.mxu0 0
    %3473 = vmatpush1.bf16.msra.mxu0 0
    %3474 = vmatprep.subr.bf16.mxu0 0
    %3475 = vmatpush1.bf16.msra.mxu0 %v3456
    %3476 = vmatprep.subr.bf16.mxu0 0
    %3477 = vmatpush1.bf16.msra.mxu0 %v3455
    %3478 = vmatprep.subr.bf16.mxu0 0
    %3479 = vmatpush2.bf16.msra.mxu0 0
    %3480 = vmatprep.subr.bf16.mxu0 0
    %3481 = vmatpush2.bf16.msra.mxu0 0
    %3482 = vmatprep.subr.bf16.mxu0 0
    %3483 = vmatpush2.bf16.msra.mxu0 0
    %3484 = vmatprep.subr.bf16.mxu0 0
    %3485 = vmatpush2.bf16.msra.mxu0 0
    %3486 = vmatprep.subr.bf16.mxu0 0
    %3487 = vmatpush2.bf16.msra.mxu0 0
    %3488 = vmatprep.subr.bf16.mxu0 0
    %3489 = vmatpush2.bf16.msra.mxu0 0
    %3490 = vmatprep.subr.bf16.mxu0 0
    %3491 = vmatpush2.bf16.msra.mxu0 0
    %3492 = vmatprep.subr.bf16.mxu0 0
    %3493 = vmatpush2.bf16.msra.mxu0 0
    %3494 = vmatprep.mubr.bf16.mxu0 0
    %3495 = vmatmul.mubr.bf16.gmra.mxu0 %v3460
    %v3496 = vpop.f32.mrf.mxu0
    %v3497 = vadd.f32 %v3446, %v3496
    %v3498 = vpop.f32.mrf.mxu0
    %v3499 = vpop.f32.mrf.mxu0
    %v3500 = vadd.f32 %v3446, %v3499
    %v3501 = vpop.f32.mrf.mxu0
    %3502 = vdwg.mxu0
    %v3503 = vmul.f32 %v3497, 0.5
    %v3504 = vmul.f32 %v3500, 0.5
    %v3505 = vmul.f32 %v3497, 0.044715
    %v3506 = vmul.f32 %v3500, 0.044715
    %v3507 = vmul.f32 %v3505, %v3497
    %v3508 = vmul.f32 %v3506, %v3500
    %v3509 = vmul.f32 %v3507, %v3497
    %v3510 = vmul.f32 %v3508, %v3500
    %v3511 = vadd.f32 %v3497, %v3509
    %v3512 = vadd.f32 %v3500, %v3510
    %v3513 = vmul.f32 %v3511, 0.7978846
    %v3514 = vmul.f32 %v3512, 0.7978846
    %v3515 = vtanh.pop %v3513
    %v3516 = vtanh.pop %v3514
    %v3517 = vadd.f32 %v3515, 1.0
    %v3518 = vadd.f32 %v3516, 1.0
    %v3519 = vmul.f32 %v3503, %v3517
    %v3520 = vmul.f32 %v3504, %v3518
    %v3521 = vpack.c.bf16 %v3520, %v3519
    %s3522 = scalar_lea.vmem %s6, 64
    %v3523 = vld [vmem:[%s3522] sm:$0xf]
    %v3524 = vld [vmem:[%s3522 + $0x4] sm:$0xf]
    %v3525 = vld [vmem:[%s3522 + $0x8] sm:$0xf]
    %v3526 = vld [vmem:[%s3522 + $0xc] sm:$0xf]
    %v3527 = vld [vmem:[%s3522 + $0x10] sm:$0xf]
    %v3528 = vld [vmem:[%s3522 + $0x14] sm:$0xf]
    %v3529 = vld [vmem:[%s3522 + $0x18] sm:$0xf]
    %v3530 = vld [vmem:[%s3522 + $0x1c] sm:$0xf]
    %v3531 = vld [vmem:[%s3522 + $0x20] sm:$0xf]
    %v3532 = vld [vmem:[%s3522 + $0x24] sm:$0xf]
    %v3533 = vld [vmem:[%s3522 + $0x28] sm:$0xf]
    %v3534 = vld [vmem:[%s3522 + $0x2c] sm:$0xf]
    %v3535 = vld [vmem:[%s3522 + $0x30] sm:$0xf]
    %v3536 = vld [vmem:[%s3522 + $0x34] sm:$0xf]
    %v3537 = vld [vmem:[%s3522 + $0x38] sm:$0xf]
    %v3538 = vld [vmem:[%s3522 + $0x3c] sm:$0xf]
    %v3539 = vld [vmem:[%s9 + $0x9] sm:$0x1]
    %v3540 = vlaneseq
    %v3541 = vshrl.u32 %v3540, 7
    %v3542 = vsub.s32 0, %v3541
    %v3543 = vrot.slane %v3539, %v3542
    %v3560 = vunpack.c.l.b16 %v3523
    %v3561 = vunpack.c.l.b16 %v3524
    %v3562 = vunpack.c.l.b16 %v3525
    %v3563 = vunpack.c.l.b16 %v3526
    %v3564 = vunpack.c.l.b16 %v3527
    %v3565 = vunpack.c.l.b16 %v3528
    %v3566 = vunpack.c.l.b16 %v3529
    %v3567 = vunpack.c.l.b16 %v3530
    %v3568 = vunpack.c.l.b16 %v3531
    %v3569 = vunpack.c.l.b16 %v3532
    %v3570 = vunpack.c.l.b16 %v3533
    %v3571 = vunpack.c.l.b16 %v3534
    %v3572 = vunpack.c.l.b16 %v3535
    %v3573 = vunpack.c.l.b16 %v3536
    %v3574 = vunpack.c.l.b16 %v3537
    %v3575 = vunpack.c.l.b16 %v3538
    %v3576 = vpack.c.b16 %v3561, %v3560
    %v3577 = vpack.c.b16 %v3563, %v3562
    %v3578 = vpack.c.b16 %v3565, %v3564
    %v3579 = vpack.c.b16 %v3567, %v3566
    %v3580 = vpack.c.b16 %v3569, %v3568
    %v3581 = vpack.c.b16 %v3571, %v3570
    %v3582 = vpack.c.b16 %v3573, %v3572
    %v3583 = vpack.c.b16 %v3575, %v3574
    %3592 = vmatprep.subr.bf16.mxu0 0
    %3593 = vmatpush1.bf16.msra.mxu0 %v3583
    %3594 = vmatprep.subr.bf16.mxu0 0
    %3595 = vmatpush1.bf16.msra.mxu0 %v3582
    %3596 = vmatprep.subr.bf16.mxu0 0
    %3597 = vmatpush1.bf16.msra.mxu0 %v3581
    %3598 = vmatprep.subr.bf16.mxu0 0
    %3599 = vmatpush1.bf16.msra.mxu0 %v3580
    %3600 = vmatprep.subr.bf16.mxu0 0
    %3601 = vmatpush1.bf16.msra.mxu0 %v3579
    %3602 = vmatprep.subr.bf16.mxu0 0
    %3603 = vmatpush1.bf16.msra.mxu0 %v3578
    %3604 = vmatprep.subr.bf16.mxu0 0
    %3605 = vmatpush1.bf16.msra.mxu0 %v3577
    %3606 = vmatprep.subr.bf16.mxu0 0
    %3607 = vmatpush1.bf16.msra.mxu0 %v3576
    %3608 = vmatprep.subr.bf16.mxu0 0
    %3609 = vmatpush2.bf16.msra.mxu0 0
    %3610 = vmatprep.subr.bf16.mxu0 0
    %3611 = vmatpush2.bf16.msra.mxu0 0
    %3612 = vmatprep.subr.bf16.mxu0 0
    %3613 = vmatpush2.bf16.msra.mxu0 0
    %3614 = vmatprep.subr.bf16.mxu0 0
    %3615 = vmatpush2.bf16.msra.mxu0 0
    %3616 = vmatprep.subr.bf16.mxu0 0
    %3617 = vmatpush2.bf16.msra.mxu0 0
    %3618 = vmatprep.subr.bf16.mxu0 0
    %3619 = vmatpush2.bf16.msra.mxu0 0
    %3620 = vmatprep.subr.bf16.mxu0 0
    %3621 = vmatpush2.bf16.msra.mxu0 0
    %3622 = vmatprep.subr.bf16.mxu0 0
    %3623 = vmatpush2.bf16.msra.mxu0 0
    %3624 = vmatprep.mubr.bf16.mxu0 0
    %3625 = vmatmul.mubr.bf16.gmra.mxu0 %v3521
    %v3626 = vpop.f32.mrf.mxu0
    %v3627 = vadd.f32 %v3543, %v3626
    %v3628 = vpop.f32.mrf.mxu0
    %v3629 = vpop.f32.mrf.mxu0
    %v3630 = vadd.f32 %v3543, %v3629
    %v3631 = vpop.f32.mrf.mxu0
    %3632 = vdwg.mxu0
    %v3633 = vadd.f32 %v3627, %v3434
    %v3634 = vadd.f32 %v3630, %v3435
    %v3635 = vld [vmem:[%s9 + $0xa] sm:$0x1]
    %v3636 = vld [vmem:[%s9 + $0xb] sm:$0x1]
    %v3637 = vsel %vm135, %v3633, 0.0
    %3638 = vadd.xlane.f32.xlu0 %v3637
    %v3639 = vpop.xlane.xlu0 %3638
    %v3640 = vsel %vm135, %v3634, 0.0
    %3641 = vadd.xlane.f32.xlu0 %v3640
    %v3642 = vpop.xlane.xlu0 %3641
    %v3643 = vmul.f32 %v3639, %v142
    %v3644 = vmul.f32 %v3642, %v142
    %v3645 = vsub.f32 %v3633, %v3643
    %v3646 = vsub.f32 %v3634, %v3644
    %v3647 = vmul.f32 %v3645, %v3645
    %v3648 = vmul.f32 %v3646, %v3646
    %v3649 = vsel %vm135, %v3647, 0.0
    %3650 = vadd.xlane.f32.xlu0 %v3649
    %v3651 = vpop.xlane.xlu0 %3650
    %v3652 = vsel %vm135, %v3648, 0.0
    %3653 = vadd.xlane.f32.xlu0 %v3652
    %v3654 = vpop.xlane.xlu0 %3653
    %v3655 = vmul.f32 %v3651, %v142
    %v3656 = vmul.f32 %v3654, %v142
    %v3657 = vadd.f32 %v3655, 1e-12
    %v3658 = vadd.f32 %v3656, 1e-12
    %v3659 = vrsqrt.pop %v3657
    %v3660 = vrsqrt.pop %v3658
    %v3661 = vmul.f32 %v3645, %v3659
    %v3662 = vmul.f32 %v3646, %v3660
    %v3663 = vlaneseq
    %v3664 = vshrl.u32 %v3663, 7
    %v3665 = vsub.s32 0, %v3664
    %v3666 = vrot.slane %v3635, %v3665
    %v3667 = vmul.f32 %v3661, %v3666
    %v3668 = vmul.f32 %v3662, %v3666
    %v3669 = vlaneseq
    %v3670 = vshrl.u32 %v3669, 7
    %v3671 = vsub.s32 0, %v3670
    %v3672 = vrot.slane %v3636, %v3671
    %v3673 = vadd.f32 %v3667, %v3672
    %v3674 = vadd.f32 %v3668, %v3672
    %v3675 = vpack.c.bf16 %v3674, %v3673
    %s3676 = scalar_lea.vmem %s4, 64
    %v3677 = vld [vmem:[%s3676] sm:$0xff]
    %v3678 = vld [vmem:[%s3676 + $0x8] sm:$0xff]
    %v3679 = vld [vmem:[%s3676 + $0x10] sm:$0xff]
    %v3680 = vld [vmem:[%s3676 + $0x18] sm:$0xff]
    %s3681 = scalar_lea.vmem %s7, 2
    %v3682 = vld [vmem:[%s3681] ss:$8 sm:$0x3]
    %v3684 = vlaneseq
    %v3685 = vshrl.u32 %v3684, 7
    %v3686 = vsub.s32 0, %v3685
    %v3687 = vrot.slane %v3682, %v3686
    %v3688 = vlaneseq
    %v3689 = vshrl.u32 %v3688, 7
    %v3690 = vsub.s32 1, %v3689
    %v3691 = vrot.slane %v3682, %v3690
    %v3698 = vunpack.c.l.b16 %v3677
    %v3699 = vunpack.c.h.b16 %v3677
    %v3700 = vunpack.c.l.b16 %v3678
    %v3701 = vunpack.c.h.b16 %v3678
    %v3702 = vunpack.c.l.b16 %v3679
    %v3703 = vunpack.c.h.b16 %v3679
    %v3704 = vunpack.c.l.b16 %v3680
    %v3705 = vunpack.c.h.b16 %v3680
    %v3706 = vpack.c.b16 %v3700, %v3698
    %v3707 = vpack.c.b16 %v3701, %v3699
    %v3708 = vpack.c.b16 %v3704, %v3702
    %v3709 = vpack.c.b16 %v3705, %v3703
    %v3715 = vsel %vm135, %v3675, 0
    %3717 = vmatprep.subr.bf16.mxu0 0
    %3718 = vmatpush1.bf16.msra.mxu0 0
    %3719 = vmatprep.subr.bf16.mxu0 0
    %3720 = vmatpush1.bf16.msra.mxu0 0
    %3721 = vmatprep.subr.bf16.mxu0 0
    %3722 = vmatpush1.bf16.msra.mxu0 0
    %3723 = vmatprep.subr.bf16.mxu0 0
    %3724 = vmatpush1.bf16.msra.mxu0 0
    %3725 = vmatprep.subr.bf16.mxu0 0
    %3726 = vmatpush1.bf16.msra.mxu0 0
    %3727 = vmatprep.subr.bf16.mxu0 0
    %3728 = vmatpush1.bf16.msra.mxu0 0
    %3729 = vmatprep.subr.bf16.mxu0 %v3709
    %3730 = vmatpush1.bf16.msra.mxu0 %v3708
    %3731 = vmatprep.subr.bf16.mxu0 %v3707
    %3732 = vmatpush1.bf16.msra.mxu0 %v3706
    %3733 = vmatprep.subr.bf16.mxu0 0
    %3734 = vmatpush2.bf16.msra.mxu0 0
    %3735 = vmatprep.subr.bf16.mxu0 0
    %3736 = vmatpush2.bf16.msra.mxu0 0
    %3737 = vmatprep.subr.bf16.mxu0 0
    %3738 = vmatpush2.bf16.msra.mxu0 0
    %3739 = vmatprep.subr.bf16.mxu0 0
    %3740 = vmatpush2.bf16.msra.mxu0 0
    %3741 = vmatprep.subr.bf16.mxu0 0
    %3742 = vmatpush2.bf16.msra.mxu0 0
    %3743 = vmatprep.subr.bf16.mxu0 0
    %3744 = vmatpush2.bf16.msra.mxu0 0
    %3745 = vmatprep.subr.bf16.mxu0 0
    %3746 = vmatpush2.bf16.msra.mxu0 0
    %3747 = vmatprep.subr.bf16.mxu0 0
    %3748 = vmatpush2.bf16.msra.mxu0 0
    %3749 = vmatprep.mubr.bf16.mxu0 0
    %3750 = vmatmul.mubr.bf16.gmra.mxu0 %v3715
    %v3751 = vpop.f32.mrf.mxu0
    %v3752 = vadd.f32 %v3687, %v3751
    %v3753 = vpop.f32.mrf.mxu0
    %v3754 = vadd.f32 %v3691, %v3753
    %v3755 = vpop.f32.mrf.mxu0
    %v3756 = vadd.f32 %v3687, %v3755
    %v3757 = vpop.f32.mrf.mxu0
    %v3758 = vadd.f32 %v3691, %v3757
    %3759 = vdwg.mxu0
    %3762 = vrot.lane.b32.xlu0 %v3752, 80
    %v3763 = vpop.permute.xlu0 %3762
    %3764 = vrot.lane.b32.xlu0 %v3756, 80
    %v3765 = vpop.permute.xlu0 %3764
    %3768 = vrot.lane.b32.xlu0 %v3752, 32
    %v3769 = vpop.permute.xlu0 %3768
    %3770 = vrot.lane.b32.xlu0 %v3754, 32
    %v3771 = vpop.permute.xlu0 %3770
    %3772 = vrot.lane.b32.xlu0 %v3756, 32
    %v3773 = vpop.permute.xlu0 %3772
    %3774 = vrot.lane.b32.xlu0 %v3758, 32
    %v3775 = vpop.permute.xlu0 %3774
    %v3776 = vsel %vm135, %v3769, %v3771
    %v3777 = vsel %vm135, %v3773, %v3775
    %3778 = vrot.lane.b32.xlu0 %v3754, 112
    %v3779 = vpop.permute.xlu0 %3778
    %3780 = vrot.lane.b32.xlu0 %v3758, 112
    %v3781 = vpop.permute.xlu0 %3780
    %3782 = vrot.lane.b32.xlu0 %v3752, 120
    %v3783 = vpop.permute.xlu0 %3782
    %v3784 = vsel %vm373, %v3752, 0
    %v3786 = vsel %vm373, %v3783, 0
    %3788 = vmatprep.subr.mxu0 0.0
    %3789 = vmatpush1.xpose.msra.mxu0 0.0
    %3790 = vmatprep.subr.mxu0 0.0
    %3791 = vmatpush1.xpose.msra.mxu0 0.0
    %3792 = vmatprep.subr.mxu0 0.0
    %3793 = vmatpush1.xpose.msra.mxu0 0.0
    %3794 = vmatprep.subr.mxu0 0.0
    %3795 = vmatpush1.xpose.msra.mxu0 0.0
    %3796 = vmatprep.subr.mxu0 0.0
    %3797 = vmatpush1.xpose.msra.mxu0 0.0
    %3798 = vmatprep.subr.mxu0 0.0
    %3799 = vmatpush1.xpose.msra.mxu0 0.0
    %3800 = vmatprep.subr.mxu0 0.0
    %3801 = vmatpush1.xpose.msra.mxu0 0.0
    %3802 = vmatprep.subr.mxu0 0.0
    %3803 = vmatpush1.xpose.msra.mxu0 0.0
    %3804 = vmatprep.subr.mxu0 0.0
    %3805 = vmatpush1.xpose.msra.mxu0 0.0
    %3806 = vmatprep.subr.mxu0 0.0
    %3807 = vmatpush1.xpose.msra.mxu0 0.0
    %3808 = vmatprep.subr.mxu0 0.0
    %3809 = vmatpush1.xpose.msra.mxu0 0.0
    %3810 = vmatprep.subr.mxu0 0.0
    %3811 = vmatpush1.xpose.msra.mxu0 0.0
    %3812 = vmatprep.subr.mxu0 0.0
    %3813 = vmatpush1.xpose.msra.mxu0 0.0
    %3814 = vmatprep.subr.mxu0 0.0
    %3815 = vmatpush1.xpose.msra.mxu0 0.0
    %3816 = vmatprep.subr.mxu0 0.0
    %3817 = vmatpush1.xpose.msra.mxu0 0.0
    %3818 = vmatprep.subr.mxu0 0.0
    %3819 = vmatpush1.xpose.msra.mxu0 %v3786
    %3820 = vmatprep.subr.mxu0 0.0
    %3821 = vmatpush2.xpose.msra.mxu0 0.0
    %3822 = vmatprep.subr.mxu0 0.0
    %3823 = vmatpush2.xpose.msra.mxu0 0.0
    %3824 = vmatprep.subr.mxu0 0.0
    %3825 = vmatpush2.xpose.msra.mxu0 0.0
    %3826 = vmatprep.subr.mxu0 0.0
    %3827 = vmatpush2.xpose.msra.mxu0 0.0
    %3828 = vmatprep.subr.mxu0 0.0
    %3829 = vmatpush2.xpose.msra.mxu0 0.0
    %3830 = vmatprep.subr.mxu0 0.0
    %3831 = vmatpush2.xpose.msra.mxu0 0.0
    %3832 = vmatprep.subr.mxu0 0.0
    %3833 = vmatpush2.xpose.msra.mxu0 0.0
    %3834 = vmatprep.subr.mxu0 0.0
    %3835 = vmatpush2.xpose.msra.mxu0 0.0
    %3836 = vmatprep.subr.mxu0 0.0
    %3837 = vmatpush2.xpose.msra.mxu0 0.0
    %3838 = vmatprep.subr.mxu0 0.0
    %3839 = vmatpush2.xpose.msra.mxu0 0.0
    %3840 = vmatprep.subr.mxu0 0.0
    %3841 = vmatpush2.xpose.msra.mxu0 0.0
    %3842 = vmatprep.subr.mxu0 0.0
    %3843 = vmatpush2.xpose.msra.mxu0 0.0
    %3844 = vmatprep.subr.mxu0 0.0
    %3845 = vmatpush2.xpose.msra.mxu0 0.0
    %3846 = vmatprep.subr.mxu0 0.0
    %3847 = vmatpush2.xpose.msra.mxu0 0.0
    %3848 = vmatprep.subr.mxu0 0.0
    %3849 = vmatpush2.xpose.msra.mxu0 0.0
    %3850 = vmatprep.subr.mxu0 0.0
    %3851 = vmatpush2.xpose.msra.mxu0 0.0
    %3852 = vmatprep.mubr.f32.mxu0 0.0
    %3853 = vmatmul.mubr.f32.gmra.mxu0 %v3784
    %v3854 = vpop.f32.mrf.mxu0
    %v3855 = vadd.f32 %v229, %v3854
    %v3856 = vpop.f32.mrf.mxu0
    %3857 = vdwg.mxu0
    %3858 = vrot.lane.b32.xlu0 %v3756, 120
    %v3859 = vpop.permute.xlu0 %3858
    %v3860 = vsel %vm373, %v3756, 0
    %v3862 = vsel %vm373, %v3859, 0
    %3864 = vmatprep.subr.mxu0 0.0
    %3865 = vmatpush1.xpose.msra.mxu0 0.0
    %3866 = vmatprep.subr.mxu0 0.0
    %3867 = vmatpush1.xpose.msra.mxu0 0.0
    %3868 = vmatprep.subr.mxu0 0.0
    %3869 = vmatpush1.xpose.msra.mxu0 0.0
    %3870 = vmatprep.subr.mxu0 0.0
    %3871 = vmatpush1.xpose.msra.mxu0 0.0
    %3872 = vmatprep.subr.mxu0 0.0
    %3873 = vmatpush1.xpose.msra.mxu0 0.0
    %3874 = vmatprep.subr.mxu0 0.0
    %3875 = vmatpush1.xpose.msra.mxu0 0.0
    %3876 = vmatprep.subr.mxu0 0.0
    %3877 = vmatpush1.xpose.msra.mxu0 0.0
    %3878 = vmatprep.subr.mxu0 0.0
    %3879 = vmatpush1.xpose.msra.mxu0 0.0
    %3880 = vmatprep.subr.mxu0 0.0
    %3881 = vmatpush1.xpose.msra.mxu0 0.0
    %3882 = vmatprep.subr.mxu0 0.0
    %3883 = vmatpush1.xpose.msra.mxu0 0.0
    %3884 = vmatprep.subr.mxu0 0.0
    %3885 = vmatpush1.xpose.msra.mxu0 0.0
    %3886 = vmatprep.subr.mxu0 0.0
    %3887 = vmatpush1.xpose.msra.mxu0 0.0
    %3888 = vmatprep.subr.mxu0 0.0
    %3889 = vmatpush1.xpose.msra.mxu0 0.0
    %3890 = vmatprep.subr.mxu0 0.0
    %3891 = vmatpush1.xpose.msra.mxu0 0.0
    %3892 = vmatprep.subr.mxu0 0.0
    %3893 = vmatpush1.xpose.msra.mxu0 0.0
    %3894 = vmatprep.subr.mxu0 0.0
    %3895 = vmatpush1.xpose.msra.mxu0 %v3862
    %3896 = vmatprep.subr.mxu0 0.0
    %3897 = vmatpush2.xpose.msra.mxu0 0.0
    %3898 = vmatprep.subr.mxu0 0.0
    %3899 = vmatpush2.xpose.msra.mxu0 0.0
    %3900 = vmatprep.subr.mxu0 0.0
    %3901 = vmatpush2.xpose.msra.mxu0 0.0
    %3902 = vmatprep.subr.mxu0 0.0
    %3903 = vmatpush2.xpose.msra.mxu0 0.0
    %3904 = vmatprep.subr.mxu0 0.0
    %3905 = vmatpush2.xpose.msra.mxu0 0.0
    %3906 = vmatprep.subr.mxu0 0.0
    %3907 = vmatpush2.xpose.msra.mxu0 0.0
    %3908 = vmatprep.subr.mxu0 0.0
    %3909 = vmatpush2.xpose.msra.mxu0 0.0
    %3910 = vmatprep.subr.mxu0 0.0
    %3911 = vmatpush2.xpose.msra.mxu0 0.0
    %3912 = vmatprep.subr.mxu0 0.0
    %3913 = vmatpush2.xpose.msra.mxu0 0.0
    %3914 = vmatprep.subr.mxu0 0.0
    %3915 = vmatpush2.xpose.msra.mxu0 0.0
    %3916 = vmatprep.subr.mxu0 0.0
    %3917 = vmatpush2.xpose.msra.mxu0 0.0
    %3918 = vmatprep.subr.mxu0 0.0
    %3919 = vmatpush2.xpose.msra.mxu0 0.0
    %3920 = vmatprep.subr.mxu0 0.0
    %3921 = vmatpush2.xpose.msra.mxu0 0.0
    %3922 = vmatprep.subr.mxu0 0.0
    %3923 = vmatpush2.xpose.msra.mxu0 0.0
    %3924 = vmatprep.subr.mxu0 0.0
    %3925 = vmatpush2.xpose.msra.mxu0 0.0
    %3926 = vmatprep.subr.mxu0 0.0
    %3927 = vmatpush2.xpose.msra.mxu0 0.0
    %3928 = vmatprep.mubr.f32.mxu0 0.0
    %3929 = vmatmul.mubr.f32.gmra.mxu0 %v3860
    %v3930 = vpop.f32.mrf.mxu0
    %v3931 = vadd.f32 %v233, %v3930
    %v3932 = vpop.f32.mrf.mxu0
    %3933 = vdwg.mxu0
    %3934 = vrot.lane.b32.xlu0 %v3763, 120
    %v3935 = vpop.permute.xlu0 %3934
    %v3936 = vsel %vm373, %v3763, 0
    %v3938 = vsel %vm373, %v3935, 0
    %3940 = vmatprep.subr.mxu0 0.0
    %3941 = vmatpush1.xpose.msra.mxu0 0.0
    %3942 = vmatprep.subr.mxu0 0.0
    %3943 = vmatpush1.xpose.msra.mxu0 0.0
    %3944 = vmatprep.subr.mxu0 0.0
    %3945 = vmatpush1.xpose.msra.mxu0 0.0
    %3946 = vmatprep.subr.mxu0 0.0
    %3947 = vmatpush1.xpose.msra.mxu0 0.0
    %3948 = vmatprep.subr.mxu0 0.0
    %3949 = vmatpush1.xpose.msra.mxu0 0.0
    %3950 = vmatprep.subr.mxu0 0.0
    %3951 = vmatpush1.xpose.msra.mxu0 0.0
    %3952 = vmatprep.subr.mxu0 0.0
    %3953 = vmatpush1.xpose.msra.mxu0 0.0
    %3954 = vmatprep.subr.mxu0 0.0
    %3955 = vmatpush1.xpose.msra.mxu0 0.0
    %3956 = vmatprep.subr.mxu0 0.0
    %3957 = vmatpush1.xpose.msra.mxu0 0.0
    %3958 = vmatprep.subr.mxu0 0.0
    %3959 = vmatpush1.xpose.msra.mxu0 0.0
    %3960 = vmatprep.subr.mxu0 0.0
    %3961 = vmatpush1.xpose.msra.mxu0 0.0
    %3962 = vmatprep.subr.mxu0 0.0
    %3963 = vmatpush1.xpose.msra.mxu0 0.0
    %3964 = vmatprep.subr.mxu0 0.0
    %3965 = vmatpush1.xpose.msra.mxu0 0.0
    %3966 = vmatprep.subr.mxu0 0.0
    %3967 = vmatpush1.xpose.msra.mxu0 0.0
    %3968 = vmatprep.subr.mxu0 0.0
    %3969 = vmatpush1.xpose.msra.mxu0 0.0
    %3970 = vmatprep.subr.mxu0 0.0
    %3971 = vmatpush1.xpose.msra.mxu0 %v3938
    %3972 = vmatprep.subr.mxu0 0.0
    %3973 = vmatpush2.xpose.msra.mxu0 0.0
    %3974 = vmatprep.subr.mxu0 0.0
    %3975 = vmatpush2.xpose.msra.mxu0 0.0
    %3976 = vmatprep.subr.mxu0 0.0
    %3977 = vmatpush2.xpose.msra.mxu0 0.0
    %3978 = vmatprep.subr.mxu0 0.0
    %3979 = vmatpush2.xpose.msra.mxu0 0.0
    %3980 = vmatprep.subr.mxu0 0.0
    %3981 = vmatpush2.xpose.msra.mxu0 0.0
    %3982 = vmatprep.subr.mxu0 0.0
    %3983 = vmatpush2.xpose.msra.mxu0 0.0
    %3984 = vmatprep.subr.mxu0 0.0
    %3985 = vmatpush2.xpose.msra.mxu0 0.0
    %3986 = vmatprep.subr.mxu0 0.0
    %3987 = vmatpush2.xpose.msra.mxu0 0.0
    %3988 = vmatprep.subr.mxu0 0.0
    %3989 = vmatpush2.xpose.msra.mxu0 0.0
    %3990 = vmatprep.subr.mxu0 0.0
    %3991 = vmatpush2.xpose.msra.mxu0 0.0
    %3992 = vmatprep.subr.mxu0 0.0
    %3993 = vmatpush2.xpose.msra.mxu0 0.0
    %3994 = vmatprep.subr.mxu0 0.0
    %3995 = vmatpush2.xpose.msra.mxu0 0.0
    %3996 = vmatprep.subr.mxu0 0.0
    %3997 = vmatpush2.xpose.msra.mxu0 0.0
    %3998 = vmatprep.subr.mxu0 0.0
    %3999 = vmatpush2.xpose.msra.mxu0 0.0
    %4000 = vmatprep.subr.mxu0 0.0
    %4001 = vmatpush2.xpose.msra.mxu0 0.0
    %4002 = vmatprep.subr.mxu0 0.0
    %4003 = vmatpush2.xpose.msra.mxu0 0.0
    %4004 = vmatprep.mubr.f32.mxu0 0.0
    %4005 = vmatmul.mubr.f32.gmra.mxu0 %v3936
    %v4006 = vpop.f32.mrf.mxu0
    %v4007 = vadd.f32 %v237, %v4006
    %v4008 = vpop.f32.mrf.mxu0
    %4009 = vdwg.mxu0
    %4010 = vrot.lane.b32.xlu0 %v3765, 120
    %v4011 = vpop.permute.xlu0 %4010
    %v4012 = vsel %vm373, %v3765, 0
    %v4014 = vsel %vm373, %v4011, 0
    %4016 = vmatprep.subr.mxu0 0.0
    %4017 = vmatpush1.xpose.msra.mxu0 0.0
    %4018 = vmatprep.subr.mxu0 0.0
    %4019 = vmatpush1.xpose.msra.mxu0 0.0
    %4020 = vmatprep.subr.mxu0 0.0
    %4021 = vmatpush1.xpose.msra.mxu0 0.0
    %4022 = vmatprep.subr.mxu0 0.0
    %4023 = vmatpush1.xpose.msra.mxu0 0.0
    %4024 = vmatprep.subr.mxu0 0.0
    %4025 = vmatpush1.xpose.msra.mxu0 0.0
    %4026 = vmatprep.subr.mxu0 0.0
    %4027 = vmatpush1.xpose.msra.mxu0 0.0
    %4028 = vmatprep.subr.mxu0 0.0
    %4029 = vmatpush1.xpose.msra.mxu0 0.0
    %4030 = vmatprep.subr.mxu0 0.0
    %4031 = vmatpush1.xpose.msra.mxu0 0.0
    %4032 = vmatprep.subr.mxu0 0.0
    %4033 = vmatpush1.xpose.msra.mxu0 0.0
    %4034 = vmatprep.subr.mxu0 0.0
    %4035 = vmatpush1.xpose.msra.mxu0 0.0
    %4036 = vmatprep.subr.mxu0 0.0
    %4037 = vmatpush1.xpose.msra.mxu0 0.0
    %4038 = vmatprep.subr.mxu0 0.0
    %4039 = vmatpush1.xpose.msra.mxu0 0.0
    %4040 = vmatprep.subr.mxu0 0.0
    %4041 = vmatpush1.xpose.msra.mxu0 0.0
    %4042 = vmatprep.subr.mxu0 0.0
    %4043 = vmatpush1.xpose.msra.mxu0 0.0
    %4044 = vmatprep.subr.mxu0 0.0
    %4045 = vmatpush1.xpose.msra.mxu0 0.0
    %4046 = vmatprep.subr.mxu0 0.0
    %4047 = vmatpush1.xpose.msra.mxu0 %v4014
    %4048 = vmatprep.subr.mxu0 0.0
    %4049 = vmatpush2.xpose.msra.mxu0 0.0
    %4050 = vmatprep.subr.mxu0 0.0
    %4051 = vmatpush2.xpose.msra.mxu0 0.0
    %4052 = vmatprep.subr.mxu0 0.0
    %4053 = vmatpush2.xpose.msra.mxu0 0.0
    %4054 = vmatprep.subr.mxu0 0.0
    %4055 = vmatpush2.xpose.msra.mxu0 0.0
    %4056 = vmatprep.subr.mxu0 0.0
    %4057 = vmatpush2.xpose.msra.mxu0 0.0
    %4058 = vmatprep.subr.mxu0 0.0
    %4059 = vmatpush2.xpose.msra.mxu0 0.0
    %4060 = vmatprep.subr.mxu0 0.0
    %4061 = vmatpush2.xpose.msra.mxu0 0.0
    %4062 = vmatprep.subr.mxu0 0.0
    %4063 = vmatpush2.xpose.msra.mxu0 0.0
    %4064 = vmatprep.subr.mxu0 0.0
    %4065 = vmatpush2.xpose.msra.mxu0 0.0
    %4066 = vmatprep.subr.mxu0 0.0
    %4067 = vmatpush2.xpose.msra.mxu0 0.0
    %4068 = vmatprep.subr.mxu0 0.0
    %4069 = vmatpush2.xpose.msra.mxu0 0.0
    %4070 = vmatprep.subr.mxu0 0.0
    %4071 = vmatpush2.xpose.msra.mxu0 0.0
    %4072 = vmatprep.subr.mxu0 0.0
    %4073 = vmatpush2.xpose.msra.mxu0 0.0
    %4074 = vmatprep.subr.mxu0 0.0
    %4075 = vmatpush2.xpose.msra.mxu0 0.0
    %4076 = vmatprep.subr.mxu0 0.0
    %4077 = vmatpush2.xpose.msra.mxu0 0.0
    %4078 = vmatprep.subr.mxu0 0.0
    %4079 = vmatpush2.xpose.msra.mxu0 0.0
    %4080 = vmatprep.mubr.f32.mxu0 0.0
    %4081 = vmatmul.mubr.f32.gmra.mxu0 %v4012
    %v4082 = vpop.f32.mrf.mxu0
    %v4083 = vadd.f32 %v241, %v4082
    %v4084 = vpop.f32.mrf.mxu0
    %4085 = vdwg.mxu0
    %4086 = vrot.lane.b32.xlu0 %v3776, 120
    %v4087 = vpop.permute.xlu0 %4086
    %v4088 = vsel %vm373, %v3776, 0
    %v4090 = vsel %vm373, %v4087, 0
    %4092 = vmatprep.subr.mxu0 0.0
    %4093 = vmatpush1.xpose.msra.mxu0 0.0
    %4094 = vmatprep.subr.mxu0 0.0
    %4095 = vmatpush1.xpose.msra.mxu0 0.0
    %4096 = vmatprep.subr.mxu0 0.0
    %4097 = vmatpush1.xpose.msra.mxu0 0.0
    %4098 = vmatprep.subr.mxu0 0.0
    %4099 = vmatpush1.xpose.msra.mxu0 0.0
    %4100 = vmatprep.subr.mxu0 0.0
    %4101 = vmatpush1.xpose.msra.mxu0 0.0
    %4102 = vmatprep.subr.mxu0 0.0
    %4103 = vmatpush1.xpose.msra.mxu0 0.0
    %4104 = vmatprep.subr.mxu0 0.0
    %4105 = vmatpush1.xpose.msra.mxu0 0.0
    %4106 = vmatprep.subr.mxu0 0.0
    %4107 = vmatpush1.xpose.msra.mxu0 0.0
    %4108 = vmatprep.subr.mxu0 0.0
    %4109 = vmatpush1.xpose.msra.mxu0 0.0
    %4110 = vmatprep.subr.mxu0 0.0
    %4111 = vmatpush1.xpose.msra.mxu0 0.0
    %4112 = vmatprep.subr.mxu0 0.0
    %4113 = vmatpush1.xpose.msra.mxu0 0.0
    %4114 = vmatprep.subr.mxu0 0.0
    %4115 = vmatpush1.xpose.msra.mxu0 0.0
    %4116 = vmatprep.subr.mxu0 0.0
    %4117 = vmatpush1.xpose.msra.mxu0 0.0
    %4118 = vmatprep.subr.mxu0 0.0
    %4119 = vmatpush1.xpose.msra.mxu0 0.0
    %4120 = vmatprep.subr.mxu0 0.0
    %4121 = vmatpush1.xpose.msra.mxu0 0.0
    %4122 = vmatprep.subr.mxu0 0.0
    %4123 = vmatpush1.xpose.msra.mxu0 %v4090
    %4124 = vmatprep.subr.mxu0 0.0
    %4125 = vmatpush2.xpose.msra.mxu0 0.0
    %4126 = vmatprep.subr.mxu0 0.0
    %4127 = vmatpush2.xpose.msra.mxu0 0.0
    %4128 = vmatprep.subr.mxu0 0.0
    %4129 = vmatpush2.xpose.msra.mxu0 0.0
    %4130 = vmatprep.subr.mxu0 0.0
    %4131 = vmatpush2.xpose.msra.mxu0 0.0
    %4132 = vmatprep.subr.mxu0 0.0
    %4133 = vmatpush2.xpose.msra.mxu0 0.0
    %4134 = vmatprep.subr.mxu0 0.0
    %4135 = vmatpush2.xpose.msra.mxu0 0.0
    %4136 = vmatprep.subr.mxu0 0.0
    %4137 = vmatpush2.xpose.msra.mxu0 0.0
    %4138 = vmatprep.subr.mxu0 0.0
    %4139 = vmatpush2.xpose.msra.mxu0 0.0
    %4140 = vmatprep.subr.mxu0 0.0
    %4141 = vmatpush2.xpose.msra.mxu0 0.0
    %4142 = vmatprep.subr.mxu0 0.0
    %4143 = vmatpush2.xpose.msra.mxu0 0.0
    %4144 = vmatprep.subr.mxu0 0.0
    %4145 = vmatpush2.xpose.msra.mxu0 0.0
    %4146 = vmatprep.subr.mxu0 0.0
    %4147 = vmatpush2.xpose.msra.mxu0 0.0
    %4148 = vmatprep.subr.mxu0 0.0
    %4149 = vmatpush2.xpose.msra.mxu0 0.0
    %4150 = vmatprep.subr.mxu0 0.0
    %4151 = vmatpush2.xpose.msra.mxu0 0.0
    %4152 = vmatprep.subr.mxu0 0.0
    %4153 = vmatpush2.xpose.msra.mxu0 0.0
    %4154 = vmatprep.subr.mxu0 0.0
    %4155 = vmatpush2.xpose.msra.mxu0 0.0
    %4156 = vmatprep.mubr.f32.mxu0 0.0
    %4157 = vmatmul.mubr.f32.gmra.mxu0 %v4088
    %v4158 = vpop.f32.mrf.mxu0
    %v4159 = vadd.f32 %v245, %v4158
    %v4160 = vpop.f32.mrf.mxu0
    %4161 = vdwg.mxu0
    %4162 = vrot.lane.b32.xlu0 %v3777, 120
    %v4163 = vpop.permute.xlu0 %4162
    %v4164 = vsel %vm373, %v3777, 0
    %v4166 = vsel %vm373, %v4163, 0
    %4168 = vmatprep.subr.mxu0 0.0
    %4169 = vmatpush1.xpose.msra.mxu0 0.0
    %4170 = vmatprep.subr.mxu0 0.0
    %4171 = vmatpush1.xpose.msra.mxu0 0.0
    %4172 = vmatprep.subr.mxu0 0.0
    %4173 = vmatpush1.xpose.msra.mxu0 0.0
    %4174 = vmatprep.subr.mxu0 0.0
    %4175 = vmatpush1.xpose.msra.mxu0 0.0
    %4176 = vmatprep.subr.mxu0 0.0
    %4177 = vmatpush1.xpose.msra.mxu0 0.0
    %4178 = vmatprep.subr.mxu0 0.0
    %4179 = vmatpush1.xpose.msra.mxu0 0.0
    %4180 = vmatprep.subr.mxu0 0.0
    %4181 = vmatpush1.xpose.msra.mxu0 0.0
    %4182 = vmatprep.subr.mxu0 0.0
    %4183 = vmatpush1.xpose.msra.mxu0 0.0
    %4184 = vmatprep.subr.mxu0 0.0
    %4185 = vmatpush1.xpose.msra.mxu0 0.0
    %4186 = vmatprep.subr.mxu0 0.0
    %4187 = vmatpush1.xpose.msra.mxu0 0.0
    %4188 = vmatprep.subr.mxu0 0.0
    %4189 = vmatpush1.xpose.msra.mxu0 0.0
    %4190 = vmatprep.subr.mxu0 0.0
    %4191 = vmatpush1.xpose.msra.mxu0 0.0
    %4192 = vmatprep.subr.mxu0 0.0
    %4193 = vmatpush1.xpose.msra.mxu0 0.0
    %4194 = vmatprep.subr.mxu0 0.0
    %4195 = vmatpush1.xpose.msra.mxu0 0.0
    %4196 = vmatprep.subr.mxu0 0.0
    %4197 = vmatpush1.xpose.msra.mxu0 0.0
    %4198 = vmatprep.subr.mxu0 0.0
    %4199 = vmatpush1.xpose.msra.mxu0 %v4166
    %4200 = vmatprep.subr.mxu0 0.0
    %4201 = vmatpush2.xpose.msra.mxu0 0.0
    %4202 = vmatprep.subr.mxu0 0.0
    %4203 = vmatpush2.xpose.msra.mxu0 0.0
    %4204 = vmatprep.subr.mxu0 0.0
    %4205 = vmatpush2.xpose.msra.mxu0 0.0
    %4206 = vmatprep.subr.mxu0 0.0
    %4207 = vmatpush2.xpose.msra.mxu0 0.0
    %4208 = vmatprep.subr.mxu0 0.0
    %4209 = vmatpush2.xpose.msra.mxu0 0.0
    %4210 = vmatprep.subr.mxu0 0.0
    %4211 = vmatpush2.xpose.msra.mxu0 0.0
    %4212 = vmatprep.subr.mxu0 0.0
    %4213 = vmatpush2.xpose.msra.mxu0 0.0
    %4214 = vmatprep.subr.mxu0 0.0
    %4215 = vmatpush2.xpose.msra.mxu0 0.0
    %4216 = vmatprep.subr.mxu0 0.0
    %4217 = vmatpush2.xpose.msra.mxu0 0.0
    %4218 = vmatprep.subr.mxu0 0.0
    %4219 = vmatpush2.xpose.msra.mxu0 0.0
    %4220 = vmatprep.subr.mxu0 0.0
    %4221 = vmatpush2.xpose.msra.mxu0 0.0
    %4222 = vmatprep.subr.mxu0 0.0
    %4223 = vmatpush2.xpose.msra.mxu0 0.0
    %4224 = vmatprep.subr.mxu0 0.0
    %4225 = vmatpush2.xpose.msra.mxu0 0.0
    %4226 = vmatprep.subr.mxu0 0.0
    %4227 = vmatpush2.xpose.msra.mxu0 0.0
    %4228 = vmatprep.subr.mxu0 0.0
    %4229 = vmatpush2.xpose.msra.mxu0 0.0
    %4230 = vmatprep.subr.mxu0 0.0
    %4231 = vmatpush2.xpose.msra.mxu0 0.0
    %4232 = vmatprep.mubr.f32.mxu0 0.0
    %4233 = vmatmul.mubr.f32.gmra.mxu0 %v4164
    %v4234 = vpop.f32.mrf.mxu0
    %v4235 = vadd.f32 %v249, %v4234
    %v4236 = vpop.f32.mrf.mxu0
    %4237 = vdwg.mxu0
    %4238 = vrot.lane.b32.xlu0 %v3779, 120
    %v4239 = vpop.permute.xlu0 %4238
    %v4240 = vsel %vm373, %v3779, 0
    %v4242 = vsel %vm373, %v4239, 0
    %4244 = vmatprep.subr.mxu0 0.0
    %4245 = vmatpush1.xpose.msra.mxu0 0.0
    %4246 = vmatprep.subr.mxu0 0.0
    %4247 = vmatpush1.xpose.msra.mxu0 0.0
    %4248 = vmatprep.subr.mxu0 0.0
    %4249 = vmatpush1.xpose.msra.mxu0 0.0
    %4250 = vmatprep.subr.mxu0 0.0
    %4251 = vmatpush1.xpose.msra.mxu0 0.0
    %4252 = vmatprep.subr.mxu0 0.0
    %4253 = vmatpush1.xpose.msra.mxu0 0.0
    %4254 = vmatprep.subr.mxu0 0.0
    %4255 = vmatpush1.xpose.msra.mxu0 0.0
    %4256 = vmatprep.subr.mxu0 0.0
    %4257 = vmatpush1.xpose.msra.mxu0 0.0
    %4258 = vmatprep.subr.mxu0 0.0
    %4259 = vmatpush1.xpose.msra.mxu0 0.0
    %4260 = vmatprep.subr.mxu0 0.0
    %4261 = vmatpush1.xpose.msra.mxu0 0.0
    %4262 = vmatprep.subr.mxu0 0.0
    %4263 = vmatpush1.xpose.msra.mxu0 0.0
    %4264 = vmatprep.subr.mxu0 0.0
    %4265 = vmatpush1.xpose.msra.mxu0 0.0
    %4266 = vmatprep.subr.mxu0 0.0
    %4267 = vmatpush1.xpose.msra.mxu0 0.0
    %4268 = vmatprep.subr.mxu0 0.0
    %4269 = vmatpush1.xpose.msra.mxu0 0.0
    %4270 = vmatprep.subr.mxu0 0.0
    %4271 = vmatpush1.xpose.msra.mxu0 0.0
    %4272 = vmatprep.subr.mxu0 0.0
    %4273 = vmatpush1.xpose.msra.mxu0 0.0
    %4274 = vmatprep.subr.mxu0 0.0
    %4275 = vmatpush1.xpose.msra.mxu0 %v4242
    %4276 = vmatprep.subr.mxu0 0.0
    %4277 = vmatpush2.xpose.msra.mxu0 0.0
    %4278 = vmatprep.subr.mxu0 0.0
    %4279 = vmatpush2.xpose.msra.mxu0 0.0
    %4280 = vmatprep.subr.mxu0 0.0
    %4281 = vmatpush2.xpose.msra.mxu0 0.0
    %4282 = vmatprep.subr.mxu0 0.0
    %4283 = vmatpush2.xpose.msra.mxu0 0.0
    %4284 = vmatprep.subr.mxu0 0.0
    %4285 = vmatpush2.xpose.msra.mxu0 0.0
    %4286 = vmatprep.subr.mxu0 0.0
    %4287 = vmatpush2.xpose.msra.mxu0 0.0
    %4288 = vmatprep.subr.mxu0 0.0
    %4289 = vmatpush2.xpose.msra.mxu0 0.0
    %4290 = vmatprep.subr.mxu0 0.0
    %4291 = vmatpush2.xpose.msra.mxu0 0.0
    %4292 = vmatprep.subr.mxu0 0.0
    %4293 = vmatpush2.xpose.msra.mxu0 0.0
    %4294 = vmatprep.subr.mxu0 0.0
    %4295 = vmatpush2.xpose.msra.mxu0 0.0
    %4296 = vmatprep.subr.mxu0 0.0
    %4297 = vmatpush2.xpose.msra.mxu0 0.0
    %4298 = vmatprep.subr.mxu0 0.0
    %4299 = vmatpush2.xpose.msra.mxu0 0.0
    %4300 = vmatprep.subr.mxu0 0.0
    %4301 = vmatpush2.xpose.msra.mxu0 0.0
    %4302 = vmatprep.subr.mxu0 0.0
    %4303 = vmatpush2.xpose.msra.mxu0 0.0
    %4304 = vmatprep.subr.mxu0 0.0
    %4305 = vmatpush2.xpose.msra.mxu0 0.0
    %4306 = vmatprep.subr.mxu0 0.0
    %4307 = vmatpush2.xpose.msra.mxu0 0.0
    %4308 = vmatprep.mubr.f32.mxu0 0.0
    %4309 = vmatmul.mubr.f32.gmra.mxu0 %v4240
    %v4310 = vpop.f32.mrf.mxu0
    %v4311 = vadd.f32 %v253, %v4310
    %v4312 = vpop.f32.mrf.mxu0
    %4313 = vdwg.mxu0
    %4314 = vrot.lane.b32.xlu0 %v3781, 120
    %v4315 = vpop.permute.xlu0 %4314
    %v4316 = vsel %vm373, %v3781, 0
    %v4318 = vsel %vm373, %v4315, 0
    %4320 = vmatprep.subr.mxu0 0.0
    %4321 = vmatpush1.xpose.msra.mxu0 0.0
    %4322 = vmatprep.subr.mxu0 0.0
    %4323 = vmatpush1.xpose.msra.mxu0 0.0
    %4324 = vmatprep.subr.mxu0 0.0
    %4325 = vmatpush1.xpose.msra.mxu0 0.0
    %4326 = vmatprep.subr.mxu0 0.0
    %4327 = vmatpush1.xpose.msra.mxu0 0.0
    %4328 = vmatprep.subr.mxu0 0.0
    %4329 = vmatpush1.xpose.msra.mxu0 0.0
    %4330 = vmatprep.subr.mxu0 0.0
    %4331 = vmatpush1.xpose.msra.mxu0 0.0
    %4332 = vmatprep.subr.mxu0 0.0
    %4333 = vmatpush1.xpose.msra.mxu0 0.0
    %4334 = vmatprep.subr.mxu0 0.0
    %4335 = vmatpush1.xpose.msra.mxu0 0.0
    %4336 = vmatprep.subr.mxu0 0.0
    %4337 = vmatpush1.xpose.msra.mxu0 0.0
    %4338 = vmatprep.subr.mxu0 0.0
    %4339 = vmatpush1.xpose.msra.mxu0 0.0
    %4340 = vmatprep.subr.mxu0 0.0
    %4341 = vmatpush1.xpose.msra.mxu0 0.0
    %4342 = vmatprep.subr.mxu0 0.0
    %4343 = vmatpush1.xpose.msra.mxu0 0.0
    %4344 = vmatprep.subr.mxu0 0.0
    %4345 = vmatpush1.xpose.msra.mxu0 0.0
    %4346 = vmatprep.subr.mxu0 0.0
    %4347 = vmatpush1.xpose.msra.mxu0 0.0
    %4348 = vmatprep.subr.mxu0 0.0
    %4349 = vmatpush1.xpose.msra.mxu0 0.0
    %4350 = vmatprep.subr.mxu0 0.0
    %4351 = vmatpush1.xpose.msra.mxu0 %v4318
    %4352 = vmatprep.subr.mxu0 0.0
    %4353 = vmatpush2.xpose.msra.mxu0 0.0
    %4354 = vmatprep.subr.mxu0 0.0
    %4355 = vmatpush2.xpose.msra.mxu0 0.0
    %4356 = vmatprep.subr.mxu0 0.0
    %4357 = vmatpush2.xpose.msra.mxu0 0.0
    %4358 = vmatprep.subr.mxu0 0.0
    %4359 = vmatpush2.xpose.msra.mxu0 0.0
    %4360 = vmatprep.subr.mxu0 0.0
    %4361 = vmatpush2.xpose.msra.mxu0 0.0
    %4362 = vmatprep.subr.mxu0 0.0
    %4363 = vmatpush2.xpose.msra.mxu0 0.0
    %4364 = vmatprep.subr.mxu0 0.0
    %4365 = vmatpush2.xpose.msra.mxu0 0.0
    %4366 = vmatprep.subr.mxu0 0.0
    %4367 = vmatpush2.xpose.msra.mxu0 0.0
    %4368 = vmatprep.subr.mxu0 0.0
    %4369 = vmatpush2.xpose.msra.mxu0 0.0
    %4370 = vmatprep.subr.mxu0 0.0
    %4371 = vmatpush2.xpose.msra.mxu0 0.0
    %4372 = vmatprep.subr.mxu0 0.0
    %4373 = vmatpush2.xpose.msra.mxu0 0.0
    %4374 = vmatprep.subr.mxu0 0.0
    %4375 = vmatpush2.xpose.msra.mxu0 0.0
    %4376 = vmatprep.subr.mxu0 0.0
    %4377 = vmatpush2.xpose.msra.mxu0 0.0
    %4378 = vmatprep.subr.mxu0 0.0
    %4379 = vmatpush2.xpose.msra.mxu0 0.0
    %4380 = vmatprep.subr.mxu0 0.0
    %4381 = vmatpush2.xpose.msra.mxu0 0.0
    %4382 = vmatprep.subr.mxu0 0.0
    %4383 = vmatpush2.xpose.msra.mxu0 0.0
    %4384 = vmatprep.mubr.f32.mxu0 0.0
    %4385 = vmatmul.mubr.f32.gmra.mxu0 %v4316
    %v4386 = vpop.f32.mrf.mxu0
    %v4387 = vadd.f32 %v257, %v4386
    %v4388 = vpop.f32.mrf.mxu0
    %4389 = vdwg.mxu0
    %v4390 = vsel %vm373, %v3855, -inf
    %4391 = vmax.xlane.f32.xlu0 %v4390
    %v4392 = vpop.xlane.xlu0 %4391
    %v4393 = vsel %vm373, %v3931, -inf
    %4394 = vmax.xlane.f32.xlu0 %v4393
    %v4395 = vpop.xlane.xlu0 %4394
    %v4396 = vsel %vm373, %v4007, -inf
    %4397 = vmax.xlane.f32.xlu0 %v4396
    %v4398 = vpop.xlane.xlu0 %4397
    %v4399 = vsel %vm373, %v4083, -inf
    %4400 = vmax.xlane.f32.xlu0 %v4399
    %v4401 = vpop.xlane.xlu0 %4400
    %v4402 = vsel %vm373, %v4159, -inf
    %4403 = vmax.xlane.f32.xlu0 %v4402
    %v4404 = vpop.xlane.xlu0 %4403
    %v4405 = vsel %vm373, %v4235, -inf
    %4406 = vmax.xlane.f32.xlu0 %v4405
    %v4407 = vpop.xlane.xlu0 %4406
    %v4408 = vsel %vm373, %v4311, -inf
    %4409 = vmax.xlane.f32.xlu0 %v4408
    %v4410 = vpop.xlane.xlu0 %4409
    %v4411 = vsel %vm373, %v4387, -inf
    %4412 = vmax.xlane.f32.xlu0 %v4411
    %v4413 = vpop.xlane.xlu0 %4412
    %v4414 = vsub.f32 %v3855, %v4392
    %v4415 = vsub.f32 %v3931, %v4395
    %v4416 = vsub.f32 %v4007, %v4398
    %v4417 = vsub.f32 %v4083, %v4401
    %v4418 = vsub.f32 %v4159, %v4404
    %v4419 = vsub.f32 %v4235, %v4407
    %v4420 = vsub.f32 %v4311, %v4410
    %v4421 = vsub.f32 %v4387, %v4413
    %v4422 = vmul.f32 %v4414, 1.442695
    %v4423 = vpow.pop %v4422
    %v4424 = vmul.f32 %v4415, 1.442695
    %v4425 = vpow.pop %v4424
    %v4426 = vmul.f32 %v4416, 1.442695
    %v4427 = vpow.pop %v4426
    %v4428 = vmul.f32 %v4417, 1.442695
    %v4429 = vpow.pop %v4428
    %v4430 = vmul.f32 %v4418, 1.442695
    %v4431 = vpow.pop %v4430
    %v4432 = vmul.f32 %v4419, 1.442695
    %v4433 = vpow.pop %v4432
    %v4434 = vmul.f32 %v4420, 1.442695
    %v4435 = vpow.pop %v4434
    %v4436 = vmul.f32 %v4421, 1.442695
    %v4437 = vpow.pop %v4436
    %v4438 = vsel %vm373, %v4423, 0.0
    %4439 = vadd.xlane.f32.xlu0 %v4438
    %v4440 = vpop.xlane.xlu0 %4439
    %v4441 = vsel %vm373, %v4425, 0.0
    %4442 = vadd.xlane.f32.xlu0 %v4441
    %v4443 = vpop.xlane.xlu0 %4442
    %v4444 = vsel %vm373, %v4427, 0.0
    %4445 = vadd.xlane.f32.xlu0 %v4444
    %v4446 = vpop.xlane.xlu0 %4445
    %v4447 = vsel %vm373, %v4429, 0.0
    %4448 = vadd.xlane.f32.xlu0 %v4447
    %v4449 = vpop.xlane.xlu0 %4448
    %v4450 = vsel %vm373, %v4431, 0.0
    %4451 = vadd.xlane.f32.xlu0 %v4450
    %v4452 = vpop.xlane.xlu0 %4451
    %v4453 = vsel %vm373, %v4433, 0.0
    %4454 = vadd.xlane.f32.xlu0 %v4453
    %v4455 = vpop.xlane.xlu0 %4454
    %v4456 = vsel %vm373, %v4435, 0.0
    %4457 = vadd.xlane.f32.xlu0 %v4456
    %v4458 = vpop.xlane.xlu0 %4457
    %v4459 = vsel %vm373, %v4437, 0.0
    %4460 = vadd.xlane.f32.xlu0 %v4459
    %v4461 = vpop.xlane.xlu0 %4460
    %v4462 = vrcp.pop %v4440
    %v4463 = vrcp.pop %v4443
    %v4464 = vrcp.pop %v4446
    %v4465 = vrcp.pop %v4449
    %v4466 = vrcp.pop %v4452
    %v4467 = vrcp.pop %v4455
    %v4468 = vrcp.pop %v4458
    %v4469 = vrcp.pop %v4461
    %v4470 = vmul.f32 %v4423, %v4462
    %v4471 = vmul.f32 %v4425, %v4463
    %v4472 = vmul.f32 %v4427, %v4464
    %v4473 = vmul.f32 %v4429, %v4465
    %v4474 = vmul.f32 %v4431, %v4466
    %v4475 = vmul.f32 %v4433, %v4467
    %v4476 = vmul.f32 %v4435, %v4468
    %v4477 = vmul.f32 %v4437, %v4469
    %4478 = vrot.lane.b32.xlu0 %v3752, 112
    %v4479 = vpop.permute.xlu0 %4478
    %v4482 = vsel %vm373, %v4470, 0
    %4484 = vmatprep.subr.mxu0 0.0
    %4485 = vmatpush1.msra.mxu0 0.0
    %4486 = vmatprep.subr.mxu0 0.0
    %4487 = vmatpush1.msra.mxu0 0.0
    %4488 = vmatprep.subr.mxu0 0.0
    %4489 = vmatpush1.msra.mxu0 0.0
    %4490 = vmatprep.subr.mxu0 0.0
    %4491 = vmatpush1.msra.mxu0 0.0
    %4492 = vmatprep.subr.mxu0 0.0
    %4493 = vmatpush1.msra.mxu0 0.0
    %4494 = vmatprep.subr.mxu0 0.0
    %4495 = vmatpush1.msra.mxu0 0.0
    %4496 = vmatprep.subr.mxu0 0.0
    %4497 = vmatpush1.msra.mxu0 0.0
    %4498 = vmatprep.subr.mxu0 0.0
    %4499 = vmatpush1.msra.mxu0 0.0
    %4500 = vmatprep.subr.mxu0 0.0
    %4501 = vmatpush1.msra.mxu0 0.0
    %4502 = vmatprep.subr.mxu0 0.0
    %4503 = vmatpush1.msra.mxu0 0.0
    %4504 = vmatprep.subr.mxu0 0.0
    %4505 = vmatpush1.msra.mxu0 0.0
    %4506 = vmatprep.subr.mxu0 0.0
    %4507 = vmatpush1.msra.mxu0 0.0
    %4508 = vmatprep.subr.mxu0 0.0
    %4509 = vmatpush1.msra.mxu0 0.0
    %4510 = vmatprep.subr.mxu0 0.0
    %4511 = vmatpush1.msra.mxu0 0.0
    %4512 = vmatprep.subr.mxu0 0.0
    %4513 = vmatpush1.msra.mxu0 0.0
    %4514 = vmatprep.subr.mxu0 0.0
    %4515 = vmatpush1.msra.mxu0 %v4479
    %4516 = vmatprep.subr.mxu0 0.0
    %4517 = vmatpush2.msra.mxu0 0.0
    %4518 = vmatprep.subr.mxu0 0.0
    %4519 = vmatpush2.msra.mxu0 0.0
    %4520 = vmatprep.subr.mxu0 0.0
    %4521 = vmatpush2.msra.mxu0 0.0
    %4522 = vmatprep.subr.mxu0 0.0
    %4523 = vmatpush2.msra.mxu0 0.0
    %4524 = vmatprep.subr.mxu0 0.0
    %4525 = vmatpush2.msra.mxu0 0.0
    %4526 = vmatprep.subr.mxu0 0.0
    %4527 = vmatpush2.msra.mxu0 0.0
    %4528 = vmatprep.subr.mxu0 0.0
    %4529 = vmatpush2.msra.mxu0 0.0
    %4530 = vmatprep.subr.mxu0 0.0
    %4531 = vmatpush2.msra.mxu0 0.0
    %4532 = vmatprep.subr.mxu0 0.0
    %4533 = vmatpush2.msra.mxu0 0.0
    %4534 = vmatprep.subr.mxu0 0.0
    %4535 = vmatpush2.msra.mxu0 0.0
    %4536 = vmatprep.subr.mxu0 0.0
    %4537 = vmatpush2.msra.mxu0 0.0
    %4538 = vmatprep.subr.mxu0 0.0
    %4539 = vmatpush2.msra.mxu0 0.0
    %4540 = vmatprep.subr.mxu0 0.0
    %4541 = vmatpush2.msra.mxu0 0.0
    %4542 = vmatprep.subr.mxu0 0.0
    %4543 = vmatpush2.msra.mxu0 0.0
    %4544 = vmatprep.subr.mxu0 0.0
    %4545 = vmatpush2.msra.mxu0 0.0
    %4546 = vmatprep.subr.mxu0 0.0
    %4547 = vmatpush2.msra.mxu0 0.0
    %4548 = vmatprep.mubr.f32.mxu0 0.0
    %4549 = vmatmul.mubr.f32.gmra.mxu0 %v4482
    %v4550 = vpop.f32.mrf.mxu0
    %v4551 = vadd.f32 0.0, %v4550
    %v4552 = vpop.f32.mrf.mxu0
    %4553 = vdwg.mxu0
    %4554 = vrot.lane.b32.xlu0 %v3756, 112
    %v4555 = vpop.permute.xlu0 %4554
    %v4558 = vsel %vm373, %v4471, 0
    %4560 = vmatprep.subr.mxu0 0.0
    %4561 = vmatpush1.msra.mxu0 0.0
    %4562 = vmatprep.subr.mxu0 0.0
    %4563 = vmatpush1.msra.mxu0 0.0
    %4564 = vmatprep.subr.mxu0 0.0
    %4565 = vmatpush1.msra.mxu0 0.0
    %4566 = vmatprep.subr.mxu0 0.0
    %4567 = vmatpush1.msra.mxu0 0.0
    %4568 = vmatprep.subr.mxu0 0.0
    %4569 = vmatpush1.msra.mxu0 0.0
    %4570 = vmatprep.subr.mxu0 0.0
    %4571 = vmatpush1.msra.mxu0 0.0
    %4572 = vmatprep.subr.mxu0 0.0
    %4573 = vmatpush1.msra.mxu0 0.0
    %4574 = vmatprep.subr.mxu0 0.0
    %4575 = vmatpush1.msra.mxu0 0.0
    %4576 = vmatprep.subr.mxu0 0.0
    %4577 = vmatpush1.msra.mxu0 0.0
    %4578 = vmatprep.subr.mxu0 0.0
    %4579 = vmatpush1.msra.mxu0 0.0
    %4580 = vmatprep.subr.mxu0 0.0
    %4581 = vmatpush1.msra.mxu0 0.0
    %4582 = vmatprep.subr.mxu0 0.0
    %4583 = vmatpush1.msra.mxu0 0.0
    %4584 = vmatprep.subr.mxu0 0.0
    %4585 = vmatpush1.msra.mxu0 0.0
    %4586 = vmatprep.subr.mxu0 0.0
    %4587 = vmatpush1.msra.mxu0 0.0
    %4588 = vmatprep.subr.mxu0 0.0
    %4589 = vmatpush1.msra.mxu0 0.0
    %4590 = vmatprep.subr.mxu0 0.0
    %4591 = vmatpush1.msra.mxu0 %v4555
    %4592 = vmatprep.subr.mxu0 0.0
    %4593 = vmatpush2.msra.mxu0 0.0
    %4594 = vmatprep.subr.mxu0 0.0
    %4595 = vmatpush2.msra.mxu0 0.0
    %4596 = vmatprep.subr.mxu0 0.0
    %4597 = vmatpush2.msra.mxu0 0.0
    %4598 = vmatprep.subr.mxu0 0.0
    %4599 = vmatpush2.msra.mxu0 0.0
    %4600 = vmatprep.subr.mxu0 0.0
    %4601 = vmatpush2.msra.mxu0 0.0
    %4602 = vmatprep.subr.mxu0 0.0
    %4603 = vmatpush2.msra.mxu0 0.0
    %4604 = vmatprep.subr.mxu0 0.0
    %4605 = vmatpush2.msra.mxu0 0.0
    %4606 = vmatprep.subr.mxu0 0.0
    %4607 = vmatpush2.msra.mxu0 0.0
    %4608 = vmatprep.subr.mxu0 0.0
    %4609 = vmatpush2.msra.mxu0 0.0
    %4610 = vmatprep.subr.mxu0 0.0
    %4611 = vmatpush2.msra.mxu0 0.0
    %4612 = vmatprep.subr.mxu0 0.0
    %4613 = vmatpush2.msra.mxu0 0.0
    %4614 = vmatprep.subr.mxu0 0.0
    %4615 = vmatpush2.msra.mxu0 0.0
    %4616 = vmatprep.subr.mxu0 0.0
    %4617 = vmatpush2.msra.mxu0 0.0
    %4618 = vmatprep.subr.mxu0 0.0
    %4619 = vmatpush2.msra.mxu0 0.0
    %4620 = vmatprep.subr.mxu0 0.0
    %4621 = vmatpush2.msra.mxu0 0.0
    %4622 = vmatprep.subr.mxu0 0.0
    %4623 = vmatpush2.msra.mxu0 0.0
    %4624 = vmatprep.mubr.f32.mxu0 0.0
    %4625 = vmatmul.mubr.f32.gmra.mxu0 %v4558
    %v4626 = vpop.f32.mrf.mxu0
    %v4627 = vadd.f32 0.0, %v4626
    %v4628 = vpop.f32.mrf.mxu0
    %4629 = vdwg.mxu0
    %4630 = vrot.lane.b32.xlu0 %v3763, 112
    %v4631 = vpop.permute.xlu0 %4630
    %v4634 = vsel %vm373, %v4472, 0
    %4636 = vmatprep.subr.mxu0 0.0
    %4637 = vmatpush1.msra.mxu0 0.0
    %4638 = vmatprep.subr.mxu0 0.0
    %4639 = vmatpush1.msra.mxu0 0.0
    %4640 = vmatprep.subr.mxu0 0.0
    %4641 = vmatpush1.msra.mxu0 0.0
    %4642 = vmatprep.subr.mxu0 0.0
    %4643 = vmatpush1.msra.mxu0 0.0
    %4644 = vmatprep.subr.mxu0 0.0
    %4645 = vmatpush1.msra.mxu0 0.0
    %4646 = vmatprep.subr.mxu0 0.0
    %4647 = vmatpush1.msra.mxu0 0.0
    %4648 = vmatprep.subr.mxu0 0.0
    %4649 = vmatpush1.msra.mxu0 0.0
    %4650 = vmatprep.subr.mxu0 0.0
    %4651 = vmatpush1.msra.mxu0 0.0
    %4652 = vmatprep.subr.mxu0 0.0
    %4653 = vmatpush1.msra.mxu0 0.0
    %4654 = vmatprep.subr.mxu0 0.0
    %4655 = vmatpush1.msra.mxu0 0.0
    %4656 = vmatprep.subr.mxu0 0.0
    %4657 = vmatpush1.msra.mxu0 0.0
    %4658 = vmatprep.subr.mxu0 0.0
    %4659 = vmatpush1.msra.mxu0 0.0
    %4660 = vmatprep.subr.mxu0 0.0
    %4661 = vmatpush1.msra.mxu0 0.0
    %4662 = vmatprep.subr.mxu0 0.0
    %4663 = vmatpush1.msra.mxu0 0.0
    %4664 = vmatprep.subr.mxu0 0.0
    %4665 = vmatpush1.msra.mxu0 0.0
    %4666 = vmatprep.subr.mxu0 0.0
    %4667 = vmatpush1.msra.mxu0 %v4631
    %4668 = vmatprep.subr.mxu0 0.0
    %4669 = vmatpush2.msra.mxu0 0.0
    %4670 = vmatprep.subr.mxu0 0.0
    %4671 = vmatpush2.msra.mxu0 0.0
    %4672 = vmatprep.subr.mxu0 0.0
    %4673 = vmatpush2.msra.mxu0 0.0
    %4674 = vmatprep.subr.mxu0 0.0
    %4675 = vmatpush2.msra.mxu0 0.0
    %4676 = vmatprep.subr.mxu0 0.0
    %4677 = vmatpush2.msra.mxu0 0.0
    %4678 = vmatprep.subr.mxu0 0.0
    %4679 = vmatpush2.msra.mxu0 0.0
    %4680 = vmatprep.subr.mxu0 0.0
    %4681 = vmatpush2.msra.mxu0 0.0
    %4682 = vmatprep.subr.mxu0 0.0
    %4683 = vmatpush2.msra.mxu0 0.0
    %4684 = vmatprep.subr.mxu0 0.0
    %4685 = vmatpush2.msra.mxu0 0.0
    %4686 = vmatprep.subr.mxu0 0.0
    %4687 = vmatpush2.msra.mxu0 0.0
    %4688 = vmatprep.subr.mxu0 0.0
    %4689 = vmatpush2.msra.mxu0 0.0
    %4690 = vmatprep.subr.mxu0 0.0
    %4691 = vmatpush2.msra.mxu0 0.0
    %4692 = vmatprep.subr.mxu0 0.0
    %4693 = vmatpush2.msra.mxu0 0.0
    %4694 = vmatprep.subr.mxu0 0.0
    %4695 = vmatpush2.msra.mxu0 0.0
    %4696 = vmatprep.subr.mxu0 0.0
    %4697 = vmatpush2.msra.mxu0 0.0
    %4698 = vmatprep.subr.mxu0 0.0
    %4699 = vmatpush2.msra.mxu0 0.0
    %4700 = vmatprep.mubr.f32.mxu0 0.0
    %4701 = vmatmul.mubr.f32.gmra.mxu0 %v4634
    %v4702 = vpop.f32.mrf.mxu0
    %v4703 = vadd.f32 0.0, %v4702
    %v4704 = vpop.f32.mrf.mxu0
    %4705 = vdwg.mxu0
    %4706 = vrot.lane.b32.xlu0 %v3765, 112
    %v4707 = vpop.permute.xlu0 %4706
    %v4710 = vsel %vm373, %v4473, 0
    %4712 = vmatprep.subr.mxu0 0.0
    %4713 = vmatpush1.msra.mxu0 0.0
    %4714 = vmatprep.subr.mxu0 0.0
    %4715 = vmatpush1.msra.mxu0 0.0
    %4716 = vmatprep.subr.mxu0 0.0
    %4717 = vmatpush1.msra.mxu0 0.0
    %4718 = vmatprep.subr.mxu0 0.0
    %4719 = vmatpush1.msra.mxu0 0.0
    %4720 = vmatprep.subr.mxu0 0.0
    %4721 = vmatpush1.msra.mxu0 0.0
    %4722 = vmatprep.subr.mxu0 0.0
    %4723 = vmatpush1.msra.mxu0 0.0
    %4724 = vmatprep.subr.mxu0 0.0
    %4725 = vmatpush1.msra.mxu0 0.0
    %4726 = vmatprep.subr.mxu0 0.0
    %4727 = vmatpush1.msra.mxu0 0.0
    %4728 = vmatprep.subr.mxu0 0.0
    %4729 = vmatpush1.msra.mxu0 0.0
    %4730 = vmatprep.subr.mxu0 0.0
    %4731 = vmatpush1.msra.mxu0 0.0
    %4732 = vmatprep.subr.mxu0 0.0
    %4733 = vmatpush1.msra.mxu0 0.0
    %4734 = vmatprep.subr.mxu0 0.0
    %4735 = vmatpush1.msra.mxu0 0.0
    %4736 = vmatprep.subr.mxu0 0.0
    %4737 = vmatpush1.msra.mxu0 0.0
    %4738 = vmatprep.subr.mxu0 0.0
    %4739 = vmatpush1.msra.mxu0 0.0
    %4740 = vmatprep.subr.mxu0 0.0
    %4741 = vmatpush1.msra.mxu0 0.0
    %4742 = vmatprep.subr.mxu0 0.0
    %4743 = vmatpush1.msra.mxu0 %v4707
    %4744 = vmatprep.subr.mxu0 0.0
    %4745 = vmatpush2.msra.mxu0 0.0
    %4746 = vmatprep.subr.mxu0 0.0
    %4747 = vmatpush2.msra.mxu0 0.0
    %4748 = vmatprep.subr.mxu0 0.0
    %4749 = vmatpush2.msra.mxu0 0.0
    %4750 = vmatprep.subr.mxu0 0.0
    %4751 = vmatpush2.msra.mxu0 0.0
    %4752 = vmatprep.subr.mxu0 0.0
    %4753 = vmatpush2.msra.mxu0 0.0
    %4754 = vmatprep.subr.mxu0 0.0
    %4755 = vmatpush2.msra.mxu0 0.0
    %4756 = vmatprep.subr.mxu0 0.0
    %4757 = vmatpush2.msra.mxu0 0.0
    %4758 = vmatprep.subr.mxu0 0.0
    %4759 = vmatpush2.msra.mxu0 0.0
    %4760 = vmatprep.subr.mxu0 0.0
    %4761 = vmatpush2.msra.mxu0 0.0
    %4762 = vmatprep.subr.mxu0 0.0
    %4763 = vmatpush2.msra.mxu0 0.0
    %4764 = vmatprep.subr.mxu0 0.0
    %4765 = vmatpush2.msra.mxu0 0.0
    %4766 = vmatprep.subr.mxu0 0.0
    %4767 = vmatpush2.msra.mxu0 0.0
    %4768 = vmatprep.subr.mxu0 0.0
    %4769 = vmatpush2.msra.mxu0 0.0
    %4770 = vmatprep.subr.mxu0 0.0
    %4771 = vmatpush2.msra.mxu0 0.0
    %4772 = vmatprep.subr.mxu0 0.0
    %4773 = vmatpush2.msra.mxu0 0.0
    %4774 = vmatprep.subr.mxu0 0.0
    %4775 = vmatpush2.msra.mxu0 0.0
    %4776 = vmatprep.mubr.f32.mxu0 0.0
    %4777 = vmatmul.mubr.f32.gmra.mxu0 %v4710
    %v4778 = vpop.f32.mrf.mxu0
    %v4779 = vadd.f32 0.0, %v4778
    %v4780 = vpop.f32.mrf.mxu0
    %4781 = vdwg.mxu0
    %4782 = vrot.lane.b32.xlu0 %v3776, 112
    %v4783 = vpop.permute.xlu0 %4782
    %v4786 = vsel %vm373, %v4474, 0
    %4788 = vmatprep.subr.mxu0 0.0
    %4789 = vmatpush1.msra.mxu0 0.0
    %4790 = vmatprep.subr.mxu0 0.0
    %4791 = vmatpush1.msra.mxu0 0.0
    %4792 = vmatprep.subr.mxu0 0.0
    %4793 = vmatpush1.msra.mxu0 0.0
    %4794 = vmatprep.subr.mxu0 0.0
    %4795 = vmatpush1.msra.mxu0 0.0
    %4796 = vmatprep.subr.mxu0 0.0
    %4797 = vmatpush1.msra.mxu0 0.0
    %4798 = vmatprep.subr.mxu0 0.0
    %4799 = vmatpush1.msra.mxu0 0.0
    %4800 = vmatprep.subr.mxu0 0.0
    %4801 = vmatpush1.msra.mxu0 0.0
    %4802 = vmatprep.subr.mxu0 0.0
    %4803 = vmatpush1.msra.mxu0 0.0
    %4804 = vmatprep.subr.mxu0 0.0
    %4805 = vmatpush1.msra.mxu0 0.0
    %4806 = vmatprep.subr.mxu0 0.0
    %4807 = vmatpush1.msra.mxu0 0.0
    %4808 = vmatprep.subr.mxu0 0.0
    %4809 = vmatpush1.msra.mxu0 0.0
    %4810 = vmatprep.subr.mxu0 0.0
    %4811 = vmatpush1.msra.mxu0 0.0
    %4812 = vmatprep.subr.mxu0 0.0
    %4813 = vmatpush1.msra.mxu0 0.0
    %4814 = vmatprep.subr.mxu0 0.0
    %4815 = vmatpush1.msra.mxu0 0.0
    %4816 = vmatprep.subr.mxu0 0.0
    %4817 = vmatpush1.msra.mxu0 0.0
    %4818 = vmatprep.subr.mxu0 0.0
    %4819 = vmatpush1.msra.mxu0 %v4783
    %4820 = vmatprep.subr.mxu0 0.0
    %4821 = vmatpush2.msra.mxu0 0.0
    %4822 = vmatprep.subr.mxu0 0.0
    %4823 = vmatpush2.msra.mxu0 0.0
    %4824 = vmatprep.subr.mxu0 0.0
    %4825 = vmatpush2.msra.mxu0 0.0
    %4826 = vmatprep.subr.mxu0 0.0
    %4827 = vmatpush2.msra.mxu0 0.0
    %4828 = vmatprep.subr.mxu0 0.0
    %4829 = vmatpush2.msra.mxu0 0.0
    %4830 = vmatprep.subr.mxu0 0.0
    %4831 = vmatpush2.msra.mxu0 0.0
    %4832 = vmatprep.subr.mxu0 0.0
    %4833 = vmatpush2.msra.mxu0 0.0
    %4834 = vmatprep.subr.mxu0 0.0
    %4835 = vmatpush2.msra.mxu0 0.0
    %4836 = vmatprep.subr.mxu0 0.0
    %4837 = vmatpush2.msra.mxu0 0.0
    %4838 = vmatprep.subr.mxu0 0.0
    %4839 = vmatpush2.msra.mxu0 0.0
    %4840 = vmatprep.subr.mxu0 0.0
    %4841 = vmatpush2.msra.mxu0 0.0
    %4842 = vmatprep.subr.mxu0 0.0
    %4843 = vmatpush2.msra.mxu0 0.0
    %4844 = vmatprep.subr.mxu0 0.0
    %4845 = vmatpush2.msra.mxu0 0.0
    %4846 = vmatprep.subr.mxu0 0.0
    %4847 = vmatpush2.msra.mxu0 0.0
    %4848 = vmatprep.subr.mxu0 0.0
    %4849 = vmatpush2.msra.mxu0 0.0
    %4850 = vmatprep.subr.mxu0 0.0
    %4851 = vmatpush2.msra.mxu0 0.0
    %4852 = vmatprep.mubr.f32.mxu0 0.0
    %4853 = vmatmul.mubr.f32.gmra.mxu0 %v4786
    %v4854 = vpop.f32.mrf.mxu0
    %v4855 = vadd.f32 0.0, %v4854
    %v4856 = vpop.f32.mrf.mxu0
    %4857 = vdwg.mxu0
    %4858 = vrot.lane.b32.xlu0 %v3777, 112
    %v4859 = vpop.permute.xlu0 %4858
    %v4862 = vsel %vm373, %v4475, 0
    %4864 = vmatprep.subr.mxu0 0.0
    %4865 = vmatpush1.msra.mxu0 0.0
    %4866 = vmatprep.subr.mxu0 0.0
    %4867 = vmatpush1.msra.mxu0 0.0
    %4868 = vmatprep.subr.mxu0 0.0
    %4869 = vmatpush1.msra.mxu0 0.0
    %4870 = vmatprep.subr.mxu0 0.0
    %4871 = vmatpush1.msra.mxu0 0.0
    %4872 = vmatprep.subr.mxu0 0.0
    %4873 = vmatpush1.msra.mxu0 0.0
    %4874 = vmatprep.subr.mxu0 0.0
    %4875 = vmatpush1.msra.mxu0 0.0
    %4876 = vmatprep.subr.mxu0 0.0
    %4877 = vmatpush1.msra.mxu0 0.0
    %4878 = vmatprep.subr.mxu0 0.0
    %4879 = vmatpush1.msra.mxu0 0.0
    %4880 = vmatprep.subr.mxu0 0.0
    %4881 = vmatpush1.msra.mxu0 0.0
    %4882 = vmatprep.subr.mxu0 0.0
    %4883 = vmatpush1.msra.mxu0 0.0
    %4884 = vmatprep.subr.mxu0 0.0
    %4885 = vmatpush1.msra.mxu0 0.0
    %4886 = vmatprep.subr.mxu0 0.0
    %4887 = vmatpush1.msra.mxu0 0.0
    %4888 = vmatprep.subr.mxu0 0.0
    %4889 = vmatpush1.msra.mxu0 0.0
    %4890 = vmatprep.subr.mxu0 0.0
    %4891 = vmatpush1.msra.mxu0 0.0
    %4892 = vmatprep.subr.mxu0 0.0
    %4893 = vmatpush1.msra.mxu0 0.0
    %4894 = vmatprep.subr.mxu0 0.0
    %4895 = vmatpush1.msra.mxu0 %v4859
    %4896 = vmatprep.subr.mxu0 0.0
    %4897 = vmatpush2.msra.mxu0 0.0
    %4898 = vmatprep.subr.mxu0 0.0
    %4899 = vmatpush2.msra.mxu0 0.0
    %4900 = vmatprep.subr.mxu0 0.0
    %4901 = vmatpush2.msra.mxu0 0.0
    %4902 = vmatprep.subr.mxu0 0.0
    %4903 = vmatpush2.msra.mxu0 0.0
    %4904 = vmatprep.subr.mxu0 0.0
    %4905 = vmatpush2.msra.mxu0 0.0
    %4906 = vmatprep.subr.mxu0 0.0
    %4907 = vmatpush2.msra.mxu0 0.0
    %4908 = vmatprep.subr.mxu0 0.0
    %4909 = vmatpush2.msra.mxu0 0.0
    %4910 = vmatprep.subr.mxu0 0.0
    %4911 = vmatpush2.msra.mxu0 0.0
    %4912 = vmatprep.subr.mxu0 0.0
    %4913 = vmatpush2.msra.mxu0 0.0
    %4914 = vmatprep.subr.mxu0 0.0
    %4915 = vmatpush2.msra.mxu0 0.0
    %4916 = vmatprep.subr.mxu0 0.0
    %4917 = vmatpush2.msra.mxu0 0.0
    %4918 = vmatprep.subr.mxu0 0.0
    %4919 = vmatpush2.msra.mxu0 0.0
    %4920 = vmatprep.subr.mxu0 0.0
    %4921 = vmatpush2.msra.mxu0 0.0
    %4922 = vmatprep.subr.mxu0 0.0
    %4923 = vmatpush2.msra.mxu0 0.0
    %4924 = vmatprep.subr.mxu0 0.0
    %4925 = vmatpush2.msra.mxu0 0.0
    %4926 = vmatprep.subr.mxu0 0.0
    %4927 = vmatpush2.msra.mxu0 0.0
    %4928 = vmatprep.mubr.f32.mxu0 0.0
    %4929 = vmatmul.mubr.f32.gmra.mxu0 %v4862
    %v4930 = vpop.f32.mrf.mxu0
    %v4931 = vadd.f32 0.0, %v4930
    %v4932 = vpop.f32.mrf.mxu0
    %4933 = vdwg.mxu0
    %4934 = vrot.lane.b32.xlu0 %v3779, 112
    %v4935 = vpop.permute.xlu0 %4934
    %v4938 = vsel %vm373, %v4476, 0
    %4940 = vmatprep.subr.mxu0 0.0
    %4941 = vmatpush1.msra.mxu0 0.0
    %4942 = vmatprep.subr.mxu0 0.0
    %4943 = vmatpush1.msra.mxu0 0.0
    %4944 = vmatprep.subr.mxu0 0.0
    %4945 = vmatpush1.msra.mxu0 0.0
    %4946 = vmatprep.subr.mxu0 0.0
    %4947 = vmatpush1.msra.mxu0 0.0
    %4948 = vmatprep.subr.mxu0 0.0
    %4949 = vmatpush1.msra.mxu0 0.0
    %4950 = vmatprep.subr.mxu0 0.0
    %4951 = vmatpush1.msra.mxu0 0.0
    %4952 = vmatprep.subr.mxu0 0.0
    %4953 = vmatpush1.msra.mxu0 0.0
    %4954 = vmatprep.subr.mxu0 0.0
    %4955 = vmatpush1.msra.mxu0 0.0
    %4956 = vmatprep.subr.mxu0 0.0
    %4957 = vmatpush1.msra.mxu0 0.0
    %4958 = vmatprep.subr.mxu0 0.0
    %4959 = vmatpush1.msra.mxu0 0.0
    %4960 = vmatprep.subr.mxu0 0.0
    %4961 = vmatpush1.msra.mxu0 0.0
    %4962 = vmatprep.subr.mxu0 0.0
    %4963 = vmatpush1.msra.mxu0 0.0
    %4964 = vmatprep.subr.mxu0 0.0
    %4965 = vmatpush1.msra.mxu0 0.0
    %4966 = vmatprep.subr.mxu0 0.0
    %4967 = vmatpush1.msra.mxu0 0.0
    %4968 = vmatprep.subr.mxu0 0.0
    %4969 = vmatpush1.msra.mxu0 0.0
    %4970 = vmatprep.subr.mxu0 0.0
    %4971 = vmatpush1.msra.mxu0 %v4935
    %4972 = vmatprep.subr.mxu0 0.0
    %4973 = vmatpush2.msra.mxu0 0.0
    %4974 = vmatprep.subr.mxu0 0.0
    %4975 = vmatpush2.msra.mxu0 0.0
    %4976 = vmatprep.subr.mxu0 0.0
    %4977 = vmatpush2.msra.mxu0 0.0
    %4978 = vmatprep.subr.mxu0 0.0
    %4979 = vmatpush2.msra.mxu0 0.0
    %4980 = vmatprep.subr.mxu0 0.0
    %4981 = vmatpush2.msra.mxu0 0.0
    %4982 = vmatprep.subr.mxu0 0.0
    %4983 = vmatpush2.msra.mxu0 0.0
    %4984 = vmatprep.subr.mxu0 0.0
    %4985 = vmatpush2.msra.mxu0 0.0
    %4986 = vmatprep.subr.mxu0 0.0
    %4987 = vmatpush2.msra.mxu0 0.0
    %4988 = vmatprep.subr.mxu0 0.0
    %4989 = vmatpush2.msra.mxu0 0.0
    %4990 = vmatprep.subr.mxu0 0.0
    %4991 = vmatpush2.msra.mxu0 0.0
    %4992 = vmatprep.subr.mxu0 0.0
    %4993 = vmatpush2.msra.mxu0 0.0
    %4994 = vmatprep.subr.mxu0 0.0
    %4995 = vmatpush2.msra.mxu0 0.0
    %4996 = vmatprep.subr.mxu0 0.0
    %4997 = vmatpush2.msra.mxu0 0.0
    %4998 = vmatprep.subr.mxu0 0.0
    %4999 = vmatpush2.msra.mxu0 0.0
    %5000 = vmatprep.subr.mxu0 0.0
    %5001 = vmatpush2.msra.mxu0 0.0
    %5002 = vmatprep.subr.mxu0 0.0
    %5003 = vmatpush2.msra.mxu0 0.0
    %5004 = vmatprep.mubr.f32.mxu0 0.0
    %5005 = vmatmul.mubr.f32.gmra.mxu0 %v4938
    %v5006 = vpop.f32.mrf.mxu0
    %v5007 = vadd.f32 0.0, %v5006
    %v5008 = vpop.f32.mrf.mxu0
    %5009 = vdwg.mxu0
    %5010 = vrot.lane.b32.xlu0 %v3781, 112
    %v5011 = vpop.permute.xlu0 %5010
    %v5014 = vsel %vm373, %v4477, 0
    %5016 = vmatprep.subr.mxu0 0.0
    %5017 = vmatpush1.msra.mxu0 0.0
    %5018 = vmatprep.subr.mxu0 0.0
    %5019 = vmatpush1.msra.mxu0 0.0
    %5020 = vmatprep.subr.mxu0 0.0
    %5021 = vmatpush1.msra.mxu0 0.0
    %5022 = vmatprep.subr.mxu0 0.0
    %5023 = vmatpush1.msra.mxu0 0.0
    %5024 = vmatprep.subr.mxu0 0.0
    %5025 = vmatpush1.msra.mxu0 0.0
    %5026 = vmatprep.subr.mxu0 0.0
    %5027 = vmatpush1.msra.mxu0 0.0
    %5028 = vmatprep.subr.mxu0 0.0
    %5029 = vmatpush1.msra.mxu0 0.0
    %5030 = vmatprep.subr.mxu0 0.0
    %5031 = vmatpush1.msra.mxu0 0.0
    %5032 = vmatprep.subr.mxu0 0.0
    %5033 = vmatpush1.msra.mxu0 0.0
    %5034 = vmatprep.subr.mxu0 0.0
    %5035 = vmatpush1.msra.mxu0 0.0
    %5036 = vmatprep.subr.mxu0 0.0
    %5037 = vmatpush1.msra.mxu0 0.0
    %5038 = vmatprep.subr.mxu0 0.0
    %5039 = vmatpush1.msra.mxu0 0.0
    %5040 = vmatprep.subr.mxu0 0.0
    %5041 = vmatpush1.msra.mxu0 0.0
    %5042 = vmatprep.subr.mxu0 0.0
    %5043 = vmatpush1.msra.mxu0 0.0
    %5044 = vmatprep.subr.mxu0 0.0
    %5045 = vmatpush1.msra.mxu0 0.0
    %5046 = vmatprep.subr.mxu0 0.0
    %5047 = vmatpush1.msra.mxu0 %v5011
    %5048 = vmatprep.subr.mxu0 0.0
    %5049 = vmatpush2.msra.mxu0 0.0
    %5050 = vmatprep.subr.mxu0 0.0
    %5051 = vmatpush2.msra.mxu0 0.0
    %5052 = vmatprep.subr.mxu0 0.0
    %5053 = vmatpush2.msra.mxu0 0.0
    %5054 = vmatprep.subr.mxu0 0.0
    %5055 = vmatpush2.msra.mxu0 0.0
    %5056 = vmatprep.subr.mxu0 0.0
    %5057 = vmatpush2.msra.mxu0 0.0
    %5058 = vmatprep.subr.mxu0 0.0
    %5059 = vmatpush2.msra.mxu0 0.0
    %5060 = vmatprep.subr.mxu0 0.0
    %5061 = vmatpush2.msra.mxu0 0.0
    %5062 = vmatprep.subr.mxu0 0.0
    %5063 = vmatpush2.msra.mxu0 0.0
    %5064 = vmatprep.subr.mxu0 0.0
    %5065 = vmatpush2.msra.mxu0 0.0
    %5066 = vmatprep.subr.mxu0 0.0
    %5067 = vmatpush2.msra.mxu0 0.0
    %5068 = vmatprep.subr.mxu0 0.0
    %5069 = vmatpush2.msra.mxu0 0.0
    %5070 = vmatprep.subr.mxu0 0.0
    %5071 = vmatpush2.msra.mxu0 0.0
    %5072 = vmatprep.subr.mxu0 0.0
    %5073 = vmatpush2.msra.mxu0 0.0
    %5074 = vmatprep.subr.mxu0 0.0
    %5075 = vmatpush2.msra.mxu0 0.0
    %5076 = vmatprep.subr.mxu0 0.0
    %5077 = vmatpush2.msra.mxu0 0.0
    %5078 = vmatprep.subr.mxu0 0.0
    %5079 = vmatpush2.msra.mxu0 0.0
    %5080 = vmatprep.mubr.f32.mxu0 0.0
    %5081 = vmatmul.mubr.f32.gmra.mxu0 %v5014
    %v5082 = vpop.f32.mrf.mxu0
    %v5083 = vadd.f32 0.0, %v5082
    %v5084 = vpop.f32.mrf.mxu0
    %5085 = vdwg.mxu0
    %v5086 = vsel %vm135, %v4551, 0.0
    %v5087 = vsel %vm135, %v4703, 0.0
    %v5088 = vadd.f32 %v5086, %v5087
    %v5089 = vsel %vm135, %v4855, 0.0
    %v5090 = vadd.f32 %v5088, %v5089
    %v5091 = vsel %vm135, %v5007, 0.0
    %v5092 = vadd.f32 %v5090, %v5091
    %v5093 = vsel %vm135, %v4627, 0.0
    %v5094 = vsel %vm135, %v4779, 0.0
    %v5095 = vadd.f32 %v5093, %v5094
    %v5096 = vsel %vm135, %v4931, 0.0
    %v5097 = vadd.f32 %v5095, %v5096
    %v5098 = vsel %vm135, %v5083, 0.0
    %v5099 = vadd.f32 %v5097, %v5098
    %v5100 = vadd.f32 %v5092, %v3673
    %v5101 = vadd.f32 %v5099, %v3674
    %v5102 = vld [vmem:[%s9 + $0xc] sm:$0x1]
    %v5103 = vld [vmem:[%s9 + $0xd] sm:$0x1]
    %v5104 = vsel %vm135, %v5100, 0.0
    %5105 = vadd.xlane.f32.xlu0 %v5104
    %v5106 = vpop.xlane.xlu0 %5105
    %v5107 = vsel %vm135, %v5101, 0.0
    %5108 = vadd.xlane.f32.xlu0 %v5107
    %v5109 = vpop.xlane.xlu0 %5108
    %v5110 = vmul.f32 %v5106, %v142
    %v5111 = vmul.f32 %v5109, %v142
    %v5112 = vsub.f32 %v5100, %v5110
    %v5113 = vsub.f32 %v5101, %v5111
    %v5114 = vmul.f32 %v5112, %v5112
    %v5115 = vmul.f32 %v5113, %v5113
    %v5116 = vsel %vm135, %v5114, 0.0
    %5117 = vadd.xlane.f32.xlu0 %v5116
    %v5118 = vpop.xlane.xlu0 %5117
    %v5119 = vsel %vm135, %v5115, 0.0
    %5120 = vadd.xlane.f32.xlu0 %v5119
    %v5121 = vpop.xlane.xlu0 %5120
    %v5122 = vmul.f32 %v5118, %v142
    %v5123 = vmul.f32 %v5121, %v142
    %v5124 = vadd.f32 %v5122, 1e-12
    %v5125 = vadd.f32 %v5123, 1e-12
    %v5126 = vrsqrt.pop %v5124
    %v5127 = vrsqrt.pop %v5125
    %v5128 = vmul.f32 %v5112, %v5126
    %v5129 = vmul.f32 %v5113, %v5127
    %v5130 = vlaneseq
    %v5131 = vshrl.u32 %v5130, 7
    %v5132 = vsub.s32 0, %v5131
    %v5133 = vrot.slane %v5102, %v5132
    %v5134 = vmul.f32 %v5128, %v5133
    %v5135 = vmul.f32 %v5129, %v5133
    %v5136 = vlaneseq
    %v5137 = vshrl.u32 %v5136, 7
    %v5138 = vsub.s32 0, %v5137
    %v5139 = vrot.slane %v5103, %v5138
    %v5140 = vadd.f32 %v5134, %v5139
    %v5141 = vadd.f32 %v5135, %v5139
    %v5142 = vpack.c.bf16 %v5141, %v5140
    %s5143 = scalar_lea.vmem %s5, 32
    %v5144 = vld [vmem:[%s5143] sm:$0xf]
    %v5145 = vld [vmem:[%s5143 + $0x4] sm:$0xf]
    %v5146 = vld [vmem:[%s5143 + $0x8] sm:$0xf]
    %v5147 = vld [vmem:[%s5143 + $0xc] sm:$0xf]
    %v5148 = vld [vmem:[%s8 + $0x2] sm:$0x1]
    %v5149 = vlaneseq
    %v5150 = vshrl.u32 %v5149, 7
    %v5151 = vsub.s32 0, %v5150
    %v5152 = vrot.slane %v5148, %v5151
    %v5157 = vunpack.c.l.b16 %v5144
    %v5158 = vunpack.c.l.b16 %v5145
    %v5159 = vunpack.c.l.b16 %v5146
    %v5160 = vunpack.c.l.b16 %v5147
    %v5161 = vpack.c.b16 %v5158, %v5157
    %v5162 = vpack.c.b16 %v5160, %v5159
    %v5166 = vsel %vm135, %v5142, 0
    %5168 = vmatprep.subr.bf16.mxu0 0
    %5169 = vmatpush1.bf16.msra.mxu0 0
    %5170 = vmatprep.subr.bf16.mxu0 0
    %5171 = vmatpush1.bf16.msra.mxu0 0
    %5172 = vmatprep.subr.bf16.mxu0 0
    %5173 = vmatpush1.bf16.msra.mxu0 0
    %5174 = vmatprep.subr.bf16.mxu0 0
    %5175 = vmatpush1.bf16.msra.mxu0 0
    %5176 = vmatprep.subr.bf16.mxu0 0
    %5177 = vmatpush1.bf16.msra.mxu0 0
    %5178 = vmatprep.subr.bf16.mxu0 0
    %5179 = vmatpush1.bf16.msra.mxu0 0
    %5180 = vmatprep.subr.bf16.mxu0 0
    %5181 = vmatpush1.bf16.msra.mxu0 %v5162
    %5182 = vmatprep.subr.bf16.mxu0 0
    %5183 = vmatpush1.bf16.msra.mxu0 %v5161
    %5184 = vmatprep.subr.bf16.mxu0 0
    %5185 = vmatpush2.bf16.msra.mxu0 0
    %5186 = vmatprep.subr.bf16.mxu0 0
    %5187 = vmatpush2.bf16.msra.mxu0 0
    %5188 = vmatprep.subr.bf16.mxu0 0
    %5189 = vmatpush2.bf16.msra.mxu0 0
    %5190 = vmatprep.subr.bf16.mxu0 0
    %5191 = vmatpush2.bf16.msra.mxu0 0
    %5192 = vmatprep.subr.bf16.mxu0 0
    %5193 = vmatpush2.bf16.msra.mxu0 0
    %5194 = vmatprep.subr.bf16.mxu0 0
    %5195 = vmatpush2.bf16.msra.mxu0 0
    %5196 = vmatprep.subr.bf16.mxu0 0
    %5197 = vmatpush2.bf16.msra.mxu0 0
    %5198 = vmatprep.subr.bf16.mxu0 0
    %5199 = vmatpush2.bf16.msra.mxu0 0
    %5200 = vmatprep.mubr.bf16.mxu0 0
    %5201 = vmatmul.mubr.bf16.gmra.mxu0 %v5166
    %v5202 = vpop.f32.mrf.mxu0
    %v5203 = vadd.f32 %v5152, %v5202
    %v5204 = vpop.f32.mrf.mxu0
    %v5205 = vpop.f32.mrf.mxu0
    %v5206 = vadd.f32 %v5152, %v5205
    %v5207 = vpop.f32.mrf.mxu0
    %5208 = vdwg.mxu0
    %v5209 = vmul.f32 %v5203, 0.5
    %v5210 = vmul.f32 %v5206, 0.5
    %v5211 = vmul.f32 %v5203, 0.044715
    %v5212 = vmul.f32 %v5206, 0.044715
    %v5213 = vmul.f32 %v5211, %v5203
    %v5214 = vmul.f32 %v5212, %v5206
    %v5215 = vmul.f32 %v5213, %v5203
    %v5216 = vmul.f32 %v5214, %v5206
    %v5217 = vadd.f32 %v5203, %v5215
    %v5218 = vadd.f32 %v5206, %v5216
    %v5219 = vmul.f32 %v5217, 0.7978846
    %v5220 = vmul.f32 %v5218, 0.7978846
    %v5221 = vtanh.pop %v5219
    %v5222 = vtanh.pop %v5220
    %v5223 = vadd.f32 %v5221, 1.0
    %v5224 = vadd.f32 %v5222, 1.0
    %v5225 = vmul.f32 %v5209, %v5223
    %v5226 = vmul.f32 %v5210, %v5224
    %v5227 = vpack.c.bf16 %v5226, %v5225
    %s5228 = scalar_lea.vmem %s6, 128
    %v5229 = vld [vmem:[%s5228] sm:$0xf]
    %v5230 = vld [vmem:[%s5228 + $0x4] sm:$0xf]
    %v5231 = vld [vmem:[%s5228 + $0x8] sm:$0xf]
    %v5232 = vld [vmem:[%s5228 + $0xc] sm:$0xf]
    %v5233 = vld [vmem:[%s5228 + $0x10] sm:$0xf]
    %v5234 = vld [vmem:[%s5228 + $0x14] sm:$0xf]
    %v5235 = vld [vmem:[%s5228 + $0x18] sm:$0xf]
    %v5236 = vld [vmem:[%s5228 + $0x1c] sm:$0xf]
    %v5237 = vld [vmem:[%s5228 + $0x20] sm:$0xf]
    %v5238 = vld [vmem:[%s5228 + $0x24] sm:$0xf]
    %v5239 = vld [vmem:[%s5228 + $0x28] sm:$0xf]
    %v5240 = vld [vmem:[%s5228 + $0x2c] sm:$0xf]
    %v5241 = vld [vmem:[%s5228 + $0x30] sm:$0xf]
    %v5242 = vld [vmem:[%s5228 + $0x34] sm:$0xf]
    %v5243 = vld [vmem:[%s5228 + $0x38] sm:$0xf]
    %v5244 = vld [vmem:[%s5228 + $0x3c] sm:$0xf]
    %v5245 = vld [vmem:[%s9 + $0xe] sm:$0x1]
    %v5246 = vlaneseq
    %v5247 = vshrl.u32 %v5246, 7
    %v5248 = vsub.s32 0, %v5247
    %v5249 = vrot.slane %v5245, %v5248
    %v5266 = vunpack.c.l.b16 %v5229
    %v5267 = vunpack.c.l.b16 %v5230
    %v5268 = vunpack.c.l.b16 %v5231
    %v5269 = vunpack.c.l.b16 %v5232
    %v5270 = vunpack.c.l.b16 %v5233
    %v5271 = vunpack.c.l.b16 %v5234
    %v5272 = vunpack.c.l.b16 %v5235
    %v5273 = vunpack.c.l.b16 %v5236
    %v5274 = vunpack.c.l.b16 %v5237
    %v5275 = vunpack.c.l.b16 %v5238
    %v5276 = vunpack.c.l.b16 %v5239
    %v5277 = vunpack.c.l.b16 %v5240
    %v5278 = vunpack.c.l.b16 %v5241
    %v5279 = vunpack.c.l.b16 %v5242
    %v5280 = vunpack.c.l.b16 %v5243
    %v5281 = vunpack.c.l.b16 %v5244
    %v5282 = vpack.c.b16 %v5267, %v5266
    %v5283 = vpack.c.b16 %v5269, %v5268
    %v5284 = vpack.c.b16 %v5271, %v5270
    %v5285 = vpack.c.b16 %v5273, %v5272
    %v5286 = vpack.c.b16 %v5275, %v5274
    %v5287 = vpack.c.b16 %v5277, %v5276
    %v5288 = vpack.c.b16 %v5279, %v5278
    %v5289 = vpack.c.b16 %v5281, %v5280
    %5298 = vmatprep.subr.bf16.mxu0 0
    %5299 = vmatpush1.bf16.msra.mxu0 %v5289
    %5300 = vmatprep.subr.bf16.mxu0 0
    %5301 = vmatpush1.bf16.msra.mxu0 %v5288
    %5302 = vmatprep.subr.bf16.mxu0 0
    %5303 = vmatpush1.bf16.msra.mxu0 %v5287
    %5304 = vmatprep.subr.bf16.mxu0 0
    %5305 = vmatpush1.bf16.msra.mxu0 %v5286
    %5306 = vmatprep.subr.bf16.mxu0 0
    %5307 = vmatpush1.bf16.msra.mxu0 %v5285
    %5308 = vmatprep.subr.bf16.mxu0 0
    %5309 = vmatpush1.bf16.msra.mxu0 %v5284
    %5310 = vmatprep.subr.bf16.mxu0 0
    %5311 = vmatpush1.bf16.msra.mxu0 %v5283
    %5312 = vmatprep.subr.bf16.mxu0 0
    %5313 = vmatpush1.bf16.msra.mxu0 %v5282
    %5314 = vmatprep.subr.bf16.mxu0 0
    %5315 = vmatpush2.bf16.msra.mxu0 0
    %5316 = vmatprep.subr.bf16.mxu0 0
    %5317 = vmatpush2.bf16.msra.mxu0 0
    %5318 = vmatprep.subr.bf16.mxu0 0
    %5319 = vmatpush2.bf16.msra.mxu0 0
    %5320 = vmatprep.subr.bf16.mxu0 0
    %5321 = vmatpush2.bf16.msra.mxu0 0
    %5322 = vmatprep.subr.bf16.mxu0 0
    %5323 = vmatpush2.bf16.msra.mxu0 0
    %5324 = vmatprep.subr.bf16.mxu0 0
    %5325 = vmatpush2.bf16.msra.mxu0 0
    %5326 = vmatprep.subr.bf16.mxu0 0
    %5327 = vmatpush2.bf16.msra.mxu0 0
    %5328 = vmatprep.subr.bf16.mxu0 0
    %5329 = vmatpush2.bf16.msra.mxu0 0
    %5330 = vmatprep.mubr.bf16.mxu0 0
    %5331 = vmatmul.mubr.bf16.gmra.mxu0 %v5227
    %v5332 = vpop.f32.mrf.mxu0
    %v5333 = vadd.f32 %v5249, %v5332
    %v5334 = vpop.f32.mrf.mxu0
    %v5335 = vpop.f32.mrf.mxu0
    %v5336 = vadd.f32 %v5249, %v5335
    %v5337 = vpop.f32.mrf.mxu0
    %5338 = vdwg.mxu0
    %v5339 = vadd.f32 %v5333, %v5140
    %v5340 = vadd.f32 %v5336, %v5141
    %v5341 = vld [vmem:[%s9 + $0xf] sm:$0x1]
    %v5342 = vld [vmem:[%s9 + $0x10] sm:$0x1]
    %v5343 = vsel %vm135, %v5339, 0.0
    %5344 = vadd.xlane.f32.xlu0 %v5343
    %v5345 = vpop.xlane.xlu0 %5344
    %v5346 = vsel %vm135, %v5340, 0.0
    %5347 = vadd.xlane.f32.xlu0 %v5346
    %v5348 = vpop.xlane.xlu0 %5347
    %v5349 = vmul.f32 %v5345, %v142
    %v5350 = vmul.f32 %v5348, %v142
    %v5351 = vsub.f32 %v5339, %v5349
    %v5352 = vsub.f32 %v5340, %v5350
    %v5353 = vmul.f32 %v5351, %v5351
    %v5354 = vmul.f32 %v5352, %v5352
    %v5355 = vsel %vm135, %v5353, 0.0
    %5356 = vadd.xlane.f32.xlu0 %v5355
    %v5357 = vpop.xlane.xlu0 %5356
    %v5358 = vsel %vm135, %v5354, 0.0
    %5359 = vadd.xlane.f32.xlu0 %v5358
    %v5360 = vpop.xlane.xlu0 %5359
    %v5361 = vmul.f32 %v5357, %v142
    %v5362 = vmul.f32 %v5360, %v142
    %v5363 = vadd.f32 %v5361, 1e-12
    %v5364 = vadd.f32 %v5362, 1e-12
    %v5365 = vrsqrt.pop %v5363
    %v5366 = vrsqrt.pop %v5364
    %v5367 = vmul.f32 %v5351, %v5365
    %v5368 = vmul.f32 %v5352, %v5366
    %v5369 = vlaneseq
    %v5370 = vshrl.u32 %v5369, 7
    %v5371 = vsub.s32 0, %v5370
    %v5372 = vrot.slane %v5341, %v5371
    %v5373 = vmul.f32 %v5367, %v5372
    %v5374 = vmul.f32 %v5368, %v5372
    %v5375 = vlaneseq
    %v5376 = vshrl.u32 %v5375, 7
    %v5377 = vsub.s32 0, %v5376
    %v5378 = vrot.slane %v5342, %v5377
    %v5379 = vadd.f32 %v5373, %v5378
    %v5380 = vadd.f32 %v5374, %v5378
    %v5381 = vpack.c.bf16 %v5380, %v5379
    %s5382 = scalar_lea.vmem %s4, 96
    %v5383 = vld [vmem:[%s5382] sm:$0xff]
    %v5384 = vld [vmem:[%s5382 + $0x8] sm:$0xff]
    %v5385 = vld [vmem:[%s5382 + $0x10] sm:$0xff]
    %v5386 = vld [vmem:[%s5382 + $0x18] sm:$0xff]
    %s5387 = scalar_lea.vmem %s7, 3
    %v5388 = vld [vmem:[%s5387] ss:$8 sm:$0x3]
    %v5390 = vlaneseq
    %v5391 = vshrl.u32 %v5390, 7
    %v5392 = vsub.s32 0, %v5391
    %v5393 = vrot.slane %v5388, %v5392
    %v5394 = vlaneseq
    %v5395 = vshrl.u32 %v5394, 7
    %v5396 = vsub.s32 1, %v5395
    %v5397 = vrot.slane %v5388, %v5396
    %v5404 = vunpack.c.l.b16 %v5383
    %v5405 = vunpack.c.h.b16 %v5383
    %v5406 = vunpack.c.l.b16 %v5384
    %v5407 = vunpack.c.h.b16 %v5384
    %v5408 = vunpack.c.l.b16 %v5385
    %v5409 = vunpack.c.h.b16 %v5385
    %v5410 = vunpack.c.l.b16 %v5386
    %v5411 = vunpack.c.h.b16 %v5386
    %v5412 = vpack.c.b16 %v5406, %v5404
    %v5413 = vpack.c.b16 %v5407, %v5405
    %v5414 = vpack.c.b16 %v5410, %v5408
    %v5415 = vpack.c.b16 %v5411, %v5409
    %v5421 = vsel %vm135, %v5381, 0
    %5423 = vmatprep.subr.bf16.mxu0 0
    %5424 = vmatpush1.bf16.msra.mxu0 0
    %5425 = vmatprep.subr.bf16.mxu0 0
    %5426 = vmatpush1.bf16.msra.mxu0 0
    %5427 = vmatprep.subr.bf16.mxu0 0
    %5428 = vmatpush1.bf16.msra.mxu0 0
    %5429 = vmatprep.subr.bf16.mxu0 0
    %5430 = vmatpush1.bf16.msra.mxu0 0
    %5431 = vmatprep.subr.bf16.mxu0 0
    %5432 = vmatpush1.bf16.msra.mxu0 0
    %5433 = vmatprep.subr.bf16.mxu0 0
    %5434 = vmatpush1.bf16.msra.mxu0 0
    %5435 = vmatprep.subr.bf16.mxu0 %v5415
    %5436 = vmatpush1.bf16.msra.mxu0 %v5414
    %5437 = vmatprep.subr.bf16.mxu0 %v5413
    %5438 = vmatpush1.bf16.msra.mxu0 %v5412
    %5439 = vmatprep.subr.bf16.mxu0 0
    %5440 = vmatpush2.bf16.msra.mxu0 0
    %5441 = vmatprep.subr.bf16.mxu0 0
    %5442 = vmatpush2.bf16.msra.mxu0 0
    %5443 = vmatprep.subr.bf16.mxu0 0
    %5444 = vmatpush2.bf16.msra.mxu0 0
    %5445 = vmatprep.subr.bf16.mxu0 0
    %5446 = vmatpush2.bf16.msra.mxu0 0
    %5447 = vmatprep.subr.bf16.mxu0 0
    %5448 = vmatpush2.bf16.msra.mxu0 0
    %5449 = vmatprep.subr.bf16.mxu0 0
    %5450 = vmatpush2.bf16.msra.mxu0 0
    %5451 = vmatprep.subr.bf16.mxu0 0
    %5452 = vmatpush2.bf16.msra.mxu0 0
    %5453 = vmatprep.subr.bf16.mxu0 0
    %5454 = vmatpush2.bf16.msra.mxu0 0
    %5455 = vmatprep.mubr.bf16.mxu0 0
    %5456 = vmatmul.mubr.bf16.gmra.mxu0 %v5421
    %v5457 = vpop.f32.mrf.mxu0
    %v5458 = vadd.f32 %v5393, %v5457
    %v5459 = vpop.f32.mrf.mxu0
    %v5460 = vadd.f32 %v5397, %v5459
    %v5461 = vpop.f32.mrf.mxu0
    %v5462 = vadd.f32 %v5393, %v5461
    %v5463 = vpop.f32.mrf.mxu0
    %v5464 = vadd.f32 %v5397, %v5463
    %5465 = vdwg.mxu0
    %5468 = vrot.lane.b32.xlu0 %v5458, 80
    %v5469 = vpop.permute.xlu0 %5468
    %5470 = vrot.lane.b32.xlu0 %v5462, 80
    %v5471 = vpop.permute.xlu0 %5470
    %5474 = vrot.lane.b32.xlu0 %v5458, 32
    %v5475 = vpop.permute.xlu0 %5474
    %5476 = vrot.lane.b32.xlu0 %v5460, 32
    %v5477 = vpop.permute.xlu0 %5476
    %5478 = vrot.lane.b32.xlu0 %v5462, 32
    %v5479 = vpop.permute.xlu0 %5478
    %5480 = vrot.lane.b32.xlu0 %v5464, 32
    %v5481 = vpop.permute.xlu0 %5480
    %v5482 = vsel %vm135, %v5475, %v5477
    %v5483 = vsel %vm135, %v5479, %v5481
    %5484 = vrot.lane.b32.xlu0 %v5460, 112
    %v5485 = vpop.permute.xlu0 %5484
    %5486 = vrot.lane.b32.xlu0 %v5464, 112
    %v5487 = vpop.permute.xlu0 %5486
    %5488 = vrot.lane.b32.xlu0 %v5458, 120
    %v5489 = vpop.permute.xlu0 %5488
    %v5490 = vsel %vm373, %v5458, 0
    %v5492 = vsel %vm373, %v5489, 0
    %5494 = vmatprep.subr.mxu0 0.0
    %5495 = vmatpush1.xpose.msra.mxu0 0.0
    %5496 = vmatprep.subr.mxu0 0.0
    %5497 = vmatpush1.xpose.msra.mxu0 0.0
    %5498 = vmatprep.subr.mxu0 0.0
    %5499 = vmatpush1.xpose.msra.mxu0 0.0
    %5500 = vmatprep.subr.mxu0 0.0
    %5501 = vmatpush1.xpose.msra.mxu0 0.0
    %5502 = vmatprep.subr.mxu0 0.0
    %5503 = vmatpush1.xpose.msra.mxu0 0.0
    %5504 = vmatprep.subr.mxu0 0.0
    %5505 = vmatpush1.xpose.msra.mxu0 0.0
    %5506 = vmatprep.subr.mxu0 0.0
    %5507 = vmatpush1.xpose.msra.mxu0 0.0
    %5508 = vmatprep.subr.mxu0 0.0
    %5509 = vmatpush1.xpose.msra.mxu0 0.0
    %5510 = vmatprep.subr.mxu0 0.0
    %5511 = vmatpush1.xpose.msra.mxu0 0.0
    %5512 = vmatprep.subr.mxu0 0.0
    %5513 = vmatpush1.xpose.msra.mxu0 0.0
    %5514 = vmatprep.subr.mxu0 0.0
    %5515 = vmatpush1.xpose.msra.mxu0 0.0
    %5516 = vmatprep.subr.mxu0 0.0
    %5517 = vmatpush1.xpose.msra.mxu0 0.0
    %5518 = vmatprep.subr.mxu0 0.0
    %5519 = vmatpush1.xpose.msra.mxu0 0.0
    %5520 = vmatprep.subr.mxu0 0.0
    %5521 = vmatpush1.xpose.msra.mxu0 0.0
    %5522 = vmatprep.subr.mxu0 0.0
    %5523 = vmatpush1.xpose.msra.mxu0 0.0
    %5524 = vmatprep.subr.mxu0 0.0
    %5525 = vmatpush1.xpose.msra.mxu0 %v5492
    %5526 = vmatprep.subr.mxu0 0.0
    %5527 = vmatpush2.xpose.msra.mxu0 0.0
    %5528 = vmatprep.subr.mxu0 0.0
    %5529 = vmatpush2.xpose.msra.mxu0 0.0
    %5530 = vmatprep.subr.mxu0 0.0
    %5531 = vmatpush2.xpose.msra.mxu0 0.0
    %5532 = vmatprep.subr.mxu0 0.0
    %5533 = vmatpush2.xpose.msra.mxu0 0.0
    %5534 = vmatprep.subr.mxu0 0.0
    %5535 = vmatpush2.xpose.msra.mxu0 0.0
    %5536 = vmatprep.subr.mxu0 0.0
    %5537 = vmatpush2.xpose.msra.mxu0 0.0
    %5538 = vmatprep.subr.mxu0 0.0
    %5539 = vmatpush2.xpose.msra.mxu0 0.0
    %5540 = vmatprep.subr.mxu0 0.0
    %5541 = vmatpush2.xpose.msra.mxu0 0.0
    %5542 = vmatprep.subr.mxu0 0.0
    %5543 = vmatpush2.xpose.msra.mxu0 0.0
    %5544 = vmatprep.subr.mxu0 0.0
    %5545 = vmatpush2.xpose.msra.mxu0 0.0
    %5546 = vmatprep.subr.mxu0 0.0
    %5547 = vmatpush2.xpose.msra.mxu0 0.0
    %5548 = vmatprep.subr.mxu0 0.0
    %5549 = vmatpush2.xpose.msra.mxu0 0.0
    %5550 = vmatprep.subr.mxu0 0.0
    %5551 = vmatpush2.xpose.msra.mxu0 0.0
    %5552 = vmatprep.subr.mxu0 0.0
    %5553 = vmatpush2.xpose.msra.mxu0 0.0
    %5554 = vmatprep.subr.mxu0 0.0
    %5555 = vmatpush2.xpose.msra.mxu0 0.0
    %5556 = vmatprep.subr.mxu0 0.0
    %5557 = vmatpush2.xpose.msra.mxu0 0.0
    %5558 = vmatprep.mubr.f32.mxu0 0.0
    %5559 = vmatmul.mubr.f32.gmra.mxu0 %v5490
    %v5560 = vpop.f32.mrf.mxu0
    %v5561 = vadd.f32 %v229, %v5560
    %v5562 = vpop.f32.mrf.mxu0
    %5563 = vdwg.mxu0
    %5564 = vrot.lane.b32.xlu0 %v5462, 120
    %v5565 = vpop.permute.xlu0 %5564
    %v5566 = vsel %vm373, %v5462, 0
    %v5568 = vsel %vm373, %v5565, 0
    %5570 = vmatprep.subr.mxu0 0.0
    %5571 = vmatpush1.xpose.msra.mxu0 0.0
    %5572 = vmatprep.subr.mxu0 0.0
    %5573 = vmatpush1.xpose.msra.mxu0 0.0
    %5574 = vmatprep.subr.mxu0 0.0
    %5575 = vmatpush1.xpose.msra.mxu0 0.0
    %5576 = vmatprep.subr.mxu0 0.0
    %5577 = vmatpush1.xpose.msra.mxu0 0.0
    %5578 = vmatprep.subr.mxu0 0.0
    %5579 = vmatpush1.xpose.msra.mxu0 0.0
    %5580 = vmatprep.subr.mxu0 0.0
    %5581 = vmatpush1.xpose.msra.mxu0 0.0
    %5582 = vmatprep.subr.mxu0 0.0
    %5583 = vmatpush1.xpose.msra.mxu0 0.0
    %5584 = vmatprep.subr.mxu0 0.0
    %5585 = vmatpush1.xpose.msra.mxu0 0.0
    %5586 = vmatprep.subr.mxu0 0.0
    %5587 = vmatpush1.xpose.msra.mxu0 0.0
    %5588 = vmatprep.subr.mxu0 0.0
    %5589 = vmatpush1.xpose.msra.mxu0 0.0
    %5590 = vmatprep.subr.mxu0 0.0
    %5591 = vmatpush1.xpose.msra.mxu0 0.0
    %5592 = vmatprep.subr.mxu0 0.0
    %5593 = vmatpush1.xpose.msra.mxu0 0.0
    %5594 = vmatprep.subr.mxu0 0.0
    %5595 = vmatpush1.xpose.msra.mxu0 0.0
    %5596 = vmatprep.subr.mxu0 0.0
    %5597 = vmatpush1.xpose.msra.mxu0 0.0
    %5598 = vmatprep.subr.mxu0 0.0
    %5599 = vmatpush1.xpose.msra.mxu0 0.0
    %5600 = vmatprep.subr.mxu0 0.0
    %5601 = vmatpush1.xpose.msra.mxu0 %v5568
    %5602 = vmatprep.subr.mxu0 0.0
    %5603 = vmatpush2.xpose.msra.mxu0 0.0
    %5604 = vmatprep.subr.mxu0 0.0
    %5605 = vmatpush2.xpose.msra.mxu0 0.0
    %5606 = vmatprep.subr.mxu0 0.0
    %5607 = vmatpush2.xpose.msra.mxu0 0.0
    %5608 = vmatprep.subr.mxu0 0.0
    %5609 = vmatpush2.xpose.msra.mxu0 0.0
    %5610 = vmatprep.subr.mxu0 0.0
    %5611 = vmatpush2.xpose.msra.mxu0 0.0
    %5612 = vmatprep.subr.mxu0 0.0
    %5613 = vmatpush2.xpose.msra.mxu0 0.0
    %5614 = vmatprep.subr.mxu0 0.0
    %5615 = vmatpush2.xpose.msra.mxu0 0.0
    %5616 = vmatprep.subr.mxu0 0.0
    %5617 = vmatpush2.xpose.msra.mxu0 0.0
    %5618 = vmatprep.subr.mxu0 0.0
    %5619 = vmatpush2.xpose.msra.mxu0 0.0
    %5620 = vmatprep.subr.mxu0 0.0
    %5621 = vmatpush2.xpose.msra.mxu0 0.0
    %5622 = vmatprep.subr.mxu0 0.0
    %5623 = vmatpush2.xpose.msra.mxu0 0.0
    %5624 = vmatprep.subr.mxu0 0.0
    %5625 = vmatpush2.xpose.msra.mxu0 0.0
    %5626 = vmatprep.subr.mxu0 0.0
    %5627 = vmatpush2.xpose.msra.mxu0 0.0
    %5628 = vmatprep.subr.mxu0 0.0
    %5629 = vmatpush2.xpose.msra.mxu0 0.0
    %5630 = vmatprep.subr.mxu0 0.0
    %5631 = vmatpush2.xpose.msra.mxu0 0.0
    %5632 = vmatprep.subr.mxu0 0.0
    %5633 = vmatpush2.xpose.msra.mxu0 0.0
    %5634 = vmatprep.mubr.f32.mxu0 0.0
    %5635 = vmatmul.mubr.f32.gmra.mxu0 %v5566
    %v5636 = vpop.f32.mrf.mxu0
    %v5637 = vadd.f32 %v233, %v5636
    %v5638 = vpop.f32.mrf.mxu0
    %5639 = vdwg.mxu0
    %5640 = vrot.lane.b32.xlu0 %v5469, 120
    %v5641 = vpop.permute.xlu0 %5640
    %v5642 = vsel %vm373, %v5469, 0
    %v5644 = vsel %vm373, %v5641, 0
    %5646 = vmatprep.subr.mxu0 0.0
    %5647 = vmatpush1.xpose.msra.mxu0 0.0
    %5648 = vmatprep.subr.mxu0 0.0
    %5649 = vmatpush1.xpose.msra.mxu0 0.0
    %5650 = vmatprep.subr.mxu0 0.0
    %5651 = vmatpush1.xpose.msra.mxu0 0.0
    %5652 = vmatprep.subr.mxu0 0.0
    %5653 = vmatpush1.xpose.msra.mxu0 0.0
    %5654 = vmatprep.subr.mxu0 0.0
    %5655 = vmatpush1.xpose.msra.mxu0 0.0
    %5656 = vmatprep.subr.mxu0 0.0
    %5657 = vmatpush1.xpose.msra.mxu0 0.0
    %5658 = vmatprep.subr.mxu0 0.0
    %5659 = vmatpush1.xpose.msra.mxu0 0.0
    %5660 = vmatprep.subr.mxu0 0.0
    %5661 = vmatpush1.xpose.msra.mxu0 0.0
    %5662 = vmatprep.subr.mxu0 0.0
    %5663 = vmatpush1.xpose.msra.mxu0 0.0
    %5664 = vmatprep.subr.mxu0 0.0
    %5665 = vmatpush1.xpose.msra.mxu0 0.0
    %5666 = vmatprep.subr.mxu0 0.0
    %5667 = vmatpush1.xpose.msra.mxu0 0.0
    %5668 = vmatprep.subr.mxu0 0.0
    %5669 = vmatpush1.xpose.msra.mxu0 0.0
    %5670 = vmatprep.subr.mxu0 0.0
    %5671 = vmatpush1.xpose.msra.mxu0 0.0
    %5672 = vmatprep.subr.mxu0 0.0
    %5673 = vmatpush1.xpose.msra.mxu0 0.0
    %5674 = vmatprep.subr.mxu0 0.0
    %5675 = vmatpush1.xpose.msra.mxu0 0.0
    %5676 = vmatprep.subr.mxu0 0.0
    %5677 = vmatpush1.xpose.msra.mxu0 %v5644
    %5678 = vmatprep.subr.mxu0 0.0
    %5679 = vmatpush2.xpose.msra.mxu0 0.0
    %5680 = vmatprep.subr.mxu0 0.0
    %5681 = vmatpush2.xpose.msra.mxu0 0.0
    %5682 = vmatprep.subr.mxu0 0.0
    %5683 = vmatpush2.xpose.msra.mxu0 0.0
    %5684 = vmatprep.subr.mxu0 0.0
    %5685 = vmatpush2.xpose.msra.mxu0 0.0
    %5686 = vmatprep.subr.mxu0 0.0
    %5687 = vmatpush2.xpose.msra.mxu0 0.0
    %5688 = vmatprep.subr.mxu0 0.0
    %5689 = vmatpush2.xpose.msra.mxu0 0.0
    %5690 = vmatprep.subr.mxu0 0.0
    %5691 = vmatpush2.xpose.msra.mxu0 0.0
    %5692 = vmatprep.subr.mxu0 0.0
    %5693 = vmatpush2.xpose.msra.mxu0 0.0
    %5694 = vmatprep.subr.mxu0 0.0
    %5695 = vmatpush2.xpose.msra.mxu0 0.0
    %5696 = vmatprep.subr.mxu0 0.0
    %5697 = vmatpush2.xpose.msra.mxu0 0.0
    %5698 = vmatprep.subr.mxu0 0.0
    %5699 = vmatpush2.xpose.msra.mxu0 0.0
    %5700 = vmatprep.subr.mxu0 0.0
    %5701 = vmatpush2.xpose.msra.mxu0 0.0
    %5702 = vmatprep.subr.mxu0 0.0
    %5703 = vmatpush2.xpose.msra.mxu0 0.0
    %5704 = vmatprep.subr.mxu0 0.0
    %5705 = vmatpush2.xpose.msra.mxu0 0.0
    %5706 = vmatprep.subr.mxu0 0.0
    %5707 = vmatpush2.xpose.msra.mxu0 0.0
    %5708 = vmatprep.subr.mxu0 0.0
    %5709 = vmatpush2.xpose.msra.mxu0 0.0
    %5710 = vmatprep.mubr.f32.mxu0 0.0
    %5711 = vmatmul.mubr.f32.gmra.mxu0 %v5642
    %v5712 = vpop.f32.mrf.mxu0
    %v5713 = vadd.f32 %v237, %v5712
    %v5714 = vpop.f32.mrf.mxu0
    %5715 = vdwg.mxu0
    %5716 = vrot.lane.b32.xlu0 %v5471, 120
    %v5717 = vpop.permute.xlu0 %5716
    %v5718 = vsel %vm373, %v5471, 0
    %v5720 = vsel %vm373, %v5717, 0
    %5722 = vmatprep.subr.mxu0 0.0
    %5723 = vmatpush1.xpose.msra.mxu0 0.0
    %5724 = vmatprep.subr.mxu0 0.0
    %5725 = vmatpush1.xpose.msra.mxu0 0.0
    %5726 = vmatprep.subr.mxu0 0.0
    %5727 = vmatpush1.xpose.msra.mxu0 0.0
    %5728 = vmatprep.subr.mxu0 0.0
    %5729 = vmatpush1.xpose.msra.mxu0 0.0
    %5730 = vmatprep.subr.mxu0 0.0
    %5731 = vmatpush1.xpose.msra.mxu0 0.0
    %5732 = vmatprep.subr.mxu0 0.0
    %5733 = vmatpush1.xpose.msra.mxu0 0.0
    %5734 = vmatprep.subr.mxu0 0.0
    %5735 = vmatpush1.xpose.msra.mxu0 0.0
    %5736 = vmatprep.subr.mxu0 0.0
    %5737 = vmatpush1.xpose.msra.mxu0 0.0
    %5738 = vmatprep.subr.mxu0 0.0
    %5739 = vmatpush1.xpose.msra.mxu0 0.0
    %5740 = vmatprep.subr.mxu0 0.0
    %5741 = vmatpush1.xpose.msra.mxu0 0.0
    %5742 = vmatprep.subr.mxu0 0.0
    %5743 = vmatpush1.xpose.msra.mxu0 0.0
    %5744 = vmatprep.subr.mxu0 0.0
    %5745 = vmatpush1.xpose.msra.mxu0 0.0
    %5746 = vmatprep.subr.mxu0 0.0
    %5747 = vmatpush1.xpose.msra.mxu0 0.0
    %5748 = vmatprep.subr.mxu0 0.0
    %5749 = vmatpush1.xpose.msra.mxu0 0.0
    %5750 = vmatprep.subr.mxu0 0.0
    %5751 = vmatpush1.xpose.msra.mxu0 0.0
    %5752 = vmatprep.subr.mxu0 0.0
    %5753 = vmatpush1.xpose.msra.mxu0 %v5720
    %5754 = vmatprep.subr.mxu0 0.0
    %5755 = vmatpush2.xpose.msra.mxu0 0.0
    %5756 = vmatprep.subr.mxu0 0.0
    %5757 = vmatpush2.xpose.msra.mxu0 0.0
    %5758 = vmatprep.subr.mxu0 0.0
    %5759 = vmatpush2.xpose.msra.mxu0 0.0
    %5760 = vmatprep.subr.mxu0 0.0
    %5761 = vmatpush2.xpose.msra.mxu0 0.0
    %5762 = vmatprep.subr.mxu0 0.0
    %5763 = vmatpush2.xpose.msra.mxu0 0.0
    %5764 = vmatprep.subr.mxu0 0.0
    %5765 = vmatpush2.xpose.msra.mxu0 0.0
    %5766 = vmatprep.subr.mxu0 0.0
    %5767 = vmatpush2.xpose.msra.mxu0 0.0
    %5768 = vmatprep.subr.mxu0 0.0
    %5769 = vmatpush2.xpose.msra.mxu0 0.0
    %5770 = vmatprep.subr.mxu0 0.0
    %5771 = vmatpush2.xpose.msra.mxu0 0.0
    %5772 = vmatprep.subr.mxu0 0.0
    %5773 = vmatpush2.xpose.msra.mxu0 0.0
    %5774 = vmatprep.subr.mxu0 0.0
    %5775 = vmatpush2.xpose.msra.mxu0 0.0
    %5776 = vmatprep.subr.mxu0 0.0
    %5777 = vmatpush2.xpose.msra.mxu0 0.0
    %5778 = vmatprep.subr.mxu0 0.0
    %5779 = vmatpush2.xpose.msra.mxu0 0.0
    %5780 = vmatprep.subr.mxu0 0.0
    %5781 = vmatpush2.xpose.msra.mxu0 0.0
    %5782 = vmatprep.subr.mxu0 0.0
    %5783 = vmatpush2.xpose.msra.mxu0 0.0
    %5784 = vmatprep.subr.mxu0 0.0
    %5785 = vmatpush2.xpose.msra.mxu0 0.0
    %5786 = vmatprep.mubr.f32.mxu0 0.0
    %5787 = vmatmul.mubr.f32.gmra.mxu0 %v5718
    %v5788 = vpop.f32.mrf.mxu0
    %v5789 = vadd.f32 %v241, %v5788
    %v5790 = vpop.f32.mrf.mxu0
    %5791 = vdwg.mxu0
    %5792 = vrot.lane.b32.xlu0 %v5482, 120
    %v5793 = vpop.permute.xlu0 %5792
    %v5794 = vsel %vm373, %v5482, 0
    %v5796 = vsel %vm373, %v5793, 0
    %5798 = vmatprep.subr.mxu0 0.0
    %5799 = vmatpush1.xpose.msra.mxu0 0.0
    %5800 = vmatprep.subr.mxu0 0.0
    %5801 = vmatpush1.xpose.msra.mxu0 0.0
    %5802 = vmatprep.subr.mxu0 0.0
    %5803 = vmatpush1.xpose.msra.mxu0 0.0
    %5804 = vmatprep.subr.mxu0 0.0
    %5805 = vmatpush1.xpose.msra.mxu0 0.0
    %5806 = vmatprep.subr.mxu0 0.0
    %5807 = vmatpush1.xpose.msra.mxu0 0.0
    %5808 = vmatprep.subr.mxu0 0.0
    %5809 = vmatpush1.xpose.msra.mxu0 0.0
    %5810 = vmatprep.subr.mxu0 0.0
    %5811 = vmatpush1.xpose.msra.mxu0 0.0
    %5812 = vmatprep.subr.mxu0 0.0
    %5813 = vmatpush1.xpose.msra.mxu0 0.0
    %5814 = vmatprep.subr.mxu0 0.0
    %5815 = vmatpush1.xpose.msra.mxu0 0.0
    %5816 = vmatprep.subr.mxu0 0.0
    %5817 = vmatpush1.xpose.msra.mxu0 0.0
    %5818 = vmatprep.subr.mxu0 0.0
    %5819 = vmatpush1.xpose.msra.mxu0 0.0
    %5820 = vmatprep.subr.mxu0 0.0
    %5821 = vmatpush1.xpose.msra.mxu0 0.0
    %5822 = vmatprep.subr.mxu0 0.0
    %5823 = vmatpush1.xpose.msra.mxu0 0.0
    %5824 = vmatprep.subr.mxu0 0.0
    %5825 = vmatpush1.xpose.msra.mxu0 0.0
    %5826 = vmatprep.subr.mxu0 0.0
    %5827 = vmatpush1.xpose.msra.mxu0 0.0
    %5828 = vmatprep.subr.mxu0 0.0
    %5829 = vmatpush1.xpose.msra.mxu0 %v5796
    %5830 = vmatprep.subr.mxu0 0.0
    %5831 = vmatpush2.xpose.msra.mxu0 0.0
    %5832 = vmatprep.subr.mxu0 0.0
    %5833 = vmatpush2.xpose.msra.mxu0 0.0
    %5834 = vmatprep.subr.mxu0 0.0
    %5835 = vmatpush2.xpose.msra.mxu0 0.0
    %5836 = vmatprep.subr.mxu0 0.0
    %5837 = vmatpush2.xpose.msra.mxu0 0.0
    %5838 = vmatprep.subr.mxu0 0.0
    %5839 = vmatpush2.xpose.msra.mxu0 0.0
    %5840 = vmatprep.subr.mxu0 0.0
    %5841 = vmatpush2.xpose.msra.mxu0 0.0
    %5842 = vmatprep.subr.mxu0 0.0
    %5843 = vmatpush2.xpose.msra.mxu0 0.0
    %5844 = vmatprep.subr.mxu0 0.0
    %5845 = vmatpush2.xpose.msra.mxu0 0.0
    %5846 = vmatprep.subr.mxu0 0.0
    %5847 = vmatpush2.xpose.msra.mxu0 0.0
    %5848 = vmatprep.subr.mxu0 0.0
    %5849 = vmatpush2.xpose.msra.mxu0 0.0
    %5850 = vmatprep.subr.mxu0 0.0
    %5851 = vmatpush2.xpose.msra.mxu0 0.0
    %5852 = vmatprep.subr.mxu0 0.0
    %5853 = vmatpush2.xpose.msra.mxu0 0.0
    %5854 = vmatprep.subr.mxu0 0.0
    %5855 = vmatpush2.xpose.msra.mxu0 0.0
    %5856 = vmatprep.subr.mxu0 0.0
    %5857 = vmatpush2.xpose.msra.mxu0 0.0
    %5858 = vmatprep.subr.mxu0 0.0
    %5859 = vmatpush2.xpose.msra.mxu0 0.0
    %5860 = vmatprep.subr.mxu0 0.0
    %5861 = vmatpush2.xpose.msra.mxu0 0.0
    %5862 = vmatprep.mubr.f32.mxu0 0.0
    %5863 = vmatmul.mubr.f32.gmra.mxu0 %v5794
    %v5864 = vpop.f32.mrf.mxu0
    %v5865 = vadd.f32 %v245, %v5864
    %v5866 = vpop.f32.mrf.mxu0
    %5867 = vdwg.mxu0
    %5868 = vrot.lane.b32.xlu0 %v5483, 120
    %v5869 = vpop.permute.xlu0 %5868
    %v5870 = vsel %vm373, %v5483, 0
    %v5872 = vsel %vm373, %v5869, 0
    %5874 = vmatprep.subr.mxu0 0.0
    %5875 = vmatpush1.xpose.msra.mxu0 0.0
    %5876 = vmatprep.subr.mxu0 0.0
    %5877 = vmatpush1.xpose.msra.mxu0 0.0
    %5878 = vmatprep.subr.mxu0 0.0
    %5879 = vmatpush1.xpose.msra.mxu0 0.0
    %5880 = vmatprep.subr.mxu0 0.0
    %5881 = vmatpush1.xpose.msra.mxu0 0.0
    %5882 = vmatprep.subr.mxu0 0.0
    %5883 = vmatpush1.xpose.msra.mxu0 0.0
    %5884 = vmatprep.subr.mxu0 0.0
    %5885 = vmatpush1.xpose.msra.mxu0 0.0
    %5886 = vmatprep.subr.mxu0 0.0
    %5887 = vmatpush1.xpose.msra.mxu0 0.0
    %5888 = vmatprep.subr.mxu0 0.0
    %5889 = vmatpush1.xpose.msra.mxu0 0.0
    %5890 = vmatprep.subr.mxu0 0.0
    %5891 = vmatpush1.xpose.msra.mxu0 0.0
    %5892 = vmatprep.subr.mxu0 0.0
    %5893 = vmatpush1.xpose.msra.mxu0 0.0
    %5894 = vmatprep.subr.mxu0 0.0
    %5895 = vmatpush1.xpose.msra.mxu0 0.0
    %5896 = vmatprep.subr.mxu0 0.0
    %5897 = vmatpush1.xpose.msra.mxu0 0.0
    %5898 = vmatprep.subr.mxu0 0.0
    %5899 = vmatpush1.xpose.msra.mxu0 0.0
    %5900 = vmatprep.subr.mxu0 0.0
    %5901 = vmatpush1.xpose.msra.mxu0 0.0
    %5902 = vmatprep.subr.mxu0 0.0
    %5903 = vmatpush1.xpose.msra.mxu0 0.0
    %5904 = vmatprep.subr.mxu0 0.0
    %5905 = vmatpush1.xpose.msra.mxu0 %v5872
    %5906 = vmatprep.subr.mxu0 0.0
    %5907 = vmatpush2.xpose.msra.mxu0 0.0
    %5908 = vmatprep.subr.mxu0 0.0
    %5909 = vmatpush2.xpose.msra.mxu0 0.0
    %5910 = vmatprep.subr.mxu0 0.0
    %5911 = vmatpush2.xpose.msra.mxu0 0.0
    %5912 = vmatprep.subr.mxu0 0.0
    %5913 = vmatpush2.xpose.msra.mxu0 0.0
    %5914 = vmatprep.subr.mxu0 0.0
    %5915 = vmatpush2.xpose.msra.mxu0 0.0
    %5916 = vmatprep.subr.mxu0 0.0
    %5917 = vmatpush2.xpose.msra.mxu0 0.0
    %5918 = vmatprep.subr.mxu0 0.0
    %5919 = vmatpush2.xpose.msra.mxu0 0.0
    %5920 = vmatprep.subr.mxu0 0.0
    %5921 = vmatpush2.xpose.msra.mxu0 0.0
    %5922 = vmatprep.subr.mxu0 0.0
    %5923 = vmatpush2.xpose.msra.mxu0 0.0
    %5924 = vmatprep.subr.mxu0 0.0
    %5925 = vmatpush2.xpose.msra.mxu0 0.0
    %5926 = vmatprep.subr.mxu0 0.0
    %5927 = vmatpush2.xpose.msra.mxu0 0.0
    %5928 = vmatprep.subr.mxu0 0.0
    %5929 = vmatpush2.xpose.msra.mxu0 0.0
    %5930 = vmatprep.subr.mxu0 0.0
    %5931 = vmatpush2.xpose.msra.mxu0 0.0
    %5932 = vmatprep.subr.mxu0 0.0
    %5933 = vmatpush2.xpose.msra.mxu0 0.0
    %5934 = vmatprep.subr.mxu0 0.0
    %5935 = vmatpush2.xpose.msra.mxu0 0.0
    %5936 = vmatprep.subr.mxu0 0.0
    %5937 = vmatpush2.xpose.msra.mxu0 0.0
    %5938 = vmatprep.mubr.f32.mxu0 0.0
    %5939 = vmatmul.mubr.f32.gmra.mxu0 %v5870
    %v5940 = vpop.f32.mrf.mxu0
    %v5941 = vadd.f32 %v249, %v5940
    %v5942 = vpop.f32.mrf.mxu0
    %5943 = vdwg.mxu0
    %5944 = vrot.lane.b32.xlu0 %v5485, 120
    %v5945 = vpop.permute.xlu0 %5944
    %v5946 = vsel %vm373, %v5485, 0
    %v5948 = vsel %vm373, %v5945, 0
    %5950 = vmatprep.subr.mxu0 0.0
    %5951 = vmatpush1.xpose.msra.mxu0 0.0
    %5952 = vmatprep.subr.mxu0 0.0
    %5953 = vmatpush1.xpose.msra.mxu0 0.0
    %5954 = vmatprep.subr.mxu0 0.0
    %5955 = vmatpush1.xpose.msra.mxu0 0.0
    %5956 = vmatprep.subr.mxu0 0.0
    %5957 = vmatpush1.xpose.msra.mxu0 0.0
    %5958 = vmatprep.subr.mxu0 0.0
    %5959 = vmatpush1.xpose.msra.mxu0 0.0
    %5960 = vmatprep.subr.mxu0 0.0
    %5961 = vmatpush1.xpose.msra.mxu0 0.0
    %5962 = vmatprep.subr.mxu0 0.0
    %5963 = vmatpush1.xpose.msra.mxu0 0.0
    %5964 = vmatprep.subr.mxu0 0.0
    %5965 = vmatpush1.xpose.msra.mxu0 0.0
    %5966 = vmatprep.subr.mxu0 0.0
    %5967 = vmatpush1.xpose.msra.mxu0 0.0
    %5968 = vmatprep.subr.mxu0 0.0
    %5969 = vmatpush1.xpose.msra.mxu0 0.0
    %5970 = vmatprep.subr.mxu0 0.0
    %5971 = vmatpush1.xpose.msra.mxu0 0.0
    %5972 = vmatprep.subr.mxu0 0.0
    %5973 = vmatpush1.xpose.msra.mxu0 0.0
    %5974 = vmatprep.subr.mxu0 0.0
    %5975 = vmatpush1.xpose.msra.mxu0 0.0
    %5976 = vmatprep.subr.mxu0 0.0
    %5977 = vmatpush1.xpose.msra.mxu0 0.0
    %5978 = vmatprep.subr.mxu0 0.0
    %5979 = vmatpush1.xpose.msra.mxu0 0.0
    %5980 = vmatprep.subr.mxu0 0.0
    %5981 = vmatpush1.xpose.msra.mxu0 %v5948
    %5982 = vmatprep.subr.mxu0 0.0
    %5983 = vmatpush2.xpose.msra.mxu0 0.0
    %5984 = vmatprep.subr.mxu0 0.0
    %5985 = vmatpush2.xpose.msra.mxu0 0.0
    %5986 = vmatprep.subr.mxu0 0.0
    %5987 = vmatpush2.xpose.msra.mxu0 0.0
    %5988 = vmatprep.subr.mxu0 0.0
    %5989 = vmatpush2.xpose.msra.mxu0 0.0
    %5990 = vmatprep.subr.mxu0 0.0
    %5991 = vmatpush2.xpose.msra.mxu0 0.0
    %5992 = vmatprep.subr.mxu0 0.0
    %5993 = vmatpush2.xpose.msra.mxu0 0.0
    %5994 = vmatprep.subr.mxu0 0.0
    %5995 = vmatpush2.xpose.msra.mxu0 0.0
    %5996 = vmatprep.subr.mxu0 0.0
    %5997 = vmatpush2.xpose.msra.mxu0 0.0
    %5998 = vmatprep.subr.mxu0 0.0
    %5999 = vmatpush2.xpose.msra.mxu0 0.0
    %6000 = vmatprep.subr.mxu0 0.0
    %6001 = vmatpush2.xpose.msra.mxu0 0.0
    %6002 = vmatprep.subr.mxu0 0.0
    %6003 = vmatpush2.xpose.msra.mxu0 0.0
    %6004 = vmatprep.subr.mxu0 0.0
    %6005 = vmatpush2.xpose.msra.mxu0 0.0
    %6006 = vmatprep.subr.mxu0 0.0
    %6007 = vmatpush2.xpose.msra.mxu0 0.0
    %6008 = vmatprep.subr.mxu0 0.0
    %6009 = vmatpush2.xpose.msra.mxu0 0.0
    %6010 = vmatprep.subr.mxu0 0.0
    %6011 = vmatpush2.xpose.msra.mxu0 0.0
    %6012 = vmatprep.subr.mxu0 0.0
    %6013 = vmatpush2.xpose.msra.mxu0 0.0
    %6014 = vmatprep.mubr.f32.mxu0 0.0
    %6015 = vmatmul.mubr.f32.gmra.mxu0 %v5946
    %v6016 = vpop.f32.mrf.mxu0
    %v6017 = vadd.f32 %v253, %v6016
    %v6018 = vpop.f32.mrf.mxu0
    %6019 = vdwg.mxu0
    %6020 = vrot.lane.b32.xlu0 %v5487, 120
    %v6021 = vpop.permute.xlu0 %6020
    %v6022 = vsel %vm373, %v5487, 0
    %v6024 = vsel %vm373, %v6021, 0
    %6026 = vmatprep.subr.mxu0 0.0
    %6027 = vmatpush1.xpose.msra.mxu0 0.0
    %6028 = vmatprep.subr.mxu0 0.0
    %6029 = vmatpush1.xpose.msra.mxu0 0.0
    %6030 = vmatprep.subr.mxu0 0.0
    %6031 = vmatpush1.xpose.msra.mxu0 0.0
    %6032 = vmatprep.subr.mxu0 0.0
    %6033 = vmatpush1.xpose.msra.mxu0 0.0
    %6034 = vmatprep.subr.mxu0 0.0
    %6035 = vmatpush1.xpose.msra.mxu0 0.0
    %6036 = vmatprep.subr.mxu0 0.0
    %6037 = vmatpush1.xpose.msra.mxu0 0.0
    %6038 = vmatprep.subr.mxu0 0.0
    %6039 = vmatpush1.xpose.msra.mxu0 0.0
    %6040 = vmatprep.subr.mxu0 0.0
    %6041 = vmatpush1.xpose.msra.mxu0 0.0
    %6042 = vmatprep.subr.mxu0 0.0
    %6043 = vmatpush1.xpose.msra.mxu0 0.0
    %6044 = vmatprep.subr.mxu0 0.0
    %6045 = vmatpush1.xpose.msra.mxu0 0.0
    %6046 = vmatprep.subr.mxu0 0.0
    %6047 = vmatpush1.xpose.msra.mxu0 0.0
    %6048 = vmatprep.subr.mxu0 0.0
    %6049 = vmatpush1.xpose.msra.mxu0 0.0
    %6050 = vmatprep.subr.mxu0 0.0
    %6051 = vmatpush1.xpose.msra.mxu0 0.0
    %6052 = vmatprep.subr.mxu0 0.0
    %6053 = vmatpush1.xpose.msra.mxu0 0.0
    %6054 = vmatprep.subr.mxu0 0.0
    %6055 = vmatpush1.xpose.msra.mxu0 0.0
    %6056 = vmatprep.subr.mxu0 0.0
    %6057 = vmatpush1.xpose.msra.mxu0 %v6024
    %6058 = vmatprep.subr.mxu0 0.0
    %6059 = vmatpush2.xpose.msra.mxu0 0.0
    %6060 = vmatprep.subr.mxu0 0.0
    %6061 = vmatpush2.xpose.msra.mxu0 0.0
    %6062 = vmatprep.subr.mxu0 0.0
    %6063 = vmatpush2.xpose.msra.mxu0 0.0
    %6064 = vmatprep.subr.mxu0 0.0
    %6065 = vmatpush2.xpose.msra.mxu0 0.0
    %6066 = vmatprep.subr.mxu0 0.0
    %6067 = vmatpush2.xpose.msra.mxu0 0.0
    %6068 = vmatprep.subr.mxu0 0.0
    %6069 = vmatpush2.xpose.msra.mxu0 0.0
    %6070 = vmatprep.subr.mxu0 0.0
    %6071 = vmatpush2.xpose.msra.mxu0 0.0
    %6072 = vmatprep.subr.mxu0 0.0
    %6073 = vmatpush2.xpose.msra.mxu0 0.0
    %6074 = vmatprep.subr.mxu0 0.0
    %6075 = vmatpush2.xpose.msra.mxu0 0.0
    %6076 = vmatprep.subr.mxu0 0.0
    %6077 = vmatpush2.xpose.msra.mxu0 0.0
    %6078 = vmatprep.subr.mxu0 0.0
    %6079 = vmatpush2.xpose.msra.mxu0 0.0
    %6080 = vmatprep.subr.mxu0 0.0
    %6081 = vmatpush2.xpose.msra.mxu0 0.0
    %6082 = vmatprep.subr.mxu0 0.0
    %6083 = vmatpush2.xpose.msra.mxu0 0.0
    %6084 = vmatprep.subr.mxu0 0.0
    %6085 = vmatpush2.xpose.msra.mxu0 0.0
    %6086 = vmatprep.subr.mxu0 0.0
    %6087 = vmatpush2.xpose.msra.mxu0 0.0
    %6088 = vmatprep.subr.mxu0 0.0
    %6089 = vmatpush2.xpose.msra.mxu0 0.0
    %6090 = vmatprep.mubr.f32.mxu0 0.0
    %6091 = vmatmul.mubr.f32.gmra.mxu0 %v6022
    %v6092 = vpop.f32.mrf.mxu0
    %v6093 = vadd.f32 %v257, %v6092
    %v6094 = vpop.f32.mrf.mxu0
    %6095 = vdwg.mxu0
    %v6096 = vsel %vm373, %v5561, -inf
    %6097 = vmax.xlane.f32.xlu0 %v6096
    %v6098 = vpop.xlane.xlu0 %6097
    %v6099 = vsel %vm373, %v5637, -inf
    %6100 = vmax.xlane.f32.xlu0 %v6099
    %v6101 = vpop.xlane.xlu0 %6100
    %v6102 = vsel %vm373, %v5713, -inf
    %6103 = vmax.xlane.f32.xlu0 %v6102
    %v6104 = vpop.xlane.xlu0 %6103
    %v6105 = vsel %vm373, %v5789, -inf
    %6106 = vmax.xlane.f32.xlu0 %v6105
    %v6107 = vpop.xlane.xlu0 %6106
    %v6108 = vsel %vm373, %v5865, -inf
    %6109 = vmax.xlane.f32.xlu0 %v6108
    %v6110 = vpop.xlane.xlu0 %6109
    %v6111 = vsel %vm373, %v5941, -inf
    %6112 = vmax.xlane.f32.xlu0 %v6111
    %v6113 = vpop.xlane.xlu0 %6112
    %v6114 = vsel %vm373, %v6017, -inf
    %6115 = vmax.xlane.f32.xlu0 %v6114
    %v6116 = vpop.xlane.xlu0 %6115
    %v6117 = vsel %vm373, %v6093, -inf
    %6118 = vmax.xlane.f32.xlu0 %v6117
    %v6119 = vpop.xlane.xlu0 %6118
    %v6120 = vsub.f32 %v5561, %v6098
    %v6121 = vsub.f32 %v5637, %v6101
    %v6122 = vsub.f32 %v5713, %v6104
    %v6123 = vsub.f32 %v5789, %v6107
    %v6124 = vsub.f32 %v5865, %v6110
    %v6125 = vsub.f32 %v5941, %v6113
    %v6126 = vsub.f32 %v6017, %v6116
    %v6127 = vsub.f32 %v6093, %v6119
    %v6128 = vmul.f32 %v6120, 1.442695
    %v6129 = vpow.pop %v6128
    %v6130 = vmul.f32 %v6121, 1.442695
    %v6131 = vpow.pop %v6130
    %v6132 = vmul.f32 %v6122, 1.442695
    %v6133 = vpow.pop %v6132
    %v6134 = vmul.f32 %v6123, 1.442695
    %v6135 = vpow.pop %v6134
    %v6136 = vmul.f32 %v6124, 1.442695
    %v6137 = vpow.pop %v6136
    %v6138 = vmul.f32 %v6125, 1.442695
    %v6139 = vpow.pop %v6138
    %v6140 = vmul.f32 %v6126, 1.442695
    %v6141 = vpow.pop %v6140
    %v6142 = vmul.f32 %v6127, 1.442695
    %v6143 = vpow.pop %v6142
    %v6144 = vsel %vm373, %v6129, 0.0
    %6145 = vadd.xlane.f32.xlu0 %v6144
    %v6146 = vpop.xlane.xlu0 %6145
    %v6147 = vsel %vm373, %v6131, 0.0
    %6148 = vadd.xlane.f32.xlu0 %v6147
    %v6149 = vpop.xlane.xlu0 %6148
    %v6150 = vsel %vm373, %v6133, 0.0
    %6151 = vadd.xlane.f32.xlu0 %v6150
    %v6152 = vpop.xlane.xlu0 %6151
    %v6153 = vsel %vm373, %v6135, 0.0
    %6154 = vadd.xlane.f32.xlu0 %v6153
    %v6155 = vpop.xlane.xlu0 %6154
    %v6156 = vsel %vm373, %v6137, 0.0
    %6157 = vadd.xlane.f32.xlu0 %v6156
    %v6158 = vpop.xlane.xlu0 %6157
    %v6159 = vsel %vm373, %v6139, 0.0
    %6160 = vadd.xlane.f32.xlu0 %v6159
    %v6161 = vpop.xlane.xlu0 %6160
    %v6162 = vsel %vm373, %v6141, 0.0
    %6163 = vadd.xlane.f32.xlu0 %v6162
    %v6164 = vpop.xlane.xlu0 %6163
    %v6165 = vsel %vm373, %v6143, 0.0
    %6166 = vadd.xlane.f32.xlu0 %v6165
    %v6167 = vpop.xlane.xlu0 %6166
    %v6168 = vrcp.pop %v6146
    %v6169 = vrcp.pop %v6149
    %v6170 = vrcp.pop %v6152
    %v6171 = vrcp.pop %v6155
    %v6172 = vrcp.pop %v6158
    %v6173 = vrcp.pop %v6161
    %v6174 = vrcp.pop %v6164
    %v6175 = vrcp.pop %v6167
    %v6176 = vmul.f32 %v6129, %v6168
    %v6177 = vmul.f32 %v6131, %v6169
    %v6178 = vmul.f32 %v6133, %v6170
    %v6179 = vmul.f32 %v6135, %v6171
    %v6180 = vmul.f32 %v6137, %v6172
    %v6181 = vmul.f32 %v6139, %v6173
    %v6182 = vmul.f32 %v6141, %v6174
    %v6183 = vmul.f32 %v6143, %v6175
    %6184 = vrot.lane.b32.xlu0 %v5458, 112
    %v6185 = vpop.permute.xlu0 %6184
    %v6188 = vsel %vm373, %v6176, 0
    %6190 = vmatprep.subr.mxu0 0.0
    %6191 = vmatpush1.msra.mxu0 0.0
    %6192 = vmatprep.subr.mxu0 0.0
    %6193 = vmatpush1.msra.mxu0 0.0
    %6194 = vmatprep.subr.mxu0 0.0
    %6195 = vmatpush1.msra.mxu0 0.0
    %6196 = vmatprep.subr.mxu0 0.0
    %6197 = vmatpush1.msra.mxu0 0.0
    %6198 = vmatprep.subr.mxu0 0.0
    %6199 = vmatpush1.msra.mxu0 0.0
    %6200 = vmatprep.subr.mxu0 0.0
    %6201 = vmatpush1.msra.mxu0 0.0
    %6202 = vmatprep.subr.mxu0 0.0
    %6203 = vmatpush1.msra.mxu0 0.0
    %6204 = vmatprep.subr.mxu0 0.0
    %6205 = vmatpush1.msra.mxu0 0.0
    %6206 = vmatprep.subr.mxu0 0.0
    %6207 = vmatpush1.msra.mxu0 0.0
    %6208 = vmatprep.subr.mxu0 0.0
    %6209 = vmatpush1.msra.mxu0 0.0
    %6210 = vmatprep.subr.mxu0 0.0
    %6211 = vmatpush1.msra.mxu0 0.0
    %6212 = vmatprep.subr.mxu0 0.0
    %6213 = vmatpush1.msra.mxu0 0.0
    %6214 = vmatprep.subr.mxu0 0.0
    %6215 = vmatpush1.msra.mxu0 0.0
    %6216 = vmatprep.subr.mxu0 0.0
    %6217 = vmatpush1.msra.mxu0 0.0
    %6218 = vmatprep.subr.mxu0 0.0
    %6219 = vmatpush1.msra.mxu0 0.0
    %6220 = vmatprep.subr.mxu0 0.0
    %6221 = vmatpush1.msra.mxu0 %v6185
    %6222 = vmatprep.subr.mxu0 0.0
    %6223 = vmatpush2.msra.mxu0 0.0
    %6224 = vmatprep.subr.mxu0 0.0
    %6225 = vmatpush2.msra.mxu0 0.0
    %6226 = vmatprep.subr.mxu0 0.0
    %6227 = vmatpush2.msra.mxu0 0.0
    %6228 = vmatprep.subr.mxu0 0.0
    %6229 = vmatpush2.msra.mxu0 0.0
    %6230 = vmatprep.subr.mxu0 0.0
    %6231 = vmatpush2.msra.mxu0 0.0
    %6232 = vmatprep.subr.mxu0 0.0
    %6233 = vmatpush2.msra.mxu0 0.0
    %6234 = vmatprep.subr.mxu0 0.0
    %6235 = vmatpush2.msra.mxu0 0.0
    %6236 = vmatprep.subr.mxu0 0.0
    %6237 = vmatpush2.msra.mxu0 0.0
    %6238 = vmatprep.subr.mxu0 0.0
    %6239 = vmatpush2.msra.mxu0 0.0
    %6240 = vmatprep.subr.mxu0 0.0
    %6241 = vmatpush2.msra.mxu0 0.0
    %6242 = vmatprep.subr.mxu0 0.0
    %6243 = vmatpush2.msra.mxu0 0.0
    %6244 = vmatprep.subr.mxu0 0.0
    %6245 = vmatpush2.msra.mxu0 0.0
    %6246 = vmatprep.subr.mxu0 0.0
    %6247 = vmatpush2.msra.mxu0 0.0
    %6248 = vmatprep.subr.mxu0 0.0
    %6249 = vmatpush2.msra.mxu0 0.0
    %6250 = vmatprep.subr.mxu0 0.0
    %6251 = vmatpush2.msra.mxu0 0.0
    %6252 = vmatprep.subr.mxu0 0.0
    %6253 = vmatpush2.msra.mxu0 0.0
    %6254 = vmatprep.mubr.f32.mxu0 0.0
    %6255 = vmatmul.mubr.f32.gmra.mxu0 %v6188
    %v6256 = vpop.f32.mrf.mxu0
    %v6257 = vadd.f32 0.0, %v6256
    %v6258 = vpop.f32.mrf.mxu0
    %6259 = vdwg.mxu0
    %6260 = vrot.lane.b32.xlu0 %v5462, 112
    %v6261 = vpop.permute.xlu0 %6260
    %v6264 = vsel %vm373, %v6177, 0
    %6266 = vmatprep.subr.mxu0 0.0
    %6267 = vmatpush1.msra.mxu0 0.0
    %6268 = vmatprep.subr.mxu0 0.0
    %6269 = vmatpush1.msra.mxu0 0.0
    %6270 = vmatprep.subr.mxu0 0.0
    %6271 = vmatpush1.msra.mxu0 0.0
    %6272 = vmatprep.subr.mxu0 0.0
    %6273 = vmatpush1.msra.mxu0 0.0
    %6274 = vmatprep.subr.mxu0 0.0
    %6275 = vmatpush1.msra.mxu0 0.0
    %6276 = vmatprep.subr.mxu0 0.0
    %6277 = vmatpush1.msra.mxu0 0.0
    %6278 = vmatprep.subr.mxu0 0.0
    %6279 = vmatpush1.msra.mxu0 0.0
    %6280 = vmatprep.subr.mxu0 0.0
    %6281 = vmatpush1.msra.mxu0 0.0
    %6282 = vmatprep.subr.mxu0 0.0
    %6283 = vmatpush1.msra.mxu0 0.0
    %6284 = vmatprep.subr.mxu0 0.0
    %6285 = vmatpush1.msra.mxu0 0.0
    %6286 = vmatprep.subr.mxu0 0.0
    %6287 = vmatpush1.msra.mxu0 0.0
    %6288 = vmatprep.subr.mxu0 0.0
    %6289 = vmatpush1.msra.mxu0 0.0
    %6290 = vmatprep.subr.mxu0 0.0
    %6291 = vmatpush1.msra.mxu0 0.0
    %6292 = vmatprep.subr.mxu0 0.0
    %6293 = vmatpush1.msra.mxu0 0.0
    %6294 = vmatprep.subr.mxu0 0.0
    %6295 = vmatpush1.msra.mxu0 0.0
    %6296 = vmatprep.subr.mxu0 0.0
    %6297 = vmatpush1.msra.mxu0 %v6261
    %6298 = vmatprep.subr.mxu0 0.0
    %6299 = vmatpush2.msra.mxu0 0.0
    %6300 = vmatprep.subr.mxu0 0.0
    %6301 = vmatpush2.msra.mxu0 0.0
    %6302 = vmatprep.subr.mxu0 0.0
    %6303 = vmatpush2.msra.mxu0 0.0
    %6304 = vmatprep.subr.mxu0 0.0
    %6305 = vmatpush2.msra.mxu0 0.0
    %6306 = vmatprep.subr.mxu0 0.0
    %6307 = vmatpush2.msra.mxu0 0.0
    %6308 = vmatprep.subr.mxu0 0.0
    %6309 = vmatpush2.msra.mxu0 0.0
    %6310 = vmatprep.subr.mxu0 0.0
    %6311 = vmatpush2.msra.mxu0 0.0
    %6312 = vmatprep.subr.mxu0 0.0
    %6313 = vmatpush2.msra.mxu0 0.0
    %6314 = vmatprep.subr.mxu0 0.0
    %6315 = vmatpush2.msra.mxu0 0.0
    %6316 = vmatprep.subr.mxu0 0.0
    %6317 = vmatpush2.msra.mxu0 0.0
    %6318 = vmatprep.subr.mxu0 0.0
    %6319 = vmatpush2.msra.mxu0 0.0
    %6320 = vmatprep.subr.mxu0 0.0
    %6321 = vmatpush2.msra.mxu0 0.0
    %6322 = vmatprep.subr.mxu0 0.0
    %6323 = vmatpush2.msra.mxu0 0.0
    %6324 = vmatprep.subr.mxu0 0.0
    %6325 = vmatpush2.msra.mxu0 0.0
    %6326 = vmatprep.subr.mxu0 0.0
    %6327 = vmatpush2.msra.mxu0 0.0
    %6328 = vmatprep.subr.mxu0 0.0
    %6329 = vmatpush2.msra.mxu0 0.0
    %6330 = vmatprep.mubr.f32.mxu0 0.0
    %6331 = vmatmul.mubr.f32.gmra.mxu0 %v6264
    %v6332 = vpop.f32.mrf.mxu0
    %v6333 = vadd.f32 0.0, %v6332
    %v6334 = vpop.f32.mrf.mxu0
    %6335 = vdwg.mxu0
    %6336 = vrot.lane.b32.xlu0 %v5469, 112
    %v6337 = vpop.permute.xlu0 %6336
    %v6340 = vsel %vm373, %v6178, 0
    %6342 = vmatprep.subr.mxu0 0.0
    %6343 = vmatpush1.msra.mxu0 0.0
    %6344 = vmatprep.subr.mxu0 0.0
    %6345 = vmatpush1.msra.mxu0 0.0
    %6346 = vmatprep.subr.mxu0 0.0
    %6347 = vmatpush1.msra.mxu0 0.0
    %6348 = vmatprep.subr.mxu0 0.0
    %6349 = vmatpush1.msra.mxu0 0.0
    %6350 = vmatprep.subr.mxu0 0.0
    %6351 = vmatpush1.msra.mxu0 0.0
    %6352 = vmatprep.subr.mxu0 0.0
    %6353 = vmatpush1.msra.mxu0 0.0
    %6354 = vmatprep.subr.mxu0 0.0
    %6355 = vmatpush1.msra.mxu0 0.0
    %6356 = vmatprep.subr.mxu0 0.0
    %6357 = vmatpush1.msra.mxu0 0.0
    %6358 = vmatprep.subr.mxu0 0.0
    %6359 = vmatpush1.msra.mxu0 0.0
    %6360 = vmatprep.subr.mxu0 0.0
    %6361 = vmatpush1.msra.mxu0 0.0
    %6362 = vmatprep.subr.mxu0 0.0
    %6363 = vmatpush1.msra.mxu0 0.0
    %6364 = vmatprep.subr.mxu0 0.0
    %6365 = vmatpush1.msra.mxu0 0.0
    %6366 = vmatprep.subr.mxu0 0.0
    %6367 = vmatpush1.msra.mxu0 0.0
    %6368 = vmatprep.subr.mxu0 0.0
    %6369 = vmatpush1.msra.mxu0 0.0
    %6370 = vmatprep.subr.mxu0 0.0
    %6371 = vmatpush1.msra.mxu0 0.0
    %6372 = vmatprep.subr.mxu0 0.0
    %6373 = vmatpush1.msra.mxu0 %v6337
    %6374 = vmatprep.subr.mxu0 0.0
    %6375 = vmatpush2.msra.mxu0 0.0
    %6376 = vmatprep.subr.mxu0 0.0
    %6377 = vmatpush2.msra.mxu0 0.0
    %6378 = vmatprep.subr.mxu0 0.0
    %6379 = vmatpush2.msra.mxu0 0.0
    %6380 = vmatprep.subr.mxu0 0.0
    %6381 = vmatpush2.msra.mxu0 0.0
    %6382 = vmatprep.subr.mxu0 0.0
    %6383 = vmatpush2.msra.mxu0 0.0
    %6384 = vmatprep.subr.mxu0 0.0
    %6385 = vmatpush2.msra.mxu0 0.0
    %6386 = vmatprep.subr.mxu0 0.0
    %6387 = vmatpush2.msra.mxu0 0.0
    %6388 = vmatprep.subr.mxu0 0.0
    %6389 = vmatpush2.msra.mxu0 0.0
    %6390 = vmatprep.subr.mxu0 0.0
    %6391 = vmatpush2.msra.mxu0 0.0
    %6392 = vmatprep.subr.mxu0 0.0
    %6393 = vmatpush2.msra.mxu0 0.0
    %6394 = vmatprep.subr.mxu0 0.0
    %6395 = vmatpush2.msra.mxu0 0.0
    %6396 = vmatprep.subr.mxu0 0.0
    %6397 = vmatpush2.msra.mxu0 0.0
    %6398 = vmatprep.subr.mxu0 0.0
    %6399 = vmatpush2.msra.mxu0 0.0
    %6400 = vmatprep.subr.mxu0 0.0
    %6401 = vmatpush2.msra.mxu0 0.0
    %6402 = vmatprep.subr.mxu0 0.0
    %6403 = vmatpush2.msra.mxu0 0.0
    %6404 = vmatprep.subr.mxu0 0.0
    %6405 = vmatpush2.msra.mxu0 0.0
    %6406 = vmatprep.mubr.f32.mxu0 0.0
    %6407 = vmatmul.mubr.f32.gmra.mxu0 %v6340
    %v6408 = vpop.f32.mrf.mxu0
    %v6409 = vadd.f32 0.0, %v6408
    %v6410 = vpop.f32.mrf.mxu0
    %6411 = vdwg.mxu0
    %6412 = vrot.lane.b32.xlu0 %v5471, 112
    %v6413 = vpop.permute.xlu0 %6412
    %v6416 = vsel %vm373, %v6179, 0
    %6418 = vmatprep.subr.mxu0 0.0
    %6419 = vmatpush1.msra.mxu0 0.0
    %6420 = vmatprep.subr.mxu0 0.0
    %6421 = vmatpush1.msra.mxu0 0.0
    %6422 = vmatprep.subr.mxu0 0.0
    %6423 = vmatpush1.msra.mxu0 0.0
    %6424 = vmatprep.subr.mxu0 0.0
    %6425 = vmatpush1.msra.mxu0 0.0
    %6426 = vmatprep.subr.mxu0 0.0
    %6427 = vmatpush1.msra.mxu0 0.0
    %6428 = vmatprep.subr.mxu0 0.0
    %6429 = vmatpush1.msra.mxu0 0.0
    %6430 = vmatprep.subr.mxu0 0.0
    %6431 = vmatpush1.msra.mxu0 0.0
    %6432 = vmatprep.subr.mxu0 0.0
    %6433 = vmatpush1.msra.mxu0 0.0
    %6434 = vmatprep.subr.mxu0 0.0
    %6435 = vmatpush1.msra.mxu0 0.0
    %6436 = vmatprep.subr.mxu0 0.0
    %6437 = vmatpush1.msra.mxu0 0.0
    %6438 = vmatprep.subr.mxu0 0.0
    %6439 = vmatpush1.msra.mxu0 0.0
    %6440 = vmatprep.subr.mxu0 0.0
    %6441 = vmatpush1.msra.mxu0 0.0
    %6442 = vmatprep.subr.mxu0 0.0
    %6443 = vmatpush1.msra.mxu0 0.0
    %6444 = vmatprep.subr.mxu0 0.0
    %6445 = vmatpush1.msra.mxu0 0.0
    %6446 = vmatprep.subr.mxu0 0.0
    %6447 = vmatpush1.msra.mxu0 0.0
    %6448 = vmatprep.subr.mxu0 0.0
    %6449 = vmatpush1.msra.mxu0 %v6413
    %6450 = vmatprep.subr.mxu0 0.0
    %6451 = vmatpush2.msra.mxu0 0.0
    %6452 = vmatprep.subr.mxu0 0.0
    %6453 = vmatpush2.msra.mxu0 0.0
    %6454 = vmatprep.subr.mxu0 0.0
    %6455 = vmatpush2.msra.mxu0 0.0
    %6456 = vmatprep.subr.mxu0 0.0
    %6457 = vmatpush2.msra.mxu0 0.0
    %6458 = vmatprep.subr.mxu0 0.0
    %6459 = vmatpush2.msra.mxu0 0.0
    %6460 = vmatprep.subr.mxu0 0.0
    %6461 = vmatpush2.msra.mxu0 0.0
    %6462 = vmatprep.subr.mxu0 0.0
    %6463 = vmatpush2.msra.mxu0 0.0
    %6464 = vmatprep.subr.mxu0 0.0
    %6465 = vmatpush2.msra.mxu0 0.0
    %6466 = vmatprep.subr.mxu0 0.0
    %6467 = vmatpush2.msra.mxu0 0.0
    %6468 = vmatprep.subr.mxu0 0.0
    %6469 = vmatpush2.msra.mxu0 0.0
    %6470 = vmatprep.subr.mxu0 0.0
    %6471 = vmatpush2.msra.mxu0 0.0
    %6472 = vmatprep.subr.mxu0 0.0
    %6473 = vmatpush2.msra.mxu0 0.0
    %6474 = vmatprep.subr.mxu0 0.0
    %6475 = vmatpush2.msra.mxu0 0.0
    %6476 = vmatprep.subr.mxu0 0.0
    %6477 = vmatpush2.msra.mxu0 0.0
    %6478 = vmatprep.subr.mxu0 0.0
    %6479 = vmatpush2.msra.mxu0 0.0
    %6480 = vmatprep.subr.mxu0 0.0
    %6481 = vmatpush2.msra.mxu0 0.0
    %6482 = vmatprep.mubr.f32.mxu0 0.0
    %6483 = vmatmul.mubr.f32.gmra.mxu0 %v6416
    %v6484 = vpop.f32.mrf.mxu0
    %v6485 = vadd.f32 0.0, %v6484
    %v6486 = vpop.f32.mrf.mxu0
    %6487 = vdwg.mxu0
    %6488 = vrot.lane.b32.xlu0 %v5482, 112
    %v6489 = vpop.permute.xlu0 %6488
    %v6492 = vsel %vm373, %v6180, 0
    %6494 = vmatprep.subr.mxu0 0.0
    %6495 = vmatpush1.msra.mxu0 0.0
    %6496 = vmatprep.subr.mxu0 0.0
    %6497 = vmatpush1.msra.mxu0 0.0
    %6498 = vmatprep.subr.mxu0 0.0
    %6499 = vmatpush1.msra.mxu0 0.0
    %6500 = vmatprep.subr.mxu0 0.0
    %6501 = vmatpush1.msra.mxu0 0.0
    %6502 = vmatprep.subr.mxu0 0.0
    %6503 = vmatpush1.msra.mxu0 0.0
    %6504 = vmatprep.subr.mxu0 0.0
    %6505 = vmatpush1.msra.mxu0 0.0
    %6506 = vmatprep.subr.mxu0 0.0
    %6507 = vmatpush1.msra.mxu0 0.0
    %6508 = vmatprep.subr.mxu0 0.0
    %6509 = vmatpush1.msra.mxu0 0.0
    %6510 = vmatprep.subr.mxu0 0.0
    %6511 = vmatpush1.msra.mxu0 0.0
    %6512 = vmatprep.subr.mxu0 0.0
    %6513 = vmatpush1.msra.mxu0 0.0
    %6514 = vmatprep.subr.mxu0 0.0
    %6515 = vmatpush1.msra.mxu0 0.0
    %6516 = vmatprep.subr.mxu0 0.0
    %6517 = vmatpush1.msra.mxu0 0.0
    %6518 = vmatprep.subr.mxu0 0.0
    %6519 = vmatpush1.msra.mxu0 0.0
    %6520 = vmatprep.subr.mxu0 0.0
    %6521 = vmatpush1.msra.mxu0 0.0
    %6522 = vmatprep.subr.mxu0 0.0
    %6523 = vmatpush1.msra.mxu0 0.0
    %6524 = vmatprep.subr.mxu0 0.0
    %6525 = vmatpush1.msra.mxu0 %v6489
    %6526 = vmatprep.subr.mxu0 0.0
    %6527 = vmatpush2.msra.mxu0 0.0
    %6528 = vmatprep.subr.mxu0 0.0
    %6529 = vmatpush2.msra.mxu0 0.0
    %6530 = vmatprep.subr.mxu0 0.0
    %6531 = vmatpush2.msra.mxu0 0.0
    %6532 = vmatprep.subr.mxu0 0.0
    %6533 = vmatpush2.msra.mxu0 0.0
    %6534 = vmatprep.subr.mxu0 0.0
    %6535 = vmatpush2.msra.mxu0 0.0
    %6536 = vmatprep.subr.mxu0 0.0
    %6537 = vmatpush2.msra.mxu0 0.0
    %6538 = vmatprep.subr.mxu0 0.0
    %6539 = vmatpush2.msra.mxu0 0.0
    %6540 = vmatprep.subr.mxu0 0.0
    %6541 = vmatpush2.msra.mxu0 0.0
    %6542 = vmatprep.subr.mxu0 0.0
    %6543 = vmatpush2.msra.mxu0 0.0
    %6544 = vmatprep.subr.mxu0 0.0
    %6545 = vmatpush2.msra.mxu0 0.0
    %6546 = vmatprep.subr.mxu0 0.0
    %6547 = vmatpush2.msra.mxu0 0.0
    %6548 = vmatprep.subr.mxu0 0.0
    %6549 = vmatpush2.msra.mxu0 0.0
    %6550 = vmatprep.subr.mxu0 0.0
    %6551 = vmatpush2.msra.mxu0 0.0
    %6552 = vmatprep.subr.mxu0 0.0
    %6553 = vmatpush2.msra.mxu0 0.0
    %6554 = vmatprep.subr.mxu0 0.0
    %6555 = vmatpush2.msra.mxu0 0.0
    %6556 = vmatprep.subr.mxu0 0.0
    %6557 = vmatpush2.msra.mxu0 0.0
    %6558 = vmatprep.mubr.f32.mxu0 0.0
    %6559 = vmatmul.mubr.f32.gmra.mxu0 %v6492
    %v6560 = vpop.f32.mrf.mxu0
    %v6561 = vadd.f32 0.0, %v6560
    %v6562 = vpop.f32.mrf.mxu0
    %6563 = vdwg.mxu0
    %6564 = vrot.lane.b32.xlu0 %v5483, 112
    %v6565 = vpop.permute.xlu0 %6564
    %v6568 = vsel %vm373, %v6181, 0
    %6570 = vmatprep.subr.mxu0 0.0
    %6571 = vmatpush1.msra.mxu0 0.0
    %6572 = vmatprep.subr.mxu0 0.0
    %6573 = vmatpush1.msra.mxu0 0.0
    %6574 = vmatprep.subr.mxu0 0.0
    %6575 = vmatpush1.msra.mxu0 0.0
    %6576 = vmatprep.subr.mxu0 0.0
    %6577 = vmatpush1.msra.mxu0 0.0
    %6578 = vmatprep.subr.mxu0 0.0
    %6579 = vmatpush1.msra.mxu0 0.0
    %6580 = vmatprep.subr.mxu0 0.0
    %6581 = vmatpush1.msra.mxu0 0.0
    %6582 = vmatprep.subr.mxu0 0.0
    %6583 = vmatpush1.msra.mxu0 0.0
    %6584 = vmatprep.subr.mxu0 0.0
    %6585 = vmatpush1.msra.mxu0 0.0
    %6586 = vmatprep.subr.mxu0 0.0
    %6587 = vmatpush1.msra.mxu0 0.0
    %6588 = vmatprep.subr.mxu0 0.0
    %6589 = vmatpush1.msra.mxu0 0.0
    %6590 = vmatprep.subr.mxu0 0.0
    %6591 = vmatpush1.msra.mxu0 0.0
    %6592 = vmatprep.subr.mxu0 0.0
    %6593 = vmatpush1.msra.mxu0 0.0
    %6594 = vmatprep.subr.mxu0 0.0
    %6595 = vmatpush1.msra.mxu0 0.0
    %6596 = vmatprep.subr.mxu0 0.0
    %6597 = vmatpush1.msra.mxu0 0.0
    %6598 = vmatprep.subr.mxu0 0.0
    %6599 = vmatpush1.msra.mxu0 0.0
    %6600 = vmatprep.subr.mxu0 0.0
    %6601 = vmatpush1.msra.mxu0 %v6565
    %6602 = vmatprep.subr.mxu0 0.0
    %6603 = vmatpush2.msra.mxu0 0.0
    %6604 = vmatprep.subr.mxu0 0.0
    %6605 = vmatpush2.msra.mxu0 0.0
    %6606 = vmatprep.subr.mxu0 0.0
    %6607 = vmatpush2.msra.mxu0 0.0
    %6608 = vmatprep.subr.mxu0 0.0
    %6609 = vmatpush2.msra.mxu0 0.0
    %6610 = vmatprep.subr.mxu0 0.0
    %6611 = vmatpush2.msra.mxu0 0.0
    %6612 = vmatprep.subr.mxu0 0.0
    %6613 = vmatpush2.msra.mxu0 0.0
    %6614 = vmatprep.subr.mxu0 0.0
    %6615 = vmatpush2.msra.mxu0 0.0
    %6616 = vmatprep.subr.mxu0 0.0
    %6617 = vmatpush2.msra.mxu0 0.0
    %6618 = vmatprep.subr.mxu0 0.0
    %6619 = vmatpush2.msra.mxu0 0.0
    %6620 = vmatprep.subr.mxu0 0.0
    %6621 = vmatpush2.msra.mxu0 0.0
    %6622 = vmatprep.subr.mxu0 0.0
    %6623 = vmatpush2.msra.mxu0 0.0
    %6624 = vmatprep.subr.mxu0 0.0
    %6625 = vmatpush2.msra.mxu0 0.0
    %6626 = vmatprep.subr.mxu0 0.0
    %6627 = vmatpush2.msra.mxu0 0.0
    %6628 = vmatprep.subr.mxu0 0.0
    %6629 = vmatpush2.msra.mxu0 0.0
    %6630 = vmatprep.subr.mxu0 0.0
    %6631 = vmatpush2.msra.mxu0 0.0
    %6632 = vmatprep.subr.mxu0 0.0
    %6633 = vmatpush2.msra.mxu0 0.0
    %6634 = vmatprep.mubr.f32.mxu0 0.0
    %6635 = vmatmul.mubr.f32.gmra.mxu0 %v6568
    %v6636 = vpop.f32.mrf.mxu0
    %v6637 = vadd.f32 0.0, %v6636
    %v6638 = vpop.f32.mrf.mxu0
    %6639 = vdwg.mxu0
    %6640 = vrot.lane.b32.xlu0 %v5485, 112
    %v6641 = vpop.permute.xlu0 %6640
    %v6644 = vsel %vm373, %v6182, 0
    %6646 = vmatprep.subr.mxu0 0.0
    %6647 = vmatpush1.msra.mxu0 0.0
    %6648 = vmatprep.subr.mxu0 0.0
    %6649 = vmatpush1.msra.mxu0 0.0
    %6650 = vmatprep.subr.mxu0 0.0
    %6651 = vmatpush1.msra.mxu0 0.0
    %6652 = vmatprep.subr.mxu0 0.0
    %6653 = vmatpush1.msra.mxu0 0.0
    %6654 = vmatprep.subr.mxu0 0.0
    %6655 = vmatpush1.msra.mxu0 0.0
    %6656 = vmatprep.subr.mxu0 0.0
    %6657 = vmatpush1.msra.mxu0 0.0
    %6658 = vmatprep.subr.mxu0 0.0
    %6659 = vmatpush1.msra.mxu0 0.0
    %6660 = vmatprep.subr.mxu0 0.0
    %6661 = vmatpush1.msra.mxu0 0.0
    %6662 = vmatprep.subr.mxu0 0.0
    %6663 = vmatpush1.msra.mxu0 0.0
    %6664 = vmatprep.subr.mxu0 0.0
    %6665 = vmatpush1.msra.mxu0 0.0
    %6666 = vmatprep.subr.mxu0 0.0
    %6667 = vmatpush1.msra.mxu0 0.0
    %6668 = vmatprep.subr.mxu0 0.0
    %6669 = vmatpush1.msra.mxu0 0.0
    %6670 = vmatprep.subr.mxu0 0.0
    %6671 = vmatpush1.msra.mxu0 0.0
    %6672 = vmatprep.subr.mxu0 0.0
    %6673 = vmatpush1.msra.mxu0 0.0
    %6674 = vmatprep.subr.mxu0 0.0
    %6675 = vmatpush1.msra.mxu0 0.0
    %6676 = vmatprep.subr.mxu0 0.0
    %6677 = vmatpush1.msra.mxu0 %v6641
    %6678 = vmatprep.subr.mxu0 0.0
    %6679 = vmatpush2.msra.mxu0 0.0
    %6680 = vmatprep.subr.mxu0 0.0
    %6681 = vmatpush2.msra.mxu0 0.0
    %6682 = vmatprep.subr.mxu0 0.0
    %6683 = vmatpush2.msra.mxu0 0.0
    %6684 = vmatprep.subr.mxu0 0.0
    %6685 = vmatpush2.msra.mxu0 0.0
    %6686 = vmatprep.subr.mxu0 0.0
    %6687 = vmatpush2.msra.mxu0 0.0
    %6688 = vmatprep.subr.mxu0 0.0
    %6689 = vmatpush2.msra.mxu0 0.0
    %6690 = vmatprep.subr.mxu0 0.0
    %6691 = vmatpush2.msra.mxu0 0.0
    %6692 = vmatprep.subr.mxu0 0.0
    %6693 = vmatpush2.msra.mxu0 0.0
    %6694 = vmatprep.subr.mxu0 0.0
    %6695 = vmatpush2.msra.mxu0 0.0
    %6696 = vmatprep.subr.mxu0 0.0
    %6697 = vmatpush2.msra.mxu0 0.0
    %6698 = vmatprep.subr.mxu0 0.0
    %6699 = vmatpush2.msra.mxu0 0.0
    %6700 = vmatprep.subr.mxu0 0.0
    %6701 = vmatpush2.msra.mxu0 0.0
    %6702 = vmatprep.subr.mxu0 0.0
    %6703 = vmatpush2.msra.mxu0 0.0
    %6704 = vmatprep.subr.mxu0 0.0
    %6705 = vmatpush2.msra.mxu0 0.0
    %6706 = vmatprep.subr.mxu0 0.0
    %6707 = vmatpush2.msra.mxu0 0.0
    %6708 = vmatprep.subr.mxu0 0.0
    %6709 = vmatpush2.msra.mxu0 0.0
    %6710 = vmatprep.mubr.f32.mxu0 0.0
    %6711 = vmatmul.mubr.f32.gmra.mxu0 %v6644
    %v6712 = vpop.f32.mrf.mxu0
    %v6713 = vadd.f32 0.0, %v6712
    %v6714 = vpop.f32.mrf.mxu0
    %6715 = vdwg.mxu0
    %6716 = vrot.lane.b32.xlu0 %v5487, 112
    %v6717 = vpop.permute.xlu0 %6716
    %v6720 = vsel %vm373, %v6183, 0
    %6722 = vmatprep.subr.mxu0 0.0
    %6723 = vmatpush1.msra.mxu0 0.0
    %6724 = vmatprep.subr.mxu0 0.0
    %6725 = vmatpush1.msra.mxu0 0.0
    %6726 = vmatprep.subr.mxu0 0.0
    %6727 = vmatpush1.msra.mxu0 0.0
    %6728 = vmatprep.subr.mxu0 0.0
    %6729 = vmatpush1.msra.mxu0 0.0
    %6730 = vmatprep.subr.mxu0 0.0
    %6731 = vmatpush1.msra.mxu0 0.0
    %6732 = vmatprep.subr.mxu0 0.0
    %6733 = vmatpush1.msra.mxu0 0.0
    %6734 = vmatprep.subr.mxu0 0.0
    %6735 = vmatpush1.msra.mxu0 0.0
    %6736 = vmatprep.subr.mxu0 0.0
    %6737 = vmatpush1.msra.mxu0 0.0
    %6738 = vmatprep.subr.mxu0 0.0
    %6739 = vmatpush1.msra.mxu0 0.0
    %6740 = vmatprep.subr.mxu0 0.0
    %6741 = vmatpush1.msra.mxu0 0.0
    %6742 = vmatprep.subr.mxu0 0.0
    %6743 = vmatpush1.msra.mxu0 0.0
    %6744 = vmatprep.subr.mxu0 0.0
    %6745 = vmatpush1.msra.mxu0 0.0
    %6746 = vmatprep.subr.mxu0 0.0
    %6747 = vmatpush1.msra.mxu0 0.0
    %6748 = vmatprep.subr.mxu0 0.0
    %6749 = vmatpush1.msra.mxu0 0.0
    %6750 = vmatprep.subr.mxu0 0.0
    %6751 = vmatpush1.msra.mxu0 0.0
    %6752 = vmatprep.subr.mxu0 0.0
    %6753 = vmatpush1.msra.mxu0 %v6717
    %6754 = vmatprep.subr.mxu0 0.0
    %6755 = vmatpush2.msra.mxu0 0.0
    %6756 = vmatprep.subr.mxu0 0.0
    %6757 = vmatpush2.msra.mxu0 0.0
    %6758 = vmatprep.subr.mxu0 0.0
    %6759 = vmatpush2.msra.mxu0 0.0
    %6760 = vmatprep.subr.mxu0 0.0
    %6761 = vmatpush2.msra.mxu0 0.0
    %6762 = vmatprep.subr.mxu0 0.0
    %6763 = vmatpush2.msra.mxu0 0.0
    %6764 = vmatprep.subr.mxu0 0.0
    %6765 = vmatpush2.msra.mxu0 0.0
    %6766 = vmatprep.subr.mxu0 0.0
    %6767 = vmatpush2.msra.mxu0 0.0
    %6768 = vmatprep.subr.mxu0 0.0
    %6769 = vmatpush2.msra.mxu0 0.0
    %6770 = vmatprep.subr.mxu0 0.0
    %6771 = vmatpush2.msra.mxu0 0.0
    %6772 = vmatprep.subr.mxu0 0.0
    %6773 = vmatpush2.msra.mxu0 0.0
    %6774 = vmatprep.subr.mxu0 0.0
    %6775 = vmatpush2.msra.mxu0 0.0
    %6776 = vmatprep.subr.mxu0 0.0
    %6777 = vmatpush2.msra.mxu0 0.0
    %6778 = vmatprep.subr.mxu0 0.0
    %6779 = vmatpush2.msra.mxu0 0.0
    %6780 = vmatprep.subr.mxu0 0.0
    %6781 = vmatpush2.msra.mxu0 0.0
    %6782 = vmatprep.subr.mxu0 0.0
    %6783 = vmatpush2.msra.mxu0 0.0
    %6784 = vmatprep.subr.mxu0 0.0
    %6785 = vmatpush2.msra.mxu0 0.0
    %6786 = vmatprep.mubr.f32.mxu0 0.0
    %6787 = vmatmul.mubr.f32.gmra.mxu0 %v6720
    %v6788 = vpop.f32.mrf.mxu0
    %v6789 = vadd.f32 0.0, %v6788
    %v6790 = vpop.f32.mrf.mxu0
    %6791 = vdwg.mxu0
    %v6792 = vsel %vm135, %v6257, 0.0
    %v6793 = vsel %vm135, %v6409, 0.0
    %v6794 = vadd.f32 %v6792, %v6793
    %v6795 = vsel %vm135, %v6561, 0.0
    %v6796 = vadd.f32 %v6794, %v6795
    %v6797 = vsel %vm135, %v6713, 0.0
    %v6798 = vadd.f32 %v6796, %v6797
    %v6799 = vsel %vm135, %v6333, 0.0
    %v6800 = vsel %vm135, %v6485, 0.0
    %v6801 = vadd.f32 %v6799, %v6800
    %v6802 = vsel %vm135, %v6637, 0.0
    %v6803 = vadd.f32 %v6801, %v6802
    %v6804 = vsel %vm135, %v6789, 0.0
    %v6805 = vadd.f32 %v6803, %v6804
    %v6806 = vadd.f32 %v6798, %v5379
    %v6807 = vadd.f32 %v6805, %v5380
    %v6808 = vld [vmem:[%s9 + $0x11] sm:$0x1]
    %v6809 = vld [vmem:[%s9 + $0x12] sm:$0x1]
    %v6810 = vsel %vm135, %v6806, 0.0
    %6811 = vadd.xlane.f32.xlu0 %v6810
    %v6812 = vpop.xlane.xlu0 %6811
    %v6813 = vsel %vm135, %v6807, 0.0
    %6814 = vadd.xlane.f32.xlu0 %v6813
    %v6815 = vpop.xlane.xlu0 %6814
    %v6816 = vmul.f32 %v6812, %v142
    %v6817 = vmul.f32 %v6815, %v142
    %v6818 = vsub.f32 %v6806, %v6816
    %v6819 = vsub.f32 %v6807, %v6817
    %v6820 = vmul.f32 %v6818, %v6818
    %v6821 = vmul.f32 %v6819, %v6819
    %v6822 = vsel %vm135, %v6820, 0.0
    %6823 = vadd.xlane.f32.xlu0 %v6822
    %v6824 = vpop.xlane.xlu0 %6823
    %v6825 = vsel %vm135, %v6821, 0.0
    %6826 = vadd.xlane.f32.xlu0 %v6825
    %v6827 = vpop.xlane.xlu0 %6826
    %v6828 = vmul.f32 %v6824, %v142
    %v6829 = vmul.f32 %v6827, %v142
    %v6830 = vadd.f32 %v6828, 1e-12
    %v6831 = vadd.f32 %v6829, 1e-12
    %v6832 = vrsqrt.pop %v6830
    %v6833 = vrsqrt.pop %v6831
    %v6834 = vmul.f32 %v6818, %v6832
    %v6835 = vmul.f32 %v6819, %v6833
    %v6836 = vlaneseq
    %v6837 = vshrl.u32 %v6836, 7
    %v6838 = vsub.s32 0, %v6837
    %v6839 = vrot.slane %v6808, %v6838
    %v6840 = vmul.f32 %v6834, %v6839
    %v6841 = vmul.f32 %v6835, %v6839
    %v6842 = vlaneseq
    %v6843 = vshrl.u32 %v6842, 7
    %v6844 = vsub.s32 0, %v6843
    %v6845 = vrot.slane %v6809, %v6844
    %v6846 = vadd.f32 %v6840, %v6845
    %v6847 = vadd.f32 %v6841, %v6845
    %v6848 = vpack.c.bf16 %v6847, %v6846
    %s6849 = scalar_lea.vmem %s5, 48
    %v6850 = vld [vmem:[%s6849] sm:$0xf]
    %v6851 = vld [vmem:[%s6849 + $0x4] sm:$0xf]
    %v6852 = vld [vmem:[%s6849 + $0x8] sm:$0xf]
    %v6853 = vld [vmem:[%s6849 + $0xc] sm:$0xf]
    %v6854 = vld [vmem:[%s8 + $0x3] sm:$0x1]
    %v6855 = vlaneseq
    %v6856 = vshrl.u32 %v6855, 7
    %v6857 = vsub.s32 0, %v6856
    %v6858 = vrot.slane %v6854, %v6857
    %v6863 = vunpack.c.l.b16 %v6850
    %v6864 = vunpack.c.l.b16 %v6851
    %v6865 = vunpack.c.l.b16 %v6852
    %v6866 = vunpack.c.l.b16 %v6853
    %v6867 = vpack.c.b16 %v6864, %v6863
    %v6868 = vpack.c.b16 %v6866, %v6865
    %v6872 = vsel %vm135, %v6848, 0
    %6874 = vmatprep.subr.bf16.mxu0 0
    %6875 = vmatpush1.bf16.msra.mxu0 0
    %6876 = vmatprep.subr.bf16.mxu0 0
    %6877 = vmatpush1.bf16.msra.mxu0 0
    %6878 = vmatprep.subr.bf16.mxu0 0
    %6879 = vmatpush1.bf16.msra.mxu0 0
    %6880 = vmatprep.subr.bf16.mxu0 0
    %6881 = vmatpush1.bf16.msra.mxu0 0
    %6882 = vmatprep.subr.bf16.mxu0 0
    %6883 = vmatpush1.bf16.msra.mxu0 0
    %6884 = vmatprep.subr.bf16.mxu0 0
    %6885 = vmatpush1.bf16.msra.mxu0 0
    %6886 = vmatprep.subr.bf16.mxu0 0
    %6887 = vmatpush1.bf16.msra.mxu0 %v6868
    %6888 = vmatprep.subr.bf16.mxu0 0
    %6889 = vmatpush1.bf16.msra.mxu0 %v6867
    %6890 = vmatprep.subr.bf16.mxu0 0
    %6891 = vmatpush2.bf16.msra.mxu0 0
    %6892 = vmatprep.subr.bf16.mxu0 0
    %6893 = vmatpush2.bf16.msra.mxu0 0
    %6894 = vmatprep.subr.bf16.mxu0 0
    %6895 = vmatpush2.bf16.msra.mxu0 0
    %6896 = vmatprep.subr.bf16.mxu0 0
    %6897 = vmatpush2.bf16.msra.mxu0 0
    %6898 = vmatprep.subr.bf16.mxu0 0
    %6899 = vmatpush2.bf16.msra.mxu0 0
    %6900 = vmatprep.subr.bf16.mxu0 0
    %6901 = vmatpush2.bf16.msra.mxu0 0
    %6902 = vmatprep.subr.bf16.mxu0 0
    %6903 = vmatpush2.bf16.msra.mxu0 0
    %6904 = vmatprep.subr.bf16.mxu0 0
    %6905 = vmatpush2.bf16.msra.mxu0 0
    %6906 = vmatprep.mubr.bf16.mxu0 0
    %6907 = vmatmul.mubr.bf16.gmra.mxu0 %v6872
    %v6908 = vpop.f32.mrf.mxu0
    %v6909 = vadd.f32 %v6858, %v6908
    %v6910 = vpop.f32.mrf.mxu0
    %v6911 = vpop.f32.mrf.mxu0
    %v6912 = vadd.f32 %v6858, %v6911
    %v6913 = vpop.f32.mrf.mxu0
    %6914 = vdwg.mxu0
    %v6915 = vmul.f32 %v6909, 0.5
    %v6916 = vmul.f32 %v6912, 0.5
    %v6917 = vmul.f32 %v6909, 0.044715
    %v6918 = vmul.f32 %v6912, 0.044715
    %v6919 = vmul.f32 %v6917, %v6909
    %v6920 = vmul.f32 %v6918, %v6912
    %v6921 = vmul.f32 %v6919, %v6909
    %v6922 = vmul.f32 %v6920, %v6912
    %v6923 = vadd.f32 %v6909, %v6921
    %v6924 = vadd.f32 %v6912, %v6922
    %v6925 = vmul.f32 %v6923, 0.7978846
    %v6926 = vmul.f32 %v6924, 0.7978846
    %v6927 = vtanh.pop %v6925
    %v6928 = vtanh.pop %v6926
    %v6929 = vadd.f32 %v6927, 1.0
    %v6930 = vadd.f32 %v6928, 1.0
    %v6931 = vmul.f32 %v6915, %v6929
    %v6932 = vmul.f32 %v6916, %v6930
    %v6933 = vpack.c.bf16 %v6932, %v6931
    %s6934 = scalar_lea.vmem %s6, 192
    %v6935 = vld [vmem:[%s6934] sm:$0xf]
    %v6936 = vld [vmem:[%s6934 + $0x4] sm:$0xf]
    %v6937 = vld [vmem:[%s6934 + $0x8] sm:$0xf]
    %v6938 = vld [vmem:[%s6934 + $0xc] sm:$0xf]
    %v6939 = vld [vmem:[%s6934 + $0x10] sm:$0xf]
    %v6940 = vld [vmem:[%s6934 + $0x14] sm:$0xf]
    %v6941 = vld [vmem:[%s6934 + $0x18] sm:$0xf]
    %v6942 = vld [vmem:[%s6934 + $0x1c] sm:$0xf]
    %v6943 = vld [vmem:[%s6934 + $0x20] sm:$0xf]
    %v6944 = vld [vmem:[%s6934 + $0x24] sm:$0xf]
    %v6945 = vld [vmem:[%s6934 + $0x28] sm:$0xf]
    %v6946 = vld [vmem:[%s6934 + $0x2c] sm:$0xf]
    %v6947 = vld [vmem:[%s6934 + $0x30] sm:$0xf]
    %v6948 = vld [vmem:[%s6934 + $0x34] sm:$0xf]
    %v6949 = vld [vmem:[%s6934 + $0x38] sm:$0xf]
    %v6950 = vld [vmem:[%s6934 + $0x3c] sm:$0xf]
    %v6951 = vld [vmem:[%s9 + $0x13] sm:$0x1]
    %v6952 = vlaneseq
    %v6953 = vshrl.u32 %v6952, 7
    %v6954 = vsub.s32 0, %v6953
    %v6955 = vrot.slane %v6951, %v6954
    %v6972 = vunpack.c.l.b16 %v6935
    %v6973 = vunpack.c.l.b16 %v6936
    %v6974 = vunpack.c.l.b16 %v6937
    %v6975 = vunpack.c.l.b16 %v6938
    %v6976 = vunpack.c.l.b16 %v6939
    %v6977 = vunpack.c.l.b16 %v6940
    %v6978 = vunpack.c.l.b16 %v6941
    %v6979 = vunpack.c.l.b16 %v6942
    %v6980 = vunpack.c.l.b16 %v6943
    %v6981 = vunpack.c.l.b16 %v6944
    %v6982 = vunpack.c.l.b16 %v6945
    %v6983 = vunpack.c.l.b16 %v6946
    %v6984 = vunpack.c.l.b16 %v6947
    %v6985 = vunpack.c.l.b16 %v6948
    %v6986 = vunpack.c.l.b16 %v6949
    %v6987 = vunpack.c.l.b16 %v6950
    %v6988 = vpack.c.b16 %v6973, %v6972
    %v6989 = vpack.c.b16 %v6975, %v6974
    %v6990 = vpack.c.b16 %v6977, %v6976
    %v6991 = vpack.c.b16 %v6979, %v6978
    %v6992 = vpack.c.b16 %v6981, %v6980
    %v6993 = vpack.c.b16 %v6983, %v6982
    %v6994 = vpack.c.b16 %v6985, %v6984
    %v6995 = vpack.c.b16 %v6987, %v6986
    %7004 = vmatprep.subr.bf16.mxu0 0
    %7005 = vmatpush1.bf16.msra.mxu0 %v6995
    %7006 = vmatprep.subr.bf16.mxu0 0
    %7007 = vmatpush1.bf16.msra.mxu0 %v6994
    %7008 = vmatprep.subr.bf16.mxu0 0
    %7009 = vmatpush1.bf16.msra.mxu0 %v6993
    %7010 = vmatprep.subr.bf16.mxu0 0
    %7011 = vmatpush1.bf16.msra.mxu0 %v6992
    %7012 = vmatprep.subr.bf16.mxu0 0
    %7013 = vmatpush1.bf16.msra.mxu0 %v6991
    %7014 = vmatprep.subr.bf16.mxu0 0
    %7015 = vmatpush1.bf16.msra.mxu0 %v6990
    %7016 = vmatprep.subr.bf16.mxu0 0
    %7017 = vmatpush1.bf16.msra.mxu0 %v6989
    %7018 = vmatprep.subr.bf16.mxu0 0
    %7019 = vmatpush1.bf16.msra.mxu0 %v6988
    %7020 = vmatprep.subr.bf16.mxu0 0
    %7021 = vmatpush2.bf16.msra.mxu0 0
    %7022 = vmatprep.subr.bf16.mxu0 0
    %7023 = vmatpush2.bf16.msra.mxu0 0
    %7024 = vmatprep.subr.bf16.mxu0 0
    %7025 = vmatpush2.bf16.msra.mxu0 0
    %7026 = vmatprep.subr.bf16.mxu0 0
    %7027 = vmatpush2.bf16.msra.mxu0 0
    %7028 = vmatprep.subr.bf16.mxu0 0
    %7029 = vmatpush2.bf16.msra.mxu0 0
    %7030 = vmatprep.subr.bf16.mxu0 0
    %7031 = vmatpush2.bf16.msra.mxu0 0
    %7032 = vmatprep.subr.bf16.mxu0 0
    %7033 = vmatpush2.bf16.msra.mxu0 0
    %7034 = vmatprep.subr.bf16.mxu0 0
    %7035 = vmatpush2.bf16.msra.mxu0 0
    %7036 = vmatprep.mubr.bf16.mxu0 0
    %7037 = vmatmul.mubr.bf16.gmra.mxu0 %v6933
    %v7038 = vpop.f32.mrf.mxu0
    %v7039 = vadd.f32 %v6955, %v7038
    %v7040 = vpop.f32.mrf.mxu0
    %v7041 = vpop.f32.mrf.mxu0
    %v7042 = vadd.f32 %v6955, %v7041
    %v7043 = vpop.f32.mrf.mxu0
    %7044 = vdwg.mxu0
    %v7045 = vadd.f32 %v7039, %v6846
    %v7046 = vadd.f32 %v7042, %v6847
    %v7047 = vld [vmem:[%s9 + $0x14] sm:$0x1]
    %v7048 = vld [vmem:[%s9 + $0x15] sm:$0x1]
    %v7049 = vsel %vm135, %v7045, 0.0
    %7050 = vadd.xlane.f32.xlu0 %v7049
    %v7051 = vpop.xlane.xlu0 %7050
    %v7052 = vsel %vm135, %v7046, 0.0
    %7053 = vadd.xlane.f32.xlu0 %v7052
    %v7054 = vpop.xlane.xlu0 %7053
    %v7055 = vmul.f32 %v7051, %v142
    %v7056 = vmul.f32 %v7054, %v142
    %v7057 = vsub.f32 %v7045, %v7055
    %v7058 = vsub.f32 %v7046, %v7056
    %v7059 = vmul.f32 %v7057, %v7057
    %v7060 = vmul.f32 %v7058, %v7058
    %v7061 = vsel %vm135, %v7059, 0.0
    %7062 = vadd.xlane.f32.xlu0 %v7061
    %v7063 = vpop.xlane.xlu0 %7062
    %v7064 = vsel %vm135, %v7060, 0.0
    %7065 = vadd.xlane.f32.xlu0 %v7064
    %v7066 = vpop.xlane.xlu0 %7065
    %v7067 = vmul.f32 %v7063, %v142
    %v7068 = vmul.f32 %v7066, %v142
    %v7069 = vadd.f32 %v7067, 1e-12
    %v7070 = vadd.f32 %v7068, 1e-12
    %v7071 = vrsqrt.pop %v7069
    %v7072 = vrsqrt.pop %v7070
    %v7073 = vmul.f32 %v7057, %v7071
    %v7074 = vmul.f32 %v7058, %v7072
    %v7075 = vlaneseq
    %v7076 = vshrl.u32 %v7075, 7
    %v7077 = vsub.s32 0, %v7076
    %v7078 = vrot.slane %v7047, %v7077
    %v7079 = vmul.f32 %v7073, %v7078
    %v7080 = vmul.f32 %v7074, %v7078
    %v7081 = vlaneseq
    %v7082 = vshrl.u32 %v7081, 7
    %v7083 = vsub.s32 0, %v7082
    %v7084 = vrot.slane %v7048, %v7083
    %v7085 = vadd.f32 %v7079, %v7084
    %v7086 = vadd.f32 %v7080, %v7084
    %v7087 = vpack.c.bf16 %v7086, %v7085
    %s7088 = scalar_lea.vmem %s4, 128
    %v7089 = vld [vmem:[%s7088] sm:$0xff]
    %v7090 = vld [vmem:[%s7088 + $0x8] sm:$0xff]
    %v7091 = vld [vmem:[%s7088 + $0x10] sm:$0xff]
    %v7092 = vld [vmem:[%s7088 + $0x18] sm:$0xff]
    %s7093 = scalar_lea.vmem %s7, 4
    %v7094 = vld [vmem:[%s7093] ss:$8 sm:$0x3]
    %v7096 = vlaneseq
    %v7097 = vshrl.u32 %v7096, 7
    %v7098 = vsub.s32 0, %v7097
    %v7099 = vrot.slane %v7094, %v7098
    %v7100 = vlaneseq
    %v7101 = vshrl.u32 %v7100, 7
    %v7102 = vsub.s32 1, %v7101
    %v7103 = vrot.slane %v7094, %v7102
    %v7110 = vunpack.c.l.b16 %v7089
    %v7111 = vunpack.c.h.b16 %v7089
    %v7112 = vunpack.c.l.b16 %v7090
    %v7113 = vunpack.c.h.b16 %v7090
    %v7114 = vunpack.c.l.b16 %v7091
    %v7115 = vunpack.c.h.b16 %v7091
    %v7116 = vunpack.c.l.b16 %v7092
    %v7117 = vunpack.c.h.b16 %v7092
    %v7118 = vpack.c.b16 %v7112, %v7110
    %v7119 = vpack.c.b16 %v7113, %v7111
    %v7120 = vpack.c.b16 %v7116, %v7114
    %v7121 = vpack.c.b16 %v7117, %v7115
    %v7127 = vsel %vm135, %v7087, 0
    %7129 = vmatprep.subr.bf16.mxu0 0
    %7130 = vmatpush1.bf16.msra.mxu0 0
    %7131 = vmatprep.subr.bf16.mxu0 0
    %7132 = vmatpush1.bf16.msra.mxu0 0
    %7133 = vmatprep.subr.bf16.mxu0 0
    %7134 = vmatpush1.bf16.msra.mxu0 0
    %7135 = vmatprep.subr.bf16.mxu0 0
    %7136 = vmatpush1.bf16.msra.mxu0 0
    %7137 = vmatprep.subr.bf16.mxu0 0
    %7138 = vmatpush1.bf16.msra.mxu0 0
    %7139 = vmatprep.subr.bf16.mxu0 0
    %7140 = vmatpush1.bf16.msra.mxu0 0
    %7141 = vmatprep.subr.bf16.mxu0 %v7121
    %7142 = vmatpush1.bf16.msra.mxu0 %v7120
    %7143 = vmatprep.subr.bf16.mxu0 %v7119
    %7144 = vmatpush1.bf16.msra.mxu0 %v7118
    %7145 = vmatprep.subr.bf16.mxu0 0
    %7146 = vmatpush2.bf16.msra.mxu0 0
    %7147 = vmatprep.subr.bf16.mxu0 0
    %7148 = vmatpush2.bf16.msra.mxu0 0
    %7149 = vmatprep.subr.bf16.mxu0 0
    %7150 = vmatpush2.bf16.msra.mxu0 0
    %7151 = vmatprep.subr.bf16.mxu0 0
    %7152 = vmatpush2.bf16.msra.mxu0 0
    %7153 = vmatprep.subr.bf16.mxu0 0
    %7154 = vmatpush2.bf16.msra.mxu0 0
    %7155 = vmatprep.subr.bf16.mxu0 0
    %7156 = vmatpush2.bf16.msra.mxu0 0
    %7157 = vmatprep.subr.bf16.mxu0 0
    %7158 = vmatpush2.bf16.msra.mxu0 0
    %7159 = vmatprep.subr.bf16.mxu0 0
    %7160 = vmatpush2.bf16.msra.mxu0 0
    %7161 = vmatprep.mubr.bf16.mxu0 0
    %7162 = vmatmul.mubr.bf16.gmra.mxu0 %v7127
    %v7163 = vpop.f32.mrf.mxu0
    %v7164 = vadd.f32 %v7099, %v7163
    %v7165 = vpop.f32.mrf.mxu0
    %v7166 = vadd.f32 %v7103, %v7165
    %v7167 = vpop.f32.mrf.mxu0
    %v7168 = vadd.f32 %v7099, %v7167
    %v7169 = vpop.f32.mrf.mxu0
    %v7170 = vadd.f32 %v7103, %v7169
    %7171 = vdwg.mxu0
    %7174 = vrot.lane.b32.xlu0 %v7164, 80
    %v7175 = vpop.permute.xlu0 %7174
    %7176 = vrot.lane.b32.xlu0 %v7168, 80
    %v7177 = vpop.permute.xlu0 %7176
    %7180 = vrot.lane.b32.xlu0 %v7164, 32
    %v7181 = vpop.permute.xlu0 %7180
    %7182 = vrot.lane.b32.xlu0 %v7166, 32
    %v7183 = vpop.permute.xlu0 %7182
    %7184 = vrot.lane.b32.xlu0 %v7168, 32
    %v7185 = vpop.permute.xlu0 %7184
    %7186 = vrot.lane.b32.xlu0 %v7170, 32
    %v7187 = vpop.permute.xlu0 %7186
    %v7188 = vsel %vm135, %v7181, %v7183
    %v7189 = vsel %vm135, %v7185, %v7187
    %7190 = vrot.lane.b32.xlu0 %v7166, 112
    %v7191 = vpop.permute.xlu0 %7190
    %7192 = vrot.lane.b32.xlu0 %v7170, 112
    %v7193 = vpop.permute.xlu0 %7192
    %7194 = vrot.lane.b32.xlu0 %v7164, 120
    %v7195 = vpop.permute.xlu0 %7194
    %v7196 = vsel %vm373, %v7164, 0
    %v7198 = vsel %vm373, %v7195, 0
    %7200 = vmatprep.subr.mxu0 0.0
    %7201 = vmatpush1.xpose.msra.mxu0 0.0
    %7202 = vmatprep.subr.mxu0 0.0
    %7203 = vmatpush1.xpose.msra.mxu0 0.0
    %7204 = vmatprep.subr.mxu0 0.0
    %7205 = vmatpush1.xpose.msra.mxu0 0.0
    %7206 = vmatprep.subr.mxu0 0.0
    %7207 = vmatpush1.xpose.msra.mxu0 0.0
    %7208 = vmatprep.subr.mxu0 0.0
    %7209 = vmatpush1.xpose.msra.mxu0 0.0
    %7210 = vmatprep.subr.mxu0 0.0
    %7211 = vmatpush1.xpose.msra.mxu0 0.0
    %7212 = vmatprep.subr.mxu0 0.0
    %7213 = vmatpush1.xpose.msra.mxu0 0.0
    %7214 = vmatprep.subr.mxu0 0.0
    %7215 = vmatpush1.xpose.msra.mxu0 0.0
    %7216 = vmatprep.subr.mxu0 0.0
    %7217 = vmatpush1.xpose.msra.mxu0 0.0
    %7218 = vmatprep.subr.mxu0 0.0
    %7219 = vmatpush1.xpose.msra.mxu0 0.0
    %7220 = vmatprep.subr.mxu0 0.0
    %7221 = vmatpush1.xpose.msra.mxu0 0.0
    %7222 = vmatprep.subr.mxu0 0.0
    %7223 = vmatpush1.xpose.msra.mxu0 0.0
    %7224 = vmatprep.subr.mxu0 0.0
    %7225 = vmatpush1.xpose.msra.mxu0 0.0
    %7226 = vmatprep.subr.mxu0 0.0
    %7227 = vmatpush1.xpose.msra.mxu0 0.0
    %7228 = vmatprep.subr.mxu0 0.0
    %7229 = vmatpush1.xpose.msra.mxu0 0.0
    %7230 = vmatprep.subr.mxu0 0.0
    %7231 = vmatpush1.xpose.msra.mxu0 %v7198
    %7232 = vmatprep.subr.mxu0 0.0
    %7233 = vmatpush2.xpose.msra.mxu0 0.0
    %7234 = vmatprep.subr.mxu0 0.0
    %7235 = vmatpush2.xpose.msra.mxu0 0.0
    %7236 = vmatprep.subr.mxu0 0.0
    %7237 = vmatpush2.xpose.msra.mxu0 0.0
    %7238 = vmatprep.subr.mxu0 0.0
    %7239 = vmatpush2.xpose.msra.mxu0 0.0
    %7240 = vmatprep.subr.mxu0 0.0
    %7241 = vmatpush2.xpose.msra.mxu0 0.0
    %7242 = vmatprep.subr.mxu0 0.0
    %7243 = vmatpush2.xpose.msra.mxu0 0.0
    %7244 = vmatprep.subr.mxu0 0.0
    %7245 = vmatpush2.xpose.msra.mxu0 0.0
    %7246 = vmatprep.subr.mxu0 0.0
    %7247 = vmatpush2.xpose.msra.mxu0 0.0
    %7248 = vmatprep.subr.mxu0 0.0
    %7249 = vmatpush2.xpose.msra.mxu0 0.0
    %7250 = vmatprep.subr.mxu0 0.0
    %7251 = vmatpush2.xpose.msra.mxu0 0.0
    %7252 = vmatprep.subr.mxu0 0.0
    %7253 = vmatpush2.xpose.msra.mxu0 0.0
    %7254 = vmatprep.subr.mxu0 0.0
    %7255 = vmatpush2.xpose.msra.mxu0 0.0
    %7256 = vmatprep.subr.mxu0 0.0
    %7257 = vmatpush2.xpose.msra.mxu0 0.0
    %7258 = vmatprep.subr.mxu0 0.0
    %7259 = vmatpush2.xpose.msra.mxu0 0.0
    %7260 = vmatprep.subr.mxu0 0.0
    %7261 = vmatpush2.xpose.msra.mxu0 0.0
    %7262 = vmatprep.subr.mxu0 0.0
    %7263 = vmatpush2.xpose.msra.mxu0 0.0
    %7264 = vmatprep.mubr.f32.mxu0 0.0
    %7265 = vmatmul.mubr.f32.gmra.mxu0 %v7196
    %v7266 = vpop.f32.mrf.mxu0
    %v7267 = vadd.f32 %v229, %v7266
    %v7268 = vpop.f32.mrf.mxu0
    %7269 = vdwg.mxu0
    %7270 = vrot.lane.b32.xlu0 %v7168, 120
    %v7271 = vpop.permute.xlu0 %7270
    %v7272 = vsel %vm373, %v7168, 0
    %v7274 = vsel %vm373, %v7271, 0
    %7276 = vmatprep.subr.mxu0 0.0
    %7277 = vmatpush1.xpose.msra.mxu0 0.0
    %7278 = vmatprep.subr.mxu0 0.0
    %7279 = vmatpush1.xpose.msra.mxu0 0.0
    %7280 = vmatprep.subr.mxu0 0.0
    %7281 = vmatpush1.xpose.msra.mxu0 0.0
    %7282 = vmatprep.subr.mxu0 0.0
    %7283 = vmatpush1.xpose.msra.mxu0 0.0
    %7284 = vmatprep.subr.mxu0 0.0
    %7285 = vmatpush1.xpose.msra.mxu0 0.0
    %7286 = vmatprep.subr.mxu0 0.0
    %7287 = vmatpush1.xpose.msra.mxu0 0.0
    %7288 = vmatprep.subr.mxu0 0.0
    %7289 = vmatpush1.xpose.msra.mxu0 0.0
    %7290 = vmatprep.subr.mxu0 0.0
    %7291 = vmatpush1.xpose.msra.mxu0 0.0
    %7292 = vmatprep.subr.mxu0 0.0
    %7293 = vmatpush1.xpose.msra.mxu0 0.0
    %7294 = vmatprep.subr.mxu0 0.0
    %7295 = vmatpush1.xpose.msra.mxu0 0.0
    %7296 = vmatprep.subr.mxu0 0.0
    %7297 = vmatpush1.xpose.msra.mxu0 0.0
    %7298 = vmatprep.subr.mxu0 0.0
    %7299 = vmatpush1.xpose.msra.mxu0 0.0
    %7300 = vmatprep.subr.mxu0 0.0
    %7301 = vmatpush1.xpose.msra.mxu0 0.0
    %7302 = vmatprep.subr.mxu0 0.0
    %7303 = vmatpush1.xpose.msra.mxu0 0.0
    %7304 = vmatprep.subr.mxu0 0.0
    %7305 = vmatpush1.xpose.msra.mxu0 0.0
    %7306 = vmatprep.subr.mxu0 0.0
    %7307 = vmatpush1.xpose.msra.mxu0 %v7274
    %7308 = vmatprep.subr.mxu0 0.0
    %7309 = vmatpush2.xpose.msra.mxu0 0.0
    %7310 = vmatprep.subr.mxu0 0.0
    %7311 = vmatpush2.xpose.msra.mxu0 0.0
    %7312 = vmatprep.subr.mxu0 0.0
    %7313 = vmatpush2.xpose.msra.mxu0 0.0
    %7314 = vmatprep.subr.mxu0 0.0
    %7315 = vmatpush2.xpose.msra.mxu0 0.0
    %7316 = vmatprep.subr.mxu0 0.0
    %7317 = vmatpush2.xpose.msra.mxu0 0.0
    %7318 = vmatprep.subr.mxu0 0.0
    %7319 = vmatpush2.xpose.msra.mxu0 0.0
    %7320 = vmatprep.subr.mxu0 0.0
    %7321 = vmatpush2.xpose.msra.mxu0 0.0
    %7322 = vmatprep.subr.mxu0 0.0
    %7323 = vmatpush2.xpose.msra.mxu0 0.0
    %7324 = vmatprep.subr.mxu0 0.0
    %7325 = vmatpush2.xpose.msra.mxu0 0.0
    %7326 = vmatprep.subr.mxu0 0.0
    %7327 = vmatpush2.xpose.msra.mxu0 0.0
    %7328 = vmatprep.subr.mxu0 0.0
    %7329 = vmatpush2.xpose.msra.mxu0 0.0
    %7330 = vmatprep.subr.mxu0 0.0
    %7331 = vmatpush2.xpose.msra.mxu0 0.0
    %7332 = vmatprep.subr.mxu0 0.0
    %7333 = vmatpush2.xpose.msra.mxu0 0.0
    %7334 = vmatprep.subr.mxu0 0.0
    %7335 = vmatpush2.xpose.msra.mxu0 0.0
    %7336 = vmatprep.subr.mxu0 0.0
    %7337 = vmatpush2.xpose.msra.mxu0 0.0
    %7338 = vmatprep.subr.mxu0 0.0
    %7339 = vmatpush2.xpose.msra.mxu0 0.0
    %7340 = vmatprep.mubr.f32.mxu0 0.0
    %7341 = vmatmul.mubr.f32.gmra.mxu0 %v7272
    %v7342 = vpop.f32.mrf.mxu0
    %v7343 = vadd.f32 %v233, %v7342
    %v7344 = vpop.f32.mrf.mxu0
    %7345 = vdwg.mxu0
    %7346 = vrot.lane.b32.xlu0 %v7175, 120
    %v7347 = vpop.permute.xlu0 %7346
    %v7348 = vsel %vm373, %v7175, 0
    %v7350 = vsel %vm373, %v7347, 0
    %7352 = vmatprep.subr.mxu0 0.0
    %7353 = vmatpush1.xpose.msra.mxu0 0.0
    %7354 = vmatprep.subr.mxu0 0.0
    %7355 = vmatpush1.xpose.msra.mxu0 0.0
    %7356 = vmatprep.subr.mxu0 0.0
    %7357 = vmatpush1.xpose.msra.mxu0 0.0
    %7358 = vmatprep.subr.mxu0 0.0
    %7359 = vmatpush1.xpose.msra.mxu0 0.0
    %7360 = vmatprep.subr.mxu0 0.0
    %7361 = vmatpush1.xpose.msra.mxu0 0.0
    %7362 = vmatprep.subr.mxu0 0.0
    %7363 = vmatpush1.xpose.msra.mxu0 0.0
    %7364 = vmatprep.subr.mxu0 0.0
    %7365 = vmatpush1.xpose.msra.mxu0 0.0
    %7366 = vmatprep.subr.mxu0 0.0
    %7367 = vmatpush1.xpose.msra.mxu0 0.0
    %7368 = vmatprep.subr.mxu0 0.0
    %7369 = vmatpush1.xpose.msra.mxu0 0.0
    %7370 = vmatprep.subr.mxu0 0.0
    %7371 = vmatpush1.xpose.msra.mxu0 0.0
    %7372 = vmatprep.subr.mxu0 0.0
    %7373 = vmatpush1.xpose.msra.mxu0 0.0
    %7374 = vmatprep.subr.mxu0 0.0
    %7375 = vmatpush1.xpose.msra.mxu0 0.0
    %7376 = vmatprep.subr.mxu0 0.0
    %7377 = vmatpush1.xpose.msra.mxu0 0.0
    %7378 = vmatprep.subr.mxu0 0.0
    %7379 = vmatpush1.xpose.msra.mxu0 0.0
    %7380 = vmatprep.subr.mxu0 0.0
    %7381 = vmatpush1.xpose.msra.mxu0 0.0
    %7382 = vmatprep.subr.mxu0 0.0
    %7383 = vmatpush1.xpose.msra.mxu0 %v7350
    %7384 = vmatprep.subr.mxu0 0.0
    %7385 = vmatpush2.xpose.msra.mxu0 0.0
    %7386 = vmatprep.subr.mxu0 0.0
    %7387 = vmatpush2.xpose.msra.mxu0 0.0
    %7388 = vmatprep.subr.mxu0 0.0
    %7389 = vmatpush2.xpose.msra.mxu0 0.0
    %7390 = vmatprep.subr.mxu0 0.0
    %7391 = vmatpush2.xpose.msra.mxu0 0.0
    %7392 = vmatprep.subr.mxu0 0.0
    %7393 = vmatpush2.xpose.msra.mxu0 0.0
    %7394 = vmatprep.subr.mxu0 0.0
    %7395 = vmatpush2.xpose.msra.mxu0 0.0
    %7396 = vmatprep.subr.mxu0 0.0
    %7397 = vmatpush2.xpose.msra.mxu0 0.0
    %7398 = vmatprep.subr.mxu0 0.0
    %7399 = vmatpush2.xpose.msra.mxu0 0.0
    %7400 = vmatprep.subr.mxu0 0.0
    %7401 = vmatpush2.xpose.msra.mxu0 0.0
    %7402 = vmatprep.subr.mxu0 0.0
    %7403 = vmatpush2.xpose.msra.mxu0 0.0
    %7404 = vmatprep.subr.mxu0 0.0
    %7405 = vmatpush2.xpose.msra.mxu0 0.0
    %7406 = vmatprep.subr.mxu0 0.0
    %7407 = vmatpush2.xpose.msra.mxu0 0.0
    %7408 = vmatprep.subr.mxu0 0.0
    %7409 = vmatpush2.xpose.msra.mxu0 0.0
    %7410 = vmatprep.subr.mxu0 0.0
    %7411 = vmatpush2.xpose.msra.mxu0 0.0
    %7412 = vmatprep.subr.mxu0 0.0
    %7413 = vmatpush2.xpose.msra.mxu0 0.0
    %7414 = vmatprep.subr.mxu0 0.0
    %7415 = vmatpush2.xpose.msra.mxu0 0.0
    %7416 = vmatprep.mubr.f32.mxu0 0.0
    %7417 = vmatmul.mubr.f32.gmra.mxu0 %v7348
    %v7418 = vpop.f32.mrf.mxu0
    %v7419 = vadd.f32 %v237, %v7418
    %v7420 = vpop.f32.mrf.mxu0
    %7421 = vdwg.mxu0
    %7422 = vrot.lane.b32.xlu0 %v7177, 120
    %v7423 = vpop.permute.xlu0 %7422
    %v7424 = vsel %vm373, %v7177, 0
    %v7426 = vsel %vm373, %v7423, 0
    %7428 = vmatprep.subr.mxu0 0.0
    %7429 = vmatpush1.xpose.msra.mxu0 0.0
    %7430 = vmatprep.subr.mxu0 0.0
    %7431 = vmatpush1.xpose.msra.mxu0 0.0
    %7432 = vmatprep.subr.mxu0 0.0
    %7433 = vmatpush1.xpose.msra.mxu0 0.0
    %7434 = vmatprep.subr.mxu0 0.0
    %7435 = vmatpush1.xpose.msra.mxu0 0.0
    %7436 = vmatprep.subr.mxu0 0.0
    %7437 = vmatpush1.xpose.msra.mxu0 0.0
    %7438 = vmatprep.subr.mxu0 0.0
    %7439 = vmatpush1.xpose.msra.mxu0 0.0
    %7440 = vmatprep.subr.mxu0 0.0
    %7441 = vmatpush1.xpose.msra.mxu0 0.0
    %7442 = vmatprep.subr.mxu0 0.0
    %7443 = vmatpush1.xpose.msra.mxu0 0.0
    %7444 = vmatprep.subr.mxu0 0.0
    %7445 = vmatpush1.xpose.msra.mxu0 0.0
    %7446 = vmatprep.subr.mxu0 0.0
    %7447 = vmatpush1.xpose.msra.mxu0 0.0
    %7448 = vmatprep.subr.mxu0 0.0
    %7449 = vmatpush1.xpose.msra.mxu0 0.0
    %7450 = vmatprep.subr.mxu0 0.0
    %7451 = vmatpush1.xpose.msra.mxu0 0.0
    %7452 = vmatprep.subr.mxu0 0.0
    %7453 = vmatpush1.xpose.msra.mxu0 0.0
    %7454 = vmatprep.subr.mxu0 0.0
    %7455 = vmatpush1.xpose.msra.mxu0 0.0
    %7456 = vmatprep.subr.mxu0 0.0
    %7457 = vmatpush1.xpose.msra.mxu0 0.0
    %7458 = vmatprep.subr.mxu0 0.0
    %7459 = vmatpush1.xpose.msra.mxu0 %v7426
    %7460 = vmatprep.subr.mxu0 0.0
    %7461 = vmatpush2.xpose.msra.mxu0 0.0
    %7462 = vmatprep.subr.mxu0 0.0
    %7463 = vmatpush2.xpose.msra.mxu0 0.0
    %7464 = vmatprep.subr.mxu0 0.0
    %7465 = vmatpush2.xpose.msra.mxu0 0.0
    %7466 = vmatprep.subr.mxu0 0.0
    %7467 = vmatpush2.xpose.msra.mxu0 0.0
    %7468 = vmatprep.subr.mxu0 0.0
    %7469 = vmatpush2.xpose.msra.mxu0 0.0
    %7470 = vmatprep.subr.mxu0 0.0
    %7471 = vmatpush2.xpose.msra.mxu0 0.0
    %7472 = vmatprep.subr.mxu0 0.0
    %7473 = vmatpush2.xpose.msra.mxu0 0.0
    %7474 = vmatprep.subr.mxu0 0.0
    %7475 = vmatpush2.xpose.msra.mxu0 0.0
    %7476 = vmatprep.subr.mxu0 0.0
    %7477 = vmatpush2.xpose.msra.mxu0 0.0
    %7478 = vmatprep.subr.mxu0 0.0
    %7479 = vmatpush2.xpose.msra.mxu0 0.0
    %7480 = vmatprep.subr.mxu0 0.0
    %7481 = vmatpush2.xpose.msra.mxu0 0.0
    %7482 = vmatprep.subr.mxu0 0.0
    %7483 = vmatpush2.xpose.msra.mxu0 0.0
    %7484 = vmatprep.subr.mxu0 0.0
    %7485 = vmatpush2.xpose.msra.mxu0 0.0
    %7486 = vmatprep.subr.mxu0 0.0
    %7487 = vmatpush2.xpose.msra.mxu0 0.0
    %7488 = vmatprep.subr.mxu0 0.0
    %7489 = vmatpush2.xpose.msra.mxu0 0.0
    %7490 = vmatprep.subr.mxu0 0.0
    %7491 = vmatpush2.xpose.msra.mxu0 0.0
    %7492 = vmatprep.mubr.f32.mxu0 0.0
    %7493 = vmatmul.mubr.f32.gmra.mxu0 %v7424
    %v7494 = vpop.f32.mrf.mxu0
    %v7495 = vadd.f32 %v241, %v7494
    %v7496 = vpop.f32.mrf.mxu0
    %7497 = vdwg.mxu0
    %7498 = vrot.lane.b32.xlu0 %v7188, 120
    %v7499 = vpop.permute.xlu0 %7498
    %v7500 = vsel %vm373, %v7188, 0
    %v7502 = vsel %vm373, %v7499, 0
    %7504 = vmatprep.subr.mxu0 0.0
    %7505 = vmatpush1.xpose.msra.mxu0 0.0
    %7506 = vmatprep.subr.mxu0 0.0
    %7507 = vmatpush1.xpose.msra.mxu0 0.0
    %7508 = vmatprep.subr.mxu0 0.0
    %7509 = vmatpush1.xpose.msra.mxu0 0.0
    %7510 = vmatprep.subr.mxu0 0.0
    %7511 = vmatpush1.xpose.msra.mxu0 0.0
    %7512 = vmatprep.subr.mxu0 0.0
    %7513 = vmatpush1.xpose.msra.mxu0 0.0
    %7514 = vmatprep.subr.mxu0 0.0
    %7515 = vmatpush1.xpose.msra.mxu0 0.0
    %7516 = vmatprep.subr.mxu0 0.0
    %7517 = vmatpush1.xpose.msra.mxu0 0.0
    %7518 = vmatprep.subr.mxu0 0.0
    %7519 = vmatpush1.xpose.msra.mxu0 0.0
    %7520 = vmatprep.subr.mxu0 0.0
    %7521 = vmatpush1.xpose.msra.mxu0 0.0
    %7522 = vmatprep.subr.mxu0 0.0
    %7523 = vmatpush1.xpose.msra.mxu0 0.0
    %7524 = vmatprep.subr.mxu0 0.0
    %7525 = vmatpush1.xpose.msra.mxu0 0.0
    %7526 = vmatprep.subr.mxu0 0.0
    %7527 = vmatpush1.xpose.msra.mxu0 0.0
    %7528 = vmatprep.subr.mxu0 0.0
    %7529 = vmatpush1.xpose.msra.mxu0 0.0
    %7530 = vmatprep.subr.mxu0 0.0
    %7531 = vmatpush1.xpose.msra.mxu0 0.0
    %7532 = vmatprep.subr.mxu0 0.0
    %7533 = vmatpush1.xpose.msra.mxu0 0.0
    %7534 = vmatprep.subr.mxu0 0.0
    %7535 = vmatpush1.xpose.msra.mxu0 %v7502
    %7536 = vmatprep.subr.mxu0 0.0
    %7537 = vmatpush2.xpose.msra.mxu0 0.0
    %7538 = vmatprep.subr.mxu0 0.0
    %7539 = vmatpush2.xpose.msra.mxu0 0.0
    %7540 = vmatprep.subr.mxu0 0.0
    %7541 = vmatpush2.xpose.msra.mxu0 0.0
    %7542 = vmatprep.subr.mxu0 0.0
    %7543 = vmatpush2.xpose.msra.mxu0 0.0
    %7544 = vmatprep.subr.mxu0 0.0
    %7545 = vmatpush2.xpose.msra.mxu0 0.0
    %7546 = vmatprep.subr.mxu0 0.0
    %7547 = vmatpush2.xpose.msra.mxu0 0.0
    %7548 = vmatprep.subr.mxu0 0.0
    %7549 = vmatpush2.xpose.msra.mxu0 0.0
    %7550 = vmatprep.subr.mxu0 0.0
    %7551 = vmatpush2.xpose.msra.mxu0 0.0
    %7552 = vmatprep.subr.mxu0 0.0
    %7553 = vmatpush2.xpose.msra.mxu0 0.0
    %7554 = vmatprep.subr.mxu0 0.0
    %7555 = vmatpush2.xpose.msra.mxu0 0.0
    %7556 = vmatprep.subr.mxu0 0.0
    %7557 = vmatpush2.xpose.msra.mxu0 0.0
    %7558 = vmatprep.subr.mxu0 0.0
    %7559 = vmatpush2.xpose.msra.mxu0 0.0
    %7560 = vmatprep.subr.mxu0 0.0
    %7561 = vmatpush2.xpose.msra.mxu0 0.0
    %7562 = vmatprep.subr.mxu0 0.0
    %7563 = vmatpush2.xpose.msra.mxu0 0.0
    %7564 = vmatprep.subr.mxu0 0.0
    %7565 = vmatpush2.xpose.msra.mxu0 0.0
    %7566 = vmatprep.subr.mxu0 0.0
    %7567 = vmatpush2.xpose.msra.mxu0 0.0
    %7568 = vmatprep.mubr.f32.mxu0 0.0
    %7569 = vmatmul.mubr.f32.gmra.mxu0 %v7500
    %v7570 = vpop.f32.mrf.mxu0
    %v7571 = vadd.f32 %v245, %v7570
    %v7572 = vpop.f32.mrf.mxu0
    %7573 = vdwg.mxu0
    %7574 = vrot.lane.b32.xlu0 %v7189, 120
    %v7575 = vpop.permute.xlu0 %7574
    %v7576 = vsel %vm373, %v7189, 0
    %v7578 = vsel %vm373, %v7575, 0
    %7580 = vmatprep.subr.mxu0 0.0
    %7581 = vmatpush1.xpose.msra.mxu0 0.0
    %7582 = vmatprep.subr.mxu0 0.0
    %7583 = vmatpush1.xpose.msra.mxu0 0.0
    %7584 = vmatprep.subr.mxu0 0.0
    %7585 = vmatpush1.xpose.msra.mxu0 0.0
    %7586 = vmatprep.subr.mxu0 0.0
    %7587 = vmatpush1.xpose.msra.mxu0 0.0
    %7588 = vmatprep.subr.mxu0 0.0
    %7589 = vmatpush1.xpose.msra.mxu0 0.0
    %7590 = vmatprep.subr.mxu0 0.0
    %7591 = vmatpush1.xpose.msra.mxu0 0.0
    %7592 = vmatprep.subr.mxu0 0.0
    %7593 = vmatpush1.xpose.msra.mxu0 0.0
    %7594 = vmatprep.subr.mxu0 0.0
    %7595 = vmatpush1.xpose.msra.mxu0 0.0
    %7596 = vmatprep.subr.mxu0 0.0
    %7597 = vmatpush1.xpose.msra.mxu0 0.0
    %7598 = vmatprep.subr.mxu0 0.0
    %7599 = vmatpush1.xpose.msra.mxu0 0.0
    %7600 = vmatprep.subr.mxu0 0.0
    %7601 = vmatpush1.xpose.msra.mxu0 0.0
    %7602 = vmatprep.subr.mxu0 0.0
    %7603 = vmatpush1.xpose.msra.mxu0 0.0
    %7604 = vmatprep.subr.mxu0 0.0
    %7605 = vmatpush1.xpose.msra.mxu0 0.0
    %7606 = vmatprep.subr.mxu0 0.0
    %7607 = vmatpush1.xpose.msra.mxu0 0.0
    %7608 = vmatprep.subr.mxu0 0.0
    %7609 = vmatpush1.xpose.msra.mxu0 0.0
    %7610 = vmatprep.subr.mxu0 0.0
    %7611 = vmatpush1.xpose.msra.mxu0 %v7578
    %7612 = vmatprep.subr.mxu0 0.0
    %7613 = vmatpush2.xpose.msra.mxu0 0.0
    %7614 = vmatprep.subr.mxu0 0.0
    %7615 = vmatpush2.xpose.msra.mxu0 0.0
    %7616 = vmatprep.subr.mxu0 0.0
    %7617 = vmatpush2.xpose.msra.mxu0 0.0
    %7618 = vmatprep.subr.mxu0 0.0
    %7619 = vmatpush2.xpose.msra.mxu0 0.0
    %7620 = vmatprep.subr.mxu0 0.0
    %7621 = vmatpush2.xpose.msra.mxu0 0.0
    %7622 = vmatprep.subr.mxu0 0.0
    %7623 = vmatpush2.xpose.msra.mxu0 0.0
    %7624 = vmatprep.subr.mxu0 0.0
    %7625 = vmatpush2.xpose.msra.mxu0 0.0
    %7626 = vmatprep.subr.mxu0 0.0
    %7627 = vmatpush2.xpose.msra.mxu0 0.0
    %7628 = vmatprep.subr.mxu0 0.0
    %7629 = vmatpush2.xpose.msra.mxu0 0.0
    %7630 = vmatprep.subr.mxu0 0.0
    %7631 = vmatpush2.xpose.msra.mxu0 0.0
    %7632 = vmatprep.subr.mxu0 0.0
    %7633 = vmatpush2.xpose.msra.mxu0 0.0
    %7634 = vmatprep.subr.mxu0 0.0
    %7635 = vmatpush2.xpose.msra.mxu0 0.0
    %7636 = vmatprep.subr.mxu0 0.0
    %7637 = vmatpush2.xpose.msra.mxu0 0.0
    %7638 = vmatprep.subr.mxu0 0.0
    %7639 = vmatpush2.xpose.msra.mxu0 0.0
    %7640 = vmatprep.subr.mxu0 0.0
    %7641 = vmatpush2.xpose.msra.mxu0 0.0
    %7642 = vmatprep.subr.mxu0 0.0
    %7643 = vmatpush2.xpose.msra.mxu0 0.0
    %7644 = vmatprep.mubr.f32.mxu0 0.0
    %7645 = vmatmul.mubr.f32.gmra.mxu0 %v7576
    %v7646 = vpop.f32.mrf.mxu0
    %v7647 = vadd.f32 %v249, %v7646
    %v7648 = vpop.f32.mrf.mxu0
    %7649 = vdwg.mxu0
    %7650 = vrot.lane.b32.xlu0 %v7191, 120
    %v7651 = vpop.permute.xlu0 %7650
    %v7652 = vsel %vm373, %v7191, 0
    %v7654 = vsel %vm373, %v7651, 0
    %7656 = vmatprep.subr.mxu0 0.0
    %7657 = vmatpush1.xpose.msra.mxu0 0.0
    %7658 = vmatprep.subr.mxu0 0.0
    %7659 = vmatpush1.xpose.msra.mxu0 0.0
    %7660 = vmatprep.subr.mxu0 0.0
    %7661 = vmatpush1.xpose.msra.mxu0 0.0
    %7662 = vmatprep.subr.mxu0 0.0
    %7663 = vmatpush1.xpose.msra.mxu0 0.0
    %7664 = vmatprep.subr.mxu0 0.0
    %7665 = vmatpush1.xpose.msra.mxu0 0.0
    %7666 = vmatprep.subr.mxu0 0.0
    %7667 = vmatpush1.xpose.msra.mxu0 0.0
    %7668 = vmatprep.subr.mxu0 0.0
    %7669 = vmatpush1.xpose.msra.mxu0 0.0
    %7670 = vmatprep.subr.mxu0 0.0
    %7671 = vmatpush1.xpose.msra.mxu0 0.0
    %7672 = vmatprep.subr.mxu0 0.0
    %7673 = vmatpush1.xpose.msra.mxu0 0.0
    %7674 = vmatprep.subr.mxu0 0.0
    %7675 = vmatpush1.xpose.msra.mxu0 0.0
    %7676 = vmatprep.subr.mxu0 0.0
    %7677 = vmatpush1.xpose.msra.mxu0 0.0
    %7678 = vmatprep.subr.mxu0 0.0
    %7679 = vmatpush1.xpose.msra.mxu0 0.0
    %7680 = vmatprep.subr.mxu0 0.0
    %7681 = vmatpush1.xpose.msra.mxu0 0.0
    %7682 = vmatprep.subr.mxu0 0.0
    %7683 = vmatpush1.xpose.msra.mxu0 0.0
    %7684 = vmatprep.subr.mxu0 0.0
    %7685 = vmatpush1.xpose.msra.mxu0 0.0
    %7686 = vmatprep.subr.mxu0 0.0
    %7687 = vmatpush1.xpose.msra.mxu0 %v7654
    %7688 = vmatprep.subr.mxu0 0.0
    %7689 = vmatpush2.xpose.msra.mxu0 0.0
    %7690 = vmatprep.subr.mxu0 0.0
    %7691 = vmatpush2.xpose.msra.mxu0 0.0
    %7692 = vmatprep.subr.mxu0 0.0
    %7693 = vmatpush2.xpose.msra.mxu0 0.0
    %7694 = vmatprep.subr.mxu0 0.0
    %7695 = vmatpush2.xpose.msra.mxu0 0.0
    %7696 = vmatprep.subr.mxu0 0.0
    %7697 = vmatpush2.xpose.msra.mxu0 0.0
    %7698 = vmatprep.subr.mxu0 0.0
    %7699 = vmatpush2.xpose.msra.mxu0 0.0
    %7700 = vmatprep.subr.mxu0 0.0
    %7701 = vmatpush2.xpose.msra.mxu0 0.0
    %7702 = vmatprep.subr.mxu0 0.0
    %7703 = vmatpush2.xpose.msra.mxu0 0.0
    %7704 = vmatprep.subr.mxu0 0.0
    %7705 = vmatpush2.xpose.msra.mxu0 0.0
    %7706 = vmatprep.subr.mxu0 0.0
    %7707 = vmatpush2.xpose.msra.mxu0 0.0
    %7708 = vmatprep.subr.mxu0 0.0
    %7709 = vmatpush2.xpose.msra.mxu0 0.0
    %7710 = vmatprep.subr.mxu0 0.0
    %7711 = vmatpush2.xpose.msra.mxu0 0.0
    %7712 = vmatprep.subr.mxu0 0.0
    %7713 = vmatpush2.xpose.msra.mxu0 0.0
    %7714 = vmatprep.subr.mxu0 0.0
    %7715 = vmatpush2.xpose.msra.mxu0 0.0
    %7716 = vmatprep.subr.mxu0 0.0
    %7717 = vmatpush2.xpose.msra.mxu0 0.0
    %7718 = vmatprep.subr.mxu0 0.0
    %7719 = vmatpush2.xpose.msra.mxu0 0.0
    %7720 = vmatprep.mubr.f32.mxu0 0.0
    %7721 = vmatmul.mubr.f32.gmra.mxu0 %v7652
    %v7722 = vpop.f32.mrf.mxu0
    %v7723 = vadd.f32 %v253, %v7722
    %v7724 = vpop.f32.mrf.mxu0
    %7725 = vdwg.mxu0
    %7726 = vrot.lane.b32.xlu0 %v7193, 120
    %v7727 = vpop.permute.xlu0 %7726
    %v7728 = vsel %vm373, %v7193, 0
    %v7730 = vsel %vm373, %v7727, 0
    %7732 = vmatprep.subr.mxu0 0.0
    %7733 = vmatpush1.xpose.msra.mxu0 0.0
    %7734 = vmatprep.subr.mxu0 0.0
    %7735 = vmatpush1.xpose.msra.mxu0 0.0
    %7736 = vmatprep.subr.mxu0 0.0
    %7737 = vmatpush1.xpose.msra.mxu0 0.0
    %7738 = vmatprep.subr.mxu0 0.0
    %7739 = vmatpush1.xpose.msra.mxu0 0.0
    %7740 = vmatprep.subr.mxu0 0.0
    %7741 = vmatpush1.xpose.msra.mxu0 0.0
    %7742 = vmatprep.subr.mxu0 0.0
    %7743 = vmatpush1.xpose.msra.mxu0 0.0
    %7744 = vmatprep.subr.mxu0 0.0
    %7745 = vmatpush1.xpose.msra.mxu0 0.0
    %7746 = vmatprep.subr.mxu0 0.0
    %7747 = vmatpush1.xpose.msra.mxu0 0.0
    %7748 = vmatprep.subr.mxu0 0.0
    %7749 = vmatpush1.xpose.msra.mxu0 0.0
    %7750 = vmatprep.subr.mxu0 0.0
    %7751 = vmatpush1.xpose.msra.mxu0 0.0
    %7752 = vmatprep.subr.mxu0 0.0
    %7753 = vmatpush1.xpose.msra.mxu0 0.0
    %7754 = vmatprep.subr.mxu0 0.0
    %7755 = vmatpush1.xpose.msra.mxu0 0.0
    %7756 = vmatprep.subr.mxu0 0.0
    %7757 = vmatpush1.xpose.msra.mxu0 0.0
    %7758 = vmatprep.subr.mxu0 0.0
    %7759 = vmatpush1.xpose.msra.mxu0 0.0
    %7760 = vmatprep.subr.mxu0 0.0
    %7761 = vmatpush1.xpose.msra.mxu0 0.0
    %7762 = vmatprep.subr.mxu0 0.0
    %7763 = vmatpush1.xpose.msra.mxu0 %v7730
    %7764 = vmatprep.subr.mxu0 0.0
    %7765 = vmatpush2.xpose.msra.mxu0 0.0
    %7766 = vmatprep.subr.mxu0 0.0
    %7767 = vmatpush2.xpose.msra.mxu0 0.0
    %7768 = vmatprep.subr.mxu0 0.0
    %7769 = vmatpush2.xpose.msra.mxu0 0.0
    %7770 = vmatprep.subr.mxu0 0.0
    %7771 = vmatpush2.xpose.msra.mxu0 0.0
    %7772 = vmatprep.subr.mxu0 0.0
    %7773 = vmatpush2.xpose.msra.mxu0 0.0
    %7774 = vmatprep.subr.mxu0 0.0
    %7775 = vmatpush2.xpose.msra.mxu0 0.0
    %7776 = vmatprep.subr.mxu0 0.0
    %7777 = vmatpush2.xpose.msra.mxu0 0.0
    %7778 = vmatprep.subr.mxu0 0.0
    %7779 = vmatpush2.xpose.msra.mxu0 0.0
    %7780 = vmatprep.subr.mxu0 0.0
    %7781 = vmatpush2.xpose.msra.mxu0 0.0
    %7782 = vmatprep.subr.mxu0 0.0
    %7783 = vmatpush2.xpose.msra.mxu0 0.0
    %7784 = vmatprep.subr.mxu0 0.0
    %7785 = vmatpush2.xpose.msra.mxu0 0.0
    %7786 = vmatprep.subr.mxu0 0.0
    %7787 = vmatpush2.xpose.msra.mxu0 0.0
    %7788 = vmatprep.subr.mxu0 0.0
    %7789 = vmatpush2.xpose.msra.mxu0 0.0
    %7790 = vmatprep.subr.mxu0 0.0
    %7791 = vmatpush2.xpose.msra.mxu0 0.0
    %7792 = vmatprep.subr.mxu0 0.0
    %7793 = vmatpush2.xpose.msra.mxu0 0.0
    %7794 = vmatprep.subr.mxu0 0.0
    %7795 = vmatpush2.xpose.msra.mxu0 0.0
    %7796 = vmatprep.mubr.f32.mxu0 0.0
    %7797 = vmatmul.mubr.f32.gmra.mxu0 %v7728
    %v7798 = vpop.f32.mrf.mxu0
    %v7799 = vadd.f32 %v257, %v7798
    %v7800 = vpop.f32.mrf.mxu0
    %7801 = vdwg.mxu0
    %v7802 = vsel %vm373, %v7267, -inf
    %7803 = vmax.xlane.f32.xlu0 %v7802
    %v7804 = vpop.xlane.xlu0 %7803
    %v7805 = vsel %vm373, %v7343, -inf
    %7806 = vmax.xlane.f32.xlu0 %v7805
    %v7807 = vpop.xlane.xlu0 %7806
    %v7808 = vsel %vm373, %v7419, -inf
    %7809 = vmax.xlane.f32.xlu0 %v7808
    %v7810 = vpop.xlane.xlu0 %7809
    %v7811 = vsel %vm373, %v7495, -inf
    %7812 = vmax.xlane.f32.xlu0 %v7811
    %v7813 = vpop.xlane.xlu0 %7812
    %v7814 = vsel %vm373, %v7571, -inf
    %7815 = vmax.xlane.f32.xlu0 %v7814
    %v7816 = vpop.xlane.xlu0 %7815
    %v7817 = vsel %vm373, %v7647, -inf
    %7818 = vmax.xlane.f32.xlu0 %v7817
    %v7819 = vpop.xlane.xlu0 %7818
    %v7820 = vsel %vm373, %v7723, -inf
    %7821 = vmax.xlane.f32.xlu0 %v7820
    %v7822 = vpop.xlane.xlu0 %7821
    %v7823 = vsel %vm373, %v7799, -inf
    %7824 = vmax.xlane.f32.xlu0 %v7823
    %v7825 = vpop.xlane.xlu0 %7824
    %v7826 = vsub.f32 %v7267, %v7804
    %v7827 = vsub.f32 %v7343, %v7807
    %v7828 = vsub.f32 %v7419, %v7810
    %v7829 = vsub.f32 %v7495, %v7813
    %v7830 = vsub.f32 %v7571, %v7816
    %v7831 = vsub.f32 %v7647, %v7819
    %v7832 = vsub.f32 %v7723, %v7822
    %v7833 = vsub.f32 %v7799, %v7825
    %v7834 = vmul.f32 %v7826, 1.442695
    %v7835 = vpow.pop %v7834
    %v7836 = vmul.f32 %v7827, 1.442695
    %v7837 = vpow.pop %v7836
    %v7838 = vmul.f32 %v7828, 1.442695
    %v7839 = vpow.pop %v7838
    %v7840 = vmul.f32 %v7829, 1.442695
    %v7841 = vpow.pop %v7840
    %v7842 = vmul.f32 %v7830, 1.442695
    %v7843 = vpow.pop %v7842
    %v7844 = vmul.f32 %v7831, 1.442695
    %v7845 = vpow.pop %v7844
    %v7846 = vmul.f32 %v7832, 1.442695
    %v7847 = vpow.pop %v7846
    %v7848 = vmul.f32 %v7833, 1.442695
    %v7849 = vpow.pop %v7848
    %v7850 = vsel %vm373, %v7835, 0.0
    %7851 = vadd.xlane.f32.xlu0 %v7850
    %v7852 = vpop.xlane.xlu0 %7851
    %v7853 = vsel %vm373, %v7837, 0.0
    %7854 = vadd.xlane.f32.xlu0 %v7853
    %v7855 = vpop.xlane.xlu0 %7854
    %v7856 = vsel %vm373, %v7839, 0.0
    %7857 = vadd.xlane.f32.xlu0 %v7856
    %v7858 = vpop.xlane.xlu0 %7857
    %v7859 = vsel %vm373, %v7841, 0.0
    %7860 = vadd.xlane.f32.xlu0 %v7859
    %v7861 = vpop.xlane.xlu0 %7860
    %v7862 = vsel %vm373, %v7843, 0.0
    %7863 = vadd.xlane.f32.xlu0 %v7862
    %v7864 = vpop.xlane.xlu0 %7863
    %v7865 = vsel %vm373, %v7845, 0.0
    %7866 = vadd.xlane.f32.xlu0 %v7865
    %v7867 = vpop.xlane.xlu0 %7866
    %v7868 = vsel %vm373, %v7847, 0.0
    %7869 = vadd.xlane.f32.xlu0 %v7868
    %v7870 = vpop.xlane.xlu0 %7869
    %v7871 = vsel %vm373, %v7849, 0.0
    %7872 = vadd.xlane.f32.xlu0 %v7871
    %v7873 = vpop.xlane.xlu0 %7872
    %v7874 = vrcp.pop %v7852
    %v7875 = vrcp.pop %v7855
    %v7876 = vrcp.pop %v7858
    %v7877 = vrcp.pop %v7861
    %v7878 = vrcp.pop %v7864
    %v7879 = vrcp.pop %v7867
    %v7880 = vrcp.pop %v7870
    %v7881 = vrcp.pop %v7873
    %v7882 = vmul.f32 %v7835, %v7874
    %v7883 = vmul.f32 %v7837, %v7875
    %v7884 = vmul.f32 %v7839, %v7876
    %v7885 = vmul.f32 %v7841, %v7877
    %v7886 = vmul.f32 %v7843, %v7878
    %v7887 = vmul.f32 %v7845, %v7879
    %v7888 = vmul.f32 %v7847, %v7880
    %v7889 = vmul.f32 %v7849, %v7881
    %7890 = vrot.lane.b32.xlu0 %v7164, 112
    %v7891 = vpop.permute.xlu0 %7890
    %v7894 = vsel %vm373, %v7882, 0
    %7896 = vmatprep.subr.mxu0 0.0
    %7897 = vmatpush1.msra.mxu0 0.0
    %7898 = vmatprep.subr.mxu0 0.0
    %7899 = vmatpush1.msra.mxu0 0.0
    %7900 = vmatprep.subr.mxu0 0.0
    %7901 = vmatpush1.msra.mxu0 0.0
    %7902 = vmatprep.subr.mxu0 0.0
    %7903 = vmatpush1.msra.mxu0 0.0
    %7904 = vmatprep.subr.mxu0 0.0
    %7905 = vmatpush1.msra.mxu0 0.0
    %7906 = vmatprep.subr.mxu0 0.0
    %7907 = vmatpush1.msra.mxu0 0.0
    %7908 = vmatprep.subr.mxu0 0.0
    %7909 = vmatpush1.msra.mxu0 0.0
    %7910 = vmatprep.subr.mxu0 0.0
    %7911 = vmatpush1.msra.mxu0 0.0
    %7912 = vmatprep.subr.mxu0 0.0
    %7913 = vmatpush1.msra.mxu0 0.0
    %7914 = vmatprep.subr.mxu0 0.0
    %7915 = vmatpush1.msra.mxu0 0.0
    %7916 = vmatprep.subr.mxu0 0.0
    %7917 = vmatpush1.msra.mxu0 0.0
    %7918 = vmatprep.subr.mxu0 0.0
    %7919 = vmatpush1.msra.mxu0 0.0
    %7920 = vmatprep.subr.mxu0 0.0
    %7921 = vmatpush1.msra.mxu0 0.0
    %7922 = vmatprep.subr.mxu0 0.0
    %7923 = vmatpush1.msra.mxu0 0.0
    %7924 = vmatprep.subr.mxu0 0.0
    %7925 = vmatpush1.msra.mxu0 0.0
    %7926 = vmatprep.subr.mxu0 0.0
    %7927 = vmatpush1.msra.mxu0 %v7891
    %7928 = vmatprep.subr.mxu0 0.0
    %7929 = vmatpush2.msra.mxu0 0.0
    %7930 = vmatprep.subr.mxu0 0.0
    %7931 = vmatpush2.msra.mxu0 0.0
    %7932 = vmatprep.subr.mxu0 0.0
    %7933 = vmatpush2.msra.mxu0 0.0
    %7934 = vmatprep.subr.mxu0 0.0
    %7935 = vmatpush2.msra.mxu0 0.0
    %7936 = vmatprep.subr.mxu0 0.0
    %7937 = vmatpush2.msra.mxu0 0.0
    %7938 = vmatprep.subr.mxu0 0.0
    %7939 = vmatpush2.msra.mxu0 0.0
    %7940 = vmatprep.subr.mxu0 0.0
    %7941 = vmatpush2.msra.mxu0 0.0
    %7942 = vmatprep.subr.mxu0 0.0
    %7943 = vmatpush2.msra.mxu0 0.0
    %7944 = vmatprep.subr.mxu0 0.0
    %7945 = vmatpush2.msra.mxu0 0.0
    %7946 = vmatprep.subr.mxu0 0.0
    %7947 = vmatpush2.msra.mxu0 0.0
    %7948 = vmatprep.subr.mxu0 0.0
    %7949 = vmatpush2.msra.mxu0 0.0
    %7950 = vmatprep.subr.mxu0 0.0
    %7951 = vmatpush2.msra.mxu0 0.0
    %7952 = vmatprep.subr.mxu0 0.0
    %7953 = vmatpush2.msra.mxu0 0.0
    %7954 = vmatprep.subr.mxu0 0.0
    %7955 = vmatpush2.msra.mxu0 0.0
    %7956 = vmatprep.subr.mxu0 0.0
    %7957 = vmatpush2.msra.mxu0 0.0
    %7958 = vmatprep.subr.mxu0 0.0
    %7959 = vmatpush2.msra.mxu0 0.0
    %7960 = vmatprep.mubr.f32.mxu0 0.0
    %7961 = vmatmul.mubr.f32.gmra.mxu0 %v7894
    %v7962 = vpop.f32.mrf.mxu0
    %v7963 = vadd.f32 0.0, %v7962
    %v7964 = vpop.f32.mrf.mxu0
    %7965 = vdwg.mxu0
    %7966 = vrot.lane.b32.xlu0 %v7168, 112
    %v7967 = vpop.permute.xlu0 %7966
    %v7970 = vsel %vm373, %v7883, 0
    %7972 = vmatprep.subr.mxu0 0.0
    %7973 = vmatpush1.msra.mxu0 0.0
    %7974 = vmatprep.subr.mxu0 0.0
    %7975 = vmatpush1.msra.mxu0 0.0
    %7976 = vmatprep.subr.mxu0 0.0
    %7977 = vmatpush1.msra.mxu0 0.0
    %7978 = vmatprep.subr.mxu0 0.0
    %7979 = vmatpush1.msra.mxu0 0.0
    %7980 = vmatprep.subr.mxu0 0.0
    %7981 = vmatpush1.msra.mxu0 0.0
    %7982 = vmatprep.subr.mxu0 0.0
    %7983 = vmatpush1.msra.mxu0 0.0
    %7984 = vmatprep.subr.mxu0 0.0
    %7985 = vmatpush1.msra.mxu0 0.0
    %7986 = vmatprep.subr.mxu0 0.0
    %7987 = vmatpush1.msra.mxu0 0.0
    %7988 = vmatprep.subr.mxu0 0.0
    %7989 = vmatpush1.msra.mxu0 0.0
    %7990 = vmatprep.subr.mxu0 0.0
    %7991 = vmatpush1.msra.mxu0 0.0
    %7992 = vmatprep.subr.mxu0 0.0
    %7993 = vmatpush1.msra.mxu0 0.0
    %7994 = vmatprep.subr.mxu0 0.0
    %7995 = vmatpush1.msra.mxu0 0.0
    %7996 = vmatprep.subr.mxu0 0.0
    %7997 = vmatpush1.msra.mxu0 0.0
    %7998 = vmatprep.subr.mxu0 0.0
    %7999 = vmatpush1.msra.mxu0 0.0
    %8000 = vmatprep.subr.mxu0 0.0
    %8001 = vmatpush1.msra.mxu0 0.0
    %8002 = vmatprep.subr.mxu0 0.0
    %8003 = vmatpush1.msra.mxu0 %v7967
    %8004 = vmatprep.subr.mxu0 0.0
    %8005 = vmatpush2.msra.mxu0 0.0
    %8006 = vmatprep.subr.mxu0 0.0
    %8007 = vmatpush2.msra.mxu0 0.0
    %8008 = vmatprep.subr.mxu0 0.0
    %8009 = vmatpush2.msra.mxu0 0.0
    %8010 = vmatprep.subr.mxu0 0.0
    %8011 = vmatpush2.msra.mxu0 0.0
    %8012 = vmatprep.subr.mxu0 0.0
    %8013 = vmatpush2.msra.mxu0 0.0
    %8014 = vmatprep.subr.mxu0 0.0
    %8015 = vmatpush2.msra.mxu0 0.0
    %8016 = vmatprep.subr.mxu0 0.0
    %8017 = vmatpush2.msra.mxu0 0.0
    %8018 = vmatprep.subr.mxu0 0.0
    %8019 = vmatpush2.msra.mxu0 0.0
    %8020 = vmatprep.subr.mxu0 0.0
    %8021 = vmatpush2.msra.mxu0 0.0
    %8022 = vmatprep.subr.mxu0 0.0
    %8023 = vmatpush2.msra.mxu0 0.0
    %8024 = vmatprep.subr.mxu0 0.0
    %8025 = vmatpush2.msra.mxu0 0.0
    %8026 = vmatprep.subr.mxu0 0.0
    %8027 = vmatpush2.msra.mxu0 0.0
    %8028 = vmatprep.subr.mxu0 0.0
    %8029 = vmatpush2.msra.mxu0 0.0
    %8030 = vmatprep.subr.mxu0 0.0
    %8031 = vmatpush2.msra.mxu0 0.0
    %8032 = vmatprep.subr.mxu0 0.0
    %8033 = vmatpush2.msra.mxu0 0.0
    %8034 = vmatprep.subr.mxu0 0.0
    %8035 = vmatpush2.msra.mxu0 0.0
    %8036 = vmatprep.mubr.f32.mxu0 0.0
    %8037 = vmatmul.mubr.f32.gmra.mxu0 %v7970
    %v8038 = vpop.f32.mrf.mxu0
    %v8039 = vadd.f32 0.0, %v8038
    %v8040 = vpop.f32.mrf.mxu0
    %8041 = vdwg.mxu0
    %8042 = vrot.lane.b32.xlu0 %v7175, 112
    %v8043 = vpop.permute.xlu0 %8042
    %v8046 = vsel %vm373, %v7884, 0
    %8048 = vmatprep.subr.mxu0 0.0
    %8049 = vmatpush1.msra.mxu0 0.0
    %8050 = vmatprep.subr.mxu0 0.0
    %8051 = vmatpush1.msra.mxu0 0.0
    %8052 = vmatprep.subr.mxu0 0.0
    %8053 = vmatpush1.msra.mxu0 0.0
    %8054 = vmatprep.subr.mxu0 0.0
    %8055 = vmatpush1.msra.mxu0 0.0
    %8056 = vmatprep.subr.mxu0 0.0
    %8057 = vmatpush1.msra.mxu0 0.0
    %8058 = vmatprep.subr.mxu0 0.0
    %8059 = vmatpush1.msra.mxu0 0.0
    %8060 = vmatprep.subr.mxu0 0.0
    %8061 = vmatpush1.msra.mxu0 0.0
    %8062 = vmatprep.subr.mxu0 0.0
    %8063 = vmatpush1.msra.mxu0 0.0
    %8064 = vmatprep.subr.mxu0 0.0
    %8065 = vmatpush1.msra.mxu0 0.0
    %8066 = vmatprep.subr.mxu0 0.0
    %8067 = vmatpush1.msra.mxu0 0.0
    %8068 = vmatprep.subr.mxu0 0.0
    %8069 = vmatpush1.msra.mxu0 0.0
    %8070 = vmatprep.subr.mxu0 0.0
    %8071 = vmatpush1.msra.mxu0 0.0
    %8072 = vmatprep.subr.mxu0 0.0
    %8073 = vmatpush1.msra.mxu0 0.0
    %8074 = vmatprep.subr.mxu0 0.0
    %8075 = vmatpush1.msra.mxu0 0.0
    %8076 = vmatprep.subr.mxu0 0.0
    %8077 = vmatpush1.msra.mxu0 0.0
    %8078 = vmatprep.subr.mxu0 0.0
    %8079 = vmatpush1.msra.mxu0 %v8043
    %8080 = vmatprep.subr.mxu0 0.0
    %8081 = vmatpush2.msra.mxu0 0.0
    %8082 = vmatprep.subr.mxu0 0.0
    %8083 = vmatpush2.msra.mxu0 0.0
    %8084 = vmatprep.subr.mxu0 0.0
    %8085 = vmatpush2.msra.mxu0 0.0
    %8086 = vmatprep.subr.mxu0 0.0
    %8087 = vmatpush2.msra.mxu0 0.0
    %8088 = vmatprep.subr.mxu0 0.0
    %8089 = vmatpush2.msra.mxu0 0.0
    %8090 = vmatprep.subr.mxu0 0.0
    %8091 = vmatpush2.msra.mxu0 0.0
    %8092 = vmatprep.subr.mxu0 0.0
    %8093 = vmatpush2.msra.mxu0 0.0
    %8094 = vmatprep.subr.mxu0 0.0
    %8095 = vmatpush2.msra.mxu0 0.0
    %8096 = vmatprep.subr.mxu0 0.0
    %8097 = vmatpush2.msra.mxu0 0.0
    %8098 = vmatprep.subr.mxu0 0.0
    %8099 = vmatpush2.msra.mxu0 0.0
    %8100 = vmatprep.subr.mxu0 0.0
    %8101 = vmatpush2.msra.mxu0 0.0
    %8102 = vmatprep.subr.mxu0 0.0
    %8103 = vmatpush2.msra.mxu0 0.0
    %8104 = vmatprep.subr.mxu0 0.0
    %8105 = vmatpush2.msra.mxu0 0.0
    %8106 = vmatprep.subr.mxu0 0.0
    %8107 = vmatpush2.msra.mxu0 0.0
    %8108 = vmatprep.subr.mxu0 0.0
    %8109 = vmatpush2.msra.mxu0 0.0
    %8110 = vmatprep.subr.mxu0 0.0
    %8111 = vmatpush2.msra.mxu0 0.0
    %8112 = vmatprep.mubr.f32.mxu0 0.0
    %8113 = vmatmul.mubr.f32.gmra.mxu0 %v8046
    %v8114 = vpop.f32.mrf.mxu0
    %v8115 = vadd.f32 0.0, %v8114
    %v8116 = vpop.f32.mrf.mxu0
    %8117 = vdwg.mxu0
    %8118 = vrot.lane.b32.xlu0 %v7177, 112
    %v8119 = vpop.permute.xlu0 %8118
    %v8122 = vsel %vm373, %v7885, 0
    %8124 = vmatprep.subr.mxu0 0.0
    %8125 = vmatpush1.msra.mxu0 0.0
    %8126 = vmatprep.subr.mxu0 0.0
    %8127 = vmatpush1.msra.mxu0 0.0
    %8128 = vmatprep.subr.mxu0 0.0
    %8129 = vmatpush1.msra.mxu0 0.0
    %8130 = vmatprep.subr.mxu0 0.0
    %8131 = vmatpush1.msra.mxu0 0.0
    %8132 = vmatprep.subr.mxu0 0.0
    %8133 = vmatpush1.msra.mxu0 0.0
    %8134 = vmatprep.subr.mxu0 0.0
    %8135 = vmatpush1.msra.mxu0 0.0
    %8136 = vmatprep.subr.mxu0 0.0
    %8137 = vmatpush1.msra.mxu0 0.0
    %8138 = vmatprep.subr.mxu0 0.0
    %8139 = vmatpush1.msra.mxu0 0.0
    %8140 = vmatprep.subr.mxu0 0.0
    %8141 = vmatpush1.msra.mxu0 0.0
    %8142 = vmatprep.subr.mxu0 0.0
    %8143 = vmatpush1.msra.mxu0 0.0
    %8144 = vmatprep.subr.mxu0 0.0
    %8145 = vmatpush1.msra.mxu0 0.0
    %8146 = vmatprep.subr.mxu0 0.0
    %8147 = vmatpush1.msra.mxu0 0.0
    %8148 = vmatprep.subr.mxu0 0.0
    %8149 = vmatpush1.msra.mxu0 0.0
    %8150 = vmatprep.subr.mxu0 0.0
    %8151 = vmatpush1.msra.mxu0 0.0
    %8152 = vmatprep.subr.mxu0 0.0
    %8153 = vmatpush1.msra.mxu0 0.0
    %8154 = vmatprep.subr.mxu0 0.0
    %8155 = vmatpush1.msra.mxu0 %v8119
    %8156 = vmatprep.subr.mxu0 0.0
    %8157 = vmatpush2.msra.mxu0 0.0
    %8158 = vmatprep.subr.mxu0 0.0
    %8159 = vmatpush2.msra.mxu0 0.0
    %8160 = vmatprep.subr.mxu0 0.0
    %8161 = vmatpush2.msra.mxu0 0.0
    %8162 = vmatprep.subr.mxu0 0.0
    %8163 = vmatpush2.msra.mxu0 0.0
    %8164 = vmatprep.subr.mxu0 0.0
    %8165 = vmatpush2.msra.mxu0 0.0
    %8166 = vmatprep.subr.mxu0 0.0
    %8167 = vmatpush2.msra.mxu0 0.0
    %8168 = vmatprep.subr.mxu0 0.0
    %8169 = vmatpush2.msra.mxu0 0.0
    %8170 = vmatprep.subr.mxu0 0.0
    %8171 = vmatpush2.msra.mxu0 0.0
    %8172 = vmatprep.subr.mxu0 0.0
    %8173 = vmatpush2.msra.mxu0 0.0
    %8174 = vmatprep.subr.mxu0 0.0
    %8175 = vmatpush2.msra.mxu0 0.0
    %8176 = vmatprep.subr.mxu0 0.0
    %8177 = vmatpush2.msra.mxu0 0.0
    %8178 = vmatprep.subr.mxu0 0.0
    %8179 = vmatpush2.msra.mxu0 0.0
    %8180 = vmatprep.subr.mxu0 0.0
    %8181 = vmatpush2.msra.mxu0 0.0
    %8182 = vmatprep.subr.mxu0 0.0
    %8183 = vmatpush2.msra.mxu0 0.0
    %8184 = vmatprep.subr.mxu0 0.0
    %8185 = vmatpush2.msra.mxu0 0.0
    %8186 = vmatprep.subr.mxu0 0.0
    %8187 = vmatpush2.msra.mxu0 0.0
    %8188 = vmatprep.mubr.f32.mxu0 0.0
    %8189 = vmatmul.mubr.f32.gmra.mxu0 %v8122
    %v8190 = vpop.f32.mrf.mxu0
    %v8191 = vadd.f32 0.0, %v8190
    %v8192 = vpop.f32.mrf.mxu0
    %8193 = vdwg.mxu0
    %8194 = vrot.lane.b32.xlu0 %v7188, 112
    %v8195 = vpop.permute.xlu0 %8194
    %v8198 = vsel %vm373, %v7886, 0
    %8200 = vmatprep.subr.mxu0 0.0
    %8201 = vmatpush1.msra.mxu0 0.0
    %8202 = vmatprep.subr.mxu0 0.0
    %8203 = vmatpush1.msra.mxu0 0.0
    %8204 = vmatprep.subr.mxu0 0.0
    %8205 = vmatpush1.msra.mxu0 0.0
    %8206 = vmatprep.subr.mxu0 0.0
    %8207 = vmatpush1.msra.mxu0 0.0
    %8208 = vmatprep.subr.mxu0 0.0
    %8209 = vmatpush1.msra.mxu0 0.0
    %8210 = vmatprep.subr.mxu0 0.0
    %8211 = vmatpush1.msra.mxu0 0.0
    %8212 = vmatprep.subr.mxu0 0.0
    %8213 = vmatpush1.msra.mxu0 0.0
    %8214 = vmatprep.subr.mxu0 0.0
    %8215 = vmatpush1.msra.mxu0 0.0
    %8216 = vmatprep.subr.mxu0 0.0
    %8217 = vmatpush1.msra.mxu0 0.0
    %8218 = vmatprep.subr.mxu0 0.0
    %8219 = vmatpush1.msra.mxu0 0.0
    %8220 = vmatprep.subr.mxu0 0.0
    %8221 = vmatpush1.msra.mxu0 0.0
    %8222 = vmatprep.subr.mxu0 0.0
    %8223 = vmatpush1.msra.mxu0 0.0
    %8224 = vmatprep.subr.mxu0 0.0
    %8225 = vmatpush1.msra.mxu0 0.0
    %8226 = vmatprep.subr.mxu0 0.0
    %8227 = vmatpush1.msra.mxu0 0.0
    %8228 = vmatprep.subr.mxu0 0.0
    %8229 = vmatpush1.msra.mxu0 0.0
    %8230 = vmatprep.subr.mxu0 0.0
    %8231 = vmatpush1.msra.mxu0 %v8195
    %8232 = vmatprep.subr.mxu0 0.0
    %8233 = vmatpush2.msra.mxu0 0.0
    %8234 = vmatprep.subr.mxu0 0.0
    %8235 = vmatpush2.msra.mxu0 0.0
    %8236 = vmatprep.subr.mxu0 0.0
    %8237 = vmatpush2.msra.mxu0 0.0
    %8238 = vmatprep.subr.mxu0 0.0
    %8239 = vmatpush2.msra.mxu0 0.0
    %8240 = vmatprep.subr.mxu0 0.0
    %8241 = vmatpush2.msra.mxu0 0.0
    %8242 = vmatprep.subr.mxu0 0.0
    %8243 = vmatpush2.msra.mxu0 0.0
    %8244 = vmatprep.subr.mxu0 0.0
    %8245 = vmatpush2.msra.mxu0 0.0
    %8246 = vmatprep.subr.mxu0 0.0
    %8247 = vmatpush2.msra.mxu0 0.0
    %8248 = vmatprep.subr.mxu0 0.0
    %8249 = vmatpush2.msra.mxu0 0.0
    %8250 = vmatprep.subr.mxu0 0.0
    %8251 = vmatpush2.msra.mxu0 0.0
    %8252 = vmatprep.subr.mxu0 0.0
    %8253 = vmatpush2.msra.mxu0 0.0
    %8254 = vmatprep.subr.mxu0 0.0
    %8255 = vmatpush2.msra.mxu0 0.0
    %8256 = vmatprep.subr.mxu0 0.0
    %8257 = vmatpush2.msra.mxu0 0.0
    %8258 = vmatprep.subr.mxu0 0.0
    %8259 = vmatpush2.msra.mxu0 0.0
    %8260 = vmatprep.subr.mxu0 0.0
    %8261 = vmatpush2.msra.mxu0 0.0
    %8262 = vmatprep.subr.mxu0 0.0
    %8263 = vmatpush2.msra.mxu0 0.0
    %8264 = vmatprep.mubr.f32.mxu0 0.0
    %8265 = vmatmul.mubr.f32.gmra.mxu0 %v8198
    %v8266 = vpop.f32.mrf.mxu0
    %v8267 = vadd.f32 0.0, %v8266
    %v8268 = vpop.f32.mrf.mxu0
    %8269 = vdwg.mxu0
    %8270 = vrot.lane.b32.xlu0 %v7189, 112
    %v8271 = vpop.permute.xlu0 %8270
    %v8274 = vsel %vm373, %v7887, 0
    %8276 = vmatprep.subr.mxu0 0.0
    %8277 = vmatpush1.msra.mxu0 0.0
    %8278 = vmatprep.subr.mxu0 0.0
    %8279 = vmatpush1.msra.mxu0 0.0
    %8280 = vmatprep.subr.mxu0 0.0
    %8281 = vmatpush1.msra.mxu0 0.0
    %8282 = vmatprep.subr.mxu0 0.0
    %8283 = vmatpush1.msra.mxu0 0.0
    %8284 = vmatprep.subr.mxu0 0.0
    %8285 = vmatpush1.msra.mxu0 0.0
    %8286 = vmatprep.subr.mxu0 0.0
    %8287 = vmatpush1.msra.mxu0 0.0
    %8288 = vmatprep.subr.mxu0 0.0
    %8289 = vmatpush1.msra.mxu0 0.0
    %8290 = vmatprep.subr.mxu0 0.0
    %8291 = vmatpush1.msra.mxu0 0.0
    %8292 = vmatprep.subr.mxu0 0.0
    %8293 = vmatpush1.msra.mxu0 0.0
    %8294 = vmatprep.subr.mxu0 0.0
    %8295 = vmatpush1.msra.mxu0 0.0
    %8296 = vmatprep.subr.mxu0 0.0
    %8297 = vmatpush1.msra.mxu0 0.0
    %8298 = vmatprep.subr.mxu0 0.0
    %8299 = vmatpush1.msra.mxu0 0.0
    %8300 = vmatprep.subr.mxu0 0.0
    %8301 = vmatpush1.msra.mxu0 0.0
    %8302 = vmatprep.subr.mxu0 0.0
    %8303 = vmatpush1.msra.mxu0 0.0
    %8304 = vmatprep.subr.mxu0 0.0
    %8305 = vmatpush1.msra.mxu0 0.0
    %8306 = vmatprep.subr.mxu0 0.0
    %8307 = vmatpush1.msra.mxu0 %v8271
    %8308 = vmatprep.subr.mxu0 0.0
    %8309 = vmatpush2.msra.mxu0 0.0
    %8310 = vmatprep.subr.mxu0 0.0
    %8311 = vmatpush2.msra.mxu0 0.0
    %8312 = vmatprep.subr.mxu0 0.0
    %8313 = vmatpush2.msra.mxu0 0.0
    %8314 = vmatprep.subr.mxu0 0.0
    %8315 = vmatpush2.msra.mxu0 0.0
    %8316 = vmatprep.subr.mxu0 0.0
    %8317 = vmatpush2.msra.mxu0 0.0
    %8318 = vmatprep.subr.mxu0 0.0
    %8319 = vmatpush2.msra.mxu0 0.0
    %8320 = vmatprep.subr.mxu0 0.0
    %8321 = vmatpush2.msra.mxu0 0.0
    %8322 = vmatprep.subr.mxu0 0.0
    %8323 = vmatpush2.msra.mxu0 0.0
    %8324 = vmatprep.subr.mxu0 0.0
    %8325 = vmatpush2.msra.mxu0 0.0
    %8326 = vmatprep.subr.mxu0 0.0
    %8327 = vmatpush2.msra.mxu0 0.0
    %8328 = vmatprep.subr.mxu0 0.0
    %8329 = vmatpush2.msra.mxu0 0.0
    %8330 = vmatprep.subr.mxu0 0.0
    %8331 = vmatpush2.msra.mxu0 0.0
    %8332 = vmatprep.subr.mxu0 0.0
    %8333 = vmatpush2.msra.mxu0 0.0
    %8334 = vmatprep.subr.mxu0 0.0
    %8335 = vmatpush2.msra.mxu0 0.0
    %8336 = vmatprep.subr.mxu0 0.0
    %8337 = vmatpush2.msra.mxu0 0.0
    %8338 = vmatprep.subr.mxu0 0.0
    %8339 = vmatpush2.msra.mxu0 0.0
    %8340 = vmatprep.mubr.f32.mxu0 0.0
    %8341 = vmatmul.mubr.f32.gmra.mxu0 %v8274
    %v8342 = vpop.f32.mrf.mxu0
    %v8343 = vadd.f32 0.0, %v8342
    %v8344 = vpop.f32.mrf.mxu0
    %8345 = vdwg.mxu0
    %8346 = vrot.lane.b32.xlu0 %v7191, 112
    %v8347 = vpop.permute.xlu0 %8346
    %v8350 = vsel %vm373, %v7888, 0
    %8352 = vmatprep.subr.mxu0 0.0
    %8353 = vmatpush1.msra.mxu0 0.0
    %8354 = vmatprep.subr.mxu0 0.0
    %8355 = vmatpush1.msra.mxu0 0.0
    %8356 = vmatprep.subr.mxu0 0.0
    %8357 = vmatpush1.msra.mxu0 0.0
    %8358 = vmatprep.subr.mxu0 0.0
    %8359 = vmatpush1.msra.mxu0 0.0
    %8360 = vmatprep.subr.mxu0 0.0
    %8361 = vmatpush1.msra.mxu0 0.0
    %8362 = vmatprep.subr.mxu0 0.0
    %8363 = vmatpush1.msra.mxu0 0.0
    %8364 = vmatprep.subr.mxu0 0.0
    %8365 = vmatpush1.msra.mxu0 0.0
    %8366 = vmatprep.subr.mxu0 0.0
    %8367 = vmatpush1.msra.mxu0 0.0
    %8368 = vmatprep.subr.mxu0 0.0
    %8369 = vmatpush1.msra.mxu0 0.0
    %8370 = vmatprep.subr.mxu0 0.0
    %8371 = vmatpush1.msra.mxu0 0.0
    %8372 = vmatprep.subr.mxu0 0.0
    %8373 = vmatpush1.msra.mxu0 0.0
    %8374 = vmatprep.subr.mxu0 0.0
    %8375 = vmatpush1.msra.mxu0 0.0
    %8376 = vmatprep.subr.mxu0 0.0
    %8377 = vmatpush1.msra.mxu0 0.0
    %8378 = vmatprep.subr.mxu0 0.0
    %8379 = vmatpush1.msra.mxu0 0.0
    %8380 = vmatprep.subr.mxu0 0.0
    %8381 = vmatpush1.msra.mxu0 0.0
    %8382 = vmatprep.subr.mxu0 0.0
    %8383 = vmatpush1.msra.mxu0 %v8347
    %8384 = vmatprep.subr.mxu0 0.0
    %8385 = vmatpush2.msra.mxu0 0.0
    %8386 = vmatprep.subr.mxu0 0.0
    %8387 = vmatpush2.msra.mxu0 0.0
    %8388 = vmatprep.subr.mxu0 0.0
    %8389 = vmatpush2.msra.mxu0 0.0
    %8390 = vmatprep.subr.mxu0 0.0
    %8391 = vmatpush2.msra.mxu0 0.0
    %8392 = vmatprep.subr.mxu0 0.0
    %8393 = vmatpush2.msra.mxu0 0.0
    %8394 = vmatprep.subr.mxu0 0.0
    %8395 = vmatpush2.msra.mxu0 0.0
    %8396 = vmatprep.subr.mxu0 0.0
    %8397 = vmatpush2.msra.mxu0 0.0
    %8398 = vmatprep.subr.mxu0 0.0
    %8399 = vmatpush2.msra.mxu0 0.0
    %8400 = vmatprep.subr.mxu0 0.0
    %8401 = vmatpush2.msra.mxu0 0.0
    %8402 = vmatprep.subr.mxu0 0.0
    %8403 = vmatpush2.msra.mxu0 0.0
    %8404 = vmatprep.subr.mxu0 0.0
    %8405 = vmatpush2.msra.mxu0 0.0
    %8406 = vmatprep.subr.mxu0 0.0
    %8407 = vmatpush2.msra.mxu0 0.0
    %8408 = vmatprep.subr.mxu0 0.0
    %8409 = vmatpush2.msra.mxu0 0.0
    %8410 = vmatprep.subr.mxu0 0.0
    %8411 = vmatpush2.msra.mxu0 0.0
    %8412 = vmatprep.subr.mxu0 0.0
    %8413 = vmatpush2.msra.mxu0 0.0
    %8414 = vmatprep.subr.mxu0 0.0
    %8415 = vmatpush2.msra.mxu0 0.0
    %8416 = vmatprep.mubr.f32.mxu0 0.0
    %8417 = vmatmul.mubr.f32.gmra.mxu0 %v8350
    %v8418 = vpop.f32.mrf.mxu0
    %v8419 = vadd.f32 0.0, %v8418
    %v8420 = vpop.f32.mrf.mxu0
    %8421 = vdwg.mxu0
    %8422 = vrot.lane.b32.xlu0 %v7193, 112
    %v8423 = vpop.permute.xlu0 %8422
    %v8426 = vsel %vm373, %v7889, 0
    %8428 = vmatprep.subr.mxu0 0.0
    %8429 = vmatpush1.msra.mxu0 0.0
    %8430 = vmatprep.subr.mxu0 0.0
    %8431 = vmatpush1.msra.mxu0 0.0
    %8432 = vmatprep.subr.mxu0 0.0
    %8433 = vmatpush1.msra.mxu0 0.0
    %8434 = vmatprep.subr.mxu0 0.0
    %8435 = vmatpush1.msra.mxu0 0.0
    %8436 = vmatprep.subr.mxu0 0.0
    %8437 = vmatpush1.msra.mxu0 0.0
    %8438 = vmatprep.subr.mxu0 0.0
    %8439 = vmatpush1.msra.mxu0 0.0
    %8440 = vmatprep.subr.mxu0 0.0
    %8441 = vmatpush1.msra.mxu0 0.0
    %8442 = vmatprep.subr.mxu0 0.0
    %8443 = vmatpush1.msra.mxu0 0.0
    %8444 = vmatprep.subr.mxu0 0.0
    %8445 = vmatpush1.msra.mxu0 0.0
    %8446 = vmatprep.subr.mxu0 0.0
    %8447 = vmatpush1.msra.mxu0 0.0
    %8448 = vmatprep.subr.mxu0 0.0
    %8449 = vmatpush1.msra.mxu0 0.0
    %8450 = vmatprep.subr.mxu0 0.0
    %8451 = vmatpush1.msra.mxu0 0.0
    %8452 = vmatprep.subr.mxu0 0.0
    %8453 = vmatpush1.msra.mxu0 0.0
    %8454 = vmatprep.subr.mxu0 0.0
    %8455 = vmatpush1.msra.mxu0 0.0
    %8456 = vmatprep.subr.mxu0 0.0
    %8457 = vmatpush1.msra.mxu0 0.0
    %8458 = vmatprep.subr.mxu0 0.0
    %8459 = vmatpush1.msra.mxu0 %v8423
    %8460 = vmatprep.subr.mxu0 0.0
    %8461 = vmatpush2.msra.mxu0 0.0
    %8462 = vmatprep.subr.mxu0 0.0
    %8463 = vmatpush2.msra.mxu0 0.0
    %8464 = vmatprep.subr.mxu0 0.0
    %8465 = vmatpush2.msra.mxu0 0.0
    %8466 = vmatprep.subr.mxu0 0.0
    %8467 = vmatpush2.msra.mxu0 0.0
    %8468 = vmatprep.subr.mxu0 0.0
    %8469 = vmatpush2.msra.mxu0 0.0
    %8470 = vmatprep.subr.mxu0 0.0
    %8471 = vmatpush2.msra.mxu0 0.0
    %8472 = vmatprep.subr.mxu0 0.0
    %8473 = vmatpush2.msra.mxu0 0.0
    %8474 = vmatprep.subr.mxu0 0.0
    %8475 = vmatpush2.msra.mxu0 0.0
    %8476 = vmatprep.subr.mxu0 0.0
    %8477 = vmatpush2.msra.mxu0 0.0
    %8478 = vmatprep.subr.mxu0 0.0
    %8479 = vmatpush2.msra.mxu0 0.0
    %8480 = vmatprep.subr.mxu0 0.0
    %8481 = vmatpush2.msra.mxu0 0.0
    %8482 = vmatprep.subr.mxu0 0.0
    %8483 = vmatpush2.msra.mxu0 0.0
    %8484 = vmatprep.subr.mxu0 0.0
    %8485 = vmatpush2.msra.mxu0 0.0
    %8486 = vmatprep.subr.mxu0 0.0
    %8487 = vmatpush2.msra.mxu0 0.0
    %8488 = vmatprep.subr.mxu0 0.0
    %8489 = vmatpush2.msra.mxu0 0.0
    %8490 = vmatprep.subr.mxu0 0.0
    %8491 = vmatpush2.msra.mxu0 0.0
    %8492 = vmatprep.mubr.f32.mxu0 0.0
    %8493 = vmatmul.mubr.f32.gmra.mxu0 %v8426
    %v8494 = vpop.f32.mrf.mxu0
    %v8495 = vadd.f32 0.0, %v8494
    %v8496 = vpop.f32.mrf.mxu0
    %8497 = vdwg.mxu0
    %v8498 = vsel %vm135, %v7963, 0.0
    %v8499 = vsel %vm135, %v8115, 0.0
    %v8500 = vadd.f32 %v8498, %v8499
    %v8501 = vsel %vm135, %v8267, 0.0
    %v8502 = vadd.f32 %v8500, %v8501
    %v8503 = vsel %vm135, %v8419, 0.0
    %v8504 = vadd.f32 %v8502, %v8503
    %v8505 = vsel %vm135, %v8039, 0.0
    %v8506 = vsel %vm135, %v8191, 0.0
    %v8507 = vadd.f32 %v8505, %v8506
    %v8508 = vsel %vm135, %v8343, 0.0
    %v8509 = vadd.f32 %v8507, %v8508
    %v8510 = vsel %vm135, %v8495, 0.0
    %v8511 = vadd.f32 %v8509, %v8510
    %v8512 = vadd.f32 %v8504, %v7085
    %v8513 = vadd.f32 %v8511, %v7086
    %v8514 = vld [vmem:[%s9 + $0x16] sm:$0x1]
    %v8515 = vld [vmem:[%s9 + $0x17] sm:$0x1]
    %v8516 = vsel %vm135, %v8512, 0.0
    %8517 = vadd.xlane.f32.xlu0 %v8516
    %v8518 = vpop.xlane.xlu0 %8517
    %v8519 = vsel %vm135, %v8513, 0.0
    %8520 = vadd.xlane.f32.xlu0 %v8519
    %v8521 = vpop.xlane.xlu0 %8520
    %v8522 = vmul.f32 %v8518, %v142
    %v8523 = vmul.f32 %v8521, %v142
    %v8524 = vsub.f32 %v8512, %v8522
    %v8525 = vsub.f32 %v8513, %v8523
    %v8526 = vmul.f32 %v8524, %v8524
    %v8527 = vmul.f32 %v8525, %v8525
    %v8528 = vsel %vm135, %v8526, 0.0
    %8529 = vadd.xlane.f32.xlu0 %v8528
    %v8530 = vpop.xlane.xlu0 %8529
    %v8531 = vsel %vm135, %v8527, 0.0
    %8532 = vadd.xlane.f32.xlu0 %v8531
    %v8533 = vpop.xlane.xlu0 %8532
    %v8534 = vmul.f32 %v8530, %v142
    %v8535 = vmul.f32 %v8533, %v142
    %v8536 = vadd.f32 %v8534, 1e-12
    %v8537 = vadd.f32 %v8535, 1e-12
    %v8538 = vrsqrt.pop %v8536
    %v8539 = vrsqrt.pop %v8537
    %v8540 = vmul.f32 %v8524, %v8538
    %v8541 = vmul.f32 %v8525, %v8539
    %v8542 = vlaneseq
    %v8543 = vshrl.u32 %v8542, 7
    %v8544 = vsub.s32 0, %v8543
    %v8545 = vrot.slane %v8514, %v8544
    %v8546 = vmul.f32 %v8540, %v8545
    %v8547 = vmul.f32 %v8541, %v8545
    %v8548 = vlaneseq
    %v8549 = vshrl.u32 %v8548, 7
    %v8550 = vsub.s32 0, %v8549
    %v8551 = vrot.slane %v8515, %v8550
    %v8552 = vadd.f32 %v8546, %v8551
    %v8553 = vadd.f32 %v8547, %v8551
    %v8554 = vpack.c.bf16 %v8553, %v8552
    %s8555 = scalar_lea.vmem %s5, 64
    %v8556 = vld [vmem:[%s8555] sm:$0xf]
    %v8557 = vld [vmem:[%s8555 + $0x4] sm:$0xf]
    %v8558 = vld [vmem:[%s8555 + $0x8] sm:$0xf]
    %v8559 = vld [vmem:[%s8555 + $0xc] sm:$0xf]
    %v8560 = vld [vmem:[%s8 + $0x4] sm:$0x1]
    %v8561 = vlaneseq
    %v8562 = vshrl.u32 %v8561, 7
    %v8563 = vsub.s32 0, %v8562
    %v8564 = vrot.slane %v8560, %v8563
    %v8569 = vunpack.c.l.b16 %v8556
    %v8570 = vunpack.c.l.b16 %v8557
    %v8571 = vunpack.c.l.b16 %v8558
    %v8572 = vunpack.c.l.b16 %v8559
    %v8573 = vpack.c.b16 %v8570, %v8569
    %v8574 = vpack.c.b16 %v8572, %v8571
    %v8578 = vsel %vm135, %v8554, 0
    %8580 = vmatprep.subr.bf16.mxu0 0
    %8581 = vmatpush1.bf16.msra.mxu0 0
    %8582 = vmatprep.subr.bf16.mxu0 0
    %8583 = vmatpush1.bf16.msra.mxu0 0
    %8584 = vmatprep.subr.bf16.mxu0 0
    %8585 = vmatpush1.bf16.msra.mxu0 0
    %8586 = vmatprep.subr.bf16.mxu0 0
    %8587 = vmatpush1.bf16.msra.mxu0 0
    %8588 = vmatprep.subr.bf16.mxu0 0
    %8589 = vmatpush1.bf16.msra.mxu0 0
    %8590 = vmatprep.subr.bf16.mxu0 0
    %8591 = vmatpush1.bf16.msra.mxu0 0
    %8592 = vmatprep.subr.bf16.mxu0 0
    %8593 = vmatpush1.bf16.msra.mxu0 %v8574
    %8594 = vmatprep.subr.bf16.mxu0 0
    %8595 = vmatpush1.bf16.msra.mxu0 %v8573
    %8596 = vmatprep.subr.bf16.mxu0 0
    %8597 = vmatpush2.bf16.msra.mxu0 0
    %8598 = vmatprep.subr.bf16.mxu0 0
    %8599 = vmatpush2.bf16.msra.mxu0 0
    %8600 = vmatprep.subr.bf16.mxu0 0
    %8601 = vmatpush2.bf16.msra.mxu0 0
    %8602 = vmatprep.subr.bf16.mxu0 0
    %8603 = vmatpush2.bf16.msra.mxu0 0
    %8604 = vmatprep.subr.bf16.mxu0 0
    %8605 = vmatpush2.bf16.msra.mxu0 0
    %8606 = vmatprep.subr.bf16.mxu0 0
    %8607 = vmatpush2.bf16.msra.mxu0 0
    %8608 = vmatprep.subr.bf16.mxu0 0
    %8609 = vmatpush2.bf16.msra.mxu0 0
    %8610 = vmatprep.subr.bf16.mxu0 0
    %8611 = vmatpush2.bf16.msra.mxu0 0
    %8612 = vmatprep.mubr.bf16.mxu0 0
    %8613 = vmatmul.mubr.bf16.gmra.mxu0 %v8578
    %v8614 = vpop.f32.mrf.mxu0
    %v8615 = vadd.f32 %v8564, %v8614
    %v8616 = vpop.f32.mrf.mxu0
    %v8617 = vpop.f32.mrf.mxu0
    %v8618 = vadd.f32 %v8564, %v8617
    %v8619 = vpop.f32.mrf.mxu0
    %8620 = vdwg.mxu0
    %v8621 = vmul.f32 %v8615, 0.5
    %v8622 = vmul.f32 %v8618, 0.5
    %v8623 = vmul.f32 %v8615, 0.044715
    %v8624 = vmul.f32 %v8618, 0.044715
    %v8625 = vmul.f32 %v8623, %v8615
    %v8626 = vmul.f32 %v8624, %v8618
    %v8627 = vmul.f32 %v8625, %v8615
    %v8628 = vmul.f32 %v8626, %v8618
    %v8629 = vadd.f32 %v8615, %v8627
    %v8630 = vadd.f32 %v8618, %v8628
    %v8631 = vmul.f32 %v8629, 0.7978846
    %v8632 = vmul.f32 %v8630, 0.7978846
    %v8633 = vtanh.pop %v8631
    %v8634 = vtanh.pop %v8632
    %v8635 = vadd.f32 %v8633, 1.0
    %v8636 = vadd.f32 %v8634, 1.0
    %v8637 = vmul.f32 %v8621, %v8635
    %v8638 = vmul.f32 %v8622, %v8636
    %v8639 = vpack.c.bf16 %v8638, %v8637
    %s8640 = scalar_lea.vmem %s6, 256
    %v8641 = vld [vmem:[%s8640] sm:$0xf]
    %v8642 = vld [vmem:[%s8640 + $0x4] sm:$0xf]
    %v8643 = vld [vmem:[%s8640 + $0x8] sm:$0xf]
    %v8644 = vld [vmem:[%s8640 + $0xc] sm:$0xf]
    %v8645 = vld [vmem:[%s8640 + $0x10] sm:$0xf]
    %v8646 = vld [vmem:[%s8640 + $0x14] sm:$0xf]
    %v8647 = vld [vmem:[%s8640 + $0x18] sm:$0xf]
    %v8648 = vld [vmem:[%s8640 + $0x1c] sm:$0xf]
    %v8649 = vld [vmem:[%s8640 + $0x20] sm:$0xf]
    %v8650 = vld [vmem:[%s8640 + $0x24] sm:$0xf]
    %v8651 = vld [vmem:[%s8640 + $0x28] sm:$0xf]
    %v8652 = vld [vmem:[%s8640 + $0x2c] sm:$0xf]
    %v8653 = vld [vmem:[%s8640 + $0x30] sm:$0xf]
    %v8654 = vld [vmem:[%s8640 + $0x34] sm:$0xf]
    %v8655 = vld [vmem:[%s8640 + $0x38] sm:$0xf]
    %v8656 = vld [vmem:[%s8640 + $0x3c] sm:$0xf]
    %v8657 = vld [vmem:[%s9 + $0x18] sm:$0x1]
    %v8658 = vlaneseq
    %v8659 = vshrl.u32 %v8658, 7
    %v8660 = vsub.s32 0, %v8659
    %v8661 = vrot.slane %v8657, %v8660
    %v8678 = vunpack.c.l.b16 %v8641
    %v8679 = vunpack.c.l.b16 %v8642
    %v8680 = vunpack.c.l.b16 %v8643
    %v8681 = vunpack.c.l.b16 %v8644
    %v8682 = vunpack.c.l.b16 %v8645
    %v8683 = vunpack.c.l.b16 %v8646
    %v8684 = vunpack.c.l.b16 %v8647
    %v8685 = vunpack.c.l.b16 %v8648
    %v8686 = vunpack.c.l.b16 %v8649
    %v8687 = vunpack.c.l.b16 %v8650
    %v8688 = vunpack.c.l.b16 %v8651
    %v8689 = vunpack.c.l.b16 %v8652
    %v8690 = vunpack.c.l.b16 %v8653
    %v8691 = vunpack.c.l.b16 %v8654
    %v8692 = vunpack.c.l.b16 %v8655
    %v8693 = vunpack.c.l.b16 %v8656
    %v8694 = vpack.c.b16 %v8679, %v8678
    %v8695 = vpack.c.b16 %v8681, %v8680
    %v8696 = vpack.c.b16 %v8683, %v8682
    %v8697 = vpack.c.b16 %v8685, %v8684
    %v8698 = vpack.c.b16 %v8687, %v8686
    %v8699 = vpack.c.b16 %v8689, %v8688
    %v8700 = vpack.c.b16 %v8691, %v8690
    %v8701 = vpack.c.b16 %v8693, %v8692
    %8710 = vmatprep.subr.bf16.mxu0 0
    %8711 = vmatpush1.bf16.msra.mxu0 %v8701
    %8712 = vmatprep.subr.bf16.mxu0 0
    %8713 = vmatpush1.bf16.msra.mxu0 %v8700
    %8714 = vmatprep.subr.bf16.mxu0 0
    %8715 = vmatpush1.bf16.msra.mxu0 %v8699
    %8716 = vmatprep.subr.bf16.mxu0 0
    %8717 = vmatpush1.bf16.msra.mxu0 %v8698
    %8718 = vmatprep.subr.bf16.mxu0 0
    %8719 = vmatpush1.bf16.msra.mxu0 %v8697
    %8720 = vmatprep.subr.bf16.mxu0 0
    %8721 = vmatpush1.bf16.msra.mxu0 %v8696
    %8722 = vmatprep.subr.bf16.mxu0 0
    %8723 = vmatpush1.bf16.msra.mxu0 %v8695
    %8724 = vmatprep.subr.bf16.mxu0 0
    %8725 = vmatpush1.bf16.msra.mxu0 %v8694
    %8726 = vmatprep.subr.bf16.mxu0 0
    %8727 = vmatpush2.bf16.msra.mxu0 0
    %8728 = vmatprep.subr.bf16.mxu0 0
    %8729 = vmatpush2.bf16.msra.mxu0 0
    %8730 = vmatprep.subr.bf16.mxu0 0
    %8731 = vmatpush2.bf16.msra.mxu0 0
    %8732 = vmatprep.subr.bf16.mxu0 0
    %8733 = vmatpush2.bf16.msra.mxu0 0
    %8734 = vmatprep.subr.bf16.mxu0 0
    %8735 = vmatpush2.bf16.msra.mxu0 0
    %8736 = vmatprep.subr.bf16.mxu0 0
    %8737 = vmatpush2.bf16.msra.mxu0 0
    %8738 = vmatprep.subr.bf16.mxu0 0
    %8739 = vmatpush2.bf16.msra.mxu0 0
    %8740 = vmatprep.subr.bf16.mxu0 0
    %8741 = vmatpush2.bf16.msra.mxu0 0
    %8742 = vmatprep.mubr.bf16.mxu0 0
    %8743 = vmatmul.mubr.bf16.gmra.mxu0 %v8639
    %v8744 = vpop.f32.mrf.mxu0
    %v8745 = vadd.f32 %v8661, %v8744
    %v8746 = vpop.f32.mrf.mxu0
    %v8747 = vpop.f32.mrf.mxu0
    %v8748 = vadd.f32 %v8661, %v8747
    %v8749 = vpop.f32.mrf.mxu0
    %8750 = vdwg.mxu0
    %v8751 = vadd.f32 %v8745, %v8552
    %v8752 = vadd.f32 %v8748, %v8553
    %v8753 = vld [vmem:[%s9 + $0x19] sm:$0x1]
    %v8754 = vld [vmem:[%s9 + $0x1a] sm:$0x1]
    %v8755 = vsel %vm135, %v8751, 0.0
    %8756 = vadd.xlane.f32.xlu0 %v8755
    %v8757 = vpop.xlane.xlu0 %8756
    %v8758 = vsel %vm135, %v8752, 0.0
    %8759 = vadd.xlane.f32.xlu0 %v8758
    %v8760 = vpop.xlane.xlu0 %8759
    %v8761 = vmul.f32 %v8757, %v142
    %v8762 = vmul.f32 %v8760, %v142
    %v8763 = vsub.f32 %v8751, %v8761
    %v8764 = vsub.f32 %v8752, %v8762
    %v8765 = vmul.f32 %v8763, %v8763
    %v8766 = vmul.f32 %v8764, %v8764
    %v8767 = vsel %vm135, %v8765, 0.0
    %8768 = vadd.xlane.f32.xlu0 %v8767
    %v8769 = vpop.xlane.xlu0 %8768
    %v8770 = vsel %vm135, %v8766, 0.0
    %8771 = vadd.xlane.f32.xlu0 %v8770
    %v8772 = vpop.xlane.xlu0 %8771
    %v8773 = vmul.f32 %v8769, %v142
    %v8774 = vmul.f32 %v8772, %v142
    %v8775 = vadd.f32 %v8773, 1e-12
    %v8776 = vadd.f32 %v8774, 1e-12
    %v8777 = vrsqrt.pop %v8775
    %v8778 = vrsqrt.pop %v8776
    %v8779 = vmul.f32 %v8763, %v8777
    %v8780 = vmul.f32 %v8764, %v8778
    %v8781 = vlaneseq
    %v8782 = vshrl.u32 %v8781, 7
    %v8783 = vsub.s32 0, %v8782
    %v8784 = vrot.slane %v8753, %v8783
    %v8785 = vmul.f32 %v8779, %v8784
    %v8786 = vmul.f32 %v8780, %v8784
    %v8787 = vlaneseq
    %v8788 = vshrl.u32 %v8787, 7
    %v8789 = vsub.s32 0, %v8788
    %v8790 = vrot.slane %v8754, %v8789
    %v8791 = vadd.f32 %v8785, %v8790
    %v8792 = vadd.f32 %v8786, %v8790
    %v8793 = vpack.c.bf16 %v8792, %v8791
    %s8794 = scalar_lea.vmem %s4, 160
    %v8795 = vld [vmem:[%s8794] sm:$0xff]
    %v8796 = vld [vmem:[%s8794 + $0x8] sm:$0xff]
    %v8797 = vld [vmem:[%s8794 + $0x10] sm:$0xff]
    %v8798 = vld [vmem:[%s8794 + $0x18] sm:$0xff]
    %s8799 = scalar_lea.vmem %s7, 5
    %v8800 = vld [vmem:[%s8799] ss:$8 sm:$0x3]
    %v8802 = vlaneseq
    %v8803 = vshrl.u32 %v8802, 7
    %v8804 = vsub.s32 0, %v8803
    %v8805 = vrot.slane %v8800, %v8804
    %v8806 = vlaneseq
    %v8807 = vshrl.u32 %v8806, 7
    %v8808 = vsub.s32 1, %v8807
    %v8809 = vrot.slane %v8800, %v8808
    %v8816 = vunpack.c.l.b16 %v8795
    %v8817 = vunpack.c.h.b16 %v8795
    %v8818 = vunpack.c.l.b16 %v8796
    %v8819 = vunpack.c.h.b16 %v8796
    %v8820 = vunpack.c.l.b16 %v8797
    %v8821 = vunpack.c.h.b16 %v8797
    %v8822 = vunpack.c.l.b16 %v8798
    %v8823 = vunpack.c.h.b16 %v8798
    %v8824 = vpack.c.b16 %v8818, %v8816
    %v8825 = vpack.c.b16 %v8819, %v8817
    %v8826 = vpack.c.b16 %v8822, %v8820
    %v8827 = vpack.c.b16 %v8823, %v8821
    %v8833 = vsel %vm135, %v8793, 0
    %8835 = vmatprep.subr.bf16.mxu0 0
    %8836 = vmatpush1.bf16.msra.mxu0 0
    %8837 = vmatprep.subr.bf16.mxu0 0
    %8838 = vmatpush1.bf16.msra.mxu0 0
    %8839 = vmatprep.subr.bf16.mxu0 0
    %8840 = vmatpush1.bf16.msra.mxu0 0
    %8841 = vmatprep.subr.bf16.mxu0 0
    %8842 = vmatpush1.bf16.msra.mxu0 0
    %8843 = vmatprep.subr.bf16.mxu0 0
    %8844 = vmatpush1.bf16.msra.mxu0 0
    %8845 = vmatprep.subr.bf16.mxu0 0
    %8846 = vmatpush1.bf16.msra.mxu0 0
    %8847 = vmatprep.subr.bf16.mxu0 %v8827
    %8848 = vmatpush1.bf16.msra.mxu0 %v8826
    %8849 = vmatprep.subr.bf16.mxu0 %v8825
    %8850 = vmatpush1.bf16.msra.mxu0 %v8824
    %8851 = vmatprep.subr.bf16.mxu0 0
    %8852 = vmatpush2.bf16.msra.mxu0 0
    %8853 = vmatprep.subr.bf16.mxu0 0
    %8854 = vmatpush2.bf16.msra.mxu0 0
    %8855 = vmatprep.subr.bf16.mxu0 0
    %8856 = vmatpush2.bf16.msra.mxu0 0
    %8857 = vmatprep.subr.bf16.mxu0 0
    %8858 = vmatpush2.bf16.msra.mxu0 0
    %8859 = vmatprep.subr.bf16.mxu0 0
    %8860 = vmatpush2.bf16.msra.mxu0 0
    %8861 = vmatprep.subr.bf16.mxu0 0
    %8862 = vmatpush2.bf16.msra.mxu0 0
    %8863 = vmatprep.subr.bf16.mxu0 0
    %8864 = vmatpush2.bf16.msra.mxu0 0
    %8865 = vmatprep.subr.bf16.mxu0 0
    %8866 = vmatpush2.bf16.msra.mxu0 0
    %8867 = vmatprep.mubr.bf16.mxu0 0
    %8868 = vmatmul.mubr.bf16.gmra.mxu0 %v8833
    %v8869 = vpop.f32.mrf.mxu0
    %v8870 = vadd.f32 %v8805, %v8869
    %v8871 = vpop.f32.mrf.mxu0
    %v8872 = vadd.f32 %v8809, %v8871
    %v8873 = vpop.f32.mrf.mxu0
    %v8874 = vadd.f32 %v8805, %v8873
    %v8875 = vpop.f32.mrf.mxu0
    %v8876 = vadd.f32 %v8809, %v8875
    %8877 = vdwg.mxu0
    %8880 = vrot.lane.b32.xlu0 %v8870, 80
    %v8881 = vpop.permute.xlu0 %8880
    %8882 = vrot.lane.b32.xlu0 %v8874, 80
    %v8883 = vpop.permute.xlu0 %8882
    %8886 = vrot.lane.b32.xlu0 %v8870, 32
    %v8887 = vpop.permute.xlu0 %8886
    %8888 = vrot.lane.b32.xlu0 %v8872, 32
    %v8889 = vpop.permute.xlu0 %8888
    %8890 = vrot.lane.b32.xlu0 %v8874, 32
    %v8891 = vpop.permute.xlu0 %8890
    %8892 = vrot.lane.b32.xlu0 %v8876, 32
    %v8893 = vpop.permute.xlu0 %8892
    %v8894 = vsel %vm135, %v8887, %v8889
    %v8895 = vsel %vm135, %v8891, %v8893
    %8896 = vrot.lane.b32.xlu0 %v8872, 112
    %v8897 = vpop.permute.xlu0 %8896
    %8898 = vrot.lane.b32.xlu0 %v8876, 112
    %v8899 = vpop.permute.xlu0 %8898
    %8900 = vrot.lane.b32.xlu0 %v8870, 120
    %v8901 = vpop.permute.xlu0 %8900
    %v8902 = vsel %vm373, %v8870, 0
    %v8904 = vsel %vm373, %v8901, 0
    %8906 = vmatprep.subr.mxu0 0.0
    %8907 = vmatpush1.xpose.msra.mxu0 0.0
    %8908 = vmatprep.subr.mxu0 0.0
    %8909 = vmatpush1.xpose.msra.mxu0 0.0
    %8910 = vmatprep.subr.mxu0 0.0
    %8911 = vmatpush1.xpose.msra.mxu0 0.0
    %8912 = vmatprep.subr.mxu0 0.0
    %8913 = vmatpush1.xpose.msra.mxu0 0.0
    %8914 = vmatprep.subr.mxu0 0.0
    %8915 = vmatpush1.xpose.msra.mxu0 0.0
    %8916 = vmatprep.subr.mxu0 0.0
    %8917 = vmatpush1.xpose.msra.mxu0 0.0
    %8918 = vmatprep.subr.mxu0 0.0
    %8919 = vmatpush1.xpose.msra.mxu0 0.0
    %8920 = vmatprep.subr.mxu0 0.0
    %8921 = vmatpush1.xpose.msra.mxu0 0.0
    %8922 = vmatprep.subr.mxu0 0.0
    %8923 = vmatpush1.xpose.msra.mxu0 0.0
    %8924 = vmatprep.subr.mxu0 0.0
    %8925 = vmatpush1.xpose.msra.mxu0 0.0
    %8926 = vmatprep.subr.mxu0 0.0
    %8927 = vmatpush1.xpose.msra.mxu0 0.0
    %8928 = vmatprep.subr.mxu0 0.0
    %8929 = vmatpush1.xpose.msra.mxu0 0.0
    %8930 = vmatprep.subr.mxu0 0.0
    %8931 = vmatpush1.xpose.msra.mxu0 0.0
    %8932 = vmatprep.subr.mxu0 0.0
    %8933 = vmatpush1.xpose.msra.mxu0 0.0
    %8934 = vmatprep.subr.mxu0 0.0
    %8935 = vmatpush1.xpose.msra.mxu0 0.0
    %8936 = vmatprep.subr.mxu0 0.0
    %8937 = vmatpush1.xpose.msra.mxu0 %v8904
    %8938 = vmatprep.subr.mxu0 0.0
    %8939 = vmatpush2.xpose.msra.mxu0 0.0
    %8940 = vmatprep.subr.mxu0 0.0
    %8941 = vmatpush2.xpose.msra.mxu0 0.0
    %8942 = vmatprep.subr.mxu0 0.0
    %8943 = vmatpush2.xpose.msra.mxu0 0.0
    %8944 = vmatprep.subr.mxu0 0.0
    %8945 = vmatpush2.xpose.msra.mxu0 0.0
    %8946 = vmatprep.subr.mxu0 0.0
    %8947 = vmatpush2.xpose.msra.mxu0 0.0
    %8948 = vmatprep.subr.mxu0 0.0
    %8949 = vmatpush2.xpose.msra.mxu0 0.0
    %8950 = vmatprep.subr.mxu0 0.0
    %8951 = vmatpush2.xpose.msra.mxu0 0.0
    %8952 = vmatprep.subr.mxu0 0.0
    %8953 = vmatpush2.xpose.msra.mxu0 0.0
    %8954 = vmatprep.subr.mxu0 0.0
    %8955 = vmatpush2.xpose.msra.mxu0 0.0
    %8956 = vmatprep.subr.mxu0 0.0
    %8957 = vmatpush2.xpose.msra.mxu0 0.0
    %8958 = vmatprep.subr.mxu0 0.0
    %8959 = vmatpush2.xpose.msra.mxu0 0.0
    %8960 = vmatprep.subr.mxu0 0.0
    %8961 = vmatpush2.xpose.msra.mxu0 0.0
    %8962 = vmatprep.subr.mxu0 0.0
    %8963 = vmatpush2.xpose.msra.mxu0 0.0
    %8964 = vmatprep.subr.mxu0 0.0
    %8965 = vmatpush2.xpose.msra.mxu0 0.0
    %8966 = vmatprep.subr.mxu0 0.0
    %8967 = vmatpush2.xpose.msra.mxu0 0.0
    %8968 = vmatprep.subr.mxu0 0.0
    %8969 = vmatpush2.xpose.msra.mxu0 0.0
    %8970 = vmatprep.mubr.f32.mxu0 0.0
    %8971 = vmatmul.mubr.f32.gmra.mxu0 %v8902
    %v8972 = vpop.f32.mrf.mxu0
    %v8973 = vadd.f32 %v229, %v8972
    %v8974 = vpop.f32.mrf.mxu0
    %8975 = vdwg.mxu0
    %8976 = vrot.lane.b32.xlu0 %v8874, 120
    %v8977 = vpop.permute.xlu0 %8976
    %v8978 = vsel %vm373, %v8874, 0
    %v8980 = vsel %vm373, %v8977, 0
    %8982 = vmatprep.subr.mxu0 0.0
    %8983 = vmatpush1.xpose.msra.mxu0 0.0
    %8984 = vmatprep.subr.mxu0 0.0
    %8985 = vmatpush1.xpose.msra.mxu0 0.0
    %8986 = vmatprep.subr.mxu0 0.0
    %8987 = vmatpush1.xpose.msra.mxu0 0.0
    %8988 = vmatprep.subr.mxu0 0.0
    %8989 = vmatpush1.xpose.msra.mxu0 0.0
    %8990 = vmatprep.subr.mxu0 0.0
    %8991 = vmatpush1.xpose.msra.mxu0 0.0
    %8992 = vmatprep.subr.mxu0 0.0
    %8993 = vmatpush1.xpose.msra.mxu0 0.0
    %8994 = vmatprep.subr.mxu0 0.0
    %8995 = vmatpush1.xpose.msra.mxu0 0.0
    %8996 = vmatprep.subr.mxu0 0.0
    %8997 = vmatpush1.xpose.msra.mxu0 0.0
    %8998 = vmatprep.subr.mxu0 0.0
    %8999 = vmatpush1.xpose.msra.mxu0 0.0
    %9000 = vmatprep.subr.mxu0 0.0
    %9001 = vmatpush1.xpose.msra.mxu0 0.0
    %9002 = vmatprep.subr.mxu0 0.0
    %9003 = vmatpush1.xpose.msra.mxu0 0.0
    %9004 = vmatprep.subr.mxu0 0.0
    %9005 = vmatpush1.xpose.msra.mxu0 0.0
    %9006 = vmatprep.subr.mxu0 0.0
    %9007 = vmatpush1.xpose.msra.mxu0 0.0
    %9008 = vmatprep.subr.mxu0 0.0
    %9009 = vmatpush1.xpose.msra.mxu0 0.0
    %9010 = vmatprep.subr.mxu0 0.0
    %9011 = vmatpush1.xpose.msra.mxu0 0.0
    %9012 = vmatprep.subr.mxu0 0.0
    %9013 = vmatpush1.xpose.msra.mxu0 %v8980
    %9014 = vmatprep.subr.mxu0 0.0
    %9015 = vmatpush2.xpose.msra.mxu0 0.0
    %9016 = vmatprep.subr.mxu0 0.0
    %9017 = vmatpush2.xpose.msra.mxu0 0.0
    %9018 = vmatprep.subr.mxu0 0.0
    %9019 = vmatpush2.xpose.msra.mxu0 0.0
    %9020 = vmatprep.subr.mxu0 0.0
    %9021 = vmatpush2.xpose.msra.mxu0 0.0
    %9022 = vmatprep.subr.mxu0 0.0
    %9023 = vmatpush2.xpose.msra.mxu0 0.0
    %9024 = vmatprep.subr.mxu0 0.0
    %9025 = vmatpush2.xpose.msra.mxu0 0.0
    %9026 = vmatprep.subr.mxu0 0.0
    %9027 = vmatpush2.xpose.msra.mxu0 0.0
    %9028 = vmatprep.subr.mxu0 0.0
    %9029 = vmatpush2.xpose.msra.mxu0 0.0
    %9030 = vmatprep.subr.mxu0 0.0
    %9031 = vmatpush2.xpose.msra.mxu0 0.0
    %9032 = vmatprep.subr.mxu0 0.0
    %9033 = vmatpush2.xpose.msra.mxu0 0.0
    %9034 = vmatprep.subr.mxu0 0.0
    %9035 = vmatpush2.xpose.msra.mxu0 0.0
    %9036 = vmatprep.subr.mxu0 0.0
    %9037 = vmatpush2.xpose.msra.mxu0 0.0
    %9038 = vmatprep.subr.mxu0 0.0
    %9039 = vmatpush2.xpose.msra.mxu0 0.0
    %9040 = vmatprep.subr.mxu0 0.0
    %9041 = vmatpush2.xpose.msra.mxu0 0.0
    %9042 = vmatprep.subr.mxu0 0.0
    %9043 = vmatpush2.xpose.msra.mxu0 0.0
    %9044 = vmatprep.subr.mxu0 0.0
    %9045 = vmatpush2.xpose.msra.mxu0 0.0
    %9046 = vmatprep.mubr.f32.mxu0 0.0
    %9047 = vmatmul.mubr.f32.gmra.mxu0 %v8978
    %v9048 = vpop.f32.mrf.mxu0
    %v9049 = vadd.f32 %v233, %v9048
    %v9050 = vpop.f32.mrf.mxu0
    %9051 = vdwg.mxu0
    %9052 = vrot.lane.b32.xlu0 %v8881, 120
    %v9053 = vpop.permute.xlu0 %9052
    %v9054 = vsel %vm373, %v8881, 0
    %v9056 = vsel %vm373, %v9053, 0
    %9058 = vmatprep.subr.mxu0 0.0
    %9059 = vmatpush1.xpose.msra.mxu0 0.0
    %9060 = vmatprep.subr.mxu0 0.0
    %9061 = vmatpush1.xpose.msra.mxu0 0.0
    %9062 = vmatprep.subr.mxu0 0.0
    %9063 = vmatpush1.xpose.msra.mxu0 0.0
    %9064 = vmatprep.subr.mxu0 0.0
    %9065 = vmatpush1.xpose.msra.mxu0 0.0
    %9066 = vmatprep.subr.mxu0 0.0
    %9067 = vmatpush1.xpose.msra.mxu0 0.0
    %9068 = vmatprep.subr.mxu0 0.0
    %9069 = vmatpush1.xpose.msra.mxu0 0.0
    %9070 = vmatprep.subr.mxu0 0.0
    %9071 = vmatpush1.xpose.msra.mxu0 0.0
    %9072 = vmatprep.subr.mxu0 0.0
    %9073 = vmatpush1.xpose.msra.mxu0 0.0
    %9074 = vmatprep.subr.mxu0 0.0
    %9075 = vmatpush1.xpose.msra.mxu0 0.0
    %9076 = vmatprep.subr.mxu0 0.0
    %9077 = vmatpush1.xpose.msra.mxu0 0.0
    %9078 = vmatprep.subr.mxu0 0.0
    %9079 = vmatpush1.xpose.msra.mxu0 0.0
    %9080 = vmatprep.subr.mxu0 0.0
    %9081 = vmatpush1.xpose.msra.mxu0 0.0
    %9082 = vmatprep.subr.mxu0 0.0
    %9083 = vmatpush1.xpose.msra.mxu0 0.0
    %9084 = vmatprep.subr.mxu0 0.0
    %9085 = vmatpush1.xpose.msra.mxu0 0.0
    %9086 = vmatprep.subr.mxu0 0.0
    %9087 = vmatpush1.xpose.msra.mxu0 0.0
    %9088 = vmatprep.subr.mxu0 0.0
    %9089 = vmatpush1.xpose.msra.mxu0 %v9056
    %9090 = vmatprep.subr.mxu0 0.0
    %9091 = vmatpush2.xpose.msra.mxu0 0.0
    %9092 = vmatprep.subr.mxu0 0.0
    %9093 = vmatpush2.xpose.msra.mxu0 0.0
    %9094 = vmatprep.subr.mxu0 0.0
    %9095 = vmatpush2.xpose.msra.mxu0 0.0
    %9096 = vmatprep.subr.mxu0 0.0
    %9097 = vmatpush2.xpose.msra.mxu0 0.0
    %9098 = vmatprep.subr.mxu0 0.0
    %9099 = vmatpush2.xpose.msra.mxu0 0.0
    %9100 = vmatprep.subr.mxu0 0.0
    %9101 = vmatpush2.xpose.msra.mxu0 0.0
    %9102 = vmatprep.subr.mxu0 0.0
    %9103 = vmatpush2.xpose.msra.mxu0 0.0
    %9104 = vmatprep.subr.mxu0 0.0
    %9105 = vmatpush2.xpose.msra.mxu0 0.0
    %9106 = vmatprep.subr.mxu0 0.0
    %9107 = vmatpush2.xpose.msra.mxu0 0.0
    %9108 = vmatprep.subr.mxu0 0.0
    %9109 = vmatpush2.xpose.msra.mxu0 0.0
    %9110 = vmatprep.subr.mxu0 0.0
    %9111 = vmatpush2.xpose.msra.mxu0 0.0
    %9112 = vmatprep.subr.mxu0 0.0
    %9113 = vmatpush2.xpose.msra.mxu0 0.0
    %9114 = vmatprep.subr.mxu0 0.0
    %9115 = vmatpush2.xpose.msra.mxu0 0.0
    %9116 = vmatprep.subr.mxu0 0.0
    %9117 = vmatpush2.xpose.msra.mxu0 0.0
    %9118 = vmatprep.subr.mxu0 0.0
    %9119 = vmatpush2.xpose.msra.mxu0 0.0
    %9120 = vmatprep.subr.mxu0 0.0
    %9121 = vmatpush2.xpose.msra.mxu0 0.0
    %9122 = vmatprep.mubr.f32.mxu0 0.0
    %9123 = vmatmul.mubr.f32.gmra.mxu0 %v9054
    %v9124 = vpop.f32.mrf.mxu0
    %v9125 = vadd.f32 %v237, %v9124
    %v9126 = vpop.f32.mrf.mxu0
    %9127 = vdwg.mxu0
    %9128 = vrot.lane.b32.xlu0 %v8883, 120
    %v9129 = vpop.permute.xlu0 %9128
    %v9130 = vsel %vm373, %v8883, 0
    %v9132 = vsel %vm373, %v9129, 0
    %9134 = vmatprep.subr.mxu0 0.0
    %9135 = vmatpush1.xpose.msra.mxu0 0.0
    %9136 = vmatprep.subr.mxu0 0.0
    %9137 = vmatpush1.xpose.msra.mxu0 0.0
    %9138 = vmatprep.subr.mxu0 0.0
    %9139 = vmatpush1.xpose.msra.mxu0 0.0
    %9140 = vmatprep.subr.mxu0 0.0
    %9141 = vmatpush1.xpose.msra.mxu0 0.0
    %9142 = vmatprep.subr.mxu0 0.0
    %9143 = vmatpush1.xpose.msra.mxu0 0.0
    %9144 = vmatprep.subr.mxu0 0.0
    %9145 = vmatpush1.xpose.msra.mxu0 0.0
    %9146 = vmatprep.subr.mxu0 0.0
    %9147 = vmatpush1.xpose.msra.mxu0 0.0
    %9148 = vmatprep.subr.mxu0 0.0
    %9149 = vmatpush1.xpose.msra.mxu0 0.0
    %9150 = vmatprep.subr.mxu0 0.0
    %9151 = vmatpush1.xpose.msra.mxu0 0.0
    %9152 = vmatprep.subr.mxu0 0.0
    %9153 = vmatpush1.xpose.msra.mxu0 0.0
    %9154 = vmatprep.subr.mxu0 0.0
    %9155 = vmatpush1.xpose.msra.mxu0 0.0
    %9156 = vmatprep.subr.mxu0 0.0
    %9157 = vmatpush1.xpose.msra.mxu0 0.0
    %9158 = vmatprep.subr.mxu0 0.0
    %9159 = vmatpush1.xpose.msra.mxu0 0.0
    %9160 = vmatprep.subr.mxu0 0.0
    %9161 = vmatpush1.xpose.msra.mxu0 0.0
    %9162 = vmatprep.subr.mxu0 0.0
    %9163 = vmatpush1.xpose.msra.mxu0 0.0
    %9164 = vmatprep.subr.mxu0 0.0
    %9165 = vmatpush1.xpose.msra.mxu0 %v9132
    %9166 = vmatprep.subr.mxu0 0.0
    %9167 = vmatpush2.xpose.msra.mxu0 0.0
    %9168 = vmatprep.subr.mxu0 0.0
    %9169 = vmatpush2.xpose.msra.mxu0 0.0
    %9170 = vmatprep.subr.mxu0 0.0
    %9171 = vmatpush2.xpose.msra.mxu0 0.0
    %9172 = vmatprep.subr.mxu0 0.0
    %9173 = vmatpush2.xpose.msra.mxu0 0.0
    %9174 = vmatprep.subr.mxu0 0.0
    %9175 = vmatpush2.xpose.msra.mxu0 0.0
    %9176 = vmatprep.subr.mxu0 0.0
    %9177 = vmatpush2.xpose.msra.mxu0 0.0
    %9178 = vmatprep.subr.mxu0 0.0
    %9179 = vmatpush2.xpose.msra.mxu0 0.0
    %9180 = vmatprep.subr.mxu0 0.0
    %9181 = vmatpush2.xpose.msra.mxu0 0.0
    %9182 = vmatprep.subr.mxu0 0.0
    %9183 = vmatpush2.xpose.msra.mxu0 0.0
    %9184 = vmatprep.subr.mxu0 0.0
    %9185 = vmatpush2.xpose.msra.mxu0 0.0
    %9186 = vmatprep.subr.mxu0 0.0
    %9187 = vmatpush2.xpose.msra.mxu0 0.0
    %9188 = vmatprep.subr.mxu0 0.0
    %9189 = vmatpush2.xpose.msra.mxu0 0.0
    %9190 = vmatprep.subr.mxu0 0.0
    %9191 = vmatpush2.xpose.msra.mxu0 0.0
    %9192 = vmatprep.subr.mxu0 0.0
    %9193 = vmatpush2.xpose.msra.mxu0 0.0
    %9194 = vmatprep.subr.mxu0 0.0
    %9195 = vmatpush2.xpose.msra.mxu0 0.0
    %9196 = vmatprep.subr.mxu0 0.0
    %9197 = vmatpush2.xpose.msra.mxu0 0.0
    %9198 = vmatprep.mubr.f32.mxu0 0.0
    %9199 = vmatmul.mubr.f32.gmra.mxu0 %v9130
    %v9200 = vpop.f32.mrf.mxu0
    %v9201 = vadd.f32 %v241, %v9200
    %v9202 = vpop.f32.mrf.mxu0
    %9203 = vdwg.mxu0
    %9204 = vrot.lane.b32.xlu0 %v8894, 120
    %v9205 = vpop.permute.xlu0 %9204
    %v9206 = vsel %vm373, %v8894, 0
    %v9208 = vsel %vm373, %v9205, 0
    %9210 = vmatprep.subr.mxu0 0.0
    %9211 = vmatpush1.xpose.msra.mxu0 0.0
    %9212 = vmatprep.subr.mxu0 0.0
    %9213 = vmatpush1.xpose.msra.mxu0 0.0
    %9214 = vmatprep.subr.mxu0 0.0
    %9215 = vmatpush1.xpose.msra.mxu0 0.0
    %9216 = vmatprep.subr.mxu0 0.0
    %9217 = vmatpush1.xpose.msra.mxu0 0.0
    %9218 = vmatprep.subr.mxu0 0.0
    %9219 = vmatpush1.xpose.msra.mxu0 0.0
    %9220 = vmatprep.subr.mxu0 0.0
    %9221 = vmatpush1.xpose.msra.mxu0 0.0
    %9222 = vmatprep.subr.mxu0 0.0
    %9223 = vmatpush1.xpose.msra.mxu0 0.0
    %9224 = vmatprep.subr.mxu0 0.0
    %9225 = vmatpush1.xpose.msra.mxu0 0.0
    %9226 = vmatprep.subr.mxu0 0.0
    %9227 = vmatpush1.xpose.msra.mxu0 0.0
    %9228 = vmatprep.subr.mxu0 0.0
    %9229 = vmatpush1.xpose.msra.mxu0 0.0
    %9230 = vmatprep.subr.mxu0 0.0
    %9231 = vmatpush1.xpose.msra.mxu0 0.0
    %9232 = vmatprep.subr.mxu0 0.0
    %9233 = vmatpush1.xpose.msra.mxu0 0.0
    %9234 = vmatprep.subr.mxu0 0.0
    %9235 = vmatpush1.xpose.msra.mxu0 0.0
    %9236 = vmatprep.subr.mxu0 0.0
    %9237 = vmatpush1.xpose.msra.mxu0 0.0
    %9238 = vmatprep.subr.mxu0 0.0
    %9239 = vmatpush1.xpose.msra.mxu0 0.0
    %9240 = vmatprep.subr.mxu0 0.0
    %9241 = vmatpush1.xpose.msra.mxu0 %v9208
    %9242 = vmatprep.subr.mxu0 0.0
    %9243 = vmatpush2.xpose.msra.mxu0 0.0
    %9244 = vmatprep.subr.mxu0 0.0
    %9245 = vmatpush2.xpose.msra.mxu0 0.0
    %9246 = vmatprep.subr.mxu0 0.0
    %9247 = vmatpush2.xpose.msra.mxu0 0.0
    %9248 = vmatprep.subr.mxu0 0.0
    %9249 = vmatpush2.xpose.msra.mxu0 0.0
    %9250 = vmatprep.subr.mxu0 0.0
    %9251 = vmatpush2.xpose.msra.mxu0 0.0
    %9252 = vmatprep.subr.mxu0 0.0
    %9253 = vmatpush2.xpose.msra.mxu0 0.0
    %9254 = vmatprep.subr.mxu0 0.0
    %9255 = vmatpush2.xpose.msra.mxu0 0.0
    %9256 = vmatprep.subr.mxu0 0.0
    %9257 = vmatpush2.xpose.msra.mxu0 0.0
    %9258 = vmatprep.subr.mxu0 0.0
    %9259 = vmatpush2.xpose.msra.mxu0 0.0
    %9260 = vmatprep.subr.mxu0 0.0
    %9261 = vmatpush2.xpose.msra.mxu0 0.0
    %9262 = vmatprep.subr.mxu0 0.0
    %9263 = vmatpush2.xpose.msra.mxu0 0.0
    %9264 = vmatprep.subr.mxu0 0.0
    %9265 = vmatpush2.xpose.msra.mxu0 0.0
    %9266 = vmatprep.subr.mxu0 0.0
    %9267 = vmatpush2.xpose.msra.mxu0 0.0
    %9268 = vmatprep.subr.mxu0 0.0
    %9269 = vmatpush2.xpose.msra.mxu0 0.0
    %9270 = vmatprep.subr.mxu0 0.0
    %9271 = vmatpush2.xpose.msra.mxu0 0.0
    %9272 = vmatprep.subr.mxu0 0.0
    %9273 = vmatpush2.xpose.msra.mxu0 0.0
    %9274 = vmatprep.mubr.f32.mxu0 0.0
    %9275 = vmatmul.mubr.f32.gmra.mxu0 %v9206
    %v9276 = vpop.f32.mrf.mxu0
    %v9277 = vadd.f32 %v245, %v9276
    %v9278 = vpop.f32.mrf.mxu0
    %9279 = vdwg.mxu0
    %9280 = vrot.lane.b32.xlu0 %v8895, 120
    %v9281 = vpop.permute.xlu0 %9280
    %v9282 = vsel %vm373, %v8895, 0
    %v9284 = vsel %vm373, %v9281, 0
    %9286 = vmatprep.subr.mxu0 0.0
    %9287 = vmatpush1.xpose.msra.mxu0 0.0
    %9288 = vmatprep.subr.mxu0 0.0
    %9289 = vmatpush1.xpose.msra.mxu0 0.0
    %9290 = vmatprep.subr.mxu0 0.0
    %9291 = vmatpush1.xpose.msra.mxu0 0.0
    %9292 = vmatprep.subr.mxu0 0.0
    %9293 = vmatpush1.xpose.msra.mxu0 0.0
    %9294 = vmatprep.subr.mxu0 0.0
    %9295 = vmatpush1.xpose.msra.mxu0 0.0
    %9296 = vmatprep.subr.mxu0 0.0
    %9297 = vmatpush1.xpose.msra.mxu0 0.0
    %9298 = vmatprep.subr.mxu0 0.0
    %9299 = vmatpush1.xpose.msra.mxu0 0.0
    %9300 = vmatprep.subr.mxu0 0.0
    %9301 = vmatpush1.xpose.msra.mxu0 0.0
    %9302 = vmatprep.subr.mxu0 0.0
    %9303 = vmatpush1.xpose.msra.mxu0 0.0
    %9304 = vmatprep.subr.mxu0 0.0
    %9305 = vmatpush1.xpose.msra.mxu0 0.0
    %9306 = vmatprep.subr.mxu0 0.0
    %9307 = vmatpush1.xpose.msra.mxu0 0.0
    %9308 = vmatprep.subr.mxu0 0.0
    %9309 = vmatpush1.xpose.msra.mxu0 0.0
    %9310 = vmatprep.subr.mxu0 0.0
    %9311 = vmatpush1.xpose.msra.mxu0 0.0
    %9312 = vmatprep.subr.mxu0 0.0
    %9313 = vmatpush1.xpose.msra.mxu0 0.0
    %9314 = vmatprep.subr.mxu0 0.0
    %9315 = vmatpush1.xpose.msra.mxu0 0.0
    %9316 = vmatprep.subr.mxu0 0.0
    %9317 = vmatpush1.xpose.msra.mxu0 %v9284
    %9318 = vmatprep.subr.mxu0 0.0
    %9319 = vmatpush2.xpose.msra.mxu0 0.0
    %9320 = vmatprep.subr.mxu0 0.0
    %9321 = vmatpush2.xpose.msra.mxu0 0.0
    %9322 = vmatprep.subr.mxu0 0.0
    %9323 = vmatpush2.xpose.msra.mxu0 0.0
    %9324 = vmatprep.subr.mxu0 0.0
    %9325 = vmatpush2.xpose.msra.mxu0 0.0
    %9326 = vmatprep.subr.mxu0 0.0
    %9327 = vmatpush2.xpose.msra.mxu0 0.0
    %9328 = vmatprep.subr.mxu0 0.0
    %9329 = vmatpush2.xpose.msra.mxu0 0.0
    %9330 = vmatprep.subr.mxu0 0.0
    %9331 = vmatpush2.xpose.msra.mxu0 0.0
    %9332 = vmatprep.subr.mxu0 0.0
    %9333 = vmatpush2.xpose.msra.mxu0 0.0
    %9334 = vmatprep.subr.mxu0 0.0
    %9335 = vmatpush2.xpose.msra.mxu0 0.0
    %9336 = vmatprep.subr.mxu0 0.0
    %9337 = vmatpush2.xpose.msra.mxu0 0.0
    %9338 = vmatprep.subr.mxu0 0.0
    %9339 = vmatpush2.xpose.msra.mxu0 0.0
    %9340 = vmatprep.subr.mxu0 0.0
    %9341 = vmatpush2.xpose.msra.mxu0 0.0
    %9342 = vmatprep.subr.mxu0 0.0
    %9343 = vmatpush2.xpose.msra.mxu0 0.0
    %9344 = vmatprep.subr.mxu0 0.0
    %9345 = vmatpush2.xpose.msra.mxu0 0.0
    %9346 = vmatprep.subr.mxu0 0.0
    %9347 = vmatpush2.xpose.msra.mxu0 0.0
    %9348 = vmatprep.subr.mxu0 0.0
    %9349 = vmatpush2.xpose.msra.mxu0 0.0
    %9350 = vmatprep.mubr.f32.mxu0 0.0
    %9351 = vmatmul.mubr.f32.gmra.mxu0 %v9282
    %v9352 = vpop.f32.mrf.mxu0
    %v9353 = vadd.f32 %v249, %v9352
    %v9354 = vpop.f32.mrf.mxu0
    %9355 = vdwg.mxu0
    %9356 = vrot.lane.b32.xlu0 %v8897, 120
    %v9357 = vpop.permute.xlu0 %9356
    %v9358 = vsel %vm373, %v8897, 0
    %v9360 = vsel %vm373, %v9357, 0
    %9362 = vmatprep.subr.mxu0 0.0
    %9363 = vmatpush1.xpose.msra.mxu0 0.0
    %9364 = vmatprep.subr.mxu0 0.0
    %9365 = vmatpush1.xpose.msra.mxu0 0.0
    %9366 = vmatprep.subr.mxu0 0.0
    %9367 = vmatpush1.xpose.msra.mxu0 0.0
    %9368 = vmatprep.subr.mxu0 0.0
    %9369 = vmatpush1.xpose.msra.mxu0 0.0
    %9370 = vmatprep.subr.mxu0 0.0
    %9371 = vmatpush1.xpose.msra.mxu0 0.0
    %9372 = vmatprep.subr.mxu0 0.0
    %9373 = vmatpush1.xpose.msra.mxu0 0.0
    %9374 = vmatprep.subr.mxu0 0.0
    %9375 = vmatpush1.xpose.msra.mxu0 0.0
    %9376 = vmatprep.subr.mxu0 0.0
    %9377 = vmatpush1.xpose.msra.mxu0 0.0
    %9378 = vmatprep.subr.mxu0 0.0
    %9379 = vmatpush1.xpose.msra.mxu0 0.0
    %9380 = vmatprep.subr.mxu0 0.0
    %9381 = vmatpush1.xpose.msra.mxu0 0.0
    %9382 = vmatprep.subr.mxu0 0.0
    %9383 = vmatpush1.xpose.msra.mxu0 0.0
    %9384 = vmatprep.subr.mxu0 0.0
    %9385 = vmatpush1.xpose.msra.mxu0 0.0
    %9386 = vmatprep.subr.mxu0 0.0
    %9387 = vmatpush1.xpose.msra.mxu0 0.0
    %9388 = vmatprep.subr.mxu0 0.0
    %9389 = vmatpush1.xpose.msra.mxu0 0.0
    %9390 = vmatprep.subr.mxu0 0.0
    %9391 = vmatpush1.xpose.msra.mxu0 0.0
    %9392 = vmatprep.subr.mxu0 0.0
    %9393 = vmatpush1.xpose.msra.mxu0 %v9360
    %9394 = vmatprep.subr.mxu0 0.0
    %9395 = vmatpush2.xpose.msra.mxu0 0.0
    %9396 = vmatprep.subr.mxu0 0.0
    %9397 = vmatpush2.xpose.msra.mxu0 0.0
    %9398 = vmatprep.subr.mxu0 0.0
    %9399 = vmatpush2.xpose.msra.mxu0 0.0
    %9400 = vmatprep.subr.mxu0 0.0
    %9401 = vmatpush2.xpose.msra.mxu0 0.0
    %9402 = vmatprep.subr.mxu0 0.0
    %9403 = vmatpush2.xpose.msra.mxu0 0.0
    %9404 = vmatprep.subr.mxu0 0.0
    %9405 = vmatpush2.xpose.msra.mxu0 0.0
    %9406 = vmatprep.subr.mxu0 0.0
    %9407 = vmatpush2.xpose.msra.mxu0 0.0
    %9408 = vmatprep.subr.mxu0 0.0
    %9409 = vmatpush2.xpose.msra.mxu0 0.0
    %9410 = vmatprep.subr.mxu0 0.0
    %9411 = vmatpush2.xpose.msra.mxu0 0.0
    %9412 = vmatprep.subr.mxu0 0.0
    %9413 = vmatpush2.xpose.msra.mxu0 0.0
    %9414 = vmatprep.subr.mxu0 0.0
    %9415 = vmatpush2.xpose.msra.mxu0 0.0
    %9416 = vmatprep.subr.mxu0 0.0
    %9417 = vmatpush2.xpose.msra.mxu0 0.0
    %9418 = vmatprep.subr.mxu0 0.0
    %9419 = vmatpush2.xpose.msra.mxu0 0.0
    %9420 = vmatprep.subr.mxu0 0.0
    %9421 = vmatpush2.xpose.msra.mxu0 0.0
    %9422 = vmatprep.subr.mxu0 0.0
    %9423 = vmatpush2.xpose.msra.mxu0 0.0
    %9424 = vmatprep.subr.mxu0 0.0
    %9425 = vmatpush2.xpose.msra.mxu0 0.0
    %9426 = vmatprep.mubr.f32.mxu0 0.0
    %9427 = vmatmul.mubr.f32.gmra.mxu0 %v9358
    %v9428 = vpop.f32.mrf.mxu0
    %v9429 = vadd.f32 %v253, %v9428
    %v9430 = vpop.f32.mrf.mxu0
    %9431 = vdwg.mxu0
    %9432 = vrot.lane.b32.xlu0 %v8899, 120
    %v9433 = vpop.permute.xlu0 %9432
    %v9434 = vsel %vm373, %v8899, 0
    %v9436 = vsel %vm373, %v9433, 0
    %9438 = vmatprep.subr.mxu0 0.0
    %9439 = vmatpush1.xpose.msra.mxu0 0.0
    %9440 = vmatprep.subr.mxu0 0.0
    %9441 = vmatpush1.xpose.msra.mxu0 0.0
    %9442 = vmatprep.subr.mxu0 0.0
    %9443 = vmatpush1.xpose.msra.mxu0 0.0
    %9444 = vmatprep.subr.mxu0 0.0
    %9445 = vmatpush1.xpose.msra.mxu0 0.0
    %9446 = vmatprep.subr.mxu0 0.0
    %9447 = vmatpush1.xpose.msra.mxu0 0.0
    %9448 = vmatprep.subr.mxu0 0.0
    %9449 = vmatpush1.xpose.msra.mxu0 0.0
    %9450 = vmatprep.subr.mxu0 0.0
    %9451 = vmatpush1.xpose.msra.mxu0 0.0
    %9452 = vmatprep.subr.mxu0 0.0
    %9453 = vmatpush1.xpose.msra.mxu0 0.0
    %9454 = vmatprep.subr.mxu0 0.0
    %9455 = vmatpush1.xpose.msra.mxu0 0.0
    %9456 = vmatprep.subr.mxu0 0.0
    %9457 = vmatpush1.xpose.msra.mxu0 0.0
    %9458 = vmatprep.subr.mxu0 0.0
    %9459 = vmatpush1.xpose.msra.mxu0 0.0
    %9460 = vmatprep.subr.mxu0 0.0
    %9461 = vmatpush1.xpose.msra.mxu0 0.0
    %9462 = vmatprep.subr.mxu0 0.0
    %9463 = vmatpush1.xpose.msra.mxu0 0.0
    %9464 = vmatprep.subr.mxu0 0.0
    %9465 = vmatpush1.xpose.msra.mxu0 0.0
    %9466 = vmatprep.subr.mxu0 0.0
    %9467 = vmatpush1.xpose.msra.mxu0 0.0
    %9468 = vmatprep.subr.mxu0 0.0
    %9469 = vmatpush1.xpose.msra.mxu0 %v9436
    %9470 = vmatprep.subr.mxu0 0.0
    %9471 = vmatpush2.xpose.msra.mxu0 0.0
    %9472 = vmatprep.subr.mxu0 0.0
    %9473 = vmatpush2.xpose.msra.mxu0 0.0
    %9474 = vmatprep.subr.mxu0 0.0
    %9475 = vmatpush2.xpose.msra.mxu0 0.0
    %9476 = vmatprep.subr.mxu0 0.0
    %9477 = vmatpush2.xpose.msra.mxu0 0.0
    %9478 = vmatprep.subr.mxu0 0.0
    %9479 = vmatpush2.xpose.msra.mxu0 0.0
    %9480 = vmatprep.subr.mxu0 0.0
    %9481 = vmatpush2.xpose.msra.mxu0 0.0
    %9482 = vmatprep.subr.mxu0 0.0
    %9483 = vmatpush2.xpose.msra.mxu0 0.0
    %9484 = vmatprep.subr.mxu0 0.0
    %9485 = vmatpush2.xpose.msra.mxu0 0.0
    %9486 = vmatprep.subr.mxu0 0.0
    %9487 = vmatpush2.xpose.msra.mxu0 0.0
    %9488 = vmatprep.subr.mxu0 0.0
    %9489 = vmatpush2.xpose.msra.mxu0 0.0
    %9490 = vmatprep.subr.mxu0 0.0
    %9491 = vmatpush2.xpose.msra.mxu0 0.0
    %9492 = vmatprep.subr.mxu0 0.0
    %9493 = vmatpush2.xpose.msra.mxu0 0.0
    %9494 = vmatprep.subr.mxu0 0.0
    %9495 = vmatpush2.xpose.msra.mxu0 0.0
    %9496 = vmatprep.subr.mxu0 0.0
    %9497 = vmatpush2.xpose.msra.mxu0 0.0
    %9498 = vmatprep.subr.mxu0 0.0
    %9499 = vmatpush2.xpose.msra.mxu0 0.0
    %9500 = vmatprep.subr.mxu0 0.0
    %9501 = vmatpush2.xpose.msra.mxu0 0.0
    %9502 = vmatprep.mubr.f32.mxu0 0.0
    %9503 = vmatmul.mubr.f32.gmra.mxu0 %v9434
    %v9504 = vpop.f32.mrf.mxu0
    %v9505 = vadd.f32 %v257, %v9504
    %v9506 = vpop.f32.mrf.mxu0
    %9507 = vdwg.mxu0
    %v9508 = vsel %vm373, %v8973, -inf
    %9509 = vmax.xlane.f32.xlu0 %v9508
    %v9510 = vpop.xlane.xlu0 %9509
    %v9511 = vsel %vm373, %v9049, -inf
    %9512 = vmax.xlane.f32.xlu0 %v9511
    %v9513 = vpop.xlane.xlu0 %9512
    %v9514 = vsel %vm373, %v9125, -inf
    %9515 = vmax.xlane.f32.xlu0 %v9514
    %v9516 = vpop.xlane.xlu0 %9515
    %v9517 = vsel %vm373, %v9201, -inf
    %9518 = vmax.xlane.f32.xlu0 %v9517
    %v9519 = vpop.xlane.xlu0 %9518
    %v9520 = vsel %vm373, %v9277, -inf
    %9521 = vmax.xlane.f32.xlu0 %v9520
    %v9522 = vpop.xlane.xlu0 %9521
    %v9523 = vsel %vm373, %v9353, -inf
    %9524 = vmax.xlane.f32.xlu0 %v9523
    %v9525 = vpop.xlane.xlu0 %9524
    %v9526 = vsel %vm373, %v9429, -inf
    %9527 = vmax.xlane.f32.xlu0 %v9526
    %v9528 = vpop.xlane.xlu0 %9527
    %v9529 = vsel %vm373, %v9505, -inf
    %9530 = vmax.xlane.f32.xlu0 %v9529
    %v9531 = vpop.xlane.xlu0 %9530
    %v9532 = vsub.f32 %v8973, %v9510
    %v9533 = vsub.f32 %v9049, %v9513
    %v9534 = vsub.f32 %v9125, %v9516
    %v9535 = vsub.f32 %v9201, %v9519
    %v9536 = vsub.f32 %v9277, %v9522
    %v9537 = vsub.f32 %v9353, %v9525
    %v9538 = vsub.f32 %v9429, %v9528
    %v9539 = vsub.f32 %v9505, %v9531
    %v9540 = vmul.f32 %v9532, 1.442695
    %v9541 = vpow.pop %v9540
    %v9542 = vmul.f32 %v9533, 1.442695
    %v9543 = vpow.pop %v9542
    %v9544 = vmul.f32 %v9534, 1.442695
    %v9545 = vpow.pop %v9544
    %v9546 = vmul.f32 %v9535, 1.442695
    %v9547 = vpow.pop %v9546
    %v9548 = vmul.f32 %v9536, 1.442695
    %v9549 = vpow.pop %v9548
    %v9550 = vmul.f32 %v9537, 1.442695
    %v9551 = vpow.pop %v9550
    %v9552 = vmul.f32 %v9538, 1.442695
    %v9553 = vpow.pop %v9552
    %v9554 = vmul.f32 %v9539, 1.442695
    %v9555 = vpow.pop %v9554
    %v9556 = vsel %vm373, %v9541, 0.0
    %9557 = vadd.xlane.f32.xlu0 %v9556
    %v9558 = vpop.xlane.xlu0 %9557
    %v9559 = vsel %vm373, %v9543, 0.0
    %9560 = vadd.xlane.f32.xlu0 %v9559
    %v9561 = vpop.xlane.xlu0 %9560
    %v9562 = vsel %vm373, %v9545, 0.0
    %9563 = vadd.xlane.f32.xlu0 %v9562
    %v9564 = vpop.xlane.xlu0 %9563
    %v9565 = vsel %vm373, %v9547, 0.0
    %9566 = vadd.xlane.f32.xlu0 %v9565
    %v9567 = vpop.xlane.xlu0 %9566
    %v9568 = vsel %vm373, %v9549, 0.0
    %9569 = vadd.xlane.f32.xlu0 %v9568
    %v9570 = vpop.xlane.xlu0 %9569
    %v9571 = vsel %vm373, %v9551, 0.0
    %9572 = vadd.xlane.f32.xlu0 %v9571
    %v9573 = vpop.xlane.xlu0 %9572
    %v9574 = vsel %vm373, %v9553, 0.0
    %9575 = vadd.xlane.f32.xlu0 %v9574
    %v9576 = vpop.xlane.xlu0 %9575
    %v9577 = vsel %vm373, %v9555, 0.0
    %9578 = vadd.xlane.f32.xlu0 %v9577
    %v9579 = vpop.xlane.xlu0 %9578
    %v9580 = vrcp.pop %v9558
    %v9581 = vrcp.pop %v9561
    %v9582 = vrcp.pop %v9564
    %v9583 = vrcp.pop %v9567
    %v9584 = vrcp.pop %v9570
    %v9585 = vrcp.pop %v9573
    %v9586 = vrcp.pop %v9576
    %v9587 = vrcp.pop %v9579
    %v9588 = vmul.f32 %v9541, %v9580
    %v9589 = vmul.f32 %v9543, %v9581
    %v9590 = vmul.f32 %v9545, %v9582
    %v9591 = vmul.f32 %v9547, %v9583
    %v9592 = vmul.f32 %v9549, %v9584
    %v9593 = vmul.f32 %v9551, %v9585
    %v9594 = vmul.f32 %v9553, %v9586
    %v9595 = vmul.f32 %v9555, %v9587
    %9596 = vrot.lane.b32.xlu0 %v8870, 112
    %v9597 = vpop.permute.xlu0 %9596
    %v9600 = vsel %vm373, %v9588, 0
    %9602 = vmatprep.subr.mxu0 0.0
    %9603 = vmatpush1.msra.mxu0 0.0
    %9604 = vmatprep.subr.mxu0 0.0
    %9605 = vmatpush1.msra.mxu0 0.0
    %9606 = vmatprep.subr.mxu0 0.0
    %9607 = vmatpush1.msra.mxu0 0.0
    %9608 = vmatprep.subr.mxu0 0.0
    %9609 = vmatpush1.msra.mxu0 0.0
    %9610 = vmatprep.subr.mxu0 0.0
    %9611 = vmatpush1.msra.mxu0 0.0
    %9612 = vmatprep.subr.mxu0 0.0
    %9613 = vmatpush1.msra.mxu0 0.0
    %9614 = vmatprep.subr.mxu0 0.0
    %9615 = vmatpush1.msra.mxu0 0.0
    %9616 = vmatprep.subr.mxu0 0.0
    %9617 = vmatpush1.msra.mxu0 0.0
    %9618 = vmatprep.subr.mxu0 0.0
    %9619 = vmatpush1.msra.mxu0 0.0
    %9620 = vmatprep.subr.mxu0 0.0
    %9621 = vmatpush1.msra.mxu0 0.0
    %9622 = vmatprep.subr.mxu0 0.0
    %9623 = vmatpush1.msra.mxu0 0.0
    %9624 = vmatprep.subr.mxu0 0.0
    %9625 = vmatpush1.msra.mxu0 0.0
    %9626 = vmatprep.subr.mxu0 0.0
    %9627 = vmatpush1.msra.mxu0 0.0
    %9628 = vmatprep.subr.mxu0 0.0
    %9629 = vmatpush1.msra.mxu0 0.0
    %9630 = vmatprep.subr.mxu0 0.0
    %9631 = vmatpush1.msra.mxu0 0.0
    %9632 = vmatprep.subr.mxu0 0.0
    %9633 = vmatpush1.msra.mxu0 %v9597
    %9634 = vmatprep.subr.mxu0 0.0
    %9635 = vmatpush2.msra.mxu0 0.0
    %9636 = vmatprep.subr.mxu0 0.0
    %9637 = vmatpush2.msra.mxu0 0.0
    %9638 = vmatprep.subr.mxu0 0.0
    %9639 = vmatpush2.msra.mxu0 0.0
    %9640 = vmatprep.subr.mxu0 0.0
    %9641 = vmatpush2.msra.mxu0 0.0
    %9642 = vmatprep.subr.mxu0 0.0
    %9643 = vmatpush2.msra.mxu0 0.0
    %9644 = vmatprep.subr.mxu0 0.0
    %9645 = vmatpush2.msra.mxu0 0.0
    %9646 = vmatprep.subr.mxu0 0.0
    %9647 = vmatpush2.msra.mxu0 0.0
    %9648 = vmatprep.subr.mxu0 0.0
    %9649 = vmatpush2.msra.mxu0 0.0
    %9650 = vmatprep.subr.mxu0 0.0
    %9651 = vmatpush2.msra.mxu0 0.0
    %9652 = vmatprep.subr.mxu0 0.0
    %9653 = vmatpush2.msra.mxu0 0.0
    %9654 = vmatprep.subr.mxu0 0.0
    %9655 = vmatpush2.msra.mxu0 0.0
    %9656 = vmatprep.subr.mxu0 0.0
    %9657 = vmatpush2.msra.mxu0 0.0
    %9658 = vmatprep.subr.mxu0 0.0
    %9659 = vmatpush2.msra.mxu0 0.0
    %9660 = vmatprep.subr.mxu0 0.0
    %9661 = vmatpush2.msra.mxu0 0.0
    %9662 = vmatprep.subr.mxu0 0.0
    %9663 = vmatpush2.msra.mxu0 0.0
    %9664 = vmatprep.subr.mxu0 0.0
    %9665 = vmatpush2.msra.mxu0 0.0
    %9666 = vmatprep.mubr.f32.mxu0 0.0
    %9667 = vmatmul.mubr.f32.gmra.mxu0 %v9600
    %v9668 = vpop.f32.mrf.mxu0
    %v9669 = vadd.f32 0.0, %v9668
    %v9670 = vpop.f32.mrf.mxu0
    %9671 = vdwg.mxu0
    %9672 = vrot.lane.b32.xlu0 %v8874, 112
    %v9673 = vpop.permute.xlu0 %9672
    %v9676 = vsel %vm373, %v9589, 0
    %9678 = vmatprep.subr.mxu0 0.0
    %9679 = vmatpush1.msra.mxu0 0.0
    %9680 = vmatprep.subr.mxu0 0.0
    %9681 = vmatpush1.msra.mxu0 0.0
    %9682 = vmatprep.subr.mxu0 0.0
    %9683 = vmatpush1.msra.mxu0 0.0
    %9684 = vmatprep.subr.mxu0 0.0
    %9685 = vmatpush1.msra.mxu0 0.0
    %9686 = vmatprep.subr.mxu0 0.0
    %9687 = vmatpush1.msra.mxu0 0.0
    %9688 = vmatprep.subr.mxu0 0.0
    %9689 = vmatpush1.msra.mxu0 0.0
    %9690 = vmatprep.subr.mxu0 0.0
    %9691 = vmatpush1.msra.mxu0 0.0
    %9692 = vmatprep.subr.mxu0 0.0
    %9693 = vmatpush1.msra.mxu0 0.0
    %9694 = vmatprep.subr.mxu0 0.0
    %9695 = vmatpush1.msra.mxu0 0.0
    %9696 = vmatprep.subr.mxu0 0.0
    %9697 = vmatpush1.msra.mxu0 0.0
    %9698 = vmatprep.subr.mxu0 0.0
    %9699 = vmatpush1.msra.mxu0 0.0
    %9700 = vmatprep.subr.mxu0 0.0
    %9701 = vmatpush1.msra.mxu0 0.0
    %9702 = vmatprep.subr.mxu0 0.0
    %9703 = vmatpush1.msra.mxu0 0.0
    %9704 = vmatprep.subr.mxu0 0.0
    %9705 = vmatpush1.msra.mxu0 0.0
    %9706 = vmatprep.subr.mxu0 0.0
    %9707 = vmatpush1.msra.mxu0 0.0
    %9708 = vmatprep.subr.mxu0 0.0
    %9709 = vmatpush1.msra.mxu0 %v9673
    %9710 = vmatprep.subr.mxu0 0.0
    %9711 = vmatpush2.msra.mxu0 0.0
    %9712 = vmatprep.subr.mxu0 0.0
    %9713 = vmatpush2.msra.mxu0 0.0
    %9714 = vmatprep.subr.mxu0 0.0
    %9715 = vmatpush2.msra.mxu0 0.0
    %9716 = vmatprep.subr.mxu0 0.0
    %9717 = vmatpush2.msra.mxu0 0.0
    %9718 = vmatprep.subr.mxu0 0.0
    %9719 = vmatpush2.msra.mxu0 0.0
    %9720 = vmatprep.subr.mxu0 0.0
    %9721 = vmatpush2.msra.mxu0 0.0
    %9722 = vmatprep.subr.mxu0 0.0
    %9723 = vmatpush2.msra.mxu0 0.0
    %9724 = vmatprep.subr.mxu0 0.0
    %9725 = vmatpush2.msra.mxu0 0.0
    %9726 = vmatprep.subr.mxu0 0.0
    %9727 = vmatpush2.msra.mxu0 0.0
    %9728 = vmatprep.subr.mxu0 0.0
    %9729 = vmatpush2.msra.mxu0 0.0
    %9730 = vmatprep.subr.mxu0 0.0
    %9731 = vmatpush2.msra.mxu0 0.0
    %9732 = vmatprep.subr.mxu0 0.0
    %9733 = vmatpush2.msra.mxu0 0.0
    %9734 = vmatprep.subr.mxu0 0.0
    %9735 = vmatpush2.msra.mxu0 0.0
    %9736 = vmatprep.subr.mxu0 0.0
    %9737 = vmatpush2.msra.mxu0 0.0
    %9738 = vmatprep.subr.mxu0 0.0
    %9739 = vmatpush2.msra.mxu0 0.0
    %9740 = vmatprep.subr.mxu0 0.0
    %9741 = vmatpush2.msra.mxu0 0.0
    %9742 = vmatprep.mubr.f32.mxu0 0.0
    %9743 = vmatmul.mubr.f32.gmra.mxu0 %v9676
    %v9744 = vpop.f32.mrf.mxu0
    %v9745 = vadd.f32 0.0, %v9744
    %v9746 = vpop.f32.mrf.mxu0
    %9747 = vdwg.mxu0
    %9748 = vrot.lane.b32.xlu0 %v8881, 112
    %v9749 = vpop.permute.xlu0 %9748
    %v9752 = vsel %vm373, %v9590, 0
    %9754 = vmatprep.subr.mxu0 0.0
    %9755 = vmatpush1.msra.mxu0 0.0
    %9756 = vmatprep.subr.mxu0 0.0
    %9757 = vmatpush1.msra.mxu0 0.0
    %9758 = vmatprep.subr.mxu0 0.0
    %9759 = vmatpush1.msra.mxu0 0.0
    %9760 = vmatprep.subr.mxu0 0.0
    %9761 = vmatpush1.msra.mxu0 0.0
    %9762 = vmatprep.subr.mxu0 0.0
    %9763 = vmatpush1.msra.mxu0 0.0
    %9764 = vmatprep.subr.mxu0 0.0
    %9765 = vmatpush1.msra.mxu0 0.0
    %9766 = vmatprep.subr.mxu0 0.0
    %9767 = vmatpush1.msra.mxu0 0.0
    %9768 = vmatprep.subr.mxu0 0.0
    %9769 = vmatpush1.msra.mxu0 0.0
    %9770 = vmatprep.subr.mxu0 0.0
    %9771 = vmatpush1.msra.mxu0 0.0
    %9772 = vmatprep.subr.mxu0 0.0
    %9773 = vmatpush1.msra.mxu0 0.0
    %9774 = vmatprep.subr.mxu0 0.0
    %9775 = vmatpush1.msra.mxu0 0.0
    %9776 = vmatprep.subr.mxu0 0.0
    %9777 = vmatpush1.msra.mxu0 0.0
    %9778 = vmatprep.subr.mxu0 0.0
    %9779 = vmatpush1.msra.mxu0 0.0
    %9780 = vmatprep.subr.mxu0 0.0
    %9781 = vmatpush1.msra.mxu0 0.0
    %9782 = vmatprep.subr.mxu0 0.0
    %9783 = vmatpush1.msra.mxu0 0.0
    %9784 = vmatprep.subr.mxu0 0.0
    %9785 = vmatpush1.msra.mxu0 %v9749
    %9786 = vmatprep.subr.mxu0 0.0
    %9787 = vmatpush2.msra.mxu0 0.0
    %9788 = vmatprep.subr.mxu0 0.0
    %9789 = vmatpush2.msra.mxu0 0.0
    %9790 = vmatprep.subr.mxu0 0.0
    %9791 = vmatpush2.msra.mxu0 0.0
    %9792 = vmatprep.subr.mxu0 0.0
    %9793 = vmatpush2.msra.mxu0 0.0
    %9794 = vmatprep.subr.mxu0 0.0
    %9795 = vmatpush2.msra.mxu0 0.0
    %9796 = vmatprep.subr.mxu0 0.0
    %9797 = vmatpush2.msra.mxu0 0.0
    %9798 = vmatprep.subr.mxu0 0.0
    %9799 = vmatpush2.msra.mxu0 0.0
    %9800 = vmatprep.subr.mxu0 0.0
    %9801 = vmatpush2.msra.mxu0 0.0
    %9802 = vmatprep.subr.mxu0 0.0
    %9803 = vmatpush2.msra.mxu0 0.0
    %9804 = vmatprep.subr.mxu0 0.0
    %9805 = vmatpush2.msra.mxu0 0.0
    %9806 = vmatprep.subr.mxu0 0.0
    %9807 = vmatpush2.msra.mxu0 0.0
    %9808 = vmatprep.subr.mxu0 0.0
    %9809 = vmatpush2.msra.mxu0 0.0
    %9810 = vmatprep.subr.mxu0 0.0
    %9811 = vmatpush2.msra.mxu0 0.0
    %9812 = vmatprep.subr.mxu0 0.0
    %9813 = vmatpush2.msra.mxu0 0.0
    %9814 = vmatprep.subr.mxu0 0.0
    %9815 = vmatpush2.msra.mxu0 0.0
    %9816 = vmatprep.subr.mxu0 0.0
    %9817 = vmatpush2.msra.mxu0 0.0
    %9818 = vmatprep.mubr.f32.mxu0 0.0
    %9819 = vmatmul.mubr.f32.gmra.mxu0 %v9752
    %v9820 = vpop.f32.mrf.mxu0
    %v9821 = vadd.f32 0.0, %v9820
    %v9822 = vpop.f32.mrf.mxu0
    %9823 = vdwg.mxu0
    %9824 = vrot.lane.b32.xlu0 %v8883, 112
    %v9825 = vpop.permute.xlu0 %9824
    %v9828 = vsel %vm373, %v9591, 0
    %9830 = vmatprep.subr.mxu0 0.0
    %9831 = vmatpush1.msra.mxu0 0.0
    %9832 = vmatprep.subr.mxu0 0.0
    %9833 = vmatpush1.msra.mxu0 0.0
    %9834 = vmatprep.subr.mxu0 0.0
    %9835 = vmatpush1.msra.mxu0 0.0
    %9836 = vmatprep.subr.mxu0 0.0
    %9837 = vmatpush1.msra.mxu0 0.0
    %9838 = vmatprep.subr.mxu0 0.0
    %9839 = vmatpush1.msra.mxu0 0.0
    %9840 = vmatprep.subr.mxu0 0.0
    %9841 = vmatpush1.msra.mxu0 0.0
    %9842 = vmatprep.subr.mxu0 0.0
    %9843 = vmatpush1.msra.mxu0 0.0
    %9844 = vmatprep.subr.mxu0 0.0
    %9845 = vmatpush1.msra.mxu0 0.0
    %9846 = vmatprep.subr.mxu0 0.0
    %9847 = vmatpush1.msra.mxu0 0.0
    %9848 = vmatprep.subr.mxu0 0.0
    %9849 = vmatpush1.msra.mxu0 0.0
    %9850 = vmatprep.subr.mxu0 0.0
    %9851 = vmatpush1.msra.mxu0 0.0
    %9852 = vmatprep.subr.mxu0 0.0
    %9853 = vmatpush1.msra.mxu0 0.0
    %9854 = vmatprep.subr.mxu0 0.0
    %9855 = vmatpush1.msra.mxu0 0.0
    %9856 = vmatprep.subr.mxu0 0.0
    %9857 = vmatpush1.msra.mxu0 0.0
    %9858 = vmatprep.subr.mxu0 0.0
    %9859 = vmatpush1.msra.mxu0 0.0
    %9860 = vmatprep.subr.mxu0 0.0
    %9861 = vmatpush1.msra.mxu0 %v9825
    %9862 = vmatprep.subr.mxu0 0.0
    %9863 = vmatpush2.msra.mxu0 0.0
    %9864 = vmatprep.subr.mxu0 0.0
    %9865 = vmatpush2.msra.mxu0 0.0
    %9866 = vmatprep.subr.mxu0 0.0
    %9867 = vmatpush2.msra.mxu0 0.0
    %9868 = vmatprep.subr.mxu0 0.0
    %9869 = vmatpush2.msra.mxu0 0.0
    %9870 = vmatprep.subr.mxu0 0.0
    %9871 = vmatpush2.msra.mxu0 0.0
    %9872 = vmatprep.subr.mxu0 0.0
    %9873 = vmatpush2.msra.mxu0 0.0
    %9874 = vmatprep.subr.mxu0 0.0
    %9875 = vmatpush2.msra.mxu0 0.0
    %9876 = vmatprep.subr.mxu0 0.0
    %9877 = vmatpush2.msra.mxu0 0.0
    %9878 = vmatprep.subr.mxu0 0.0
    %9879 = vmatpush2.msra.mxu0 0.0
    %9880 = vmatprep.subr.mxu0 0.0
    %9881 = vmatpush2.msra.mxu0 0.0
    %9882 = vmatprep.subr.mxu0 0.0
    %9883 = vmatpush2.msra.mxu0 0.0
    %9884 = vmatprep.subr.mxu0 0.0
    %9885 = vmatpush2.msra.mxu0 0.0
    %9886 = vmatprep.subr.mxu0 0.0
    %9887 = vmatpush2.msra.mxu0 0.0
    %9888 = vmatprep.subr.mxu0 0.0
    %9889 = vmatpush2.msra.mxu0 0.0
    %9890 = vmatprep.subr.mxu0 0.0
    %9891 = vmatpush2.msra.mxu0 0.0
    %9892 = vmatprep.subr.mxu0 0.0
    %9893 = vmatpush2.msra.mxu0 0.0
    %9894 = vmatprep.mubr.f32.mxu0 0.0
    %9895 = vmatmul.mubr.f32.gmra.mxu0 %v9828
    %v9896 = vpop.f32.mrf.mxu0
    %v9897 = vadd.f32 0.0, %v9896
    %v9898 = vpop.f32.mrf.mxu0
    %9899 = vdwg.mxu0
    %9900 = vrot.lane.b32.xlu0 %v8894, 112
    %v9901 = vpop.permute.xlu0 %9900
    %v9904 = vsel %vm373, %v9592, 0
    %9906 = vmatprep.subr.mxu0 0.0
    %9907 = vmatpush1.msra.mxu0 0.0
    %9908 = vmatprep.subr.mxu0 0.0
    %9909 = vmatpush1.msra.mxu0 0.0
    %9910 = vmatprep.subr.mxu0 0.0
    %9911 = vmatpush1.msra.mxu0 0.0
    %9912 = vmatprep.subr.mxu0 0.0
    %9913 = vmatpush1.msra.mxu0 0.0
    %9914 = vmatprep.subr.mxu0 0.0
    %9915 = vmatpush1.msra.mxu0 0.0
    %9916 = vmatprep.subr.mxu0 0.0
    %9917 = vmatpush1.msra.mxu0 0.0
    %9918 = vmatprep.subr.mxu0 0.0
    %9919 = vmatpush1.msra.mxu0 0.0
    %9920 = vmatprep.subr.mxu0 0.0
    %9921 = vmatpush1.msra.mxu0 0.0
    %9922 = vmatprep.subr.mxu0 0.0
    %9923 = vmatpush1.msra.mxu0 0.0
    %9924 = vmatprep.subr.mxu0 0.0
    %9925 = vmatpush1.msra.mxu0 0.0
    %9926 = vmatprep.subr.mxu0 0.0
    %9927 = vmatpush1.msra.mxu0 0.0
    %9928 = vmatprep.subr.mxu0 0.0
    %9929 = vmatpush1.msra.mxu0 0.0
    %9930 = vmatprep.subr.mxu0 0.0
    %9931 = vmatpush1.msra.mxu0 0.0
    %9932 = vmatprep.subr.mxu0 0.0
    %9933 = vmatpush1.msra.mxu0 0.0
    %9934 = vmatprep.subr.mxu0 0.0
    %9935 = vmatpush1.msra.mxu0 0.0
    %9936 = vmatprep.subr.mxu0 0.0
    %9937 = vmatpush1.msra.mxu0 %v9901
    %9938 = vmatprep.subr.mxu0 0.0
    %9939 = vmatpush2.msra.mxu0 0.0
    %9940 = vmatprep.subr.mxu0 0.0
    %9941 = vmatpush2.msra.mxu0 0.0
    %9942 = vmatprep.subr.mxu0 0.0
    %9943 = vmatpush2.msra.mxu0 0.0
    %9944 = vmatprep.subr.mxu0 0.0
    %9945 = vmatpush2.msra.mxu0 0.0
    %9946 = vmatprep.subr.mxu0 0.0
    %9947 = vmatpush2.msra.mxu0 0.0
    %9948 = vmatprep.subr.mxu0 0.0
    %9949 = vmatpush2.msra.mxu0 0.0
    %9950 = vmatprep.subr.mxu0 0.0
    %9951 = vmatpush2.msra.mxu0 0.0
    %9952 = vmatprep.subr.mxu0 0.0
    %9953 = vmatpush2.msra.mxu0 0.0
    %9954 = vmatprep.subr.mxu0 0.0
    %9955 = vmatpush2.msra.mxu0 0.0
    %9956 = vmatprep.subr.mxu0 0.0
    %9957 = vmatpush2.msra.mxu0 0.0
    %9958 = vmatprep.subr.mxu0 0.0
    %9959 = vmatpush2.msra.mxu0 0.0
    %9960 = vmatprep.subr.mxu0 0.0
    %9961 = vmatpush2.msra.mxu0 0.0
    %9962 = vmatprep.subr.mxu0 0.0
    %9963 = vmatpush2.msra.mxu0 0.0
    %9964 = vmatprep.subr.mxu0 0.0
    %9965 = vmatpush2.msra.mxu0 0.0
    %9966 = vmatprep.subr.mxu0 0.0
    %9967 = vmatpush2.msra.mxu0 0.0
    %9968 = vmatprep.subr.mxu0 0.0
    %9969 = vmatpush2.msra.mxu0 0.0
    %9970 = vmatprep.mubr.f32.mxu0 0.0
    %9971 = vmatmul.mubr.f32.gmra.mxu0 %v9904
    %v9972 = vpop.f32.mrf.mxu0
    %v9973 = vadd.f32 0.0, %v9972
    %v9974 = vpop.f32.mrf.mxu0
    %9975 = vdwg.mxu0
    %9976 = vrot.lane.b32.xlu0 %v8895, 112
    %v9977 = vpop.permute.xlu0 %9976
    %v9980 = vsel %vm373, %v9593, 0
    %9982 = vmatprep.subr.mxu0 0.0
    %9983 = vmatpush1.msra.mxu0 0.0
    %9984 = vmatprep.subr.mxu0 0.0
    %9985 = vmatpush1.msra.mxu0 0.0
    %9986 = vmatprep.subr.mxu0 0.0
    %9987 = vmatpush1.msra.mxu0 0.0
    %9988 = vmatprep.subr.mxu0 0.0
    %9989 = vmatpush1.msra.mxu0 0.0
    %9990 = vmatprep.subr.mxu0 0.0
    %9991 = vmatpush1.msra.mxu0 0.0
    %9992 = vmatprep.subr.mxu0 0.0
    %9993 = vmatpush1.msra.mxu0 0.0
    %9994 = vmatprep.subr.mxu0 0.0
    %9995 = vmatpush1.msra.mxu0 0.0
    %9996 = vmatprep.subr.mxu0 0.0
    %9997 = vmatpush1.msra.mxu0 0.0
    %9998 = vmatprep.subr.mxu0 0.0
    %9999 = vmatpush1.msra.mxu0 0.0
    %10000 = vmatprep.subr.mxu0 0.0
    %10001 = vmatpush1.msra.mxu0 0.0
    %10002 = vmatprep.subr.mxu0 0.0
    %10003 = vmatpush1.msra.mxu0 0.0
    %10004 = vmatprep.subr.mxu0 0.0
    %10005 = vmatpush1.msra.mxu0 0.0
    %10006 = vmatprep.subr.mxu0 0.0
    %10007 = vmatpush1.msra.mxu0 0.0
    %10008 = vmatprep.subr.mxu0 0.0
    %10009 = vmatpush1.msra.mxu0 0.0
    %10010 = vmatprep.subr.mxu0 0.0
    %10011 = vmatpush1.msra.mxu0 0.0
    %10012 = vmatprep.subr.mxu0 0.0
    %10013 = vmatpush1.msra.mxu0 %v9977
    %10014 = vmatprep.subr.mxu0 0.0
    %10015 = vmatpush2.msra.mxu0 0.0
    %10016 = vmatprep.subr.mxu0 0.0
    %10017 = vmatpush2.msra.mxu0 0.0
    %10018 = vmatprep.subr.mxu0 0.0
    %10019 = vmatpush2.msra.mxu0 0.0
    %10020 = vmatprep.subr.mxu0 0.0
    %10021 = vmatpush2.msra.mxu0 0.0
    %10022 = vmatprep.subr.mxu0 0.0
    %10023 = vmatpush2.msra.mxu0 0.0
    %10024 = vmatprep.subr.mxu0 0.0
    %10025 = vmatpush2.msra.mxu0 0.0
    %10026 = vmatprep.subr.mxu0 0.0
    %10027 = vmatpush2.msra.mxu0 0.0
    %10028 = vmatprep.subr.mxu0 0.0
    %10029 = vmatpush2.msra.mxu0 0.0
    %10030 = vmatprep.subr.mxu0 0.0
    %10031 = vmatpush2.msra.mxu0 0.0
    %10032 = vmatprep.subr.mxu0 0.0
    %10033 = vmatpush2.msra.mxu0 0.0
    %10034 = vmatprep.subr.mxu0 0.0
    %10035 = vmatpush2.msra.mxu0 0.0
    %10036 = vmatprep.subr.mxu0 0.0
    %10037 = vmatpush2.msra.mxu0 0.0
    %10038 = vmatprep.subr.mxu0 0.0
    %10039 = vmatpush2.msra.mxu0 0.0
    %10040 = vmatprep.subr.mxu0 0.0
    %10041 = vmatpush2.msra.mxu0 0.0
    %10042 = vmatprep.subr.mxu0 0.0
    %10043 = vmatpush2.msra.mxu0 0.0
    %10044 = vmatprep.subr.mxu0 0.0
    %10045 = vmatpush2.msra.mxu0 0.0
    %10046 = vmatprep.mubr.f32.mxu0 0.0
    %10047 = vmatmul.mubr.f32.gmra.mxu0 %v9980
    %v10048 = vpop.f32.mrf.mxu0
    %v10049 = vadd.f32 0.0, %v10048
    %v10050 = vpop.f32.mrf.mxu0
    %10051 = vdwg.mxu0
    %10052 = vrot.lane.b32.xlu0 %v8897, 112
    %v10053 = vpop.permute.xlu0 %10052
    %v10056 = vsel %vm373, %v9594, 0
    %10058 = vmatprep.subr.mxu0 0.0
    %10059 = vmatpush1.msra.mxu0 0.0
    %10060 = vmatprep.subr.mxu0 0.0
    %10061 = vmatpush1.msra.mxu0 0.0
    %10062 = vmatprep.subr.mxu0 0.0
    %10063 = vmatpush1.msra.mxu0 0.0
    %10064 = vmatprep.subr.mxu0 0.0
    %10065 = vmatpush1.msra.mxu0 0.0
    %10066 = vmatprep.subr.mxu0 0.0
    %10067 = vmatpush1.msra.mxu0 0.0
    %10068 = vmatprep.subr.mxu0 0.0
    %10069 = vmatpush1.msra.mxu0 0.0
    %10070 = vmatprep.subr.mxu0 0.0
    %10071 = vmatpush1.msra.mxu0 0.0
    %10072 = vmatprep.subr.mxu0 0.0
    %10073 = vmatpush1.msra.mxu0 0.0
    %10074 = vmatprep.subr.mxu0 0.0
    %10075 = vmatpush1.msra.mxu0 0.0
    %10076 = vmatprep.subr.mxu0 0.0
    %10077 = vmatpush1.msra.mxu0 0.0
    %10078 = vmatprep.subr.mxu0 0.0
    %10079 = vmatpush1.msra.mxu0 0.0
    %10080 = vmatprep.subr.mxu0 0.0
    %10081 = vmatpush1.msra.mxu0 0.0
    %10082 = vmatprep.subr.mxu0 0.0
    %10083 = vmatpush1.msra.mxu0 0.0
    %10084 = vmatprep.subr.mxu0 0.0
    %10085 = vmatpush1.msra.mxu0 0.0
    %10086 = vmatprep.subr.mxu0 0.0
    %10087 = vmatpush1.msra.mxu0 0.0
    %10088 = vmatprep.subr.mxu0 0.0
    %10089 = vmatpush1.msra.mxu0 %v10053
    %10090 = vmatprep.subr.mxu0 0.0
    %10091 = vmatpush2.msra.mxu0 0.0
    %10092 = vmatprep.subr.mxu0 0.0
    %10093 = vmatpush2.msra.mxu0 0.0
    %10094 = vmatprep.subr.mxu0 0.0
    %10095 = vmatpush2.msra.mxu0 0.0
    %10096 = vmatprep.subr.mxu0 0.0
    %10097 = vmatpush2.msra.mxu0 0.0
    %10098 = vmatprep.subr.mxu0 0.0
    %10099 = vmatpush2.msra.mxu0 0.0
    %10100 = vmatprep.subr.mxu0 0.0
    %10101 = vmatpush2.msra.mxu0 0.0
    %10102 = vmatprep.subr.mxu0 0.0
    %10103 = vmatpush2.msra.mxu0 0.0
    %10104 = vmatprep.subr.mxu0 0.0
    %10105 = vmatpush2.msra.mxu0 0.0
    %10106 = vmatprep.subr.mxu0 0.0
    %10107 = vmatpush2.msra.mxu0 0.0
    %10108 = vmatprep.subr.mxu0 0.0
    %10109 = vmatpush2.msra.mxu0 0.0
    %10110 = vmatprep.subr.mxu0 0.0
    %10111 = vmatpush2.msra.mxu0 0.0
    %10112 = vmatprep.subr.mxu0 0.0
    %10113 = vmatpush2.msra.mxu0 0.0
    %10114 = vmatprep.subr.mxu0 0.0
    %10115 = vmatpush2.msra.mxu0 0.0
    %10116 = vmatprep.subr.mxu0 0.0
    %10117 = vmatpush2.msra.mxu0 0.0
    %10118 = vmatprep.subr.mxu0 0.0
    %10119 = vmatpush2.msra.mxu0 0.0
    %10120 = vmatprep.subr.mxu0 0.0
    %10121 = vmatpush2.msra.mxu0 0.0
    %10122 = vmatprep.mubr.f32.mxu0 0.0
    %10123 = vmatmul.mubr.f32.gmra.mxu0 %v10056
    %v10124 = vpop.f32.mrf.mxu0
    %v10125 = vadd.f32 0.0, %v10124
    %v10126 = vpop.f32.mrf.mxu0
    %10127 = vdwg.mxu0
    %10128 = vrot.lane.b32.xlu0 %v8899, 112
    %v10129 = vpop.permute.xlu0 %10128
    %v10132 = vsel %vm373, %v9595, 0
    %10134 = vmatprep.subr.mxu0 0.0
    %10135 = vmatpush1.msra.mxu0 0.0
    %10136 = vmatprep.subr.mxu0 0.0
    %10137 = vmatpush1.msra.mxu0 0.0
    %10138 = vmatprep.subr.mxu0 0.0
    %10139 = vmatpush1.msra.mxu0 0.0
    %10140 = vmatprep.subr.mxu0 0.0
    %10141 = vmatpush1.msra.mxu0 0.0
    %10142 = vmatprep.subr.mxu0 0.0
    %10143 = vmatpush1.msra.mxu0 0.0
    %10144 = vmatprep.subr.mxu0 0.0
    %10145 = vmatpush1.msra.mxu0 0.0
    %10146 = vmatprep.subr.mxu0 0.0
    %10147 = vmatpush1.msra.mxu0 0.0
    %10148 = vmatprep.subr.mxu0 0.0
    %10149 = vmatpush1.msra.mxu0 0.0
    %10150 = vmatprep.subr.mxu0 0.0
    %10151 = vmatpush1.msra.mxu0 0.0
    %10152 = vmatprep.subr.mxu0 0.0
    %10153 = vmatpush1.msra.mxu0 0.0
    %10154 = vmatprep.subr.mxu0 0.0
    %10155 = vmatpush1.msra.mxu0 0.0
    %10156 = vmatprep.subr.mxu0 0.0
    %10157 = vmatpush1.msra.mxu0 0.0
    %10158 = vmatprep.subr.mxu0 0.0
    %10159 = vmatpush1.msra.mxu0 0.0
    %10160 = vmatprep.subr.mxu0 0.0
    %10161 = vmatpush1.msra.mxu0 0.0
    %10162 = vmatprep.subr.mxu0 0.0
    %10163 = vmatpush1.msra.mxu0 0.0
    %10164 = vmatprep.subr.mxu0 0.0
    %10165 = vmatpush1.msra.mxu0 %v10129
    %10166 = vmatprep.subr.mxu0 0.0
    %10167 = vmatpush2.msra.mxu0 0.0
    %10168 = vmatprep.subr.mxu0 0.0
    %10169 = vmatpush2.msra.mxu0 0.0
    %10170 = vmatprep.subr.mxu0 0.0
    %10171 = vmatpush2.msra.mxu0 0.0
    %10172 = vmatprep.subr.mxu0 0.0
    %10173 = vmatpush2.msra.mxu0 0.0
    %10174 = vmatprep.subr.mxu0 0.0
    %10175 = vmatpush2.msra.mxu0 0.0
    %10176 = vmatprep.subr.mxu0 0.0
    %10177 = vmatpush2.msra.mxu0 0.0
    %10178 = vmatprep.subr.mxu0 0.0
    %10179 = vmatpush2.msra.mxu0 0.0
    %10180 = vmatprep.subr.mxu0 0.0
    %10181 = vmatpush2.msra.mxu0 0.0
    %10182 = vmatprep.subr.mxu0 0.0
    %10183 = vmatpush2.msra.mxu0 0.0
    %10184 = vmatprep.subr.mxu0 0.0
    %10185 = vmatpush2.msra.mxu0 0.0
    %10186 = vmatprep.subr.mxu0 0.0
    %10187 = vmatpush2.msra.mxu0 0.0
    %10188 = vmatprep.subr.mxu0 0.0
    %10189 = vmatpush2.msra.mxu0 0.0
    %10190 = vmatprep.subr.mxu0 0.0
    %10191 = vmatpush2.msra.mxu0 0.0
    %10192 = vmatprep.subr.mxu0 0.0
    %10193 = vmatpush2.msra.mxu0 0.0
    %10194 = vmatprep.subr.mxu0 0.0
    %10195 = vmatpush2.msra.mxu0 0.0
    %10196 = vmatprep.subr.mxu0 0.0
    %10197 = vmatpush2.msra.mxu0 0.0
    %10198 = vmatprep.mubr.f32.mxu0 0.0
    %10199 = vmatmul.mubr.f32.gmra.mxu0 %v10132
    %v10200 = vpop.f32.mrf.mxu0
    %v10201 = vadd.f32 0.0, %v10200
    %v10202 = vpop.f32.mrf.mxu0
    %10203 = vdwg.mxu0
    %v10204 = vsel %vm135, %v9669, 0.0
    %v10205 = vsel %vm135, %v9821, 0.0
    %v10206 = vadd.f32 %v10204, %v10205
    %v10207 = vsel %vm135, %v9973, 0.0
    %v10208 = vadd.f32 %v10206, %v10207
    %v10209 = vsel %vm135, %v10125, 0.0
    %v10210 = vadd.f32 %v10208, %v10209
    %v10211 = vsel %vm135, %v9745, 0.0
    %v10212 = vsel %vm135, %v9897, 0.0
    %v10213 = vadd.f32 %v10211, %v10212
    %v10214 = vsel %vm135, %v10049, 0.0
    %v10215 = vadd.f32 %v10213, %v10214
    %v10216 = vsel %vm135, %v10201, 0.0
    %v10217 = vadd.f32 %v10215, %v10216
    %v10218 = vadd.f32 %v10210, %v8791
    %v10219 = vadd.f32 %v10217, %v8792
    %v10220 = vld [vmem:[%s9 + $0x1b] sm:$0x1]
    %v10221 = vld [vmem:[%s9 + $0x1c] sm:$0x1]
    %v10222 = vsel %vm135, %v10218, 0.0
    %10223 = vadd.xlane.f32.xlu0 %v10222
    %v10224 = vpop.xlane.xlu0 %10223
    %v10225 = vsel %vm135, %v10219, 0.0
    %10226 = vadd.xlane.f32.xlu0 %v10225
    %v10227 = vpop.xlane.xlu0 %10226
    %v10228 = vmul.f32 %v10224, %v142
    %v10229 = vmul.f32 %v10227, %v142
    %v10230 = vsub.f32 %v10218, %v10228
    %v10231 = vsub.f32 %v10219, %v10229
    %v10232 = vmul.f32 %v10230, %v10230
    %v10233 = vmul.f32 %v10231, %v10231
    %v10234 = vsel %vm135, %v10232, 0.0
    %10235 = vadd.xlane.f32.xlu0 %v10234
    %v10236 = vpop.xlane.xlu0 %10235
    %v10237 = vsel %vm135, %v10233, 0.0
    %10238 = vadd.xlane.f32.xlu0 %v10237
    %v10239 = vpop.xlane.xlu0 %10238
    %v10240 = vmul.f32 %v10236, %v142
    %v10241 = vmul.f32 %v10239, %v142
    %v10242 = vadd.f32 %v10240, 1e-12
    %v10243 = vadd.f32 %v10241, 1e-12
    %v10244 = vrsqrt.pop %v10242
    %v10245 = vrsqrt.pop %v10243
    %v10246 = vmul.f32 %v10230, %v10244
    %v10247 = vmul.f32 %v10231, %v10245
    %v10248 = vlaneseq
    %v10249 = vshrl.u32 %v10248, 7
    %v10250 = vsub.s32 0, %v10249
    %v10251 = vrot.slane %v10220, %v10250
    %v10252 = vmul.f32 %v10246, %v10251
    %v10253 = vmul.f32 %v10247, %v10251
    %v10254 = vlaneseq
    %v10255 = vshrl.u32 %v10254, 7
    %v10256 = vsub.s32 0, %v10255
    %v10257 = vrot.slane %v10221, %v10256
    %v10258 = vadd.f32 %v10252, %v10257
    %v10259 = vadd.f32 %v10253, %v10257
    %v10260 = vpack.c.bf16 %v10259, %v10258
    %s10261 = scalar_lea.vmem %s5, 80
    %v10262 = vld [vmem:[%s10261] sm:$0xf]
    %v10263 = vld [vmem:[%s10261 + $0x4] sm:$0xf]
    %v10264 = vld [vmem:[%s10261 + $0x8] sm:$0xf]
    %v10265 = vld [vmem:[%s10261 + $0xc] sm:$0xf]
    %v10266 = vld [vmem:[%s8 + $0x5] sm:$0x1]
    %v10267 = vlaneseq
    %v10268 = vshrl.u32 %v10267, 7
    %v10269 = vsub.s32 0, %v10268
    %v10270 = vrot.slane %v10266, %v10269
    %v10275 = vunpack.c.l.b16 %v10262
    %v10276 = vunpack.c.l.b16 %v10263
    %v10277 = vunpack.c.l.b16 %v10264
    %v10278 = vunpack.c.l.b16 %v10265
    %v10279 = vpack.c.b16 %v10276, %v10275
    %v10280 = vpack.c.b16 %v10278, %v10277
    %v10284 = vsel %vm135, %v10260, 0
    %10286 = vmatprep.subr.bf16.mxu0 0
    %10287 = vmatpush1.bf16.msra.mxu0 0
    %10288 = vmatprep.subr.bf16.mxu0 0
    %10289 = vmatpush1.bf16.msra.mxu0 0
    %10290 = vmatprep.subr.bf16.mxu0 0
    %10291 = vmatpush1.bf16.msra.mxu0 0
    %10292 = vmatprep.subr.bf16.mxu0 0
    %10293 = vmatpush1.bf16.msra.mxu0 0
    %10294 = vmatprep.subr.bf16.mxu0 0
    %10295 = vmatpush1.bf16.msra.mxu0 0
    %10296 = vmatprep.subr.bf16.mxu0 0
    %10297 = vmatpush1.bf16.msra.mxu0 0
    %10298 = vmatprep.subr.bf16.mxu0 0
    %10299 = vmatpush1.bf16.msra.mxu0 %v10280
    %10300 = vmatprep.subr.bf16.mxu0 0
    %10301 = vmatpush1.bf16.msra.mxu0 %v10279
    %10302 = vmatprep.subr.bf16.mxu0 0
    %10303 = vmatpush2.bf16.msra.mxu0 0
    %10304 = vmatprep.subr.bf16.mxu0 0
    %10305 = vmatpush2.bf16.msra.mxu0 0
    %10306 = vmatprep.subr.bf16.mxu0 0
    %10307 = vmatpush2.bf16.msra.mxu0 0
    %10308 = vmatprep.subr.bf16.mxu0 0
    %10309 = vmatpush2.bf16.msra.mxu0 0
    %10310 = vmatprep.subr.bf16.mxu0 0
    %10311 = vmatpush2.bf16.msra.mxu0 0
    %10312 = vmatprep.subr.bf16.mxu0 0
    %10313 = vmatpush2.bf16.msra.mxu0 0
    %10314 = vmatprep.subr.bf16.mxu0 0
    %10315 = vmatpush2.bf16.msra.mxu0 0
    %10316 = vmatprep.subr.bf16.mxu0 0
    %10317 = vmatpush2.bf16.msra.mxu0 0
    %10318 = vmatprep.mubr.bf16.mxu0 0
    %10319 = vmatmul.mubr.bf16.gmra.mxu0 %v10284
    %v10320 = vpop.f32.mrf.mxu0
    %v10321 = vadd.f32 %v10270, %v10320
    %v10322 = vpop.f32.mrf.mxu0
    %v10323 = vpop.f32.mrf.mxu0
    %v10324 = vadd.f32 %v10270, %v10323
    %v10325 = vpop.f32.mrf.mxu0
    %10326 = vdwg.mxu0
    %v10327 = vmul.f32 %v10321, 0.5
    %v10328 = vmul.f32 %v10324, 0.5
    %v10329 = vmul.f32 %v10321, 0.044715
    %v10330 = vmul.f32 %v10324, 0.044715
    %v10331 = vmul.f32 %v10329, %v10321
    %v10332 = vmul.f32 %v10330, %v10324
    %v10333 = vmul.f32 %v10331, %v10321
    %v10334 = vmul.f32 %v10332, %v10324
    %v10335 = vadd.f32 %v10321, %v10333
    %v10336 = vadd.f32 %v10324, %v10334
    %v10337 = vmul.f32 %v10335, 0.7978846
    %v10338 = vmul.f32 %v10336, 0.7978846
    %v10339 = vtanh.pop %v10337
    %v10340 = vtanh.pop %v10338
    %v10341 = vadd.f32 %v10339, 1.0
    %v10342 = vadd.f32 %v10340, 1.0
    %v10343 = vmul.f32 %v10327, %v10341
    %v10344 = vmul.f32 %v10328, %v10342
    %v10345 = vpack.c.bf16 %v10344, %v10343
    %s10346 = scalar_lea.vmem %s6, 320
    %v10347 = vld [vmem:[%s10346] sm:$0xf]
    %v10348 = vld [vmem:[%s10346 + $0x4] sm:$0xf]
    %v10349 = vld [vmem:[%s10346 + $0x8] sm:$0xf]
    %v10350 = vld [vmem:[%s10346 + $0xc] sm:$0xf]
    %v10351 = vld [vmem:[%s10346 + $0x10] sm:$0xf]
    %v10352 = vld [vmem:[%s10346 + $0x14] sm:$0xf]
    %v10353 = vld [vmem:[%s10346 + $0x18] sm:$0xf]
    %v10354 = vld [vmem:[%s10346 + $0x1c] sm:$0xf]
    %v10355 = vld [vmem:[%s10346 + $0x20] sm:$0xf]
    %v10356 = vld [vmem:[%s10346 + $0x24] sm:$0xf]
    %v10357 = vld [vmem:[%s10346 + $0x28] sm:$0xf]
    %v10358 = vld [vmem:[%s10346 + $0x2c] sm:$0xf]
    %v10359 = vld [vmem:[%s10346 + $0x30] sm:$0xf]
    %v10360 = vld [vmem:[%s10346 + $0x34] sm:$0xf]
    %v10361 = vld [vmem:[%s10346 + $0x38] sm:$0xf]
    %v10362 = vld [vmem:[%s10346 + $0x3c] sm:$0xf]
    %v10363 = vld [vmem:[%s9 + $0x1d] sm:$0x1]
    %v10364 = vlaneseq
    %v10365 = vshrl.u32 %v10364, 7
    %v10366 = vsub.s32 0, %v10365
    %v10367 = vrot.slane %v10363, %v10366
    %v10384 = vunpack.c.l.b16 %v10347
    %v10385 = vunpack.c.l.b16 %v10348
    %v10386 = vunpack.c.l.b16 %v10349
    %v10387 = vunpack.c.l.b16 %v10350
    %v10388 = vunpack.c.l.b16 %v10351
    %v10389 = vunpack.c.l.b16 %v10352
    %v10390 = vunpack.c.l.b16 %v10353
    %v10391 = vunpack.c.l.b16 %v10354
    %v10392 = vunpack.c.l.b16 %v10355
    %v10393 = vunpack.c.l.b16 %v10356
    %v10394 = vunpack.c.l.b16 %v10357
    %v10395 = vunpack.c.l.b16 %v10358
    %v10396 = vunpack.c.l.b16 %v10359
    %v10397 = vunpack.c.l.b16 %v10360
    %v10398 = vunpack.c.l.b16 %v10361
    %v10399 = vunpack.c.l.b16 %v10362
    %v10400 = vpack.c.b16 %v10385, %v10384
    %v10401 = vpack.c.b16 %v10387, %v10386
    %v10402 = vpack.c.b16 %v10389, %v10388
    %v10403 = vpack.c.b16 %v10391, %v10390
    %v10404 = vpack.c.b16 %v10393, %v10392
    %v10405 = vpack.c.b16 %v10395, %v10394
    %v10406 = vpack.c.b16 %v10397, %v10396
    %v10407 = vpack.c.b16 %v10399, %v10398
    %10416 = vmatprep.subr.bf16.mxu0 0
    %10417 = vmatpush1.bf16.msra.mxu0 %v10407
    %10418 = vmatprep.subr.bf16.mxu0 0
    %10419 = vmatpush1.bf16.msra.mxu0 %v10406
    %10420 = vmatprep.subr.bf16.mxu0 0
    %10421 = vmatpush1.bf16.msra.mxu0 %v10405
    %10422 = vmatprep.subr.bf16.mxu0 0
    %10423 = vmatpush1.bf16.msra.mxu0 %v10404
    %10424 = vmatprep.subr.bf16.mxu0 0
    %10425 = vmatpush1.bf16.msra.mxu0 %v10403
    %10426 = vmatprep.subr.bf16.mxu0 0
    %10427 = vmatpush1.bf16.msra.mxu0 %v10402
    %10428 = vmatprep.subr.bf16.mxu0 0
    %10429 = vmatpush1.bf16.msra.mxu0 %v10401
    %10430 = vmatprep.subr.bf16.mxu0 0
    %10431 = vmatpush1.bf16.msra.mxu0 %v10400
    %10432 = vmatprep.subr.bf16.mxu0 0
    %10433 = vmatpush2.bf16.msra.mxu0 0
    %10434 = vmatprep.subr.bf16.mxu0 0
    %10435 = vmatpush2.bf16.msra.mxu0 0
    %10436 = vmatprep.subr.bf16.mxu0 0
    %10437 = vmatpush2.bf16.msra.mxu0 0
    %10438 = vmatprep.subr.bf16.mxu0 0
    %10439 = vmatpush2.bf16.msra.mxu0 0
    %10440 = vmatprep.subr.bf16.mxu0 0
    %10441 = vmatpush2.bf16.msra.mxu0 0
    %10442 = vmatprep.subr.bf16.mxu0 0
    %10443 = vmatpush2.bf16.msra.mxu0 0
    %10444 = vmatprep.subr.bf16.mxu0 0
    %10445 = vmatpush2.bf16.msra.mxu0 0
    %10446 = vmatprep.subr.bf16.mxu0 0
    %10447 = vmatpush2.bf16.msra.mxu0 0
    %10448 = vmatprep.mubr.bf16.mxu0 0
    %10449 = vmatmul.mubr.bf16.gmra.mxu0 %v10345
    %v10450 = vpop.f32.mrf.mxu0
    %v10451 = vadd.f32 %v10367, %v10450
    %v10452 = vpop.f32.mrf.mxu0
    %v10453 = vpop.f32.mrf.mxu0
    %v10454 = vadd.f32 %v10367, %v10453
    %v10455 = vpop.f32.mrf.mxu0
    %10456 = vdwg.mxu0
    %v10457 = vadd.f32 %v10451, %v10258
    %v10458 = vadd.f32 %v10454, %v10259
    %v10459 = vld [vmem:[%s9 + $0x1e] sm:$0x1]
    %v10460 = vld [vmem:[%s9 + $0x1f] sm:$0x1]
    %v10461 = vsel %vm135, %v10457, 0.0
    %10462 = vadd.xlane.f32.xlu0 %v10461
    %v10463 = vpop.xlane.xlu0 %10462
    %v10464 = vsel %vm135, %v10458, 0.0
    %10465 = vadd.xlane.f32.xlu0 %v10464
    %v10466 = vpop.xlane.xlu0 %10465
    %v10467 = vmul.f32 %v10463, %v142
    %v10468 = vmul.f32 %v10466, %v142
    %v10469 = vsub.f32 %v10457, %v10467
    %v10470 = vsub.f32 %v10458, %v10468
    %v10471 = vmul.f32 %v10469, %v10469
    %v10472 = vmul.f32 %v10470, %v10470
    %v10473 = vsel %vm135, %v10471, 0.0
    %10474 = vadd.xlane.f32.xlu0 %v10473
    %v10475 = vpop.xlane.xlu0 %10474
    %v10476 = vsel %vm135, %v10472, 0.0
    %10477 = vadd.xlane.f32.xlu0 %v10476
    %v10478 = vpop.xlane.xlu0 %10477
    %v10479 = vmul.f32 %v10475, %v142
    %v10480 = vmul.f32 %v10478, %v142
    %v10481 = vadd.f32 %v10479, 1e-12
    %v10482 = vadd.f32 %v10480, 1e-12
    %v10483 = vrsqrt.pop %v10481
    %v10484 = vrsqrt.pop %v10482
    %v10485 = vmul.f32 %v10469, %v10483
    %v10486 = vmul.f32 %v10470, %v10484
    %v10487 = vlaneseq
    %v10488 = vshrl.u32 %v10487, 7
    %v10489 = vsub.s32 0, %v10488
    %v10490 = vrot.slane %v10459, %v10489
    %v10491 = vmul.f32 %v10485, %v10490
    %v10492 = vmul.f32 %v10486, %v10490
    %v10493 = vlaneseq
    %v10494 = vshrl.u32 %v10493, 7
    %v10495 = vsub.s32 0, %v10494
    %v10496 = vrot.slane %v10460, %v10495
    %v10497 = vadd.f32 %v10491, %v10496
    %v10498 = vadd.f32 %v10492, %v10496
    %10499 = vst.msk [vmem:[#allocation2] sm:$0xff] %vm135, %v10497
    %10500 = vst.msk [vmem:[#allocation2 + $0x8] sm:$0xff] %vm135, %v10498
    // Predicated region
    $region42: #{front_bert_forward.1} parent=1 // pred_check
      _
    $region43: #{front_bert_forward.1} parent=1 // pred_check_branch
      %10502 = sbr.rel (0) target = $region45
    $region44: #{front_bert_forward.1} parent=1 // pred_region
      %s10504 = ssub.s32 256, 256
      %10505 = vsyncadd [#allocation3], %s10504
      %s10506 = sshll.u32 [#allocation2], 4
      %s10507 = int_to_ptr.vmem [resolvable:$true] %s10506
      %10512 = dma.vmem_to_hbm [thread:$0]  %s10507, 256, %s10, [#allocation3], 128, 128, 8
    $region45: #{front_bert_forward.1} parent=1 // pred_fallthru
      _
    // Predicated region
    $region46: #{front_bert_forward.1} parent=1 // pred_check
      _
    $region47: #{front_bert_forward.1} parent=1 // pred_check_branch
      %10514 = sbr.rel (0) target = $region49
    $region48: #{front_bert_forward.1} parent=1 // pred_region
      %10515 = dma.done [#allocation3], 256
    $region49: #{front_bert_forward.1} parent=1 // pred_fallthru
      _
    %10516 = vsyncpa [#allocation3], 1

</llo_original>
